<compile_context>
chip_gen: v6e
topology: v6e:2x2x1
jax: 0.10.0
libtpu: 0.0.40
codegen_flags: <defaults>
</compile_context>

<pallas_src>
import jax
import jax.numpy as jnp
import numpy as np
from jax import lax
from jax.experimental import pallas as pl
from jax.experimental.pallas import tpu as pltpu


# ----------------------------- Generation-aware budgets -----------------------------

def _tpu_vmem_capacity():
    try:
        return int(pltpu.get_tpu_info().vmem_capacity_bytes)
    except Exception:
        return 64 * 1024 * 1024  # conservative default (v7x-sized)


_VMEM_CAP = _tpu_vmem_capacity()
# Scoped VMEM cap: ~60% of physical, leaving headroom for compiler-internal scratch.
_VMEM_LIMIT = int(min(_VMEM_CAP * 0.6, 96 * 1024 * 1024))
# Per-array streaming budget for tile-row selection (12-13 MiB on 128 MiB parts,
# ~6 MiB on 64 MiB parts).
_TILE_BUDGET = int(max(4 * 1024 * 1024, _VMEM_CAP // 10))


def _choose_rows(total, multiple, row_bytes):
    """Largest multiple-of-`multiple` divisor of `total` whose double-buffered tile fits
    the streaming byte budget.  Falls back to `total` (full-extent block) if no divisor."""
    max_rows = max(multiple, _TILE_BUDGET // max(2 * row_bytes, 1))
    best = None
    d = multiple
    while d <= min(total, max_rows):
        if total % d == 0:
            best = d
        d += multiple
    if best is None:
        # TODO(synk): if production Mp is not a multiple of `multiple`, pad Mp upstream
        # instead of falling back to one whole-extent block.
        return total
    return best


# ----------------------------- Pallas kernels -----------------------------

def _stage1_kernel(x_ref, w0_ref, w1_ref, w2_ref,
                   sc0_ref, sc1_ref, sc2_ref, sh0_ref, sh1_ref, sh2_ref,
                   y0_ref, y1_ref, y2_ref, sum0_ref):
    # x_ref: (1, tm, Cin) f32.  Three 1x1 convs + BN + ReLU fused in one pass over x.
    # y0/y1/y2: (1, tm, Ck) bf16 branch outputs (no lane padding between branches).
    # sum0_ref: (1, 1, C0) f32 resident accumulator across the spatial grid axis
    #           (b0 SE channel sums).
    @pl.when(pl.program_id(1) == 0)
    def _():
        sum0_ref[...] = jnp.zeros_like(sum0_ref)

    x = x_ref[0]

    def pw(w_ref, sc_ref, sh_ref):
        y = jnp.dot(x, w_ref[...], preferred_element_type=jnp.float32)
        return jnp.maximum(y * sc_ref[...] + sh_ref[...], 0.0)

    y0 = pw(w0_ref, sc0_ref, sh0_ref)
    sum0_ref[...] += jnp.sum(y0, axis=0, keepdims=True)[None]
    y0_ref[...] = y0.astype(y0_ref.dtype)[None]
    y1_ref[...] = pw(w1_ref, sc1_ref, sh1_ref).astype(y1_ref.dtype)[None]
    y2_ref[...] = pw(w2_ref, sc2_ref, sh2_ref).astype(y2_ref.dtype)[None]


def _sigmoid(z):
    return 1.0 / (1.0 + jnp.exp(-z))


def _fused_gate(y, w_ref, m):
    # y: (m, c) f32 relu_out; returns (1, c) sigmoid SE gate (pool_shape == full extent).
    c = y.shape[-1]
    mean = jnp.sum(y, axis=0, keepdims=True) * (1.0 / m)          # (1, c)
    g = jnp.dot(jnp.broadcast_to(mean, (8, c)), w_ref[...],       # M=8 keeps MXU happy
                preferred_element_type=jnp.float32)
    return _sigmoid(g[0:1, :])


def _b1b2_tail_kernel(x_ref, w2_ref, sc2_ref, sh2_ref, w3_ref, b3_ref, w4_ref,
                      o_ref, xp_ref, hp_ref):
    # Fused per-sample tail of branches b1/b2:
    #   (1,3,3)conv+BN+ReLU -> (3,1,1)conv+bias+ReLU -> SE gate -> gate*relu_out.
    # x_ref : (1, T, H, W, c1) bf16 stage-1 branch output.
    # w2_ref: (9*c1, c2) f32 ((dy,dx,cin) rows); w3_ref: (3*c2, c2) f32 ((dt,cin) rows).
    # o_ref : (1, T, H, W, c2) bf16 gated output.
    # xp_ref: VMEM (T, H+2, W+2, c1) f32 zero-'same' pad in H,W.
    # hp_ref: VMEM (T+2, H, W, c2) f32 zero-'same' pad in T (h never leaves VMEM).
    _, T, H, W, c2 = o_ref.shape
    c1 = x_ref.shape[-1]
    m = T * H * W

    # Zero only the pad halo (O(perimeter) stores; the interior is fully overwritten each
    # step).  Done every step so the kernel stays correct when the grid axis is sharded
    # across TensorCores ("parallel").
    zrow = jnp.zeros((T, 1, W + 2, c1), xp_ref.dtype)
    xp_ref[:, 0:1, :, :] = zrow
    xp_ref[:, H + 1:H + 2, :, :] = zrow
    zcol = jnp.zeros((T, H, 1, c1), xp_ref.dtype)
    xp_ref[:, 1:H + 1, 0:1, :] = zcol
    xp_ref[:, 1:H + 1, W + 1:W + 2, :] = zcol
    zfrm = jnp.zeros((1, H, W, c2), hp_ref.dtype)
    hp_ref[0:1] = zfrm
    hp_ref[T + 1:T + 2] = zfrm

    # (1,3,3) conv over all T frames as one wide-K matmul (K = 9*c1, M = T*H*W).
    # TODO(synk): if the im2col lane-concat shows up as the binding XLU slot, switch to
    # the matmul-then-shift-add formulation.
    xp_ref[:, 1:H + 1, 1:W + 1, :] = x_ref[0].astype(xp_ref.dtype)
    xp = xp_ref[...]
    cols = [xp[:, dy:dy + H, dx:dx + W, :].reshape(m, c1)
            for dy in range(3) for dx in range(3)]
    patch = jnp.concatenate(cols, axis=-1)                        # (m, 9*c1)
    h = jnp.dot(patch, w2_ref[...], preferred_element_type=jnp.float32)
    h = jnp.maximum(h * sc2_ref[...] + sh2_ref[...], 0.0)

    # (3,1,1) conv consumes h straight from VMEM (no HBM round trip for h).
    hp_ref[1:T + 1] = h.reshape(T, H, W, c2)
    hp = hp_ref[...]
    cols2 = [hp[dt:dt + T].reshape(m, c2) for dt in range(3)]
    patch2 = jnp.concatenate(cols2, axis=-1)                      # (m, 3*c2)
    y = jnp.dot(patch2, w3_ref[...], preferred_element_type=jnp.float32)
    y = jnp.maximum(y + b3_ref[...], 0.0)

    gate = _fused_gate(y, w4_ref, m)                              # (1, c2)
    o_ref[...] = (y * gate).reshape(1, T, H, W, c2).astype(o_ref.dtype)


def _b3_kernel(x_ref, w_ref, sc_ref, sh_ref, wg_ref, o_ref, xp_ref):
    # Fused MaxPool3dSame(3,3,3, zero pad) -> 1x1 conv -> BN -> ReLU -> SE gate -> gated
    # output, one sample per grid step.
    # x_ref: (1, T, H, W, Cin) f32 raw input; xp_ref: VMEM (T+2, H+2, W+2, Cin) f32.
    _, T, H, W, c_out = o_ref.shape
    c_in = x_ref.shape[-1]
    m = T * H * W

    # Zero only the halo faces (interior overwritten below); every step -> megacore-safe.
    zt = jnp.zeros((1, H + 2, W + 2, c_in), xp_ref.dtype)
    xp_ref[0:1] = zt
    xp_ref[T + 1:T + 2] = zt
    zh = jnp.zeros((T, 1, W + 2, c_in), xp_ref.dtype)
    xp_ref[1:T + 1, 0:1] = zh
    xp_ref[1:T + 1, H + 1:H + 2] = zh
    zw = jnp.zeros((T, H, 1, c_in), xp_ref.dtype)
    xp_ref[1:T + 1, 1:H + 1, 0:1] = zw
    xp_ref[1:T + 1, 1:H + 1, W + 1:W + 2] = zw

    xp_ref[1:T + 1, 1:H + 1, 1:W + 1, :] = x_ref[0]
    xp = xp_ref[...]
    # Separable zero-padded 3x3x3 max: 6 VPU max ops per element instead of 26.
    mw = jnp.maximum(jnp.maximum(xp[:, :, 0:W, :], xp[:, :, 1:W + 1, :]),
                     xp[:, :, 2:W + 2, :])
    mh = jnp.maximum(jnp.maximum(mw[:, 0:H], mw[:, 1:H + 1]), mw[:, 2:H + 2])
    mt = jnp.maximum(jnp.maximum(mh[0:T], mh[1:T + 1]), mh[2:T + 2])

    y = jnp.dot(mt.reshape(m, c_in), w_ref[...], preferred_element_type=jnp.float32)
    y = jnp.maximum(y * sc_ref[...] + sh_ref[...], 0.0)
    gate = _fused_gate(y, wg_ref, m)
    o_ref[...] = (y * gate).reshape(1, T, H, W, c_out).astype(o_ref.dtype)


def _writer_kernel(y0_ref, g0_ref, r1_ref, r2_ref, r3_ref, o_ref):
    # Gated concat: b0's gate is applied here (its SE sum only finishes on the last
    # stage-1 grid step); b1/b2/b3 arrive already gated.  One full-block store.
    # TODO(synk): emit lane-dense channels-major (Ctot, tm) tiles (in-kernel XLU
    # transposes) and drop the trailing NDHWC->NCDHW transpose in the wrapper.
    parts = [
        y0_ref[0].astype(jnp.float32) * g0_ref[0],
        r1_ref[0].astype(jnp.float32),
        r2_ref[0].astype(jnp.float32),
        r3_ref[0].astype(jnp.float32),
    ]
    o_ref[...] = jnp.concatenate(parts, axis=-1)[None]


# ----------------------------- pallas_call wrappers -----------------------------

def stage1_pointwise(x_flat, p0, p1, p2):
    # x_flat: (N, Mp, Cin) f32 -> three bf16 branch outputs + b0 SE channel sums.
    N, Mp, Cin = x_flat.shape
    c0 = p0["w1"].shape[1]
    c1 = p1["w1"].shape[1]
    c2 = p2["w1"].shape[1]
    row_bytes = 4 * Cin + 6 * (c0 + c1 + c2)
    tm = _choose_rows(Mp, 16, row_bytes)
    full = lambda n, s: (0, 0)
    return pl.pallas_call(
        _stage1_kernel,
        out_shape=(jax.ShapeDtypeStruct((N, Mp, c0), jnp.bfloat16),
                   jax.ShapeDtypeStruct((N, Mp, c1), jnp.bfloat16),
                   jax.ShapeDtypeStruct((N, Mp, c2), jnp.bfloat16),
                   jax.ShapeDtypeStruct((N, 1, c0), jnp.float32)),
        grid=(N, Mp // tm),
        in_specs=[
            pl.BlockSpec((1, tm, Cin), lambda n, s: (n, s, 0)),
            pl.BlockSpec((Cin, c0), full),
            pl.BlockSpec((Cin, c1), full),
            pl.BlockSpec((Cin, c2), full),
            pl.BlockSpec((1, c0), full),
            pl.BlockSpec((1, c1), full),
            pl.BlockSpec((1, c2), full),
            pl.BlockSpec((1, c0), full),
            pl.BlockSpec((1, c1), full),
            pl.BlockSpec((1, c2), full),
        ],
        out_specs=(pl.BlockSpec((1, tm, c0), lambda n, s: (n, s, 0)),
                   pl.BlockSpec((1, tm, c1), lambda n, s: (n, s, 0)),
                   pl.BlockSpec((1, tm, c2), lambda n, s: (n, s, 0)),
                   pl.BlockSpec((1, 1, c0), lambda n, s: (n, 0, 0))),
        compiler_params=pltpu.CompilerParams(
            dimension_semantics=("parallel", "arbitrary"),
            vmem_limit_bytes=_VMEM_LIMIT),
    )(x_flat, p0["w1"], p1["w1"], p2["w1"],
      p0["bn1_scale"], p1["bn1_scale"], p2["bn1_scale"],
      p0["bn1_shift"], p1["bn1_shift"], p2["bn1_shift"])


def b1b2_tail(h1, bp):
    # h1: (N, T, H, W, c1) bf16 stage-1 branch output -> (N, T, H, W, c2) bf16 gated out.
    N, T, H, W, c1 = h1.shape
    c2 = bp["w3r"].shape[-1]
    full = lambda n: (0, 0)
    return pl.pallas_call(
        _b1b2_tail_kernel,
        out_shape=jax.ShapeDtypeStruct((N, T, H, W, c2), jnp.bfloat16),
        grid=(N,),
        in_specs=[
            pl.BlockSpec((1, T, H, W, c1), lambda n: (n, 0, 0, 0, 0)),
            pl.BlockSpec((9 * c1, c2), full),
            pl.BlockSpec((1, c2), full),
            pl.BlockSpec((1, c2), full),
            pl.BlockSpec((3 * c2, c2), full),
            pl.BlockSpec((1, c2), full),
            pl.BlockSpec((c2, c2), full),
        ],
        out_specs=pl.BlockSpec((1, T, H, W, c2), lambda n: (n, 0, 0, 0, 0)),
        scratch_shapes=[pltpu.VMEM((T, H + 2, W + 2, c1), jnp.float32),
                        pltpu.VMEM((T + 2, H, W, c2), jnp.float32)],
        compiler_params=pltpu.CompilerParams(
            dimension_semantics=("parallel",), vmem_limit_bytes=_VMEM_LIMIT),
    )(h1, bp["w2r"], bp["bn2_scale"], bp["bn2_shift"], bp["w3r"], bp["b3"], bp["w4"])


def b3_branch(x_cl, bp):
    # x_cl: (N, T, H, W, Cin) f32 raw input -> (N, T, H, W, C3) bf16 gated output.
    N, T, H, W, c_in = x_cl.shape
    c_out = bp["w1"].shape[-1]
    full = lambda n: (0, 0)
    return pl.pallas_call(
        _b3_kernel,
        out_shape=jax.ShapeDtypeStruct((N, T, H, W, c_out), jnp.bfloat16),
        grid=(N,),
        in_specs=[
            pl.BlockSpec((1, T, H, W, c_in), lambda n: (n, 0, 0, 0, 0)),
            pl.BlockSpec((c_in, c_out), full),
            pl.BlockSpec((1, c_out), full),
            pl.BlockSpec((1, c_out), full),
            pl.BlockSpec((c_out, c_out), full),
        ],
        out_specs=pl.BlockSpec((1, T, H, W, c_out), lambda n: (n, 0, 0, 0, 0)),
        scratch_shapes=[pltpu.VMEM((T + 2, H + 2, W + 2, c_in), jnp.float32)],
        compiler_params=pltpu.CompilerParams(
            dimension_semantics=("parallel",), vmem_limit_bytes=_VMEM_LIMIT),
    )(x_cl, bp["w1"], bp["bn1_scale"], bp["bn1_shift"], bp["w2"])


def gated_concat(y0, g0, r1, r2, r3):
    # y0: (N, Mp, C0) bf16 ungated b0 relu_out; g0: (N, 1, C0) f32 gate;
    # r1/r2/r3: (N, Mp, Ck) bf16 already-gated branch outputs.
    N, Mp, c0 = y0.shape
    c1, c2, c3 = r1.shape[-1], r2.shape[-1], r3.shape[-1]
    ct = c0 + c1 + c2 + c3
    row_bytes = 2 * ct + 8 * ct
    tm = _choose_rows(Mp, 16, row_bytes)
    return pl.pallas_call(
        _writer_kernel,
        out_shape=jax.ShapeDtypeStruct((N, Mp, ct), jnp.float32),
        grid=(N, Mp // tm),
        in_specs=[
            pl.BlockSpec((1, tm, c0), lambda n, s: (n, s, 0)),
            pl.BlockSpec((1, 1, c0), lambda n, s: (n, 0, 0)),
            pl.BlockSpec((1, tm, c1), lambda n, s: (n, s, 0)),
            pl.BlockSpec((1, tm, c2), lambda n, s: (n, s, 0)),
            pl.BlockSpec((1, tm, c3), lambda n, s: (n, s, 0)),
        ],
        out_specs=pl.BlockSpec((1, tm, ct), lambda n, s: (n, s, 0)),
        compiler_params=pltpu.CompilerParams(
            dimension_semantics=("parallel", "parallel"),
            vmem_limit_bytes=_VMEM_LIMIT),
    )(y0, g0, r1, r2, r3)


# ----------------------------- Parameter prep & forward -----------------------------

def prepare_params(params):
    """One-time weight reshapes (hoisted out of the jitted forward)."""
    p0, p1, p2, p3 = params["b0"], params["b1"], params["b2"], params["b3"]

    def tail(p):
        c1, c2 = p["w2"].shape[2], p["w2"].shape[3]
        return dict(
            w1=p["w1"], bn1_scale=p["bn1_scale"], bn1_shift=p["bn1_shift"],
            w2r=p["w2"].reshape(9 * c1, c2),   # (dy, dx, cin) rows match in-kernel im2col
            bn2_scale=p["bn2_scale"], bn2_shift=p["bn2_shift"],
            w3r=p["w3"].reshape(3 * c2, c2),   # (dt, cin) rows match in-kernel im2col
            b3=p["b3"], w4=p["w4"])

    return dict(
        b0=dict(w1=p0["w1"], bn1_scale=p0["bn1_scale"], bn1_shift=p0["bn1_shift"],
                w2=p0["w2"]),
        b1=tail(p1), b2=tail(p2),
        b3=dict(w1=p3["w1"], bn1_scale=p3["bn1_scale"], bn1_shift=p3["bn1_shift"],
                w2=p3["w2"]),
    )


def inception_mixed(x_ncdhw, prep):
    N, Cin, T, H, W = x_ncdhw.shape
    Mp = T * H * W
    p0, p1, p2, p3 = prep["b0"], prep["b1"], prep["b2"], prep["b3"]
    c0 = p0["w1"].shape[1]

    # NCDHW -> NDHWC once (the raw input is the smallest tensor in the pipeline).
    x_cl = jnp.transpose(x_ncdhw, (0, 2, 3, 4, 1))
    x_flat = x_cl.reshape(N, Mp, Cin)

    # ---- Stage 1: three 1x1 convs fused into one pass, un-padded bf16 branch outputs.
    y0, y1a, y2a, s0 = stage1_pointwise(x_flat, p0, p1, p2)

    # ---- b1/b2: fully fused tails (h never leaves VMEM, SE gate fused in-kernel).
    r1 = b1b2_tail(y1a.reshape(N, T, H, W, -1), p1)
    r2 = b1b2_tail(y2a.reshape(N, T, H, W, -1), p2)

    # ---- b3: fused maxpool + 1x1 conv + BN + ReLU + SE gate.
    r3 = b3_branch(x_cl, p3)

    # ---- b0 gate from the stage-1 side sums (applied in the writer).
    g0 = jax.nn.sigmoid((s0[:, 0, :] * (1.0 / Mp)) @ p0["w2"]).reshape(N, 1, c0)

    # ---- Gated concat writer: one kernel writes every branch into its channel slice.
    out = gated_concat(y0, g0, r1.reshape(N, Mp, -1), r2.reshape(N, Mp, -1),
                       r3.reshape(N, Mp, -1))
    ct = out.shape[-1]
    # TODO(synk): fold this NCDHW transpose into a lane-dense channels-major writer.
    return jnp.transpose(out.reshape(N, T, H, W, ct), (0, 4, 1, 2, 3))


# ----------------------------- Parameters -----------------------------

def init_params(key, cin, b0c, b1c1, b1c2, b2c1, b2c2, b3c):
    keys = iter(jax.random.split(key, 64))

    def nrm(shape, scale=0.2):
        return (scale * jax.random.normal(next(keys), shape)).astype(jnp.float32)

    def bn_affine(c):
        gamma = 1.0 + 0.1 * jax.random.normal(next(keys), (c,))
        beta = 0.1 * jax.random.normal(next(keys), (c,))
        running_mean = 0.1 * jax.random.normal(next(keys), (c,))
        running_var = 1.0 + 0.2 * jax.random.uniform(next(keys), (c,))
        scale = gamma / jnp.sqrt(running_var + 1e-5)
        shift = beta - running_mean * scale
        return (scale.reshape(1, c).astype(jnp.float32),
                shift.reshape(1, c).astype(jnp.float32))

    def b0b3(cout):
        s1, h1 = bn_affine(cout)
        return dict(w1=nrm((cin, cout)), bn1_scale=s1, bn1_shift=h1, w2=nrm((cout, cout)))

    def b1b2(c1, c2):
        s1, h1 = bn_affine(c1)
        s2, h2 = bn_affine(c2)
        return dict(
            w1=nrm((cin, c1)), bn1_scale=s1, bn1_shift=h1,
            w2=nrm((3, 3, c1, c2)), bn2_scale=s2, bn2_shift=h2,
            w3=nrm((3, c2, c2)), b3=nrm((1, c2)),
            w4=nrm((c2, c2)),
        )

    return dict(b0=b0b3(b0c), b1=b1b2(b1c1, b1c2), b2=b1b2(b2c1, b2c2), b3=b0b3(b3c))


# ----------------------------- Pure-JAX reference -----------------------------

def _ref_conv3d_same(x, w, bias=None):
    out = lax.conv_general_dilated(
        x, w, window_strides=(1, 1, 1), padding="SAME",
        dimension_numbers=("NDHWC", "DHWIO", "NDHWC"))
    if bias is not None:
        out = out + bias.reshape(1, 1, 1, 1, -1)
    return out


def _ref_bn(x, scale, shift):
    return x * scale.reshape(1, 1, 1, 1, -1) + shift.reshape(1, 1, 1, 1, -1)


def _ref_se(relu_out, w):
    m = jnp.mean(relu_out, axis=(1, 2, 3))
    g = jax.nn.sigmoid(m @ w)
    return relu_out * g[:, None, None, None, :]


def _ref_branch_b0b3(x, p, include_maxpool):
    if include_maxpool:
        xp = jnp.pad(x, ((0, 0), (1, 1), (1, 1), (1, 1), (0, 0)))
        x = lax.reduce_window(xp, -jnp.inf, lax.max,
                              (1, 3, 3, 3, 1), (1, 1, 1, 1, 1), "VALID")
    h = jnp.einsum("nthwc,cd->nthwd", x, p["w1"])
    relu_out = jnp.maximum(_ref_bn(h, p["bn1_scale"], p["bn1_shift"]), 0.0)
    return _ref_se(relu_out, p["w2"])


def _ref_branch_b1b2(x, p):
    h = jnp.einsum("nthwc,cd->nthwd", x, p["w1"])
    h = jnp.maximum(_ref_bn(h, p["bn1_scale"], p["bn1_shift"]), 0.0)
    h = _ref_conv3d_same(h, p["w2"][None])                         # (1,3,3,Cin,Cout)
    h = jnp.maximum(_ref_bn(h, p["bn2_scale"], p["bn2_shift"]), 0.0)
    h = _ref_conv3d_same(h, p["w3"][:, None, None], bias=p["b3"])  # (3,1,1,Cin,Cout)
    relu_out = jnp.maximum(h, 0.0)
    return _ref_se(relu_out, p["w4"])


def inception_mixed_ref(x_ncdhw, params):
    x = jnp.transpose(x_ncdhw, (0, 2, 3, 4, 1))
    outs = [
        _ref_branch_b0b3(x, params["b0"], False),
        _ref_branch_b1b2(x, params["b1"]),
        _ref_branch_b1b2(x, params["b2"]),
        _ref_branch_b0b3(x, params["b3"], True),
    ]
    return jnp.transpose(jnp.concatenate(outs, axis=-1), (0, 4, 1, 2, 3))


# ----------------------------- Main -----------------------------

if __name__ == "__main__":
    key = jax.random.PRNGKey(0)
    k_x, k_p = jax.random.split(key)

    N, Cin, T, H, W = 2, 4, 4, 8, 8
    # pool_shape for every branch is the full spatial extent (T, H, W), matching UVQ usage.
    x = jax.random.normal(k_x, (N, Cin, T, H, W), jnp.float32)
    params = init_params(k_p, Cin, b0c=8, b1c1=8, b1c2=8, b2c1=8, b2c2=8, b3c=8)
    prep = prepare_params(params)   # one-time weight packing, hoisted out of the forward

    fwd = jax.jit(inception_mixed)
    out = jax.block_until_ready(fwd(x, prep))
    ref = jax.block_until_ready(inception_mixed_ref(x, params))

    assert out.shape == (N, 8 + 8 + 8 + 8, T, H, W), out.shape
    # bf16 HBM intermediates -> compare against the f32 reference with a matching tolerance.
    np.testing.assert_allclose(np.asarray(out), np.asarray(ref), rtol=2e-2, atol=2e-2)
    print("KERNEL_OK")
</pallas_src>

<mosaic_0001>
module attributes {stable_mosaic.version = 11 : i64} {
  func.func @_stage1_kernel(%arg0: i32, %arg1: i32, %arg2: memref<1x256x4xf32, #tpu.memory_space<vmem>>, %arg3: memref<4x8xf32, #tpu.memory_space<vmem>>, %arg4: memref<4x8xf32, #tpu.memory_space<vmem>>, %arg5: memref<4x8xf32, #tpu.memory_space<vmem>>, %arg6: memref<1x8xf32, #tpu.memory_space<vmem>>, %arg7: memref<1x8xf32, #tpu.memory_space<vmem>>, %arg8: memref<1x8xf32, #tpu.memory_space<vmem>>, %arg9: memref<1x8xf32, #tpu.memory_space<vmem>>, %arg10: memref<1x8xf32, #tpu.memory_space<vmem>>, %arg11: memref<1x8xf32, #tpu.memory_space<vmem>>, %arg12: memref<1x256x8xbf16, #tpu.memory_space<vmem>>, %arg13: memref<1x256x8xbf16, #tpu.memory_space<vmem>>, %arg14: memref<1x256x8xbf16, #tpu.memory_space<vmem>>, %arg15: memref<1x1x8xf32, #tpu.memory_space<vmem>>) attributes {dimension_semantics = [#tpu.dimension_semantics<parallel>, #tpu.dimension_semantics<arbitrary>], iteration_bounds = array<i64: 2, 1>, scalar_prefetch = 0 : i64, scratch_operands = 0 : i64, tpu.core_type = #tpu.core_type<tc>, window_params = [{transform_indices = @transform_0, window_bounds = array<i64: 1, 256, 4>}, {pipeline_mode = #tpu.pipeline_mode<synchronous>, transform_indices = @transform_1, window_bounds = array<i64: 4, 8>}, {pipeline_mode = #tpu.pipeline_mode<synchronous>, transform_indices = @transform_2, window_bounds = array<i64: 4, 8>}, {pipeline_mode = #tpu.pipeline_mode<synchronous>, transform_indices = @transform_3, window_bounds = array<i64: 4, 8>}, {pipeline_mode = #tpu.pipeline_mode<synchronous>, transform_indices = @transform_4, window_bounds = array<i64: 1, 8>}, {pipeline_mode = #tpu.pipeline_mode<synchronous>, transform_indices = @transform_5, window_bounds = array<i64: 1, 8>}, {pipeline_mode = #tpu.pipeline_mode<synchronous>, transform_indices = @transform_6, window_bounds = array<i64: 1, 8>}, {pipeline_mode = #tpu.pipeline_mode<synchronous>, transform_indices = @transform_7, window_bounds = array<i64: 1, 8>}, {pipeline_mode = #tpu.pipeline_mode<synchronous>, transform_indices = @transform_8, window_bounds = array<i64: 1, 8>}, {pipeline_mode = #tpu.pipeline_mode<synchronous>, transform_indices = @transform_9, window_bounds = array<i64: 1, 8>}, {transform_indices = @transform_10, window_bounds = array<i64: 1, 256, 8>}, {transform_indices = @transform_11, window_bounds = array<i64: 1, 256, 8>}, {transform_indices = @transform_12, window_bounds = array<i64: 1, 256, 8>}, {transform_indices = @transform_13, window_bounds = array<i64: 1, 1, 8>}]} {
    %c0_i32 = arith.constant 0 : i32
    %0 = arith.cmpi eq, %arg1, %c0_i32 : i32
    %1 = arith.extui %0 : i1 to i32
    %c0_i32_0 = arith.constant 0 : i32
    %2 = arith.cmpi ne, %1, %c0_i32_0 : i32
    scf.if %2 {
      %cst_42 = arith.constant 0.000000e+00 : f32
      %50 = vector.broadcast %cst_42 : f32 to vector<1x1x8xf32>
      %c0_43 = arith.constant 0 : index
      %c0_44 = arith.constant 0 : index
      %c0_45 = arith.constant 0 : index
      %51 = vector.load %arg15[%c0_43, %c0_44, %c0_45] : memref<1x1x8xf32, #tpu.memory_space<vmem>>, vector<1x1x8xf32>
      tpu.vector_store %arg15[%c0_43, %c0_44, %c0_45], %50 {strides = array<i32>} : memref<1x1x8xf32, #tpu.memory_space<vmem>>, vector<1x1x8xf32>,
    } else {
    }
    %c0 = arith.constant 0 : index
    %c0_1 = arith.constant 0 : index
    %c0_2 = arith.constant 0 : index
    %3 = vector.load %arg2[%c0, %c0_1, %c0_2] : memref<1x256x4xf32, #tpu.memory_space<vmem>>, vector<1x256x4xf32>
    %4 = vector.shape_cast %3 : vector<1x256x4xf32> to vector<256x4xf32>
    %c0_3 = arith.constant 0 : index
    %c0_4 = arith.constant 0 : index
    %5 = vector.load %arg3[%c0_3, %c0_4] : memref<4x8xf32, #tpu.memory_space<vmem>>, vector<4x8xf32>
    %cst = arith.constant dense<0.000000e+00> : vector<256x8xf32>
    %6 = tpu.matmul %4, %5, %cst {dimension_numbers = #tpu.dot_dimension_numbers<[1], [0], [0], [1], [0, 0, 1, 1], [], []>} : vector<256x4xf32>, vector<4x8xf32>, vector<256x8xf32> -> vector<256x8xf32>
    %c0_5 = arith.constant 0 : index
    %c0_6 = arith.constant 0 : index
    %7 = vector.load %arg6[%c0_5, %c0_6] : memref<1x8xf32, #tpu.memory_space<vmem>>, vector<1x8xf32>
    %8 = vector.broadcast %7 : vector<1x8xf32> to vector<256x8xf32>
    %9 = arith.mulf %6, %8 : vector<256x8xf32>
    %c0_7 = arith.constant 0 : index
    %c0_8 = arith.constant 0 : index
    %10 = vector.load %arg9[%c0_7, %c0_8] : memref<1x8xf32, #tpu.memory_space<vmem>>, vector<1x8xf32>
    %11 = vector.broadcast %10 : vector<1x8xf32> to vector<256x8xf32>
    %12 = arith.addf %9, %11 : vector<256x8xf32>
    %cst_9 = arith.constant 0.000000e+00 : f32
    %13 = vector.broadcast %cst_9 : f32 to vector<256x8xf32>
    %14 = arith.maximumf %12, %13 : vector<256x8xf32>
    %c0_10 = arith.constant 0 : index
    %c0_11 = arith.constant 0 : index
    %c0_12 = arith.constant 0 : index
    %15 = vector.load %arg15[%c0_10, %c0_11, %c0_12] : memref<1x1x8xf32, #tpu.memory_space<vmem>>, vector<1x1x8xf32>
    %cst_13 = arith.constant dense<0.000000e+00> : vector<8xf32>
    %16 = vector.multi_reduction <add>, %14, %cst_13 [0] : vector<256x8xf32> to vector<8xf32>
    %17 = vector.shape_cast %16 : vector<8xf32> to vector<1x8xf32>
    %18 = vector.shape_cast %17 : vector<1x8xf32> to vector<1x1x8xf32>
    %19 = arith.addf %15, %18 : vector<1x1x8xf32>
    %c0_14 = arith.constant 0 : index
    %c0_15 = arith.constant 0 : index
    %c0_16 = arith.constant 0 : index
    %20 = vector.load %arg15[%c0_14, %c0_15, %c0_16] : memref<1x1x8xf32, #tpu.memory_space<vmem>>, vector<1x1x8xf32>
    tpu.vector_store %arg15[%c0_14, %c0_15, %c0_16], %19 {strides = array<i32>} : memref<1x1x8xf32, #tpu.memory_space<vmem>>, vector<1x1x8xf32>,
    %21 = arith.truncf %14 : vector<256x8xf32> to vector<256x8xbf16>
    %22 = vector.shape_cast %21 : vector<256x8xbf16> to vector<1x256x8xbf16>
    %c0_17 = arith.constant 0 : index
    %c0_18 = arith.constant 0 : index
    %c0_19 = arith.constant 0 : index
    %23 = vector.load %arg12[%c0_17, %c0_18, %c0_19] : memref<1x256x8xbf16, #tpu.memory_space<vmem>>, vector<1x256x8xbf16>
    tpu.vector_store %arg12[%c0_17, %c0_18, %c0_19], %22 {strides = array<i32>} : memref<1x256x8xbf16, #tpu.memory_space<vmem>>, vector<1x256x8xbf16>,
    %c0_20 = arith.constant 0 : index
    %c0_21 = arith.constant 0 : index
    %24 = vector.load %arg4[%c0_20, %c0_21] : memref<4x8xf32, #tpu.memory_space<vmem>>, vector<4x8xf32>
    %cst_22 = arith.constant dense<0.000000e+00> : vector<256x8xf32>
    %25 = tpu.matmul %4, %24, %cst_22 {dimension_numbers = #tpu.dot_dimension_numbers<[1], [0], [0], [1], [0, 0, 1, 1], [], []>} : vector<256x4xf32>, vector<4x8xf32>, vector<256x8xf32> -> vector<256x8xf32>
    %c0_23 = arith.constant 0 : index
    %c0_24 = arith.constant 0 : index
    %26 = vector.load %arg7[%c0_23, %c0_24] : memref<1x8xf32, #tpu.memory_space<vmem>>, vector<1x8xf32>
    %27 = vector.broadcast %26 : vector<1x8xf32> to vector<256x8xf32>
    %28 = arith.mulf %25, %27 : vector<256x8xf32>
    %c0_25 = arith.constant 0 : index
    %c0_26 = arith.constant 0 : index
    %29 = vector.load %arg10[%c0_25, %c0_26] : memref<1x8xf32, #tpu.memory_space<vmem>>, vector<1x8xf32>
    %30 = vector.broadcast %29 : vector<1x8xf32> to vector<256x8xf32>
    %31 = arith.addf %28, %30 : vector<256x8xf32>
    %cst_27 = arith.constant 0.000000e+00 : f32
    %32 = vector.broadcast %cst_27 : f32 to vector<256x8xf32>
    %33 = arith.maximumf %31, %32 : vector<256x8xf32>
    %34 = arith.truncf %33 : vector<256x8xf32> to vector<256x8xbf16>
    %35 = vector.shape_cast %34 : vector<256x8xbf16> to vector<1x256x8xbf16>
    %c0_28 = arith.constant 0 : index
    %c0_29 = arith.constant 0 : index
    %c0_30 = arith.constant 0 : index
    %36 = vector.load %arg13[%c0_28, %c0_29, %c0_30] : memref<1x256x8xbf16, #tpu.memory_space<vmem>>, vector<1x256x8xbf16>
    tpu.vector_store %arg13[%c0_28, %c0_29, %c0_30], %35 {strides = array<i32>} : memref<1x256x8xbf16, #tpu.memory_space<vmem>>, vector<1x256x8xbf16>,
    %c0_31 = arith.constant 0 : index
    %c0_32 = arith.constant 0 : index
    %37 = vector.load %arg5[%c0_31, %c0_32] : memref<4x8xf32, #tpu.memory_space<vmem>>, vector<4x8xf32>
    %cst_33 = arith.constant dense<0.000000e+00> : vector<256x8xf32>
    %38 = tpu.matmul %4, %37, %cst_33 {dimension_numbers = #tpu.dot_dimension_numbers<[1], [0], [0], [1], [0, 0, 1, 1], [], []>} : vector<256x4xf32>, vector<4x8xf32>, vector<256x8xf32> -> vector<256x8xf32>
    %c0_34 = arith.constant 0 : index
    %c0_35 = arith.constant 0 : index
    %39 = vector.load %arg8[%c0_34, %c0_35] : memref<1x8xf32, #tpu.memory_space<vmem>>, vector<1x8xf32>
    %40 = vector.broadcast %39 : vector<1x8xf32> to vector<256x8xf32>
    %41 = arith.mulf %38, %40 : vector<256x8xf32>
    %c0_36 = arith.constant 0 : index
    %c0_37 = arith.constant 0 : index
    %42 = vector.load %arg11[%c0_36, %c0_37] : memref<1x8xf32, #tpu.memory_space<vmem>>, vector<1x8xf32>
    %43 = vector.broadcast %42 : vector<1x8xf32> to vector<256x8xf32>
    %44 = arith.addf %41, %43 : vector<256x8xf32>
    %cst_38 = arith.constant 0.000000e+00 : f32
    %45 = vector.broadcast %cst_38 : f32 to vector<256x8xf32>
    %46 = arith.maximumf %44, %45 : vector<256x8xf32>
    %47 = arith.truncf %46 : vector<256x8xf32> to vector<256x8xbf16>
    %48 = vector.shape_cast %47 : vector<256x8xbf16> to vector<1x256x8xbf16>
    %c0_39 = arith.constant 0 : index
    %c0_40 = arith.constant 0 : index
    %c0_41 = arith.constant 0 : index
    %49 = vector.load %arg14[%c0_39, %c0_40, %c0_41] : memref<1x256x8xbf16, #tpu.memory_space<vmem>>, vector<1x256x8xbf16>
    tpu.vector_store %arg14[%c0_39, %c0_40, %c0_41], %48 {strides = array<i32>} : memref<1x256x8xbf16, #tpu.memory_space<vmem>>, vector<1x256x8xbf16>,
    return
  }
  func.func @transform_0(%arg0: i32, %arg1: i32) -> (i32, i32, i32) {
    %c0_i32 = arith.constant 0 : i32
    %c0_i32_0 = arith.constant 0 : i32
    return %arg0, %arg1, %c0_i32 : i32, i32, i32
  }
  func.func @transform_1(%arg0: i32, %arg1: i32) -> (i32, i32) {
    %c0_i32 = arith.constant 0 : i32
    %c0_i32_0 = arith.constant 0 : i32
    %c0_i32_1 = arith.constant 0 : i32
    return %c0_i32, %c0_i32_0 : i32, i32
  }
  func.func @transform_2(%arg0: i32, %arg1: i32) -> (i32, i32) {
    %c0_i32 = arith.constant 0 : i32
    %c0_i32_0 = arith.constant 0 : i32
    %c0_i32_1 = arith.constant 0 : i32
    return %c0_i32, %c0_i32_0 : i32, i32
  }
  func.func @transform_3(%arg0: i32, %arg1: i32) -> (i32, i32) {
    %c0_i32 = arith.constant 0 : i32
    %c0_i32_0 = arith.constant 0 : i32
    %c0_i32_1 = arith.constant 0 : i32
    return %c0_i32, %c0_i32_0 : i32, i32
  }
  func.func @transform_4(%arg0: i32, %arg1: i32) -> (i32, i32) {
    %c0_i32 = arith.constant 0 : i32
    %c0_i32_0 = arith.constant 0 : i32
    %c0_i32_1 = arith.constant 0 : i32
    return %c0_i32, %c0_i32_0 : i32, i32
  }
  func.func @transform_5(%arg0: i32, %arg1: i32) -> (i32, i32) {
    %c0_i32 = arith.constant 0 : i32
    %c0_i32_0 = arith.constant 0 : i32
    %c0_i32_1 = arith.constant 0 : i32
    return %c0_i32, %c0_i32_0 : i32, i32
  }
  func.func @transform_6(%arg0: i32, %arg1: i32) -> (i32, i32) {
    %c0_i32 = arith.constant 0 : i32
    %c0_i32_0 = arith.constant 0 : i32
    %c0_i32_1 = arith.constant 0 : i32
    return %c0_i32, %c0_i32_0 : i32, i32
  }
  func.func @transform_7(%arg0: i32, %arg1: i32) -> (i32, i32) {
    %c0_i32 = arith.constant 0 : i32
    %c0_i32_0 = arith.constant 0 : i32
    %c0_i32_1 = arith.constant 0 : i32
    return %c0_i32, %c0_i32_0 : i32, i32
  }
  func.func @transform_8(%arg0: i32, %arg1: i32) -> (i32, i32) {
    %c0_i32 = arith.constant 0 : i32
    %c0_i32_0 = arith.constant 0 : i32
    %c0_i32_1 = arith.constant 0 : i32
    return %c0_i32, %c0_i32_0 : i32, i32
  }
  func.func @transform_9(%arg0: i32, %arg1: i32) -> (i32, i32) {
    %c0_i32 = arith.constant 0 : i32
    %c0_i32_0 = arith.constant 0 : i32
    %c0_i32_1 = arith.constant 0 : i32
    return %c0_i32, %c0_i32_0 : i32, i32
  }
  func.func @transform_10(%arg0: i32, %arg1: i32) -> (i32, i32, i32) {
    %c0_i32 = arith.constant 0 : i32
    %c0_i32_0 = arith.constant 0 : i32
    return %arg0, %arg1, %c0_i32 : i32, i32, i32
  }
  func.func @transform_11(%arg0: i32, %arg1: i32) -> (i32, i32, i32) {
    %c0_i32 = arith.constant 0 : i32
    %c0_i32_0 = arith.constant 0 : i32
    return %arg0, %arg1, %c0_i32 : i32, i32, i32
  }
  func.func @transform_12(%arg0: i32, %arg1: i32) -> (i32, i32, i32) {
    %c0_i32 = arith.constant 0 : i32
    %c0_i32_0 = arith.constant 0 : i32
    return %arg0, %arg1, %c0_i32 : i32, i32, i32
  }
  func.func @transform_13(%arg0: i32, %arg1: i32) -> (i32, i32, i32) {
    %c0_i32 = arith.constant 0 : i32
    %c0_i32_0 = arith.constant 0 : i32
    %c0_i32_1 = arith.constant 0 : i32
    return %arg0, %c0_i32, %c0_i32_0 : i32, i32, i32
  }
}

module attributes {stable_mosaic.version = 11 : i64} {
  func.func @_b1b2_tail_kernel(%arg0: i32, %arg1: memref<1x4x8x8x8xbf16, #tpu.memory_space<vmem>>, %arg2: memref<72x8xf32, #tpu.memory_space<vmem>>, %arg3: memref<1x8xf32, #tpu.memory_space<vmem>>, %arg4: memref<1x8xf32, #tpu.memory_space<vmem>>, %arg5: memref<24x8xf32, #tpu.memory_space<vmem>>, %arg6: memref<1x8xf32, #tpu.memory_space<vmem>>, %arg7: memref<8x8xf32, #tpu.memory_space<vmem>>, %arg8: memref<1x4x8x8x8xbf16, #tpu.memory_space<vmem>>, %arg9: memref<4x10x10x8xf32, #tpu.memory_space<vmem>>, %arg10: memref<6x8x8x8xf32, #tpu.memory_space<vmem>>) attributes {dimension_semantics = [#tpu.dimension_semantics<parallel>], iteration_bounds = array<i64: 2>, scalar_prefetch = 0 : i64, scratch_operands = 2 : i64, tpu.core_type = #tpu.core_type<tc>, window_params = [{transform_indices = @transform_0, window_bounds = array<i64: 1, 4, 8, 8, 8>}, {pipeline_mode = #tpu.pipeline_mode<synchronous>, transform_indices = @transform_1, window_bounds = array<i64: 72, 8>}, {pipeline_mode = #tpu.pipeline_mode<synchronous>, transform_indices = @transform_2, window_bounds = array<i64: 1, 8>}, {pipeline_mode = #tpu.pipeline_mode<synchronous>, transform_indices = @transform_3, window_bounds = array<i64: 1, 8>}, {pipeline_mode = #tpu.pipeline_mode<synchronous>, transform_indices = @transform_4, window_bounds = array<i64: 24, 8>}, {pipeline_mode = #tpu.pipeline_mode<synchronous>, transform_indices = @transform_5, window_bounds = array<i64: 1, 8>}, {pipeline_mode = #tpu.pipeline_mode<synchronous>, transform_indices = @transform_6, window_bounds = array<i64: 8, 8>}, {transform_indices = @transform_7, window_bounds = array<i64: 1, 4, 8, 8, 8>}]} {
    %cst = arith.constant 0.000000e+00 : f32
    %0 = vector.broadcast %cst : f32 to vector<4x1x10x8xf32>
    %c0 = arith.constant 0 : index
    %c0_0 = arith.constant 0 : index
    %c0_1 = arith.constant 0 : index
    %c0_2 = arith.constant 0 : index
    %1 = vector.load %arg9[%c0, %c0_0, %c0_1, %c0_2] : memref<4x10x10x8xf32, #tpu.memory_space<vmem>>, vector<4x1x10x8xf32>
    tpu.vector_store %arg9[%c0, %c0_0, %c0_1, %c0_2], %0 {strides = array<i32>} : memref<4x10x10x8xf32, #tpu.memory_space<vmem>>, vector<4x1x10x8xf32>,
    %c0_3 = arith.constant 0 : index
    %c9 = arith.constant 9 : index
    %c0_4 = arith.constant 0 : index
    %c0_5 = arith.constant 0 : index
    %2 = vector.load %arg9[%c0_3, %c9, %c0_4, %c0_5] : memref<4x10x10x8xf32, #tpu.memory_space<vmem>>, vector<4x1x10x8xf32>
    tpu.vector_store %arg9[%c0_3, %c9, %c0_4, %c0_5], %0 {strides = array<i32>} : memref<4x10x10x8xf32, #tpu.memory_space<vmem>>, vector<4x1x10x8xf32>,
    %cst_6 = arith.constant 0.000000e+00 : f32
    %3 = vector.broadcast %cst_6 : f32 to vector<4x8x1x8xf32>
    %c0_7 = arith.constant 0 : index
    %c1 = arith.constant 1 : index
    %c0_8 = arith.constant 0 : index
    %c0_9 = arith.constant 0 : index
    %4 = vector.load %arg9[%c0_7, %c1, %c0_8, %c0_9] : memref<4x10x10x8xf32, #tpu.memory_space<vmem>>, vector<4x8x1x8xf32>
    tpu.vector_store %arg9[%c0_7, %c1, %c0_8, %c0_9], %3 {strides = array<i32>} : memref<4x10x10x8xf32, #tpu.memory_space<vmem>>, vector<4x8x1x8xf32>,
    %c0_10 = arith.constant 0 : index
    %c1_11 = arith.constant 1 : index
    %c9_12 = arith.constant 9 : index
    %c0_13 = arith.constant 0 : index
    %5 = vector.load %arg9[%c0_10, %c1_11, %c9_12, %c0_13] : memref<4x10x10x8xf32, #tpu.memory_space<vmem>>, vector<4x8x1x8xf32>
    tpu.vector_store %arg9[%c0_10, %c1_11, %c9_12, %c0_13], %3 {strides = array<i32>} : memref<4x10x10x8xf32, #tpu.memory_space<vmem>>, vector<4x8x1x8xf32>,
    %cst_14 = arith.constant 0.000000e+00 : f32
    %6 = vector.broadcast %cst_14 : f32 to vector<1x8x8x8xf32>
    %c0_15 = arith.constant 0 : index
    %c0_16 = arith.constant 0 : index
    %c0_17 = arith.constant 0 : index
    %c0_18 = arith.constant 0 : index
    %7 = vector.load %arg10[%c0_15, %c0_16, %c0_17, %c0_18] : memref<6x8x8x8xf32, #tpu.memory_space<vmem>>, vector<1x8x8x8xf32>
    tpu.vector_store %arg10[%c0_15, %c0_16, %c0_17, %c0_18], %6 {strides = array<i32>} : memref<6x8x8x8xf32, #tpu.memory_space<vmem>>, vector<1x8x8x8xf32>,
    %c5 = arith.constant 5 : index
    %c0_19 = arith.constant 0 : index
    %c0_20 = arith.constant 0 : index
    %c0_21 = arith.constant 0 : index
    %8 = vector.load %arg10[%c5, %c0_19, %c0_20, %c0_21] : memref<6x8x8x8xf32, #tpu.memory_space<vmem>>, vector<1x8x8x8xf32>
    tpu.vector_store %arg10[%c5, %c0_19, %c0_20, %c0_21], %6 {strides = array<i32>} : memref<6x8x8x8xf32, #tpu.memory_space<vmem>>, vector<1x8x8x8xf32>,
    %c0_22 = arith.constant 0 : index
    %c0_23 = arith.constant 0 : index
    %c0_24 = arith.constant 0 : index
    %c0_25 = arith.constant 0 : index
    %c0_26 = arith.constant 0 : index
    %9 = vector.load %arg1[%c0_22, %c0_23, %c0_24, %c0_25, %c0_26] : memref<1x4x8x8x8xbf16, #tpu.memory_space<vmem>>, vector<1x4x8x8x8xbf16>
    %10 = vector.shape_cast %9 : vector<1x4x8x8x8xbf16> to vector<4x8x8x8xbf16>
    %11 = arith.extf %10 : vector<4x8x8x8xbf16> to vector<4x8x8x8xf32>
    %c0_27 = arith.constant 0 : index
    %c1_28 = arith.constant 1 : index
    %c1_29 = arith.constant 1 : index
    %c0_30 = arith.constant 0 : index
    %12 = vector.load %arg9[%c0_27, %c1_28, %c1_29, %c0_30] : memref<4x10x10x8xf32, #tpu.memory_space<vmem>>, vector<4x8x8x8xf32>
    tpu.vector_store %arg9[%c0_27, %c1_28, %c1_29, %c0_30], %11 {strides = array<i32>} : memref<4x10x10x8xf32, #tpu.memory_space<vmem>>, vector<4x8x8x8xf32>,
    %c0_31 = arith.constant 0 : index
    %c0_32 = arith.constant 0 : index
    %c0_33 = arith.constant 0 : index
    %c0_34 = arith.constant 0 : index
    %13 = vector.load %arg9[%c0_31, %c0_32, %c0_33, %c0_34] : memref<4x10x10x8xf32, #tpu.memory_space<vmem>>, vector<4x10x10x8xf32>
    %14 = vector.extract_strided_slice %13 {offsets = [0, 0, 0, 0], sizes = [4, 8, 8, 8], strides = [1, 1, 1, 1]} : vector<4x10x10x8xf32> to vector<4x8x8x8xf32>
    %15 = vector.shape_cast %14 : vector<4x8x8x8xf32> to vector<256x8xf32>
    %16 = vector.extract_strided_slice %13 {offsets = [0, 0, 1, 0], sizes = [4, 8, 8, 8], strides = [1, 1, 1, 1]} : vector<4x10x10x8xf32> to vector<4x8x8x8xf32>
    %17 = vector.shape_cast %16 : vector<4x8x8x8xf32> to vector<256x8xf32>
    %18 = vector.extract_strided_slice %13 {offsets = [0, 0, 2, 0], sizes = [4, 8, 8, 8], strides = [1, 1, 1, 1]} : vector<4x10x10x8xf32> to vector<4x8x8x8xf32>
    %19 = vector.shape_cast %18 : vector<4x8x8x8xf32> to vector<256x8xf32>
    %20 = vector.extract_strided_slice %13 {offsets = [0, 1, 0, 0], sizes = [4, 8, 8, 8], strides = [1, 1, 1, 1]} : vector<4x10x10x8xf32> to vector<4x8x8x8xf32>
    %21 = vector.shape_cast %20 : vector<4x8x8x8xf32> to vector<256x8xf32>
    %22 = vector.extract_strided_slice %13 {offsets = [0, 1, 1, 0], sizes = [4, 8, 8, 8], strides = [1, 1, 1, 1]} : vector<4x10x10x8xf32> to vector<4x8x8x8xf32>
    %23 = vector.shape_cast %22 : vector<4x8x8x8xf32> to vector<256x8xf32>
    %24 = vector.extract_strided_slice %13 {offsets = [0, 1, 2, 0], sizes = [4, 8, 8, 8], strides = [1, 1, 1, 1]} : vector<4x10x10x8xf32> to vector<4x8x8x8xf32>
    %25 = vector.shape_cast %24 : vector<4x8x8x8xf32> to vector<256x8xf32>
    %26 = vector.extract_strided_slice %13 {offsets = [0, 2, 0, 0], sizes = [4, 8, 8, 8], strides = [1, 1, 1, 1]} : vector<4x10x10x8xf32> to vector<4x8x8x8xf32>
    %27 = vector.shape_cast %26 : vector<4x8x8x8xf32> to vector<256x8xf32>
    %28 = vector.extract_strided_slice %13 {offsets = [0, 2, 1, 0], sizes = [4, 8, 8, 8], strides = [1, 1, 1, 1]} : vector<4x10x10x8xf32> to vector<4x8x8x8xf32>
    %29 = vector.shape_cast %28 : vector<4x8x8x8xf32> to vector<256x8xf32>
    %30 = vector.extract_strided_slice %13 {offsets = [0, 2, 2, 0], sizes = [4, 8, 8, 8], strides = [1, 1, 1, 1]} : vector<4x10x10x8xf32> to vector<4x8x8x8xf32>
    %31 = vector.shape_cast %30 : vector<4x8x8x8xf32> to vector<256x8xf32>
    %32 = tpu.concatenate %15, %17, %19, %21, %23, %25, %27, %29, %31 in 1 : vector<256x8xf32>, vector<256x8xf32>, vector<256x8xf32>, vector<256x8xf32>, vector<256x8xf32>, vector<256x8xf32>, vector<256x8xf32>, vector<256x8xf32>, vector<256x8xf32> -> vector<256x72xf32>
    %c0_35 = arith.constant 0 : index
    %c0_36 = arith.constant 0 : index
    %33 = vector.load %arg2[%c0_35, %c0_36] : memref<72x8xf32, #tpu.memory_space<vmem>>, vector<72x8xf32>
    %cst_37 = arith.constant dense<0.000000e+00> : vector<256x8xf32>
    %34 = tpu.matmul %32, %33, %cst_37 {dimension_numbers = #tpu.dot_dimension_numbers<[1], [0], [0], [1], [0, 0, 1, 1], [], []>} : vector<256x72xf32>, vector<72x8xf32>, vector<256x8xf32> -> vector<256x8xf32>
    %c0_38 = arith.constant 0 : index
    %c0_39 = arith.constant 0 : index
    %35 = vector.load %arg3[%c0_38, %c0_39] : memref<1x8xf32, #tpu.memory_space<vmem>>, vector<1x8xf32>
    %36 = vector.broadcast %35 : vector<1x8xf32> to vector<256x8xf32>
    %37 = arith.mulf %34, %36 : vector<256x8xf32>
    %c0_40 = arith.constant 0 : index
    %c0_41 = arith.constant 0 : index
    %38 = vector.load %arg4[%c0_40, %c0_41] : memref<1x8xf32, #tpu.memory_space<vmem>>, vector<1x8xf32>
    %39 = vector.broadcast %38 : vector<1x8xf32> to vector<256x8xf32>
    %40 = arith.addf %37, %39 : vector<256x8xf32>
    %cst_42 = arith.constant 0.000000e+00 : f32
    %41 = vector.broadcast %cst_42 : f32 to vector<256x8xf32>
    %42 = arith.maximumf %40, %41 : vector<256x8xf32>
    %43 = vector.shape_cast %42 : vector<256x8xf32> to vector<4x8x8x8xf32>
    %c1_43 = arith.constant 1 : index
    %c0_44 = arith.constant 0 : index
    %c0_45 = arith.constant 0 : index
    %c0_46 = arith.constant 0 : index
    %44 = vector.load %arg10[%c1_43, %c0_44, %c0_45, %c0_46] : memref<6x8x8x8xf32, #tpu.memory_space<vmem>>, vector<4x8x8x8xf32>
    tpu.vector_store %arg10[%c1_43, %c0_44, %c0_45, %c0_46], %43 {strides = array<i32>} : memref<6x8x8x8xf32, #tpu.memory_space<vmem>>, vector<4x8x8x8xf32>,
    %c0_47 = arith.constant 0 : index
    %c0_48 = arith.constant 0 : index
    %c0_49 = arith.constant 0 : index
    %c0_50 = arith.constant 0 : index
    %45 = vector.load %arg10[%c0_47, %c0_48, %c0_49, %c0_50] : memref<6x8x8x8xf32, #tpu.memory_space<vmem>>, vector<6x8x8x8xf32>
    %46 = vector.extract_strided_slice %45 {offsets = [0, 0, 0, 0], sizes = [4, 8, 8, 8], strides = [1, 1, 1, 1]} : vector<6x8x8x8xf32> to vector<4x8x8x8xf32>
    %47 = vector.shape_cast %46 : vector<4x8x8x8xf32> to vector<256x8xf32>
    %48 = vector.extract_strided_slice %45 {offsets = [1, 0, 0, 0], sizes = [4, 8, 8, 8], strides = [1, 1, 1, 1]} : vector<6x8x8x8xf32> to vector<4x8x8x8xf32>
    %49 = vector.shape_cast %48 : vector<4x8x8x8xf32> to vector<256x8xf32>
    %50 = vector.extract_strided_slice %45 {offsets = [2, 0, 0, 0], sizes = [4, 8, 8, 8], strides = [1, 1, 1, 1]} : vector<6x8x8x8xf32> to vector<4x8x8x8xf32>
    %51 = vector.shape_cast %50 : vector<4x8x8x8xf32> to vector<256x8xf32>
    %52 = tpu.concatenate %47, %49, %51 in 1 : vector<256x8xf32>, vector<256x8xf32>, vector<256x8xf32> -> vector<256x24xf32>
    %c0_51 = arith.constant 0 : index
    %c0_52 = arith.constant 0 : index
    %53 = vector.load %arg5[%c0_51, %c0_52] : memref<24x8xf32, #tpu.memory_space<vmem>>, vector<24x8xf32>
    %cst_53 = arith.constant dense<0.000000e+00> : vector<256x8xf32>
    %54 = tpu.matmul %52, %53, %cst_53 {dimension_numbers = #tpu.dot_dimension_numbers<[1], [0], [0], [1], [0, 0, 1, 1], [], []>} : vector<256x24xf32>, vector<24x8xf32>, vector<256x8xf32> -> vector<256x8xf32>
    %c0_54 = arith.constant 0 : index
    %c0_55 = arith.constant 0 : index
    %55 = vector.load %arg6[%c0_54, %c0_55] : memref<1x8xf32, #tpu.memory_space<vmem>>, vector<1x8xf32>
    %56 = vector.broadcast %55 : vector<1x8xf32> to vector<256x8xf32>
    %57 = arith.addf %54, %56 : vector<256x8xf32>
    %cst_56 = arith.constant 0.000000e+00 : f32
    %58 = vector.broadcast %cst_56 : f32 to vector<256x8xf32>
    %59 = arith.maximumf %57, %58 : vector<256x8xf32>
    %cst_57 = arith.constant dense<0.000000e+00> : vector<8xf32>
    %60 = vector.multi_reduction <add>, %59, %cst_57 [0] : vector<256x8xf32> to vector<8xf32>
    %61 = vector.shape_cast %60 : vector<8xf32> to vector<1x8xf32>
    %cst_58 = arith.constant 3.906250e-03 : f32
    %62 = vector.broadcast %cst_58 : f32 to vector<1x8xf32>
    %63 = arith.mulf %61, %62 : vector<1x8xf32>
    %64 = vector.shape_cast %63 : vector<1x8xf32> to vector<1x8xf32>
    %65 = vector.broadcast %64 : vector<1x8xf32> to vector<8x8xf32>
    %c0_59 = arith.constant 0 : index
    %c0_60 = arith.constant 0 : index
    %66 = vector.load %arg7[%c0_59, %c0_60] : memref<8x8xf32, #tpu.memory_space<vmem>>, vector<8x8xf32>
    %cst_61 = arith.constant dense<0.000000e+00> : vector<8x8xf32>
    %67 = tpu.matmul %65, %66, %cst_61 {dimension_numbers = #tpu.dot_dimension_numbers<[1], [0], [0], [1], [0, 0, 1, 1], [], []>} : vector<8x8xf32>, vector<8x8xf32>, vector<8x8xf32> -> vector<8x8xf32>
    %68 = vector.extract_strided_slice %67 {offsets = [0, 0], sizes = [1, 8], strides = [1, 1]} : vector<8x8xf32> to vector<1x8xf32>
    %cst_62 = arith.constant 0.000000e+00 : f32
    %69 = vector.broadcast %cst_62 : f32 to vector<1x8xf32>
    %70 = arith.subf %69, %68 : vector<1x8xf32>
    %71 = math.exp %70 : vector<1x8xf32>
    %cst_63 = arith.constant 1.000000e+00 : f32
    %72 = vector.broadcast %cst_63 : f32 to vector<1x8xf32>
    %73 = arith.addf %72, %71 : vector<1x8xf32>
    %cst_64 = arith.constant 1.000000e+00 : f32
    %74 = vector.broadcast %cst_64 : f32 to vector<1x8xf32>
    %75 = arith.divf %74, %73 : vector<1x8xf32>
    %76 = vector.broadcast %75 : vector<1x8xf32> to vector<256x8xf32>
    %77 = arith.mulf %59, %76 : vector<256x8xf32>
    %78 = vector.shape_cast %77 : vector<256x8xf32> to vector<1x4x8x8x8xf32>
    %79 = arith.truncf %78 : vector<1x4x8x8x8xf32> to vector<1x4x8x8x8xbf16>
    %c0_65 = arith.constant 0 : index
    %c0_66 = arith.constant 0 : index
    %c0_67 = arith.constant 0 : index
    %c0_68 = arith.constant 0 : index
    %c0_69 = arith.constant 0 : index
    %80 = vector.load %arg8[%c0_65, %c0_66, %c0_67, %c0_68, %c0_69] : memref<1x4x8x8x8xbf16, #tpu.memory_space<vmem>>, vector<1x4x8x8x8xbf16>
    tpu.vector_store %arg8[%c0_65, %c0_66, %c0_67, %c0_68, %c0_69], %79 {strides = array<i32>} : memref<1x4x8x8x8xbf16, #tpu.memory_space<vmem>>, vector<1x4x8x8x8xbf16>,
    return
  }
  func.func @transform_0(%arg0: i32) -> (i32, i32, i32, i32, i32) {
    %c0_i32 = arith.constant 0 : i32
    %c0_i32_0 = arith.constant 0 : i32
    %c0_i32_1 = arith.constant 0 : i32
    %c0_i32_2 = arith.constant 0 : i32
    %c0_i32_3 = arith.constant 0 : i32
    return %arg0, %c0_i32, %c0_i32_0, %c0_i32_1, %c0_i32_2 : i32, i32, i32, i32, i32
  }
  func.func @transform_1(%arg0: i32) -> (i32, i32) {
    %c0_i32 = arith.constant 0 : i32
    %c0_i32_0 = arith.constant 0 : i32
    %c0_i32_1 = arith.constant 0 : i32
    return %c0_i32, %c0_i32_0 : i32, i32
  }
  func.func @transform_2(%arg0: i32) -> (i32, i32) {
    %c0_i32 = arith.constant 0 : i32
    %c0_i32_0 = arith.constant 0 : i32
    %c0_i32_1 = arith.constant 0 : i32
    return %c0_i32, %c0_i32_0 : i32, i32
  }
  func.func @transform_3(%arg0: i32) -> (i32, i32) {
    %c0_i32 = arith.constant 0 : i32
    %c0_i32_0 = arith.constant 0 : i32
    %c0_i32_1 = arith.constant 0 : i32
    return %c0_i32, %c0_i32_0 : i32, i32
  }
  func.func @transform_4(%arg0: i32) -> (i32, i32) {
    %c0_i32 = arith.constant 0 : i32
    %c0_i32_0 = arith.constant 0 : i32
    %c0_i32_1 = arith.constant 0 : i32
    return %c0_i32, %c0_i32_0 : i32, i32
  }
  func.func @transform_5(%arg0: i32) -> (i32, i32) {
    %c0_i32 = arith.constant 0 : i32
    %c0_i32_0 = arith.constant 0 : i32
    %c0_i32_1 = arith.constant 0 : i32
    return %c0_i32, %c0_i32_0 : i32, i32
  }
  func.func @transform_6(%arg0: i32) -> (i32, i32) {
    %c0_i32 = arith.constant 0 : i32
    %c0_i32_0 = arith.constant 0 : i32
    %c0_i32_1 = arith.constant 0 : i32
    return %c0_i32, %c0_i32_0 : i32, i32
  }
  func.func @transform_7(%arg0: i32) -> (i32, i32, i32, i32, i32) {
    %c0_i32 = arith.constant 0 : i32
    %c0_i32_0 = arith.constant 0 : i32
    %c0_i32_1 = arith.constant 0 : i32
    %c0_i32_2 = arith.constant 0 : i32
    %c0_i32_3 = arith.constant 0 : i32
    return %arg0, %c0_i32, %c0_i32_0, %c0_i32_1, %c0_i32_2 : i32, i32, i32, i32, i32
  }
}

module attributes {stable_mosaic.version = 11 : i64} {
  func.func @_writer_kernel(%arg0: i32, %arg1: i32, %arg2: memref<1x256x8xbf16, #tpu.memory_space<vmem>>, %arg3: memref<1x1x8xf32, #tpu.memory_space<vmem>>, %arg4: memref<1x256x8xbf16, #tpu.memory_space<vmem>>, %arg5: memref<1x256x8xbf16, #tpu.memory_space<vmem>>, %arg6: memref<1x256x8xbf16, #tpu.memory_space<vmem>>, %arg7: memref<1x256x32xf32, #tpu.memory_space<vmem>>) attributes {dimension_semantics = [#tpu.dimension_semantics<parallel>, #tpu.dimension_semantics<parallel>], iteration_bounds = array<i64: 2, 1>, scalar_prefetch = 0 : i64, scratch_operands = 0 : i64, tpu.core_type = #tpu.core_type<tc>, window_params = [{transform_indices = @transform_0, window_bounds = array<i64: 1, 256, 8>}, {transform_indices = @transform_1, window_bounds = array<i64: 1, 1, 8>}, {transform_indices = @transform_2, window_bounds = array<i64: 1, 256, 8>}, {transform_indices = @transform_3, window_bounds = array<i64: 1, 256, 8>}, {transform_indices = @transform_4, window_bounds = array<i64: 1, 256, 8>}, {transform_indices = @transform_5, window_bounds = array<i64: 1, 256, 32>}]} {
    %c0 = arith.constant 0 : index
    %c0_0 = arith.constant 0 : index
    %c0_1 = arith.constant 0 : index
    %0 = vector.load %arg2[%c0, %c0_0, %c0_1] : memref<1x256x8xbf16, #tpu.memory_space<vmem>>, vector<1x256x8xbf16>
    %1 = vector.shape_cast %0 : vector<1x256x8xbf16> to vector<256x8xbf16>
    %2 = arith.extf %1 : vector<256x8xbf16> to vector<256x8xf32>
    %c0_2 = arith.constant 0 : index
    %c0_3 = arith.constant 0 : index
    %c0_4 = arith.constant 0 : index
    %3 = vector.load %arg3[%c0_2, %c0_3, %c0_4] : memref<1x1x8xf32, #tpu.memory_space<vmem>>, vector<1x1x8xf32>
    %4 = vector.shape_cast %3 : vector<1x1x8xf32> to vector<1x8xf32>
    %5 = vector.broadcast %4 : vector<1x8xf32> to vector<256x8xf32>
    %6 = arith.mulf %2, %5 : vector<256x8xf32>
    %c0_5 = arith.constant 0 : index
    %c0_6 = arith.constant 0 : index
    %c0_7 = arith.constant 0 : index
    %7 = vector.load %arg4[%c0_5, %c0_6, %c0_7] : memref<1x256x8xbf16, #tpu.memory_space<vmem>>, vector<1x256x8xbf16>
    %8 = vector.shape_cast %7 : vector<1x256x8xbf16> to vector<256x8xbf16>
    %9 = arith.extf %8 : vector<256x8xbf16> to vector<256x8xf32>
    %c0_8 = arith.constant 0 : index
    %c0_9 = arith.constant 0 : index
    %c0_10 = arith.constant 0 : index
    %10 = vector.load %arg5[%c0_8, %c0_9, %c0_10] : memref<1x256x8xbf16, #tpu.memory_space<vmem>>, vector<1x256x8xbf16>
    %11 = vector.shape_cast %10 : vector<1x256x8xbf16> to vector<256x8xbf16>
    %12 = arith.extf %11 : vector<256x8xbf16> to vector<256x8xf32>
    %c0_11 = arith.constant 0 : index
    %c0_12 = arith.constant 0 : index
    %c0_13 = arith.constant 0 : index
    %13 = vector.load %arg6[%c0_11, %c0_12, %c0_13] : memref<1x256x8xbf16, #tpu.memory_space<vmem>>, vector<1x256x8xbf16>
    %14 = vector.shape_cast %13 : vector<1x256x8xbf16> to vector<256x8xbf16>
    %15 = arith.extf %14 : vector<256x8xbf16> to vector<256x8xf32>
    %16 = tpu.concatenate %6, %9, %12, %15 in 1 : vector<256x8xf32>, vector<256x8xf32>, vector<256x8xf32>, vector<256x8xf32> -> vector<256x32xf32>
    %17 = vector.shape_cast %16 : vector<256x32xf32> to vector<1x256x32xf32>
    %c0_14 = arith.constant 0 : index
    %c0_15 = arith.constant 0 : index
    %c0_16 = arith.constant 0 : index
    %18 = vector.load %arg7[%c0_14, %c0_15, %c0_16] : memref<1x256x32xf32, #tpu.memory_space<vmem>>, vector<1x256x32xf32>
    tpu.vector_store %arg7[%c0_14, %c0_15, %c0_16], %17 {strides = array<i32>} : memref<1x256x32xf32, #tpu.memory_space<vmem>>, vector<1x256x32xf32>,
    return
  }
  func.func @transform_0(%arg0: i32, %arg1: i32) -> (i32, i32, i32) {
    %c0_i32 = arith.constant 0 : i32
    %c0_i32_0 = arith.constant 0 : i32
    return %arg0, %arg1, %c0_i32 : i32, i32, i32
  }
  func.func @transform_1(%arg0: i32, %arg1: i32) -> (i32, i32, i32) {
    %c0_i32 = arith.constant 0 : i32
    %c0_i32_0 = arith.constant 0 : i32
    %c0_i32_1 = arith.constant 0 : i32
    return %arg0, %c0_i32, %c0_i32_0 : i32, i32, i32
  }
  func.func @transform_2(%arg0: i32, %arg1: i32) -> (i32, i32, i32) {
    %c0_i32 = arith.constant 0 : i32
    %c0_i32_0 = arith.constant 0 : i32
    return %arg0, %arg1, %c0_i32 : i32, i32, i32
  }
  func.func @transform_3(%arg0: i32, %arg1: i32) -> (i32, i32, i32) {
    %c0_i32 = arith.constant 0 : i32
    %c0_i32_0 = arith.constant 0 : i32
    return %arg0, %arg1, %c0_i32 : i32, i32, i32
  }
  func.func @transform_4(%arg0: i32, %arg1: i32) -> (i32, i32, i32) {
    %c0_i32 = arith.constant 0 : i32
    %c0_i32_0 = arith.constant 0 : i32
    return %arg0, %arg1, %c0_i32 : i32, i32, i32
  }
  func.func @transform_5(%arg0: i32, %arg1: i32) -> (i32, i32, i32) {
    %c0_i32 = arith.constant 0 : i32
    %c0_i32_0 = arith.constant 0 : i32
    return %arg0, %arg1, %c0_i32 : i32, i32, i32
  }
}

module attributes {stable_mosaic.version = 11 : i64} {
  func.func @_b3_kernel(%arg0: i32, %arg1: memref<1x4x8x8x4xf32, #tpu.memory_space<vmem>>, %arg2: memref<4x8xf32, #tpu.memory_space<vmem>>, %arg3: memref<1x8xf32, #tpu.memory_space<vmem>>, %arg4: memref<1x8xf32, #tpu.memory_space<vmem>>, %arg5: memref<8x8xf32, #tpu.memory_space<vmem>>, %arg6: memref<1x4x8x8x8xbf16, #tpu.memory_space<vmem>>, %arg7: memref<6x10x10x4xf32, #tpu.memory_space<vmem>>) attributes {dimension_semantics = [#tpu.dimension_semantics<parallel>], iteration_bounds = array<i64: 2>, scalar_prefetch = 0 : i64, scratch_operands = 1 : i64, tpu.core_type = #tpu.core_type<tc>, window_params = [{transform_indices = @transform_0, window_bounds = array<i64: 1, 4, 8, 8, 4>}, {pipeline_mode = #tpu.pipeline_mode<synchronous>, transform_indices = @transform_1, window_bounds = array<i64: 4, 8>}, {pipeline_mode = #tpu.pipeline_mode<synchronous>, transform_indices = @transform_2, window_bounds = array<i64: 1, 8>}, {pipeline_mode = #tpu.pipeline_mode<synchronous>, transform_indices = @transform_3, window_bounds = array<i64: 1, 8>}, {pipeline_mode = #tpu.pipeline_mode<synchronous>, transform_indices = @transform_4, window_bounds = array<i64: 8, 8>}, {transform_indices = @transform_5, window_bounds = array<i64: 1, 4, 8, 8, 8>}]} {
    %cst = arith.constant 0.000000e+00 : f32
    %0 = vector.broadcast %cst : f32 to vector<1x10x10x4xf32>
    %c0 = arith.constant 0 : index
    %c0_0 = arith.constant 0 : index
    %c0_1 = arith.constant 0 : index
    %c0_2 = arith.constant 0 : index
    %1 = vector.load %arg7[%c0, %c0_0, %c0_1, %c0_2] : memref<6x10x10x4xf32, #tpu.memory_space<vmem>>, vector<1x10x10x4xf32>
    tpu.vector_store %arg7[%c0, %c0_0, %c0_1, %c0_2], %0 {strides = array<i32>} : memref<6x10x10x4xf32, #tpu.memory_space<vmem>>, vector<1x10x10x4xf32>,
    %c5 = arith.constant 5 : index
    %c0_3 = arith.constant 0 : index
    %c0_4 = arith.constant 0 : index
    %c0_5 = arith.constant 0 : index
    %2 = vector.load %arg7[%c5, %c0_3, %c0_4, %c0_5] : memref<6x10x10x4xf32, #tpu.memory_space<vmem>>, vector<1x10x10x4xf32>
    tpu.vector_store %arg7[%c5, %c0_3, %c0_4, %c0_5], %0 {strides = array<i32>} : memref<6x10x10x4xf32, #tpu.memory_space<vmem>>, vector<1x10x10x4xf32>,
    %cst_6 = arith.constant 0.000000e+00 : f32
    %3 = vector.broadcast %cst_6 : f32 to vector<4x1x10x4xf32>
    %c1 = arith.constant 1 : index
    %c0_7 = arith.constant 0 : index
    %c0_8 = arith.constant 0 : index
    %c0_9 = arith.constant 0 : index
    %4 = vector.load %arg7[%c1, %c0_7, %c0_8, %c0_9] : memref<6x10x10x4xf32, #tpu.memory_space<vmem>>, vector<4x1x10x4xf32>
    tpu.vector_store %arg7[%c1, %c0_7, %c0_8, %c0_9], %3 {strides = array<i32>} : memref<6x10x10x4xf32, #tpu.memory_space<vmem>>, vector<4x1x10x4xf32>,
    %c1_10 = arith.constant 1 : index
    %c9 = arith.constant 9 : index
    %c0_11 = arith.constant 0 : index
    %c0_12 = arith.constant 0 : index
    %5 = vector.load %arg7[%c1_10, %c9, %c0_11, %c0_12] : memref<6x10x10x4xf32, #tpu.memory_space<vmem>>, vector<4x1x10x4xf32>
    tpu.vector_store %arg7[%c1_10, %c9, %c0_11, %c0_12], %3 {strides = array<i32>} : memref<6x10x10x4xf32, #tpu.memory_space<vmem>>, vector<4x1x10x4xf32>,
    %cst_13 = arith.constant 0.000000e+00 : f32
    %6 = vector.broadcast %cst_13 : f32 to vector<4x8x1x4xf32>
    %c1_14 = arith.constant 1 : index
    %c1_15 = arith.constant 1 : index
    %c0_16 = arith.constant 0 : index
    %c0_17 = arith.constant 0 : index
    %7 = vector.load %arg7[%c1_14, %c1_15, %c0_16, %c0_17] : memref<6x10x10x4xf32, #tpu.memory_space<vmem>>, vector<4x8x1x4xf32>
    tpu.vector_store %arg7[%c1_14, %c1_15, %c0_16, %c0_17], %6 {strides = array<i32>} : memref<6x10x10x4xf32, #tpu.memory_space<vmem>>, vector<4x8x1x4xf32>,
    %c1_18 = arith.constant 1 : index
    %c1_19 = arith.constant 1 : index
    %c9_20 = arith.constant 9 : index
    %c0_21 = arith.constant 0 : index
    %8 = vector.load %arg7[%c1_18, %c1_19, %c9_20, %c0_21] : memref<6x10x10x4xf32, #tpu.memory_space<vmem>>, vector<4x8x1x4xf32>
    tpu.vector_store %arg7[%c1_18, %c1_19, %c9_20, %c0_21], %6 {strides = array<i32>} : memref<6x10x10x4xf32, #tpu.memory_space<vmem>>, vector<4x8x1x4xf32>,
    %c0_22 = arith.constant 0 : index
    %c0_23 = arith.constant 0 : index
    %c0_24 = arith.constant 0 : index
    %c0_25 = arith.constant 0 : index
    %c0_26 = arith.constant 0 : index
    %9 = vector.load %arg1[%c0_22, %c0_23, %c0_24, %c0_25, %c0_26] : memref<1x4x8x8x4xf32, #tpu.memory_space<vmem>>, vector<1x4x8x8x4xf32>
    %10 = vector.shape_cast %9 : vector<1x4x8x8x4xf32> to vector<4x8x8x4xf32>
    %c1_27 = arith.constant 1 : index
    %c1_28 = arith.constant 1 : index
    %c1_29 = arith.constant 1 : index
    %c0_30 = arith.constant 0 : index
    %11 = vector.load %arg7[%c1_27, %c1_28, %c1_29, %c0_30] : memref<6x10x10x4xf32, #tpu.memory_space<vmem>>, vector<4x8x8x4xf32>
    tpu.vector_store %arg7[%c1_27, %c1_28, %c1_29, %c0_30], %10 {strides = array<i32>} : memref<6x10x10x4xf32, #tpu.memory_space<vmem>>, vector<4x8x8x4xf32>,
    %c0_31 = arith.constant 0 : index
    %c0_32 = arith.constant 0 : index
    %c0_33 = arith.constant 0 : index
    %c0_34 = arith.constant 0 : index
    %12 = vector.load %arg7[%c0_31, %c0_32, %c0_33, %c0_34] : memref<6x10x10x4xf32, #tpu.memory_space<vmem>>, vector<6x10x10x4xf32>
    %13 = vector.extract_strided_slice %12 {offsets = [0, 0, 0, 0], sizes = [6, 10, 8, 4], strides = [1, 1, 1, 1]} : vector<6x10x10x4xf32> to vector<6x10x8x4xf32>
    %14 = vector.extract_strided_slice %12 {offsets = [0, 0, 1, 0], sizes = [6, 10, 8, 4], strides = [1, 1, 1, 1]} : vector<6x10x10x4xf32> to vector<6x10x8x4xf32>
    %15 = arith.maximumf %13, %14 : vector<6x10x8x4xf32>
    %16 = vector.extract_strided_slice %12 {offsets = [0, 0, 2, 0], sizes = [6, 10, 8, 4], strides = [1, 1, 1, 1]} : vector<6x10x10x4xf32> to vector<6x10x8x4xf32>
    %17 = arith.maximumf %15, %16 : vector<6x10x8x4xf32>
    %18 = vector.extract_strided_slice %17 {offsets = [0, 0, 0, 0], sizes = [6, 8, 8, 4], strides = [1, 1, 1, 1]} : vector<6x10x8x4xf32> to vector<6x8x8x4xf32>
    %19 = vector.extract_strided_slice %17 {offsets = [0, 1, 0, 0], sizes = [6, 8, 8, 4], strides = [1, 1, 1, 1]} : vector<6x10x8x4xf32> to vector<6x8x8x4xf32>
    %20 = arith.maximumf %18, %19 : vector<6x8x8x4xf32>
    %21 = vector.extract_strided_slice %17 {offsets = [0, 2, 0, 0], sizes = [6, 8, 8, 4], strides = [1, 1, 1, 1]} : vector<6x10x8x4xf32> to vector<6x8x8x4xf32>
    %22 = arith.maximumf %20, %21 : vector<6x8x8x4xf32>
    %23 = vector.extract_strided_slice %22 {offsets = [0, 0, 0, 0], sizes = [4, 8, 8, 4], strides = [1, 1, 1, 1]} : vector<6x8x8x4xf32> to vector<4x8x8x4xf32>
    %24 = vector.extract_strided_slice %22 {offsets = [1, 0, 0, 0], sizes = [4, 8, 8, 4], strides = [1, 1, 1, 1]} : vector<6x8x8x4xf32> to vector<4x8x8x4xf32>
    %25 = arith.maximumf %23, %24 : vector<4x8x8x4xf32>
    %26 = vector.extract_strided_slice %22 {offsets = [2, 0, 0, 0], sizes = [4, 8, 8, 4], strides = [1, 1, 1, 1]} : vector<6x8x8x4xf32> to vector<4x8x8x4xf32>
    %27 = arith.maximumf %25, %26 : vector<4x8x8x4xf32>
    %28 = vector.shape_cast %27 : vector<4x8x8x4xf32> to vector<256x4xf32>
    %c0_35 = arith.constant 0 : index
    %c0_36 = arith.constant 0 : index
    %29 = vector.load %arg2[%c0_35, %c0_36] : memref<4x8xf32, #tpu.memory_space<vmem>>, vector<4x8xf32>
    %cst_37 = arith.constant dense<0.000000e+00> : vector<256x8xf32>
    %30 = tpu.matmul %28, %29, %cst_37 {dimension_numbers = #tpu.dot_dimension_numbers<[1], [0], [0], [1], [0, 0, 1, 1], [], []>} : vector<256x4xf32>, vector<4x8xf32>, vector<256x8xf32> -> vector<256x8xf32>
    %c0_38 = arith.constant 0 : index
    %c0_39 = arith.constant 0 : index
    %31 = vector.load %arg3[%c0_38, %c0_39] : memref<1x8xf32, #tpu.memory_space<vmem>>, vector<1x8xf32>
    %32 = vector.broadcast %31 : vector<1x8xf32> to vector<256x8xf32>
    %33 = arith.mulf %30, %32 : vector<256x8xf32>
    %c0_40 = arith.constant 0 : index
    %c0_41 = arith.constant 0 : index
    %34 = vector.load %arg4[%c0_40, %c0_41] : memref<1x8xf32, #tpu.memory_space<vmem>>, vector<1x8xf32>
    %35 = vector.broadcast %34 : vector<1x8xf32> to vector<256x8xf32>
    %36 = arith.addf %33, %35 : vector<256x8xf32>
    %cst_42 = arith.constant 0.000000e+00 : f32
    %37 = vector.broadcast %cst_42 : f32 to vector<256x8xf32>
    %38 = arith.maximumf %36, %37 : vector<256x8xf32>
    %cst_43 = arith.constant dense<0.000000e+00> : vector<8xf32>
    %39 = vector.multi_reduction <add>, %38, %cst_43 [0] : vector<256x8xf32> to vector<8xf32>
    %40 = vector.shape_cast %39 : vector<8xf32> to vector<1x8xf32>
    %cst_44 = arith.constant 3.906250e-03 : f32
    %41 = vector.broadcast %cst_44 : f32 to vector<1x8xf32>
    %42 = arith.mulf %40, %41 : vector<1x8xf32>
    %43 = vector.shape_cast %42 : vector<1x8xf32> to vector<1x8xf32>
    %44 = vector.broadcast %43 : vector<1x8xf32> to vector<8x8xf32>
    %c0_45 = arith.constant 0 : index
    %c0_46 = arith.constant 0 : index
    %45 = vector.load %arg5[%c0_45, %c0_46] : memref<8x8xf32, #tpu.memory_space<vmem>>, vector<8x8xf32>
    %cst_47 = arith.constant dense<0.000000e+00> : vector<8x8xf32>
    %46 = tpu.matmul %44, %45, %cst_47 {dimension_numbers = #tpu.dot_dimension_numbers<[1], [0], [0], [1], [0, 0, 1, 1], [], []>} : vector<8x8xf32>, vector<8x8xf32>, vector<8x8xf32> -> vector<8x8xf32>
    %47 = vector.extract_strided_slice %46 {offsets = [0, 0], sizes = [1, 8], strides = [1, 1]} : vector<8x8xf32> to vector<1x8xf32>
    %cst_48 = arith.constant 0.000000e+00 : f32
    %48 = vector.broadcast %cst_48 : f32 to vector<1x8xf32>
    %49 = arith.subf %48, %47 : vector<1x8xf32>
    %50 = math.exp %49 : vector<1x8xf32>
    %cst_49 = arith.constant 1.000000e+00 : f32
    %51 = vector.broadcast %cst_49 : f32 to vector<1x8xf32>
    %52 = arith.addf %51, %50 : vector<1x8xf32>
    %cst_50 = arith.constant 1.000000e+00 : f32
    %53 = vector.broadcast %cst_50 : f32 to vector<1x8xf32>
    %54 = arith.divf %53, %52 : vector<1x8xf32>
    %55 = vector.broadcast %54 : vector<1x8xf32> to vector<256x8xf32>
    %56 = arith.mulf %38, %55 : vector<256x8xf32>
    %57 = vector.shape_cast %56 : vector<256x8xf32> to vector<1x4x8x8x8xf32>
    %58 = arith.truncf %57 : vector<1x4x8x8x8xf32> to vector<1x4x8x8x8xbf16>
    %c0_51 = arith.constant 0 : index
    %c0_52 = arith.constant 0 : index
    %c0_53 = arith.constant 0 : index
    %c0_54 = arith.constant 0 : index
    %c0_55 = arith.constant 0 : index
    %59 = vector.load %arg6[%c0_51, %c0_52, %c0_53, %c0_54, %c0_55] : memref<1x4x8x8x8xbf16, #tpu.memory_space<vmem>>, vector<1x4x8x8x8xbf16>
    tpu.vector_store %arg6[%c0_51, %c0_52, %c0_53, %c0_54, %c0_55], %58 {strides = array<i32>} : memref<1x4x8x8x8xbf16, #tpu.memory_space<vmem>>, vector<1x4x8x8x8xbf16>,
    return
  }
  func.func @transform_0(%arg0: i32) -> (i32, i32, i32, i32, i32) {
    %c0_i32 = arith.constant 0 : i32
    %c0_i32_0 = arith.constant 0 : i32
    %c0_i32_1 = arith.constant 0 : i32
    %c0_i32_2 = arith.constant 0 : i32
    %c0_i32_3 = arith.constant 0 : i32
    return %arg0, %c0_i32, %c0_i32_0, %c0_i32_1, %c0_i32_2 : i32, i32, i32, i32, i32
  }
  func.func @transform_1(%arg0: i32) -> (i32, i32) {
    %c0_i32 = arith.constant 0 : i32
    %c0_i32_0 = arith.constant 0 : i32
    %c0_i32_1 = arith.constant 0 : i32
    return %c0_i32, %c0_i32_0 : i32, i32
  }
  func.func @transform_2(%arg0: i32) -> (i32, i32) {
    %c0_i32 = arith.constant 0 : i32
    %c0_i32_0 = arith.constant 0 : i32
    %c0_i32_1 = arith.constant 0 : i32
    return %c0_i32, %c0_i32_0 : i32, i32
  }
  func.func @transform_3(%arg0: i32) -> (i32, i32) {
    %c0_i32 = arith.constant 0 : i32
    %c0_i32_0 = arith.constant 0 : i32
    %c0_i32_1 = arith.constant 0 : i32
    return %c0_i32, %c0_i32_0 : i32, i32
  }
  func.func @transform_4(%arg0: i32) -> (i32, i32) {
    %c0_i32 = arith.constant 0 : i32
    %c0_i32_0 = arith.constant 0 : i32
    %c0_i32_1 = arith.constant 0 : i32
    return %c0_i32, %c0_i32_0 : i32, i32
  }
  func.func @transform_5(%arg0: i32) -> (i32, i32, i32, i32, i32) {
    %c0_i32 = arith.constant 0 : i32
    %c0_i32_0 = arith.constant 0 : i32
    %c0_i32_1 = arith.constant 0 : i32
    %c0_i32_2 = arith.constant 0 : i32
    %c0_i32_3 = arith.constant 0 : i32
    return %arg0, %c0_i32, %c0_i32_0, %c0_i32_1, %c0_i32_2 : i32, i32, i32, i32, i32
  }
}

</mosaic_0001>

<llo_original>
// kernel: inception_mixed.9
$region0: #{inception_mixed.9}
  #allocation0 [shape = 'u32[]', space=smem, size = 0x4, offset = 0x4, fixed_abs, tag = 'smem constant byte address 0x4 - core index']
  #allocation1 [shape = 'u32[144,128]{1,0:T(1,128)}', space=vmem, size = 0x12000, scoped, tag = 'internal scratch']
  %s0 = inlined_call_operand.vmem [shape: bf16[2,256,8], index: 0, kind: input, shape index: {}]
  %s1 = inlined_call_operand.vmem [shape: f32[2,1,8], index: 1, kind: input, shape index: {}]
  %s2 = inlined_call_operand.vmem [shape: bf16[2,256,8], index: 2, kind: input, shape index: {}]
  %s3 = inlined_call_operand.vmem [shape: bf16[2,256,8], index: 3, kind: input, shape index: {}]
  %s4 = inlined_call_operand.vmem [shape: bf16[2,256,8], index: 4, kind: input, shape index: {}]
  %s5 = inlined_call_operand.hbm [shape: f32[2,256,32], index: 5, kind: output, shape index: {}]
  %s6 = sld [smem:[#allocation0]]
  $region53: #{inception_mixed.9} parent=0
    _
  %s8 = ssub.s32 1, %s6
  %s9 = scalar_select 0, %s8, %s6
  $region1: #{inception_mixed.9} parent=0
    #allocation2 [shape = 'u8[262144]{0}', space=vmem, size = 0x40000, scoped, tag = 'output window, operand 0']
    #allocation3 [shape = 's32[2]{0}', space=sflag, size = 0x8, scoped, tag = 'scoped memory for inception_mixed.9']
    %10 = vsyncpa [#allocation3], 0
    %s11 = scalar_lea.sflag [#allocation3], 1
    %12 = vsyncpa %s11, 0
    loop: start=0, step=1, limit=4
    $region2: #{inception_mixed.9} parent=1 // loop_pre_header
      _
    $region3: #{inception_mixed.9} parent=1 // loop_header
      %s14 = sphi 0, %s18
      %p15 = scmp.ge.s32.totalorder %s14, 4
      %s21 = sphi 0, %s33
      %s22 = sphi 0, %s29
      %s23 = sphi 0, %s21
      %s24 = sphi 0, %s22
      %s25 = sphi 0, %s23
      %s26 = sphi 0, %s24
      %s38 = sphi 0, %s40
      %s41 = sphi 0, %s38
      %s42 = sphi 0, %s41
      %s58 = sphi 0, %s42
      %s64 = sphi 0, %s66
      %s67 = sphi 0, %s64
      %s68 = sphi 0, %s67
      %s84 = sphi 0, %s68
      %s92 = sphi 0, %s94
      %s95 = sphi 0, %s92
      %s96 = sphi 0, %s95
      %s112 = sphi 0, %s96
      %s120 = sphi 0, %s122
      %s123 = sphi 0, %s120
      %s124 = sphi 0, %s123
      %s140 = sphi 0, %s124
      %s148 = sphi 0, %s150
      %s151 = sphi 0, %s148
      %s152 = sphi 0, %s151
      %s168 = sphi 0, %s152
      %s176 = sphi 0, %s178
      %s179 = sphi 0, %s176
      %s180 = sphi 0, %s179
      %s196 = sphi 0, %s180
    $region4: #{inception_mixed.9} parent=1 // loop_header_branch
      %17 = sbr.rel (%p15) target = $region8
    $region5: #{inception_mixed.9} parent=1 // loop_body
      %s19 = ssub.s32 %s14, 1
      %s20 = ssub.s32 %s14, 2
      %s27 = sadd.s32 1, %s22
      %p28 = scmp.ge.s32.totalorder %s27, 1
      %s29 = scalar_select %p28, 0, %s27
      %s30 = sadd.s32 1, %s21
      %s31 = scalar_select %p28, %s30, %s21
      %p32 = scmp.ge.s32.totalorder %s31, 2
      %s33 = scalar_select %p32, 0, %s31
      %s34 = ssub.s32 %s21, %s33
      %s35 = ssub.s32 %s22, %s29
      %s36 = sor.u32 %s34, %s35
      %p37 = scmp.eq.s32.totalorder %s36, 0
      %s39 = sadd.s32 %s38, 1
      %s40 = scalar_select %p37, %s38, %s39
      %p43 = pneg %p37
      %p44 = scmp.eq.s32.totalorder %s14, 1
      %p45 = por %p43, %p44
      %p46 = scmp.ne.s32.totalorder %s38, %s41
      %p47 = scmp.eq.s32.totalorder %s14, 0
      %p48 = por %p46, %p47
      %p49 = scmp.ne.s32.totalorder %s38, %s41
      %p50 = scmp.eq.s32.totalorder %s19, 1
      %p51 = por %p49, %p50
      %p52 = scmp.ne.s32.totalorder %s41, %s42
      %p53 = scmp.eq.s32.totalorder %s19, 0
      %p54 = por %p52, %p53
      %p55 = scmp.ne.s32.totalorder %s41, %s42
      %p56 = scmp.eq.s32.totalorder %s20, 1
      %p57 = por %p55, %p56
      %p59 = scmp.ne.s32.totalorder %s42, %s58
      %p60 = scmp.eq.s32.totalorder %s20, 0
      %p61 = por %p59, %p60
      %s62 = ssub.s32 %s21, %s33
      %p63 = scmp.eq.s32.totalorder %s62, 0
      %s65 = sadd.s32 %s64, 1
      %s66 = scalar_select %p63, %s64, %s65
      %p69 = pneg %p63
      %p70 = scmp.eq.s32.totalorder %s14, 1
      %p71 = por %p69, %p70
      %p72 = scmp.ne.s32.totalorder %s64, %s67
      %p73 = scmp.eq.s32.totalorder %s14, 0
      %p74 = por %p72, %p73
      %p75 = scmp.ne.s32.totalorder %s64, %s67
      %p76 = scmp.eq.s32.totalorder %s19, 1
      %p77 = por %p75, %p76
      %p78 = scmp.ne.s32.totalorder %s67, %s68
      %p79 = scmp.eq.s32.totalorder %s19, 0
      %p80 = por %p78, %p79
      %p81 = scmp.ne.s32.totalorder %s67, %s68
      %p82 = scmp.eq.s32.totalorder %s20, 1
      %p83 = por %p81, %p82
      %p85 = scmp.ne.s32.totalorder %s68, %s84
      %p86 = scmp.eq.s32.totalorder %s20, 0
      %p87 = por %p85, %p86
      %s88 = ssub.s32 %s21, %s33
      %s89 = ssub.s32 %s22, %s29
      %s90 = sor.u32 %s88, %s89
      %p91 = scmp.eq.s32.totalorder %s90, 0
      %s93 = sadd.s32 %s92, 1
      %s94 = scalar_select %p91, %s92, %s93
      %p97 = pneg %p91
      %p98 = scmp.eq.s32.totalorder %s14, 1
      %p99 = por %p97, %p98
      %p100 = scmp.ne.s32.totalorder %s92, %s95
      %p101 = scmp.eq.s32.totalorder %s14, 0
      %p102 = por %p100, %p101
      %p103 = scmp.ne.s32.totalorder %s92, %s95
      %p104 = scmp.eq.s32.totalorder %s19, 1
      %p105 = por %p103, %p104
      %p106 = scmp.ne.s32.totalorder %s95, %s96
      %p107 = scmp.eq.s32.totalorder %s19, 0
      %p108 = por %p106, %p107
      %p109 = scmp.ne.s32.totalorder %s95, %s96
      %p110 = scmp.eq.s32.totalorder %s20, 1
      %p111 = por %p109, %p110
      %p113 = scmp.ne.s32.totalorder %s96, %s112
      %p114 = scmp.eq.s32.totalorder %s20, 0
      %p115 = por %p113, %p114
      %s116 = ssub.s32 %s21, %s33
      %s117 = ssub.s32 %s22, %s29
      %s118 = sor.u32 %s116, %s117
      %p119 = scmp.eq.s32.totalorder %s118, 0
      %s121 = sadd.s32 %s120, 1
      %s122 = scalar_select %p119, %s120, %s121
      %p125 = pneg %p119
      %p126 = scmp.eq.s32.totalorder %s14, 1
      %p127 = por %p125, %p126
      %p128 = scmp.ne.s32.totalorder %s120, %s123
      %p129 = scmp.eq.s32.totalorder %s14, 0
      %p130 = por %p128, %p129
      %p131 = scmp.ne.s32.totalorder %s120, %s123
      %p132 = scmp.eq.s32.totalorder %s19, 1
      %p133 = por %p131, %p132
      %p134 = scmp.ne.s32.totalorder %s123, %s124
      %p135 = scmp.eq.s32.totalorder %s19, 0
      %p136 = por %p134, %p135
      %p137 = scmp.ne.s32.totalorder %s123, %s124
      %p138 = scmp.eq.s32.totalorder %s20, 1
      %p139 = por %p137, %p138
      %p141 = scmp.ne.s32.totalorder %s124, %s140
      %p142 = scmp.eq.s32.totalorder %s20, 0
      %p143 = por %p141, %p142
      %s144 = ssub.s32 %s21, %s33
      %s145 = ssub.s32 %s22, %s29
      %s146 = sor.u32 %s144, %s145
      %p147 = scmp.eq.s32.totalorder %s146, 0
      %s149 = sadd.s32 %s148, 1
      %s150 = scalar_select %p147, %s148, %s149
      %p153 = pneg %p147
      %p154 = scmp.eq.s32.totalorder %s14, 1
      %p155 = por %p153, %p154
      %p156 = scmp.ne.s32.totalorder %s148, %s151
      %p157 = scmp.eq.s32.totalorder %s14, 0
      %p158 = por %p156, %p157
      %p159 = scmp.ne.s32.totalorder %s148, %s151
      %p160 = scmp.eq.s32.totalorder %s19, 1
      %p161 = por %p159, %p160
      %p162 = scmp.ne.s32.totalorder %s151, %s152
      %p163 = scmp.eq.s32.totalorder %s19, 0
      %p164 = por %p162, %p163
      %p165 = scmp.ne.s32.totalorder %s151, %s152
      %p166 = scmp.eq.s32.totalorder %s20, 1
      %p167 = por %p165, %p166
      %p169 = scmp.ne.s32.totalorder %s152, %s168
      %p170 = scmp.eq.s32.totalorder %s20, 0
      %p171 = por %p169, %p170
      %s172 = ssub.s32 %s21, %s33
      %s173 = ssub.s32 %s22, %s29
      %s174 = sor.u32 %s172, %s173
      %p175 = scmp.eq.s32.totalorder %s174, 0
      %s177 = sadd.s32 %s176, 1
      %s178 = scalar_select %p175, %s176, %s177
      %p181 = pneg %p175
      %p182 = scmp.eq.s32.totalorder %s14, 1
      %p183 = por %p181, %p182
      %p184 = scmp.ne.s32.totalorder %s176, %s179
      %p185 = scmp.eq.s32.totalorder %s14, 0
      %p186 = por %p184, %p185
      %p187 = scmp.ne.s32.totalorder %s176, %s179
      %p188 = scmp.eq.s32.totalorder %s19, 1
      %p189 = por %p187, %p188
      %p190 = scmp.ne.s32.totalorder %s179, %s180
      %p191 = scmp.eq.s32.totalorder %s19, 0
      %p192 = por %p190, %p191
      %p193 = scmp.ne.s32.totalorder %s179, %s180
      %p194 = scmp.eq.s32.totalorder %s20, 1
      %p195 = por %p193, %p194
      %p197 = scmp.ne.s32.totalorder %s180, %s196
      %p198 = scmp.eq.s32.totalorder %s20, 0
      %p199 = por %p197, %p198
      %p200 = scmp.le.s32.totalorder 1, %s14
      %p201 = scmp.lt.s32.totalorder %s14, 3
      %p202 = pnand %p200, %p201
      %p203 = pneg %p202
      // Predicated region
      $region9: #{inception_mixed.9} parent=5 // pred_check
        _
      $region10: #{inception_mixed.9} parent=5 // pred_check_branch
        %205 = sbr.rel (%p202) target = $region12
      $region11: #{inception_mixed.9} parent=5 // pred_region
        %s206 = ssub.s32 %s14, 1
      $region12: #{inception_mixed.9} parent=5 // pred_fallthru
        _
      %p207 = scmp.lt.s32.totalorder %s14, 2
      // Predicated region
      $region13: #{inception_mixed.9} parent=5 // pred_check
        %p208 = pneg %p207
      $region14: #{inception_mixed.9} parent=5 // pred_check_branch
        %210 = sbr.rel (%p208) target = $region16
      $region15: #{inception_mixed.9} parent=5 // pred_region
        // Predicated region
        $region17: #{inception_mixed.9} parent=15 // pred_check
          %p211 = pneg %p48
        $region18: #{inception_mixed.9} parent=15 // pred_check_branch
          %213 = sbr.rel (%p211) target = $region20
        $region19: #{inception_mixed.9} parent=15 // pred_region
          %s214 = smul.u32 32, %s22
          %p215 = scmp.lt.s32.totalorder %s21, 1
          %s216 = scalar_select %p215, %s21, 1
          %p217 = scmp.lt.s32.totalorder %s214, 31
          %s218 = scalar_select %p217, %s214, 31
          %s219 = smul.addr %s216, 32
          %s220 = sadd.s32 %s218, %s219
          %s221 = smul.addr %s220, 4
          %s222 = scalar_lea.vmem %s0, %s221
          %s223 = smul.u32 32, %s22
        $region20: #{inception_mixed.9} parent=15 // pred_fallthru
          _
        // Predicated region
        $region21: #{inception_mixed.9} parent=15 // pred_check
          %p224 = pneg %p74
        $region22: #{inception_mixed.9} parent=15 // pred_check_branch
          %226 = sbr.rel (%p224) target = $region24
        $region23: #{inception_mixed.9} parent=15 // pred_region
          %p227 = scmp.lt.s32.totalorder %s21, 1
          %s228 = scalar_select %p227, %s21, 1
          %s229 = scalar_lea.vmem %s1, %s228
        $region24: #{inception_mixed.9} parent=15 // pred_fallthru
          _
        // Predicated region
        $region25: #{inception_mixed.9} parent=15 // pred_check
          %p230 = pneg %p102
        $region26: #{inception_mixed.9} parent=15 // pred_check_branch
          %232 = sbr.rel (%p230) target = $region28
        $region27: #{inception_mixed.9} parent=15 // pred_region
          %s233 = smul.u32 32, %s22
          %p234 = scmp.lt.s32.totalorder %s21, 1
          %s235 = scalar_select %p234, %s21, 1
          %p236 = scmp.lt.s32.totalorder %s233, 31
          %s237 = scalar_select %p236, %s233, 31
          %s238 = smul.addr %s235, 32
          %s239 = sadd.s32 %s237, %s238
          %s240 = smul.addr %s239, 4
          %s241 = scalar_lea.vmem %s2, %s240
          %s242 = smul.u32 32, %s22
        $region28: #{inception_mixed.9} parent=15 // pred_fallthru
          _
        // Predicated region
        $region29: #{inception_mixed.9} parent=15 // pred_check
          %p243 = pneg %p130
        $region30: #{inception_mixed.9} parent=15 // pred_check_branch
          %245 = sbr.rel (%p243) target = $region32
        $region31: #{inception_mixed.9} parent=15 // pred_region
          %s246 = smul.u32 32, %s22
          %p247 = scmp.lt.s32.totalorder %s21, 1
          %s248 = scalar_select %p247, %s21, 1
          %p249 = scmp.lt.s32.totalorder %s246, 31
          %s250 = scalar_select %p249, %s246, 31
          %s251 = smul.addr %s248, 32
          %s252 = sadd.s32 %s250, %s251
          %s253 = smul.addr %s252, 4
          %s254 = scalar_lea.vmem %s3, %s253
          %s255 = smul.u32 32, %s22
        $region32: #{inception_mixed.9} parent=15 // pred_fallthru
          _
        // Predicated region
        $region33: #{inception_mixed.9} parent=15 // pred_check
          %p256 = pneg %p158
        $region34: #{inception_mixed.9} parent=15 // pred_check_branch
          %258 = sbr.rel (%p256) target = $region36
        $region35: #{inception_mixed.9} parent=15 // pred_region
          %s259 = smul.u32 32, %s22
          %p260 = scmp.lt.s32.totalorder %s21, 1
          %s261 = scalar_select %p260, %s21, 1
          %p262 = scmp.lt.s32.totalorder %s259, 31
          %s263 = scalar_select %p262, %s259, 31
          %s264 = smul.addr %s261, 32
          %s265 = sadd.s32 %s263, %s264
          %s266 = smul.addr %s265, 4
          %s267 = scalar_lea.vmem %s4, %s266
          %s268 = smul.u32 32, %s22
        $region36: #{inception_mixed.9} parent=15 // pred_fallthru
          _
      $region16: #{inception_mixed.9} parent=5 // pred_fallthru
        _
      %p269 = scmp.le.s32.totalorder 1, %s14
      %p270 = scmp.lt.s32.totalorder %s14, 3
      %p271 = pnand %p269, %p270
      %p272 = pneg %p271
      // Predicated region
      $region37: #{inception_mixed.9} parent=5 // pred_check
        _
      $region38: #{inception_mixed.9} parent=5 // pred_check_branch
        %274 = sbr.rel (%p271) target = $region40
      $region39: #{inception_mixed.9} parent=5 // pred_region
        %s275 = ssub.s32 %s14, 1
        %s276 = smul.u32 32, %s24
        %p277 = scmp.lt.s32.totalorder %s23, 1
        %s278 = scalar_select %p277, %s23, 1
        %p279 = scmp.lt.s32.totalorder %s276, 31
        %s280 = scalar_select %p279, %s276, 31
        %s281 = smul.addr %s278, 32
        %s282 = sadd.s32 %s280, %s281
        %s283 = smul.addr %s282, 4
        %s284 = scalar_lea.vmem %s0, %s283
        %p285 = pneg %p54
        %p286 = pneg %p51
        %p287 = scmp.lt.s32.totalorder %s23, 1
        %s288 = scalar_select %p287, %s23, 1
        %s289 = scalar_lea.vmem %s1, %s288
        %p290 = pneg %p80
        %p291 = pneg %p77
        %s292 = smul.u32 32, %s24
        %p293 = scmp.lt.s32.totalorder %s23, 1
        %s294 = scalar_select %p293, %s23, 1
        %p295 = scmp.lt.s32.totalorder %s292, 31
        %s296 = scalar_select %p295, %s292, 31
        %s297 = smul.addr %s294, 32
        %s298 = sadd.s32 %s296, %s297
        %s299 = smul.addr %s298, 4
        %s300 = scalar_lea.vmem %s2, %s299
        %p301 = pneg %p108
        %p302 = pneg %p105
        %s303 = smul.u32 32, %s24
        %p304 = scmp.lt.s32.totalorder %s23, 1
        %s305 = scalar_select %p304, %s23, 1
        %p306 = scmp.lt.s32.totalorder %s303, 31
        %s307 = scalar_select %p306, %s303, 31
        %s308 = smul.addr %s305, 32
        %s309 = sadd.s32 %s307, %s308
        %s310 = smul.addr %s309, 4
        %s311 = scalar_lea.vmem %s3, %s310
        %p312 = pneg %p136
        %p313 = pneg %p133
        %s314 = smul.u32 32, %s24
        %p315 = scmp.lt.s32.totalorder %s23, 1
        %s316 = scalar_select %p315, %s23, 1
        %p317 = scmp.lt.s32.totalorder %s314, 31
        %s318 = scalar_select %p317, %s314, 31
        %s319 = smul.addr %s316, 32
        %s320 = sadd.s32 %s318, %s319
        %s321 = smul.addr %s320, 4
        %s322 = scalar_lea.vmem %s4, %s321
        %p323 = pneg %p164
        %p324 = pneg %p161
        %p325 = pneg %p192
        %p326 = pneg %p189
        %s327 = sand.u32 %s179, 1
        %s328 = scalar_lea.sflag [#allocation3], %s327
        %s329 = sand.u32 %s179, 1
        %s330 = smul.addr %s329, 256
        %s331 = scalar_lea.vmem [#allocation2], %s330
        %s332 = smul.u32 32, %s24
        %p333 = scmp.lt.s32.totalorder %s23, 1
        %s334 = scalar_select %p333, %s23, 1
        %p335 = scmp.lt.s32.totalorder %s332, 31
        %s336 = scalar_select %p335, %s332, 31
        %s337 = smul.addr %s334, 32
        %s338 = sadd.s32 %s336, %s337
        %s339 = smul.addr %s338, 4
        %s340 = scalar_lea.vmem %s0, %s339
        %s341 = smul.u32 32, %s24
        %p342 = scmp.lt.s32.totalorder %s23, 1
        %s343 = scalar_select %p342, %s23, 1
        %s344 = scalar_lea.vmem %s1, %s343
        %s345 = smul.u32 32, %s24
        %p346 = scmp.lt.s32.totalorder %s23, 1
        %s347 = scalar_select %p346, %s23, 1
        %p348 = scmp.lt.s32.totalorder %s345, 31
        %s349 = scalar_select %p348, %s345, 31
        %s350 = smul.addr %s347, 32
        %s351 = sadd.s32 %s349, %s350
        %s352 = smul.addr %s351, 4
        %s353 = scalar_lea.vmem %s2, %s352
        %s354 = smul.u32 32, %s24
        %s355 = smul.u32 32, %s24
        %p356 = scmp.lt.s32.totalorder %s23, 1
        %s357 = scalar_select %p356, %s23, 1
        %p358 = scmp.lt.s32.totalorder %s355, 31
        %s359 = scalar_select %p358, %s355, 31
        %s360 = smul.addr %s357, 32
        %s361 = sadd.s32 %s359, %s360
        %s362 = smul.addr %s361, 4
        %s363 = scalar_lea.vmem %s3, %s362
        %s364 = smul.u32 32, %s24
        %s365 = smul.u32 32, %s24
        %p366 = scmp.lt.s32.totalorder %s23, 1
        %s367 = scalar_select %p366, %s23, 1
        %p368 = scmp.lt.s32.totalorder %s365, 31
        %s369 = scalar_select %p368, %s365, 31
        %s370 = smul.addr %s367, 32
        %s371 = sadd.s32 %s369, %s370
        %s372 = smul.addr %s371, 4
        %s373 = scalar_lea.vmem %s4, %s372
        %s374 = smul.u32 32, %s24
        %s375 = smul.u32 32, %s24
        %v376 = vld [vmem:[%s340] sm:$0xf]
        %v377 = vld [vmem:[%s340 + $0x4] sm:$0xf]
        %v378 = vld [vmem:[%s340 + $0x8] sm:$0xf]
        %v379 = vld [vmem:[%s340 + $0xc] sm:$0xf]
        %v380 = vld [vmem:[%s340 + $0x10] sm:$0xf]
        %v381 = vld [vmem:[%s340 + $0x14] sm:$0xf]
        %v382 = vld [vmem:[%s340 + $0x18] sm:$0xf]
        %v383 = vld [vmem:[%s340 + $0x1c] sm:$0xf]
        %v384 = vld [vmem:[%s340 + $0x20] sm:$0xf]
        %v385 = vld [vmem:[%s340 + $0x24] sm:$0xf]
        %v386 = vld [vmem:[%s340 + $0x28] sm:$0xf]
        %v387 = vld [vmem:[%s340 + $0x2c] sm:$0xf]
        %v388 = vld [vmem:[%s340 + $0x30] sm:$0xf]
        %v389 = vld [vmem:[%s340 + $0x34] sm:$0xf]
        %v390 = vld [vmem:[%s340 + $0x38] sm:$0xf]
        %v391 = vld [vmem:[%s340 + $0x3c] sm:$0xf]
        %v392 = vld [vmem:[%s340 + $0x40] sm:$0xf]
        %v393 = vld [vmem:[%s340 + $0x44] sm:$0xf]
        %v394 = vld [vmem:[%s340 + $0x48] sm:$0xf]
        %v395 = vld [vmem:[%s340 + $0x4c] sm:$0xf]
        %v396 = vld [vmem:[%s340 + $0x50] sm:$0xf]
        %v397 = vld [vmem:[%s340 + $0x54] sm:$0xf]
        %v398 = vld [vmem:[%s340 + $0x58] sm:$0xf]
        %v399 = vld [vmem:[%s340 + $0x5c] sm:$0xf]
        %v400 = vld [vmem:[%s340 + $0x60] sm:$0xf]
        %v401 = vld [vmem:[%s340 + $0x64] sm:$0xf]
        %v402 = vld [vmem:[%s340 + $0x68] sm:$0xf]
        %v403 = vld [vmem:[%s340 + $0x6c] sm:$0xf]
        %v404 = vld [vmem:[%s340 + $0x70] sm:$0xf]
        %v405 = vld [vmem:[%s340 + $0x74] sm:$0xf]
        %v406 = vld [vmem:[%s340 + $0x78] sm:$0xf]
        %v407 = vld [vmem:[%s340 + $0x7c] sm:$0xf]
        %v408 = vunpack.c.l.bf16 %v376
        %v409 = vunpack.c.l.bf16 %v377
        %v410 = vunpack.c.l.bf16 %v378
        %v411 = vunpack.c.l.bf16 %v379
        %v412 = vunpack.c.l.bf16 %v380
        %v413 = vunpack.c.l.bf16 %v381
        %v414 = vunpack.c.l.bf16 %v382
        %v415 = vunpack.c.l.bf16 %v383
        %v416 = vunpack.c.l.bf16 %v384
        %v417 = vunpack.c.l.bf16 %v385
        %v418 = vunpack.c.l.bf16 %v386
        %v419 = vunpack.c.l.bf16 %v387
        %v420 = vunpack.c.l.bf16 %v388
        %v421 = vunpack.c.l.bf16 %v389
        %v422 = vunpack.c.l.bf16 %v390
        %v423 = vunpack.c.l.bf16 %v391
        %v424 = vunpack.c.l.bf16 %v392
        %v425 = vunpack.c.l.bf16 %v393
        %v426 = vunpack.c.l.bf16 %v394
        %v427 = vunpack.c.l.bf16 %v395
        %v428 = vunpack.c.l.bf16 %v396
        %v429 = vunpack.c.l.bf16 %v397
        %v430 = vunpack.c.l.bf16 %v398
        %v431 = vunpack.c.l.bf16 %v399
        %v432 = vunpack.c.l.bf16 %v400
        %v433 = vunpack.c.l.bf16 %v401
        %v434 = vunpack.c.l.bf16 %v402
        %v435 = vunpack.c.l.bf16 %v403
        %v436 = vunpack.c.l.bf16 %v404
        %v437 = vunpack.c.l.bf16 %v405
        %v438 = vunpack.c.l.bf16 %v406
        %v439 = vunpack.c.l.bf16 %v407
        %v440 = vld [vmem:[%s344] sm:$0x1]
        %v442 = vlaneseq
        %v443 = vshrl.u32 %v442, 7
        %v444 = vsub.s32 0, %v443
        %v445 = vrot.slane %v440, %v444
        %v447 = vmul.f32 %v408, %v445
        %v448 = vmul.f32 %v409, %v445
        %v449 = vmul.f32 %v410, %v445
        %v450 = vmul.f32 %v411, %v445
        %v451 = vmul.f32 %v412, %v445
        %v452 = vmul.f32 %v413, %v445
        %v453 = vmul.f32 %v414, %v445
        %v454 = vmul.f32 %v415, %v445
        %v455 = vmul.f32 %v416, %v445
        %v456 = vmul.f32 %v417, %v445
        %v457 = vmul.f32 %v418, %v445
        %v458 = vmul.f32 %v419, %v445
        %v459 = vmul.f32 %v420, %v445
        %v460 = vmul.f32 %v421, %v445
        %v461 = vmul.f32 %v422, %v445
        %v462 = vmul.f32 %v423, %v445
        %v463 = vmul.f32 %v424, %v445
        %v464 = vmul.f32 %v425, %v445
        %v465 = vmul.f32 %v426, %v445
        %v466 = vmul.f32 %v427, %v445
        %v467 = vmul.f32 %v428, %v445
        %v468 = vmul.f32 %v429, %v445
        %v469 = vmul.f32 %v430, %v445
        %v470 = vmul.f32 %v431, %v445
        %v471 = vmul.f32 %v432, %v445
        %v472 = vmul.f32 %v433, %v445
        %v473 = vmul.f32 %v434, %v445
        %v474 = vmul.f32 %v435, %v445
        %v475 = vmul.f32 %v436, %v445
        %v476 = vmul.f32 %v437, %v445
        %v477 = vmul.f32 %v438, %v445
        %v478 = vmul.f32 %v439, %v445
        %v479 = vld [vmem:[%s353] sm:$0xf]
        %v480 = vld [vmem:[%s353 + $0x4] sm:$0xf]
        %v481 = vld [vmem:[%s353 + $0x8] sm:$0xf]
        %v482 = vld [vmem:[%s353 + $0xc] sm:$0xf]
        %v483 = vld [vmem:[%s353 + $0x10] sm:$0xf]
        %v484 = vld [vmem:[%s353 + $0x14] sm:$0xf]
        %v485 = vld [vmem:[%s353 + $0x18] sm:$0xf]
        %v486 = vld [vmem:[%s353 + $0x1c] sm:$0xf]
        %v487 = vld [vmem:[%s353 + $0x20] sm:$0xf]
        %v488 = vld [vmem:[%s353 + $0x24] sm:$0xf]
        %v489 = vld [vmem:[%s353 + $0x28] sm:$0xf]
        %v490 = vld [vmem:[%s353 + $0x2c] sm:$0xf]
        %v491 = vld [vmem:[%s353 + $0x30] sm:$0xf]
        %v492 = vld [vmem:[%s353 + $0x34] sm:$0xf]
        %v493 = vld [vmem:[%s353 + $0x38] sm:$0xf]
        %v494 = vld [vmem:[%s353 + $0x3c] sm:$0xf]
        %v495 = vld [vmem:[%s353 + $0x40] sm:$0xf]
        %v496 = vld [vmem:[%s353 + $0x44] sm:$0xf]
        %v497 = vld [vmem:[%s353 + $0x48] sm:$0xf]
        %v498 = vld [vmem:[%s353 + $0x4c] sm:$0xf]
        %v499 = vld [vmem:[%s353 + $0x50] sm:$0xf]
        %v500 = vld [vmem:[%s353 + $0x54] sm:$0xf]
        %v501 = vld [vmem:[%s353 + $0x58] sm:$0xf]
        %v502 = vld [vmem:[%s353 + $0x5c] sm:$0xf]
        %v503 = vld [vmem:[%s353 + $0x60] sm:$0xf]
        %v504 = vld [vmem:[%s353 + $0x64] sm:$0xf]
        %v505 = vld [vmem:[%s353 + $0x68] sm:$0xf]
        %v506 = vld [vmem:[%s353 + $0x6c] sm:$0xf]
        %v507 = vld [vmem:[%s353 + $0x70] sm:$0xf]
        %v508 = vld [vmem:[%s353 + $0x74] sm:$0xf]
        %v509 = vld [vmem:[%s353 + $0x78] sm:$0xf]
        %v510 = vld [vmem:[%s353 + $0x7c] sm:$0xf]
        %v511 = vunpack.c.l.bf16 %v479
        %v512 = vunpack.c.l.bf16 %v480
        %v513 = vunpack.c.l.bf16 %v481
        %v514 = vunpack.c.l.bf16 %v482
        %v515 = vunpack.c.l.bf16 %v483
        %v516 = vunpack.c.l.bf16 %v484
        %v517 = vunpack.c.l.bf16 %v485
        %v518 = vunpack.c.l.bf16 %v486
        %v519 = vunpack.c.l.bf16 %v487
        %v520 = vunpack.c.l.bf16 %v488
        %v521 = vunpack.c.l.bf16 %v489
        %v522 = vunpack.c.l.bf16 %v490
        %v523 = vunpack.c.l.bf16 %v491
        %v524 = vunpack.c.l.bf16 %v492
        %v525 = vunpack.c.l.bf16 %v493
        %v526 = vunpack.c.l.bf16 %v494
        %v527 = vunpack.c.l.bf16 %v495
        %v528 = vunpack.c.l.bf16 %v496
        %v529 = vunpack.c.l.bf16 %v497
        %v530 = vunpack.c.l.bf16 %v498
        %v531 = vunpack.c.l.bf16 %v499
        %v532 = vunpack.c.l.bf16 %v500
        %v533 = vunpack.c.l.bf16 %v501
        %v534 = vunpack.c.l.bf16 %v502
        %v535 = vunpack.c.l.bf16 %v503
        %v536 = vunpack.c.l.bf16 %v504
        %v537 = vunpack.c.l.bf16 %v505
        %v538 = vunpack.c.l.bf16 %v506
        %v539 = vunpack.c.l.bf16 %v507
        %v540 = vunpack.c.l.bf16 %v508
        %v541 = vunpack.c.l.bf16 %v509
        %v542 = vunpack.c.l.bf16 %v510
        %v543 = vld [vmem:[%s363] sm:$0xf]
        %v544 = vld [vmem:[%s363 + $0x4] sm:$0xf]
        %v545 = vld [vmem:[%s363 + $0x8] sm:$0xf]
        %v546 = vld [vmem:[%s363 + $0xc] sm:$0xf]
        %v547 = vld [vmem:[%s363 + $0x10] sm:$0xf]
        %v548 = vld [vmem:[%s363 + $0x14] sm:$0xf]
        %v549 = vld [vmem:[%s363 + $0x18] sm:$0xf]
        %v550 = vld [vmem:[%s363 + $0x1c] sm:$0xf]
        %v551 = vld [vmem:[%s363 + $0x20] sm:$0xf]
        %v552 = vld [vmem:[%s363 + $0x24] sm:$0xf]
        %v553 = vld [vmem:[%s363 + $0x28] sm:$0xf]
        %v554 = vld [vmem:[%s363 + $0x2c] sm:$0xf]
        %v555 = vld [vmem:[%s363 + $0x30] sm:$0xf]
        %v556 = vld [vmem:[%s363 + $0x34] sm:$0xf]
        %v557 = vld [vmem:[%s363 + $0x38] sm:$0xf]
        %v558 = vld [vmem:[%s363 + $0x3c] sm:$0xf]
        %v559 = vld [vmem:[%s363 + $0x40] sm:$0xf]
        %v560 = vld [vmem:[%s363 + $0x44] sm:$0xf]
        %v561 = vld [vmem:[%s363 + $0x48] sm:$0xf]
        %v562 = vld [vmem:[%s363 + $0x4c] sm:$0xf]
        %v563 = vld [vmem:[%s363 + $0x50] sm:$0xf]
        %v564 = vld [vmem:[%s363 + $0x54] sm:$0xf]
        %v565 = vld [vmem:[%s363 + $0x58] sm:$0xf]
        %v566 = vld [vmem:[%s363 + $0x5c] sm:$0xf]
        %v567 = vld [vmem:[%s363 + $0x60] sm:$0xf]
        %v568 = vld [vmem:[%s363 + $0x64] sm:$0xf]
        %v569 = vld [vmem:[%s363 + $0x68] sm:$0xf]
        %v570 = vld [vmem:[%s363 + $0x6c] sm:$0xf]
        %v571 = vld [vmem:[%s363 + $0x70] sm:$0xf]
        %v572 = vld [vmem:[%s363 + $0x74] sm:$0xf]
        %v573 = vld [vmem:[%s363 + $0x78] sm:$0xf]
        %v574 = vld [vmem:[%s363 + $0x7c] sm:$0xf]
        %v575 = vunpack.c.l.bf16 %v543
        %v576 = vunpack.c.l.bf16 %v544
        %v577 = vunpack.c.l.bf16 %v545
        %v578 = vunpack.c.l.bf16 %v546
        %v579 = vunpack.c.l.bf16 %v547
        %v580 = vunpack.c.l.bf16 %v548
        %v581 = vunpack.c.l.bf16 %v549
        %v582 = vunpack.c.l.bf16 %v550
        %v583 = vunpack.c.l.bf16 %v551
        %v584 = vunpack.c.l.bf16 %v552
        %v585 = vunpack.c.l.bf16 %v553
        %v586 = vunpack.c.l.bf16 %v554
        %v587 = vunpack.c.l.bf16 %v555
        %v588 = vunpack.c.l.bf16 %v556
        %v589 = vunpack.c.l.bf16 %v557
        %v590 = vunpack.c.l.bf16 %v558
        %v591 = vunpack.c.l.bf16 %v559
        %v592 = vunpack.c.l.bf16 %v560
        %v593 = vunpack.c.l.bf16 %v561
        %v594 = vunpack.c.l.bf16 %v562
        %v595 = vunpack.c.l.bf16 %v563
        %v596 = vunpack.c.l.bf16 %v564
        %v597 = vunpack.c.l.bf16 %v565
        %v598 = vunpack.c.l.bf16 %v566
        %v599 = vunpack.c.l.bf16 %v567
        %v600 = vunpack.c.l.bf16 %v568
        %v601 = vunpack.c.l.bf16 %v569
        %v602 = vunpack.c.l.bf16 %v570
        %v603 = vunpack.c.l.bf16 %v571
        %v604 = vunpack.c.l.bf16 %v572
        %v605 = vunpack.c.l.bf16 %v573
        %v606 = vunpack.c.l.bf16 %v574
        %v607 = vld [vmem:[%s373] sm:$0xf]
        %v608 = vld [vmem:[%s373 + $0x4] sm:$0xf]
        %v609 = vld [vmem:[%s373 + $0x8] sm:$0xf]
        %v610 = vld [vmem:[%s373 + $0xc] sm:$0xf]
        %v611 = vld [vmem:[%s373 + $0x10] sm:$0xf]
        %v612 = vld [vmem:[%s373 + $0x14] sm:$0xf]
        %v613 = vld [vmem:[%s373 + $0x18] sm:$0xf]
        %v614 = vld [vmem:[%s373 + $0x1c] sm:$0xf]
        %v615 = vld [vmem:[%s373 + $0x20] sm:$0xf]
        %v616 = vld [vmem:[%s373 + $0x24] sm:$0xf]
        %v617 = vld [vmem:[%s373 + $0x28] sm:$0xf]
        %v618 = vld [vmem:[%s373 + $0x2c] sm:$0xf]
        %v619 = vld [vmem:[%s373 + $0x30] sm:$0xf]
        %v620 = vld [vmem:[%s373 + $0x34] sm:$0xf]
        %v621 = vld [vmem:[%s373 + $0x38] sm:$0xf]
        %v622 = vld [vmem:[%s373 + $0x3c] sm:$0xf]
        %v623 = vld [vmem:[%s373 + $0x40] sm:$0xf]
        %v624 = vld [vmem:[%s373 + $0x44] sm:$0xf]
        %v625 = vld [vmem:[%s373 + $0x48] sm:$0xf]
        %v626 = vld [vmem:[%s373 + $0x4c] sm:$0xf]
        %v627 = vld [vmem:[%s373 + $0x50] sm:$0xf]
        %v628 = vld [vmem:[%s373 + $0x54] sm:$0xf]
        %v629 = vld [vmem:[%s373 + $0x58] sm:$0xf]
        %v630 = vld [vmem:[%s373 + $0x5c] sm:$0xf]
        %v631 = vld [vmem:[%s373 + $0x60] sm:$0xf]
        %v632 = vld [vmem:[%s373 + $0x64] sm:$0xf]
        %v633 = vld [vmem:[%s373 + $0x68] sm:$0xf]
        %v634 = vld [vmem:[%s373 + $0x6c] sm:$0xf]
        %v635 = vld [vmem:[%s373 + $0x70] sm:$0xf]
        %v636 = vld [vmem:[%s373 + $0x74] sm:$0xf]
        %v637 = vld [vmem:[%s373 + $0x78] sm:$0xf]
        %v638 = vld [vmem:[%s373 + $0x7c] sm:$0xf]
        %v639 = vunpack.c.l.bf16 %v607
        %v640 = vunpack.c.l.bf16 %v608
        %v641 = vunpack.c.l.bf16 %v609
        %v642 = vunpack.c.l.bf16 %v610
        %v643 = vunpack.c.l.bf16 %v611
        %v644 = vunpack.c.l.bf16 %v612
        %v645 = vunpack.c.l.bf16 %v613
        %v646 = vunpack.c.l.bf16 %v614
        %v647 = vunpack.c.l.bf16 %v615
        %v648 = vunpack.c.l.bf16 %v616
        %v649 = vunpack.c.l.bf16 %v617
        %v650 = vunpack.c.l.bf16 %v618
        %v651 = vunpack.c.l.bf16 %v619
        %v652 = vunpack.c.l.bf16 %v620
        %v653 = vunpack.c.l.bf16 %v621
        %v654 = vunpack.c.l.bf16 %v622
        %v655 = vunpack.c.l.bf16 %v623
        %v656 = vunpack.c.l.bf16 %v624
        %v657 = vunpack.c.l.bf16 %v625
        %v658 = vunpack.c.l.bf16 %v626
        %v659 = vunpack.c.l.bf16 %v627
        %v660 = vunpack.c.l.bf16 %v628
        %v661 = vunpack.c.l.bf16 %v629
        %v662 = vunpack.c.l.bf16 %v630
        %v663 = vunpack.c.l.bf16 %v631
        %v664 = vunpack.c.l.bf16 %v632
        %v665 = vunpack.c.l.bf16 %v633
        %v666 = vunpack.c.l.bf16 %v634
        %v667 = vunpack.c.l.bf16 %v635
        %v668 = vunpack.c.l.bf16 %v636
        %v669 = vunpack.c.l.bf16 %v637
        %v670 = vunpack.c.l.bf16 %v638
        %703 = vrot.lane.b32.xlu0 %v511, 8
        %v704 = vpop.permute.xlu0 %703
        %705 = vrot.lane.b32.xlu0 %v512, 8
        %v706 = vpop.permute.xlu0 %705
        %707 = vrot.lane.b32.xlu0 %v513, 8
        %v708 = vpop.permute.xlu0 %707
        %709 = vrot.lane.b32.xlu0 %v514, 8
        %v710 = vpop.permute.xlu0 %709
        %711 = vrot.lane.b32.xlu0 %v515, 8
        %v712 = vpop.permute.xlu0 %711
        %713 = vrot.lane.b32.xlu0 %v516, 8
        %v714 = vpop.permute.xlu0 %713
        %715 = vrot.lane.b32.xlu0 %v517, 8
        %v716 = vpop.permute.xlu0 %715
        %717 = vrot.lane.b32.xlu0 %v518, 8
        %v718 = vpop.permute.xlu0 %717
        %719 = vrot.lane.b32.xlu0 %v519, 8
        %v720 = vpop.permute.xlu0 %719
        %721 = vrot.lane.b32.xlu0 %v520, 8
        %v722 = vpop.permute.xlu0 %721
        %723 = vrot.lane.b32.xlu0 %v521, 8
        %v724 = vpop.permute.xlu0 %723
        %725 = vrot.lane.b32.xlu0 %v522, 8
        %v726 = vpop.permute.xlu0 %725
        %727 = vrot.lane.b32.xlu0 %v523, 8
        %v728 = vpop.permute.xlu0 %727
        %729 = vrot.lane.b32.xlu0 %v524, 8
        %v730 = vpop.permute.xlu0 %729
        %731 = vrot.lane.b32.xlu0 %v525, 8
        %v732 = vpop.permute.xlu0 %731
        %733 = vrot.lane.b32.xlu0 %v526, 8
        %v734 = vpop.permute.xlu0 %733
        %735 = vrot.lane.b32.xlu0 %v527, 8
        %v736 = vpop.permute.xlu0 %735
        %737 = vrot.lane.b32.xlu0 %v528, 8
        %v738 = vpop.permute.xlu0 %737
        %739 = vrot.lane.b32.xlu0 %v529, 8
        %v740 = vpop.permute.xlu0 %739
        %741 = vrot.lane.b32.xlu0 %v530, 8
        %v742 = vpop.permute.xlu0 %741
        %743 = vrot.lane.b32.xlu0 %v531, 8
        %v744 = vpop.permute.xlu0 %743
        %745 = vrot.lane.b32.xlu0 %v532, 8
        %v746 = vpop.permute.xlu0 %745
        %747 = vrot.lane.b32.xlu0 %v533, 8
        %v748 = vpop.permute.xlu0 %747
        %749 = vrot.lane.b32.xlu0 %v534, 8
        %v750 = vpop.permute.xlu0 %749
        %751 = vrot.lane.b32.xlu0 %v535, 8
        %v752 = vpop.permute.xlu0 %751
        %753 = vrot.lane.b32.xlu0 %v536, 8
        %v754 = vpop.permute.xlu0 %753
        %755 = vrot.lane.b32.xlu0 %v537, 8
        %v756 = vpop.permute.xlu0 %755
        %757 = vrot.lane.b32.xlu0 %v538, 8
        %v758 = vpop.permute.xlu0 %757
        %759 = vrot.lane.b32.xlu0 %v539, 8
        %v760 = vpop.permute.xlu0 %759
        %761 = vrot.lane.b32.xlu0 %v540, 8
        %v762 = vpop.permute.xlu0 %761
        %763 = vrot.lane.b32.xlu0 %v541, 8
        %v764 = vpop.permute.xlu0 %763
        %765 = vrot.lane.b32.xlu0 %v542, 8
        %v766 = vpop.permute.xlu0 %765
        %831 = vrot.lane.b32.xlu0 %v575, 16
        %v832 = vpop.permute.xlu0 %831
        %833 = vrot.lane.b32.xlu0 %v576, 16
        %v834 = vpop.permute.xlu0 %833
        %835 = vrot.lane.b32.xlu0 %v577, 16
        %v836 = vpop.permute.xlu0 %835
        %837 = vrot.lane.b32.xlu0 %v578, 16
        %v838 = vpop.permute.xlu0 %837
        %839 = vrot.lane.b32.xlu0 %v579, 16
        %v840 = vpop.permute.xlu0 %839
        %841 = vrot.lane.b32.xlu0 %v580, 16
        %v842 = vpop.permute.xlu0 %841
        %843 = vrot.lane.b32.xlu0 %v581, 16
        %v844 = vpop.permute.xlu0 %843
        %845 = vrot.lane.b32.xlu0 %v582, 16
        %v846 = vpop.permute.xlu0 %845
        %847 = vrot.lane.b32.xlu0 %v583, 16
        %v848 = vpop.permute.xlu0 %847
        %849 = vrot.lane.b32.xlu0 %v584, 16
        %v850 = vpop.permute.xlu0 %849
        %851 = vrot.lane.b32.xlu0 %v585, 16
        %v852 = vpop.permute.xlu0 %851
        %853 = vrot.lane.b32.xlu0 %v586, 16
        %v854 = vpop.permute.xlu0 %853
        %855 = vrot.lane.b32.xlu0 %v587, 16
        %v856 = vpop.permute.xlu0 %855
        %857 = vrot.lane.b32.xlu0 %v588, 16
        %v858 = vpop.permute.xlu0 %857
        %859 = vrot.lane.b32.xlu0 %v589, 16
        %v860 = vpop.permute.xlu0 %859
        %861 = vrot.lane.b32.xlu0 %v590, 16
        %v862 = vpop.permute.xlu0 %861
        %863 = vrot.lane.b32.xlu0 %v591, 16
        %v864 = vpop.permute.xlu0 %863
        %865 = vrot.lane.b32.xlu0 %v592, 16
        %v866 = vpop.permute.xlu0 %865
        %867 = vrot.lane.b32.xlu0 %v593, 16
        %v868 = vpop.permute.xlu0 %867
        %869 = vrot.lane.b32.xlu0 %v594, 16
        %v870 = vpop.permute.xlu0 %869
        %871 = vrot.lane.b32.xlu0 %v595, 16
        %v872 = vpop.permute.xlu0 %871
        %873 = vrot.lane.b32.xlu0 %v596, 16
        %v874 = vpop.permute.xlu0 %873
        %875 = vrot.lane.b32.xlu0 %v597, 16
        %v876 = vpop.permute.xlu0 %875
        %877 = vrot.lane.b32.xlu0 %v598, 16
        %v878 = vpop.permute.xlu0 %877
        %879 = vrot.lane.b32.xlu0 %v599, 16
        %v880 = vpop.permute.xlu0 %879
        %881 = vrot.lane.b32.xlu0 %v600, 16
        %v882 = vpop.permute.xlu0 %881
        %883 = vrot.lane.b32.xlu0 %v601, 16
        %v884 = vpop.permute.xlu0 %883
        %885 = vrot.lane.b32.xlu0 %v602, 16
        %v886 = vpop.permute.xlu0 %885
        %887 = vrot.lane.b32.xlu0 %v603, 16
        %v888 = vpop.permute.xlu0 %887
        %889 = vrot.lane.b32.xlu0 %v604, 16
        %v890 = vpop.permute.xlu0 %889
        %891 = vrot.lane.b32.xlu0 %v605, 16
        %v892 = vpop.permute.xlu0 %891
        %893 = vrot.lane.b32.xlu0 %v606, 16
        %v894 = vpop.permute.xlu0 %893
        %959 = vrot.lane.b32.xlu0 %v639, 24
        %v960 = vpop.permute.xlu0 %959
        %961 = vrot.lane.b32.xlu0 %v640, 24
        %v962 = vpop.permute.xlu0 %961
        %963 = vrot.lane.b32.xlu0 %v641, 24
        %v964 = vpop.permute.xlu0 %963
        %965 = vrot.lane.b32.xlu0 %v642, 24
        %v966 = vpop.permute.xlu0 %965
        %967 = vrot.lane.b32.xlu0 %v643, 24
        %v968 = vpop.permute.xlu0 %967
        %969 = vrot.lane.b32.xlu0 %v644, 24
        %v970 = vpop.permute.xlu0 %969
        %971 = vrot.lane.b32.xlu0 %v645, 24
        %v972 = vpop.permute.xlu0 %971
        %973 = vrot.lane.b32.xlu0 %v646, 24
        %v974 = vpop.permute.xlu0 %973
        %975 = vrot.lane.b32.xlu0 %v647, 24
        %v976 = vpop.permute.xlu0 %975
        %977 = vrot.lane.b32.xlu0 %v648, 24
        %v978 = vpop.permute.xlu0 %977
        %979 = vrot.lane.b32.xlu0 %v649, 24
        %v980 = vpop.permute.xlu0 %979
        %981 = vrot.lane.b32.xlu0 %v650, 24
        %v982 = vpop.permute.xlu0 %981
        %983 = vrot.lane.b32.xlu0 %v651, 24
        %v984 = vpop.permute.xlu0 %983
        %985 = vrot.lane.b32.xlu0 %v652, 24
        %v986 = vpop.permute.xlu0 %985
        %987 = vrot.lane.b32.xlu0 %v653, 24
        %v988 = vpop.permute.xlu0 %987
        %989 = vrot.lane.b32.xlu0 %v654, 24
        %v990 = vpop.permute.xlu0 %989
        %991 = vrot.lane.b32.xlu0 %v655, 24
        %v992 = vpop.permute.xlu0 %991
        %993 = vrot.lane.b32.xlu0 %v656, 24
        %v994 = vpop.permute.xlu0 %993
        %995 = vrot.lane.b32.xlu0 %v657, 24
        %v996 = vpop.permute.xlu0 %995
        %997 = vrot.lane.b32.xlu0 %v658, 24
        %v998 = vpop.permute.xlu0 %997
        %999 = vrot.lane.b32.xlu0 %v659, 24
        %v1000 = vpop.permute.xlu0 %999
        %1001 = vrot.lane.b32.xlu0 %v660, 24
        %v1002 = vpop.permute.xlu0 %1001
        %1003 = vrot.lane.b32.xlu0 %v661, 24
        %v1004 = vpop.permute.xlu0 %1003
        %1005 = vrot.lane.b32.xlu0 %v662, 24
        %v1006 = vpop.permute.xlu0 %1005
        %1007 = vrot.lane.b32.xlu0 %v663, 24
        %v1008 = vpop.permute.xlu0 %1007
        %1009 = vrot.lane.b32.xlu0 %v664, 24
        %v1010 = vpop.permute.xlu0 %1009
        %1011 = vrot.lane.b32.xlu0 %v665, 24
        %v1012 = vpop.permute.xlu0 %1011
        %1013 = vrot.lane.b32.xlu0 %v666, 24
        %v1014 = vpop.permute.xlu0 %1013
        %1015 = vrot.lane.b32.xlu0 %v667, 24
        %v1016 = vpop.permute.xlu0 %1015
        %1017 = vrot.lane.b32.xlu0 %v668, 24
        %v1018 = vpop.permute.xlu0 %1017
        %1019 = vrot.lane.b32.xlu0 %v669, 24
        %v1020 = vpop.permute.xlu0 %1019
        %1021 = vrot.lane.b32.xlu0 %v670, 24
        %v1022 = vpop.permute.xlu0 %1021
        %vm1055 = vcmask 64512
        %v1056 = vsel %vm1055, %v447, %v704
        %v1057 = vsel %vm1055, %v448, %v706
        %v1058 = vsel %vm1055, %v449, %v708
        %v1059 = vsel %vm1055, %v450, %v710
        %v1060 = vsel %vm1055, %v451, %v712
        %v1061 = vsel %vm1055, %v452, %v714
        %v1062 = vsel %vm1055, %v453, %v716
        %v1063 = vsel %vm1055, %v454, %v718
        %v1064 = vsel %vm1055, %v455, %v720
        %v1065 = vsel %vm1055, %v456, %v722
        %v1066 = vsel %vm1055, %v457, %v724
        %v1067 = vsel %vm1055, %v458, %v726
        %v1068 = vsel %vm1055, %v459, %v728
        %v1069 = vsel %vm1055, %v460, %v730
        %v1070 = vsel %vm1055, %v461, %v732
        %v1071 = vsel %vm1055, %v462, %v734
        %v1072 = vsel %vm1055, %v463, %v736
        %v1073 = vsel %vm1055, %v464, %v738
        %v1074 = vsel %vm1055, %v465, %v740
        %v1075 = vsel %vm1055, %v466, %v742
        %v1076 = vsel %vm1055, %v467, %v744
        %v1077 = vsel %vm1055, %v468, %v746
        %v1078 = vsel %vm1055, %v469, %v748
        %v1079 = vsel %vm1055, %v470, %v750
        %v1080 = vsel %vm1055, %v471, %v752
        %v1081 = vsel %vm1055, %v472, %v754
        %v1082 = vsel %vm1055, %v473, %v756
        %v1083 = vsel %vm1055, %v474, %v758
        %v1084 = vsel %vm1055, %v475, %v760
        %v1085 = vsel %vm1055, %v476, %v762
        %v1086 = vsel %vm1055, %v477, %v764
        %v1087 = vsel %vm1055, %v478, %v766
        %vm1088 = vcmask 130048
        %v1089 = vsel %vm1088, %v1056, %v832
        %v1090 = vsel %vm1088, %v1057, %v834
        %v1091 = vsel %vm1088, %v1058, %v836
        %v1092 = vsel %vm1088, %v1059, %v838
        %v1093 = vsel %vm1088, %v1060, %v840
        %v1094 = vsel %vm1088, %v1061, %v842
        %v1095 = vsel %vm1088, %v1062, %v844
        %v1096 = vsel %vm1088, %v1063, %v846
        %v1097 = vsel %vm1088, %v1064, %v848
        %v1098 = vsel %vm1088, %v1065, %v850
        %v1099 = vsel %vm1088, %v1066, %v852
        %v1100 = vsel %vm1088, %v1067, %v854
        %v1101 = vsel %vm1088, %v1068, %v856
        %v1102 = vsel %vm1088, %v1069, %v858
        %v1103 = vsel %vm1088, %v1070, %v860
        %v1104 = vsel %vm1088, %v1071, %v862
        %v1105 = vsel %vm1088, %v1072, %v864
        %v1106 = vsel %vm1088, %v1073, %v866
        %v1107 = vsel %vm1088, %v1074, %v868
        %v1108 = vsel %vm1088, %v1075, %v870
        %v1109 = vsel %vm1088, %v1076, %v872
        %v1110 = vsel %vm1088, %v1077, %v874
        %v1111 = vsel %vm1088, %v1078, %v876
        %v1112 = vsel %vm1088, %v1079, %v878
        %v1113 = vsel %vm1088, %v1080, %v880
        %v1114 = vsel %vm1088, %v1081, %v882
        %v1115 = vsel %vm1088, %v1082, %v884
        %v1116 = vsel %vm1088, %v1083, %v886
        %v1117 = vsel %vm1088, %v1084, %v888
        %v1118 = vsel %vm1088, %v1085, %v890
        %v1119 = vsel %vm1088, %v1086, %v892
        %v1120 = vsel %vm1088, %v1087, %v894
        %vm1121 = vcmask 195584
        %v1122 = vsel %vm1121, %v1089, %v960
        %v1123 = vsel %vm1121, %v1090, %v962
        %v1124 = vsel %vm1121, %v1091, %v964
        %v1125 = vsel %vm1121, %v1092, %v966
        %v1126 = vsel %vm1121, %v1093, %v968
        %v1127 = vsel %vm1121, %v1094, %v970
        %v1128 = vsel %vm1121, %v1095, %v972
        %v1129 = vsel %vm1121, %v1096, %v974
        %v1130 = vsel %vm1121, %v1097, %v976
        %v1131 = vsel %vm1121, %v1098, %v978
        %v1132 = vsel %vm1121, %v1099, %v980
        %v1133 = vsel %vm1121, %v1100, %v982
        %v1134 = vsel %vm1121, %v1101, %v984
        %v1135 = vsel %vm1121, %v1102, %v986
        %v1136 = vsel %vm1121, %v1103, %v988
        %v1137 = vsel %vm1121, %v1104, %v990
        %v1138 = vsel %vm1121, %v1105, %v992
        %v1139 = vsel %vm1121, %v1106, %v994
        %v1140 = vsel %vm1121, %v1107, %v996
        %v1141 = vsel %vm1121, %v1108, %v998
        %v1142 = vsel %vm1121, %v1109, %v1000
        %v1143 = vsel %vm1121, %v1110, %v1002
        %v1144 = vsel %vm1121, %v1111, %v1004
        %v1145 = vsel %vm1121, %v1112, %v1006
        %v1146 = vsel %vm1121, %v1113, %v1008
        %v1147 = vsel %vm1121, %v1114, %v1010
        %v1148 = vsel %vm1121, %v1115, %v1012
        %v1149 = vsel %vm1121, %v1116, %v1014
        %v1150 = vsel %vm1121, %v1117, %v1016
        %v1151 = vsel %vm1121, %v1118, %v1018
        %v1152 = vsel %vm1121, %v1119, %v1020
        %v1153 = vsel %vm1121, %v1120, %v1022
        %vm1154 = vcmask 261120
        %1155 = vst.msk [vmem:[%s331] sm:$0xff] %vm1154, %v1122
        %1156 = vst.msk [vmem:[%s331 + $0x8] sm:$0xff] %vm1154, %v1123
        %1157 = vst.msk [vmem:[%s331 + $0x10] sm:$0xff] %vm1154, %v1124
        %1158 = vst.msk [vmem:[%s331 + $0x18] sm:$0xff] %vm1154, %v1125
        %1159 = vst.msk [vmem:[%s331 + $0x20] sm:$0xff] %vm1154, %v1126
        %1160 = vst.msk [vmem:[%s331 + $0x28] sm:$0xff] %vm1154, %v1127
        %1161 = vst.msk [vmem:[%s331 + $0x30] sm:$0xff] %vm1154, %v1128
        %1162 = vst.msk [vmem:[%s331 + $0x38] sm:$0xff] %vm1154, %v1129
        %1163 = vst.msk [vmem:[%s331 + $0x40] sm:$0xff] %vm1154, %v1130
        %1164 = vst.msk [vmem:[%s331 + $0x48] sm:$0xff] %vm1154, %v1131
        %1165 = vst.msk [vmem:[%s331 + $0x50] sm:$0xff] %vm1154, %v1132
        %1166 = vst.msk [vmem:[%s331 + $0x58] sm:$0xff] %vm1154, %v1133
        %1167 = vst.msk [vmem:[%s331 + $0x60] sm:$0xff] %vm1154, %v1134
        %1168 = vst.msk [vmem:[%s331 + $0x68] sm:$0xff] %vm1154, %v1135
        %1169 = vst.msk [vmem:[%s331 + $0x70] sm:$0xff] %vm1154, %v1136
        %1170 = vst.msk [vmem:[%s331 + $0x78] sm:$0xff] %vm1154, %v1137
        %1171 = vst.msk [vmem:[%s331 + $0x80] sm:$0xff] %vm1154, %v1138
        %1172 = vst.msk [vmem:[%s331 + $0x88] sm:$0xff] %vm1154, %v1139
        %1173 = vst.msk [vmem:[%s331 + $0x90] sm:$0xff] %vm1154, %v1140
        %1174 = vst.msk [vmem:[%s331 + $0x98] sm:$0xff] %vm1154, %v1141
        %1175 = vst.msk [vmem:[%s331 + $0xa0] sm:$0xff] %vm1154, %v1142
        %1176 = vst.msk [vmem:[%s331 + $0xa8] sm:$0xff] %vm1154, %v1143
        %1177 = vst.msk [vmem:[%s331 + $0xb0] sm:$0xff] %vm1154, %v1144
        %1178 = vst.msk [vmem:[%s331 + $0xb8] sm:$0xff] %vm1154, %v1145
        %1179 = vst.msk [vmem:[%s331 + $0xc0] sm:$0xff] %vm1154, %v1146
        %1180 = vst.msk [vmem:[%s331 + $0xc8] sm:$0xff] %vm1154, %v1147
        %1181 = vst.msk [vmem:[%s331 + $0xd0] sm:$0xff] %vm1154, %v1148
        %1182 = vst.msk [vmem:[%s331 + $0xd8] sm:$0xff] %vm1154, %v1149
        %1183 = vst.msk [vmem:[%s331 + $0xe0] sm:$0xff] %vm1154, %v1150
        %1184 = vst.msk [vmem:[%s331 + $0xe8] sm:$0xff] %vm1154, %v1151
        %1185 = vst.msk [vmem:[%s331 + $0xf0] sm:$0xff] %vm1154, %v1152
        %1186 = vst.msk [vmem:[%s331 + $0xf8] sm:$0xff] %vm1154, %v1153
        %s1187 = sand.u32 %s179, 1
        %s1188 = scalar_lea.sflag [#allocation3], %s1187
        %s1189 = sand.u32 %s179, 1
        %s1190 = smul.addr %s1189, 256
        %s1191 = scalar_lea.vmem [#allocation2], %s1190
        // Predicated region
        $region41: #{inception_mixed.9} parent=39 // pred_check
          %p1192 = pneg %p189
        $region42: #{inception_mixed.9} parent=39 // pred_check_branch
          %1194 = sbr.rel (%p1192) target = $region44
        $region43: #{inception_mixed.9} parent=39 // pred_region
          %s1195 = smul.u32 32, %s24
          %s1197 = ssub.s32 4096, 4096
          %1198 = vsyncadd %s1188, %s1197
          %s1199 = smul.addr %s23, 32
          %s1200 = sadd.s32 %s1195, %s1199
          %s1201 = smul.addr %s1200, 128
          %s1202 = scalar_lea.hbm %s5, %s1201
          %s1203 = sshll.u32 %s1191, 4
          %s1204 = int_to_ptr.vmem [resolvable:$true] %s1203
          %1209 = dma.vmem_to_hbm [thread:$0]  %s1204, 4096, %s1202, %s1188, 128, 128, 8
        $region44: #{inception_mixed.9} parent=39 // pred_fallthru
          _
      $region40: #{inception_mixed.9} parent=5 // pred_fallthru
        _
      %p1210 = scmp.le.s32.totalorder 2, %s14
      // Predicated region
      $region45: #{inception_mixed.9} parent=5 // pred_check
        %p1211 = pneg %p1210
      $region46: #{inception_mixed.9} parent=5 // pred_check_branch
        %1213 = sbr.rel (%p1211) target = $region48
      $region47: #{inception_mixed.9} parent=5 // pred_region
        %s1214 = ssub.s32 %s14, 2
        // Predicated region
        $region49: #{inception_mixed.9} parent=47 // pred_check
          %p1215 = pneg %p195
        $region50: #{inception_mixed.9} parent=47 // pred_check_branch
          %1217 = sbr.rel (%p1215) target = $region52
        $region51: #{inception_mixed.9} parent=47 // pred_region
          %s1218 = sand.u32 %s180, 1
          %s1219 = scalar_lea.sflag [#allocation3], %s1218
          %s1220 = sand.u32 %s180, 1
          %s1221 = smul.addr %s1220, 256
          %s1222 = scalar_lea.vmem [#allocation2], %s1221
          %1223 = dma.done %s1219, 4096
        $region52: #{inception_mixed.9} parent=47 // pred_fallthru
          _
      $region48: #{inception_mixed.9} parent=5 // pred_fallthru
        _
    $region6: #{inception_mixed.9} parent=1 // loop_footer
      %s18 = sadd.s32 1, %s14
    $region7: #{inception_mixed.9} parent=1 // loop_footer_branch
      %13 = sbr.rel target = $region3
    $region8: #{inception_mixed.9} parent=1 // loop_exit
      _
    %1224 = vsyncpa [#allocation3], 1
    %s1225 = scalar_lea.sflag [#allocation3], 1
    %1226 = vsyncpa %s1225, 1

// kernel: inception_mixed.5
$region0: #{inception_mixed.5}
  #allocation0 [shape = 'u32[]', space=smem, size = 0x4, offset = 0x4, fixed_abs, tag = 'smem constant byte address 0x4 - core index']
  #allocation1 [shape = 'u32[144,128]{1,0:T(1,128)}', space=vmem, size = 0x12000, scoped, tag = 'internal scratch']
  %s0 = inlined_call_operand.vmem [shape: f32[2,256,4], index: 0, kind: input, shape index: {}]
  %s1 = inlined_call_operand.vmem [shape: f32[4,8], index: 1, kind: input, shape index: {}]
  %s2 = inlined_call_operand.vmem [shape: f32[4,8], index: 2, kind: input, shape index: {}]
  %s3 = inlined_call_operand.vmem [shape: f32[4,8], index: 3, kind: input, shape index: {}]
  %s4 = inlined_call_operand.vmem [shape: f32[1,8], index: 4, kind: input, shape index: {}]
  %s5 = inlined_call_operand.vmem [shape: f32[1,8], index: 5, kind: input, shape index: {}]
  %s6 = inlined_call_operand.vmem [shape: f32[1,8], index: 6, kind: input, shape index: {}]
  %s7 = inlined_call_operand.vmem [shape: f32[1,8], index: 7, kind: input, shape index: {}]
  %s8 = inlined_call_operand.vmem [shape: f32[1,8], index: 8, kind: input, shape index: {}]
  %s9 = inlined_call_operand.vmem [shape: f32[1,8], index: 9, kind: input, shape index: {}]
  %s10 = inlined_call_operand.vmem [shape: bf16[2,256,8], index: 10, kind: output, shape index: {0}]
  %s11 = inlined_call_operand.vmem [shape: bf16[2,256,8], index: 11, kind: output, shape index: {1}]
  %s12 = inlined_call_operand.vmem [shape: bf16[2,256,8], index: 12, kind: output, shape index: {2}]
  %s13 = inlined_call_operand.vmem [shape: f32[2,1,8], index: 13, kind: output, shape index: {3}]
  %14 = xla_tuple %s10, %s11, %s12, %s13
  %s15 = sld [smem:[#allocation0]]
  $region101: #{inception_mixed.5} parent=0
    _
  %s17 = ssub.s32 1, %s15
  %s18 = scalar_select 0, %s17, %s15
  loop: start=0, step=1, limit=4
  $region2: #{inception_mixed.5} parent=0 // loop_pre_header
    _
  $region3: #{inception_mixed.5} parent=0 // loop_header
    %s20 = sphi 0, %s24
    %p21 = scmp.ge.s32.totalorder %s20, 4
    %s27 = sphi 0, %s39
    %s28 = sphi 0, %s35
    %s29 = sphi 0, %s27
    %s30 = sphi 0, %s28
    %s31 = sphi 0, %s29
    %s32 = sphi 0, %s30
    %s44 = sphi 0, %s46
    %s47 = sphi 0, %s44
    %s48 = sphi 0, %s47
    %s64 = sphi 0, %s48
    %s68 = sphi 0, %s68
    %s70 = sphi 0, %s68
    %s71 = sphi 0, %s70
    %s85 = sphi 0, %s71
    %s89 = sphi 0, %s89
    %s91 = sphi 0, %s89
    %s92 = sphi 0, %s91
    %s106 = sphi 0, %s92
    %s110 = sphi 0, %s110
    %s112 = sphi 0, %s110
    %s113 = sphi 0, %s112
    %s127 = sphi 0, %s113
    %s131 = sphi 0, %s131
    %s133 = sphi 0, %s131
    %s134 = sphi 0, %s133
    %s148 = sphi 0, %s134
    %s152 = sphi 0, %s152
    %s154 = sphi 0, %s152
    %s155 = sphi 0, %s154
    %s169 = sphi 0, %s155
    %s173 = sphi 0, %s173
    %s175 = sphi 0, %s173
    %s176 = sphi 0, %s175
    %s190 = sphi 0, %s176
    %s194 = sphi 0, %s194
    %s196 = sphi 0, %s194
    %s197 = sphi 0, %s196
    %s211 = sphi 0, %s197
    %s215 = sphi 0, %s215
    %s217 = sphi 0, %s215
    %s218 = sphi 0, %s217
    %s232 = sphi 0, %s218
    %s236 = sphi 0, %s236
    %s238 = sphi 0, %s236
    %s239 = sphi 0, %s238
    %s253 = sphi 0, %s239
    %s261 = sphi 0, %s263
    %s264 = sphi 0, %s261
    %s265 = sphi 0, %s264
    %s281 = sphi 0, %s265
    %s289 = sphi 0, %s291
    %s292 = sphi 0, %s289
    %s293 = sphi 0, %s292
    %s309 = sphi 0, %s293
    %s317 = sphi 0, %s319
    %s320 = sphi 0, %s317
    %s321 = sphi 0, %s320
    %s337 = sphi 0, %s321
    %s343 = sphi 0, %s345
    %s346 = sphi 0, %s343
    %s347 = sphi 0, %s346
    %s363 = sphi 0, %s347
  $region4: #{inception_mixed.5} parent=0 // loop_header_branch
    %23 = sbr.rel (%p21) target = $region8
  $region5: #{inception_mixed.5} parent=0 // loop_body
    %s25 = ssub.s32 %s20, 1
    %s26 = ssub.s32 %s20, 2
    %s33 = sadd.s32 1, %s28
    %p34 = scmp.ge.s32.totalorder %s33, 1
    %s35 = scalar_select %p34, 0, %s33
    %s36 = sadd.s32 1, %s27
    %s37 = scalar_select %p34, %s36, %s27
    %p38 = scmp.ge.s32.totalorder %s37, 2
    %s39 = scalar_select %p38, 0, %s37
    %s40 = ssub.s32 %s27, %s39
    %s41 = ssub.s32 %s28, %s35
    %s42 = sor.u32 %s40, %s41
    %p43 = scmp.eq.s32.totalorder %s42, 0
    %s45 = sadd.s32 %s44, 1
    %s46 = scalar_select %p43, %s44, %s45
    %p49 = pneg %p43
    %p50 = scmp.eq.s32.totalorder %s20, 1
    %p51 = por %p49, %p50
    %p52 = scmp.ne.s32.totalorder %s44, %s47
    %p53 = scmp.eq.s32.totalorder %s20, 0
    %p54 = por %p52, %p53
    %p55 = scmp.ne.s32.totalorder %s44, %s47
    %p56 = scmp.eq.s32.totalorder %s25, 1
    %p57 = por %p55, %p56
    %p58 = scmp.ne.s32.totalorder %s47, %s48
    %p59 = scmp.eq.s32.totalorder %s25, 0
    %p60 = por %p58, %p59
    %p61 = scmp.ne.s32.totalorder %s47, %s48
    %p62 = scmp.eq.s32.totalorder %s26, 1
    %p63 = por %p61, %p62
    %p65 = scmp.ne.s32.totalorder %s48, %s64
    %p66 = scmp.eq.s32.totalorder %s26, 0
    %p67 = por %p65, %p66
    %s69 = sadd.s32 %s68, 1
    %p72 = scmp.eq.s32.totalorder %s20, 1
    %p73 = scmp.ne.s32.totalorder %s68, %s70
    %p74 = scmp.eq.s32.totalorder %s20, 0
    %p75 = por %p73, %p74
    %p76 = scmp.ne.s32.totalorder %s68, %s70
    %p77 = scmp.eq.s32.totalorder %s25, 1
    %p78 = por %p76, %p77
    %p79 = scmp.ne.s32.totalorder %s70, %s71
    %p80 = scmp.eq.s32.totalorder %s25, 0
    %p81 = por %p79, %p80
    %p82 = scmp.ne.s32.totalorder %s70, %s71
    %p83 = scmp.eq.s32.totalorder %s26, 1
    %p84 = por %p82, %p83
    %p86 = scmp.ne.s32.totalorder %s71, %s85
    %p87 = scmp.eq.s32.totalorder %s26, 0
    %p88 = por %p86, %p87
    %s90 = sadd.s32 %s89, 1
    %p93 = scmp.eq.s32.totalorder %s20, 1
    %p94 = scmp.ne.s32.totalorder %s89, %s91
    %p95 = scmp.eq.s32.totalorder %s20, 0
    %p96 = por %p94, %p95
    %p97 = scmp.ne.s32.totalorder %s89, %s91
    %p98 = scmp.eq.s32.totalorder %s25, 1
    %p99 = por %p97, %p98
    %p100 = scmp.ne.s32.totalorder %s91, %s92
    %p101 = scmp.eq.s32.totalorder %s25, 0
    %p102 = por %p100, %p101
    %p103 = scmp.ne.s32.totalorder %s91, %s92
    %p104 = scmp.eq.s32.totalorder %s26, 1
    %p105 = por %p103, %p104
    %p107 = scmp.ne.s32.totalorder %s92, %s106
    %p108 = scmp.eq.s32.totalorder %s26, 0
    %p109 = por %p107, %p108
    %s111 = sadd.s32 %s110, 1
    %p114 = scmp.eq.s32.totalorder %s20, 1
    %p115 = scmp.ne.s32.totalorder %s110, %s112
    %p116 = scmp.eq.s32.totalorder %s20, 0
    %p117 = por %p115, %p116
    %p118 = scmp.ne.s32.totalorder %s110, %s112
    %p119 = scmp.eq.s32.totalorder %s25, 1
    %p120 = por %p118, %p119
    %p121 = scmp.ne.s32.totalorder %s112, %s113
    %p122 = scmp.eq.s32.totalorder %s25, 0
    %p123 = por %p121, %p122
    %p124 = scmp.ne.s32.totalorder %s112, %s113
    %p125 = scmp.eq.s32.totalorder %s26, 1
    %p126 = por %p124, %p125
    %p128 = scmp.ne.s32.totalorder %s113, %s127
    %p129 = scmp.eq.s32.totalorder %s26, 0
    %p130 = por %p128, %p129
    %s132 = sadd.s32 %s131, 1
    %p135 = scmp.eq.s32.totalorder %s20, 1
    %p136 = scmp.ne.s32.totalorder %s131, %s133
    %p137 = scmp.eq.s32.totalorder %s20, 0
    %p138 = por %p136, %p137
    %p139 = scmp.ne.s32.totalorder %s131, %s133
    %p140 = scmp.eq.s32.totalorder %s25, 1
    %p141 = por %p139, %p140
    %p142 = scmp.ne.s32.totalorder %s133, %s134
    %p143 = scmp.eq.s32.totalorder %s25, 0
    %p144 = por %p142, %p143
    %p145 = scmp.ne.s32.totalorder %s133, %s134
    %p146 = scmp.eq.s32.totalorder %s26, 1
    %p147 = por %p145, %p146
    %p149 = scmp.ne.s32.totalorder %s134, %s148
    %p150 = scmp.eq.s32.totalorder %s26, 0
    %p151 = por %p149, %p150
    %s153 = sadd.s32 %s152, 1
    %p156 = scmp.eq.s32.totalorder %s20, 1
    %p157 = scmp.ne.s32.totalorder %s152, %s154
    %p158 = scmp.eq.s32.totalorder %s20, 0
    %p159 = por %p157, %p158
    %p160 = scmp.ne.s32.totalorder %s152, %s154
    %p161 = scmp.eq.s32.totalorder %s25, 1
    %p162 = por %p160, %p161
    %p163 = scmp.ne.s32.totalorder %s154, %s155
    %p164 = scmp.eq.s32.totalorder %s25, 0
    %p165 = por %p163, %p164
    %p166 = scmp.ne.s32.totalorder %s154, %s155
    %p167 = scmp.eq.s32.totalorder %s26, 1
    %p168 = por %p166, %p167
    %p170 = scmp.ne.s32.totalorder %s155, %s169
    %p171 = scmp.eq.s32.totalorder %s26, 0
    %p172 = por %p170, %p171
    %s174 = sadd.s32 %s173, 1
    %p177 = scmp.eq.s32.totalorder %s20, 1
    %p178 = scmp.ne.s32.totalorder %s173, %s175
    %p179 = scmp.eq.s32.totalorder %s20, 0
    %p180 = por %p178, %p179
    %p181 = scmp.ne.s32.totalorder %s173, %s175
    %p182 = scmp.eq.s32.totalorder %s25, 1
    %p183 = por %p181, %p182
    %p184 = scmp.ne.s32.totalorder %s175, %s176
    %p185 = scmp.eq.s32.totalorder %s25, 0
    %p186 = por %p184, %p185
    %p187 = scmp.ne.s32.totalorder %s175, %s176
    %p188 = scmp.eq.s32.totalorder %s26, 1
    %p189 = por %p187, %p188
    %p191 = scmp.ne.s32.totalorder %s176, %s190
    %p192 = scmp.eq.s32.totalorder %s26, 0
    %p193 = por %p191, %p192
    %s195 = sadd.s32 %s194, 1
    %p198 = scmp.eq.s32.totalorder %s20, 1
    %p199 = scmp.ne.s32.totalorder %s194, %s196
    %p200 = scmp.eq.s32.totalorder %s20, 0
    %p201 = por %p199, %p200
    %p202 = scmp.ne.s32.totalorder %s194, %s196
    %p203 = scmp.eq.s32.totalorder %s25, 1
    %p204 = por %p202, %p203
    %p205 = scmp.ne.s32.totalorder %s196, %s197
    %p206 = scmp.eq.s32.totalorder %s25, 0
    %p207 = por %p205, %p206
    %p208 = scmp.ne.s32.totalorder %s196, %s197
    %p209 = scmp.eq.s32.totalorder %s26, 1
    %p210 = por %p208, %p209
    %p212 = scmp.ne.s32.totalorder %s197, %s211
    %p213 = scmp.eq.s32.totalorder %s26, 0
    %p214 = por %p212, %p213
    %s216 = sadd.s32 %s215, 1
    %p219 = scmp.eq.s32.totalorder %s20, 1
    %p220 = scmp.ne.s32.totalorder %s215, %s217
    %p221 = scmp.eq.s32.totalorder %s20, 0
    %p222 = por %p220, %p221
    %p223 = scmp.ne.s32.totalorder %s215, %s217
    %p224 = scmp.eq.s32.totalorder %s25, 1
    %p225 = por %p223, %p224
    %p226 = scmp.ne.s32.totalorder %s217, %s218
    %p227 = scmp.eq.s32.totalorder %s25, 0
    %p228 = por %p226, %p227
    %p229 = scmp.ne.s32.totalorder %s217, %s218
    %p230 = scmp.eq.s32.totalorder %s26, 1
    %p231 = por %p229, %p230
    %p233 = scmp.ne.s32.totalorder %s218, %s232
    %p234 = scmp.eq.s32.totalorder %s26, 0
    %p235 = por %p233, %p234
    %s237 = sadd.s32 %s236, 1
    %p240 = scmp.eq.s32.totalorder %s20, 1
    %p241 = scmp.ne.s32.totalorder %s236, %s238
    %p242 = scmp.eq.s32.totalorder %s20, 0
    %p243 = por %p241, %p242
    %p244 = scmp.ne.s32.totalorder %s236, %s238
    %p245 = scmp.eq.s32.totalorder %s25, 1
    %p246 = por %p244, %p245
    %p247 = scmp.ne.s32.totalorder %s238, %s239
    %p248 = scmp.eq.s32.totalorder %s25, 0
    %p249 = por %p247, %p248
    %p250 = scmp.ne.s32.totalorder %s238, %s239
    %p251 = scmp.eq.s32.totalorder %s26, 1
    %p252 = por %p250, %p251
    %p254 = scmp.ne.s32.totalorder %s239, %s253
    %p255 = scmp.eq.s32.totalorder %s26, 0
    %p256 = por %p254, %p255
    %s257 = ssub.s32 %s27, %s39
    %s258 = ssub.s32 %s28, %s35
    %s259 = sor.u32 %s257, %s258
    %p260 = scmp.eq.s32.totalorder %s259, 0
    %s262 = sadd.s32 %s261, 1
    %s263 = scalar_select %p260, %s261, %s262
    %p266 = pneg %p260
    %p267 = scmp.eq.s32.totalorder %s20, 1
    %p268 = por %p266, %p267
    %p269 = scmp.ne.s32.totalorder %s261, %s264
    %p270 = scmp.eq.s32.totalorder %s20, 0
    %p271 = por %p269, %p270
    %p272 = scmp.ne.s32.totalorder %s261, %s264
    %p273 = scmp.eq.s32.totalorder %s25, 1
    %p274 = por %p272, %p273
    %p275 = scmp.ne.s32.totalorder %s264, %s265
    %p276 = scmp.eq.s32.totalorder %s25, 0
    %p277 = por %p275, %p276
    %p278 = scmp.ne.s32.totalorder %s264, %s265
    %p279 = scmp.eq.s32.totalorder %s26, 1
    %p280 = por %p278, %p279
    %p282 = scmp.ne.s32.totalorder %s265, %s281
    %p283 = scmp.eq.s32.totalorder %s26, 0
    %p284 = por %p282, %p283
    %s285 = ssub.s32 %s27, %s39
    %s286 = ssub.s32 %s28, %s35
    %s287 = sor.u32 %s285, %s286
    %p288 = scmp.eq.s32.totalorder %s287, 0
    %s290 = sadd.s32 %s289, 1
    %s291 = scalar_select %p288, %s289, %s290
    %p294 = pneg %p288
    %p295 = scmp.eq.s32.totalorder %s20, 1
    %p296 = por %p294, %p295
    %p297 = scmp.ne.s32.totalorder %s289, %s292
    %p298 = scmp.eq.s32.totalorder %s20, 0
    %p299 = por %p297, %p298
    %p300 = scmp.ne.s32.totalorder %s289, %s292
    %p301 = scmp.eq.s32.totalorder %s25, 1
    %p302 = por %p300, %p301
    %p303 = scmp.ne.s32.totalorder %s292, %s293
    %p304 = scmp.eq.s32.totalorder %s25, 0
    %p305 = por %p303, %p304
    %p306 = scmp.ne.s32.totalorder %s292, %s293
    %p307 = scmp.eq.s32.totalorder %s26, 1
    %p308 = por %p306, %p307
    %p310 = scmp.ne.s32.totalorder %s293, %s309
    %p311 = scmp.eq.s32.totalorder %s26, 0
    %p312 = por %p310, %p311
    %s313 = ssub.s32 %s27, %s39
    %s314 = ssub.s32 %s28, %s35
    %s315 = sor.u32 %s313, %s314
    %p316 = scmp.eq.s32.totalorder %s315, 0
    %s318 = sadd.s32 %s317, 1
    %s319 = scalar_select %p316, %s317, %s318
    %p322 = pneg %p316
    %p323 = scmp.eq.s32.totalorder %s20, 1
    %p324 = por %p322, %p323
    %p325 = scmp.ne.s32.totalorder %s317, %s320
    %p326 = scmp.eq.s32.totalorder %s20, 0
    %p327 = por %p325, %p326
    %p328 = scmp.ne.s32.totalorder %s317, %s320
    %p329 = scmp.eq.s32.totalorder %s25, 1
    %p330 = por %p328, %p329
    %p331 = scmp.ne.s32.totalorder %s320, %s321
    %p332 = scmp.eq.s32.totalorder %s25, 0
    %p333 = por %p331, %p332
    %p334 = scmp.ne.s32.totalorder %s320, %s321
    %p335 = scmp.eq.s32.totalorder %s26, 1
    %p336 = por %p334, %p335
    %p338 = scmp.ne.s32.totalorder %s321, %s337
    %p339 = scmp.eq.s32.totalorder %s26, 0
    %p340 = por %p338, %p339
    %s341 = ssub.s32 %s27, %s39
    %p342 = scmp.eq.s32.totalorder %s341, 0
    %s344 = sadd.s32 %s343, 1
    %s345 = scalar_select %p342, %s343, %s344
    %p348 = pneg %p342
    %p349 = scmp.eq.s32.totalorder %s20, 1
    %p350 = por %p348, %p349
    %p351 = scmp.ne.s32.totalorder %s343, %s346
    %p352 = scmp.eq.s32.totalorder %s20, 0
    %p353 = por %p351, %p352
    %p354 = scmp.ne.s32.totalorder %s343, %s346
    %p355 = scmp.eq.s32.totalorder %s25, 1
    %p356 = por %p354, %p355
    %p357 = scmp.ne.s32.totalorder %s346, %s347
    %p358 = scmp.eq.s32.totalorder %s25, 0
    %p359 = por %p357, %p358
    %p360 = scmp.ne.s32.totalorder %s346, %s347
    %p361 = scmp.eq.s32.totalorder %s26, 1
    %p362 = por %p360, %p361
    %p364 = scmp.ne.s32.totalorder %s347, %s363
    %p365 = scmp.eq.s32.totalorder %s26, 0
    %p366 = por %p364, %p365
    %p367 = scmp.le.s32.totalorder 1, %s20
    %p368 = scmp.lt.s32.totalorder %s20, 3
    %p369 = pnand %p367, %p368
    %p370 = pneg %p369
    // Predicated region
    $region9: #{inception_mixed.5} parent=5 // pred_check
      _
    $region10: #{inception_mixed.5} parent=5 // pred_check_branch
      %372 = sbr.rel (%p369) target = $region12
    $region11: #{inception_mixed.5} parent=5 // pred_region
      %s373 = ssub.s32 %s20, 1
      // Predicated region
      $region13: #{inception_mixed.5} parent=11 // pred_check
        %p374 = pneg %p81
      $region14: #{inception_mixed.5} parent=11 // pred_check_branch
        %376 = sbr.rel (%p374) target = $region16
      $region15: #{inception_mixed.5} parent=11 // pred_region
        _
      $region16: #{inception_mixed.5} parent=11 // pred_fallthru
        _
      // Predicated region
      $region17: #{inception_mixed.5} parent=11 // pred_check
        %p377 = pneg %p102
      $region18: #{inception_mixed.5} parent=11 // pred_check_branch
        %379 = sbr.rel (%p377) target = $region20
      $region19: #{inception_mixed.5} parent=11 // pred_region
        _
      $region20: #{inception_mixed.5} parent=11 // pred_fallthru
        _
      // Predicated region
      $region21: #{inception_mixed.5} parent=11 // pred_check
        %p380 = pneg %p123
      $region22: #{inception_mixed.5} parent=11 // pred_check_branch
        %382 = sbr.rel (%p380) target = $region24
      $region23: #{inception_mixed.5} parent=11 // pred_region
        _
      $region24: #{inception_mixed.5} parent=11 // pred_fallthru
        _
      // Predicated region
      $region25: #{inception_mixed.5} parent=11 // pred_check
        %p383 = pneg %p144
      $region26: #{inception_mixed.5} parent=11 // pred_check_branch
        %385 = sbr.rel (%p383) target = $region28
      $region27: #{inception_mixed.5} parent=11 // pred_region
        _
      $region28: #{inception_mixed.5} parent=11 // pred_fallthru
        _
      // Predicated region
      $region29: #{inception_mixed.5} parent=11 // pred_check
        %p386 = pneg %p165
      $region30: #{inception_mixed.5} parent=11 // pred_check_branch
        %388 = sbr.rel (%p386) target = $region32
      $region31: #{inception_mixed.5} parent=11 // pred_region
        _
      $region32: #{inception_mixed.5} parent=11 // pred_fallthru
        _
      // Predicated region
      $region33: #{inception_mixed.5} parent=11 // pred_check
        %p389 = pneg %p186
      $region34: #{inception_mixed.5} parent=11 // pred_check_branch
        %391 = sbr.rel (%p389) target = $region36
      $region35: #{inception_mixed.5} parent=11 // pred_region
        _
      $region36: #{inception_mixed.5} parent=11 // pred_fallthru
        _
      // Predicated region
      $region37: #{inception_mixed.5} parent=11 // pred_check
        %p392 = pneg %p207
      $region38: #{inception_mixed.5} parent=11 // pred_check_branch
        %394 = sbr.rel (%p392) target = $region40
      $region39: #{inception_mixed.5} parent=11 // pred_region
        _
      $region40: #{inception_mixed.5} parent=11 // pred_fallthru
        _
      // Predicated region
      $region41: #{inception_mixed.5} parent=11 // pred_check
        %p395 = pneg %p228
      $region42: #{inception_mixed.5} parent=11 // pred_check_branch
        %397 = sbr.rel (%p395) target = $region44
      $region43: #{inception_mixed.5} parent=11 // pred_region
        _
      $region44: #{inception_mixed.5} parent=11 // pred_fallthru
        _
      // Predicated region
      $region45: #{inception_mixed.5} parent=11 // pred_check
        %p398 = pneg %p249
      $region46: #{inception_mixed.5} parent=11 // pred_check_branch
        %400 = sbr.rel (%p398) target = $region48
      $region47: #{inception_mixed.5} parent=11 // pred_region
        _
      $region48: #{inception_mixed.5} parent=11 // pred_fallthru
        _
    $region12: #{inception_mixed.5} parent=5 // pred_fallthru
      _
    %p401 = scmp.lt.s32.totalorder %s20, 2
    // Predicated region
    $region49: #{inception_mixed.5} parent=5 // pred_check
      %p402 = pneg %p401
    $region50: #{inception_mixed.5} parent=5 // pred_check_branch
      %404 = sbr.rel (%p402) target = $region52
    $region51: #{inception_mixed.5} parent=5 // pred_region
      // Predicated region
      $region53: #{inception_mixed.5} parent=51 // pred_check
        %p405 = pneg %p54
      $region54: #{inception_mixed.5} parent=51 // pred_check_branch
        %407 = sbr.rel (%p405) target = $region56
      $region55: #{inception_mixed.5} parent=51 // pred_region
        %s408 = smul.u32 32, %s28
        %p409 = scmp.lt.s32.totalorder %s27, 1
        %s410 = scalar_select %p409, %s27, 1
        %p411 = scmp.lt.s32.totalorder %s408, 31
        %s412 = scalar_select %p411, %s408, 31
        %s413 = smul.addr %s410, 32
        %s414 = sadd.s32 %s412, %s413
        %s415 = smul.addr %s414, 8
        %s416 = scalar_lea.vmem %s0, %s415
        %s417 = smul.u32 32, %s28
      $region56: #{inception_mixed.5} parent=51 // pred_fallthru
        _
    $region52: #{inception_mixed.5} parent=5 // pred_fallthru
      _
    %p418 = scmp.le.s32.totalorder 1, %s20
    %p419 = scmp.lt.s32.totalorder %s20, 3
    %p420 = pnand %p418, %p419
    %p421 = pneg %p420
    // Predicated region
    $region57: #{inception_mixed.5} parent=5 // pred_check
      _
    $region58: #{inception_mixed.5} parent=5 // pred_check_branch
      %423 = sbr.rel (%p420) target = $region60
    $region59: #{inception_mixed.5} parent=5 // pred_region
      %s424 = ssub.s32 %s20, 1
      %s425 = smul.u32 32, %s30
      %p426 = scmp.lt.s32.totalorder %s29, 1
      %s427 = scalar_select %p426, %s29, 1
      %p428 = scmp.lt.s32.totalorder %s425, 31
      %s429 = scalar_select %p428, %s425, 31
      %s430 = smul.addr %s427, 32
      %s431 = sadd.s32 %s429, %s430
      %s432 = smul.addr %s431, 8
      %s433 = scalar_lea.vmem %s0, %s432
      %p434 = pneg %p60
      %p435 = pneg %p57
      %p436 = pneg %p81
      %p437 = pneg %p78
      %p438 = pneg %p102
      %p439 = pneg %p99
      %p440 = pneg %p123
      %p441 = pneg %p120
      %p442 = pneg %p144
      %p443 = pneg %p141
      %p444 = pneg %p165
      %p445 = pneg %p162
      %p446 = pneg %p186
      %p447 = pneg %p183
      %p448 = pneg %p207
      %p449 = pneg %p204
      %p450 = pneg %p228
      %p451 = pneg %p225
      %p452 = pneg %p249
      %p453 = pneg %p246
      %p454 = pneg %p277
      %p455 = pneg %p274
      %s456 = smul.u32 32, %s30
      %p457 = scmp.lt.s32.totalorder %s29, 1
      %s458 = scalar_select %p457, %s29, 1
      %p459 = scmp.lt.s32.totalorder %s456, 31
      %s460 = scalar_select %p459, %s456, 31
      %s461 = smul.addr %s458, 32
      %s462 = sadd.s32 %s460, %s461
      %s463 = smul.addr %s462, 4
      %s464 = scalar_lea.vmem %s10, %s463
      %p465 = pneg %p305
      %p466 = pneg %p302
      %s467 = smul.u32 32, %s30
      %p468 = scmp.lt.s32.totalorder %s29, 1
      %s469 = scalar_select %p468, %s29, 1
      %p470 = scmp.lt.s32.totalorder %s467, 31
      %s471 = scalar_select %p470, %s467, 31
      %s472 = smul.addr %s469, 32
      %s473 = sadd.s32 %s471, %s472
      %s474 = smul.addr %s473, 4
      %s475 = scalar_lea.vmem %s11, %s474
      %p476 = pneg %p333
      %p477 = pneg %p330
      %s478 = smul.u32 32, %s30
      %p479 = scmp.lt.s32.totalorder %s29, 1
      %s480 = scalar_select %p479, %s29, 1
      %p481 = scmp.lt.s32.totalorder %s478, 31
      %s482 = scalar_select %p481, %s478, 31
      %s483 = smul.addr %s480, 32
      %s484 = sadd.s32 %s482, %s483
      %s485 = smul.addr %s484, 4
      %s486 = scalar_lea.vmem %s12, %s485
      %p487 = pneg %p359
      %p488 = pneg %p356
      %p489 = scmp.lt.s32.totalorder %s29, 1
      %s490 = scalar_select %p489, %s29, 1
      %s491 = scalar_lea.vmem %s13, %s490
      %s492 = smul.u32 32, %s30
      %p493 = scmp.lt.s32.totalorder %s29, 1
      %s494 = scalar_select %p493, %s29, 1
      %p495 = scmp.lt.s32.totalorder %s492, 31
      %s496 = scalar_select %p495, %s492, 31
      %s497 = smul.addr %s494, 32
      %s498 = sadd.s32 %s496, %s497
      %s499 = smul.addr %s498, 8
      %s500 = scalar_lea.vmem %s0, %s499
      %s501 = smul.u32 32, %s30
      %s502 = smul.u32 32, %s30
      %p503 = scmp.lt.s32.totalorder %s29, 1
      %s504 = scalar_select %p503, %s29, 1
      %p505 = scmp.lt.s32.totalorder %s502, 31
      %s506 = scalar_select %p505, %s502, 31
      %s507 = smul.addr %s504, 32
      %s508 = sadd.s32 %s506, %s507
      %s509 = smul.addr %s508, 4
      %s510 = scalar_lea.vmem %s10, %s509
      %s511 = smul.u32 32, %s30
      %s512 = smul.u32 32, %s30
      %p513 = scmp.lt.s32.totalorder %s29, 1
      %s514 = scalar_select %p513, %s29, 1
      %p515 = scmp.lt.s32.totalorder %s512, 31
      %s516 = scalar_select %p515, %s512, 31
      %s517 = smul.addr %s514, 32
      %s518 = sadd.s32 %s516, %s517
      %s519 = smul.addr %s518, 4
      %s520 = scalar_lea.vmem %s11, %s519
      %s521 = smul.u32 32, %s30
      %s522 = smul.u32 32, %s30
      %p523 = scmp.lt.s32.totalorder %s29, 1
      %s524 = scalar_select %p523, %s29, 1
      %p525 = scmp.lt.s32.totalorder %s522, 31
      %s526 = scalar_select %p525, %s522, 31
      %s527 = smul.addr %s524, 32
      %s528 = sadd.s32 %s526, %s527
      %s529 = smul.addr %s528, 4
      %s530 = scalar_lea.vmem %s12, %s529
      %s531 = smul.u32 32, %s30
      %p532 = scmp.lt.s32.totalorder %s29, 1
      %s533 = scalar_select %p532, %s29, 1
      %s534 = scalar_lea.vmem %s13, %s533
      %p535 = scmp.eq.s32.totalorder %s30, 0
      // Predicated region
      $region61: #{inception_mixed.5} parent=59 // pred_check
        %p536 = pneg %p535
      $region62: #{inception_mixed.5} parent=59 // pred_check_branch
        %538 = sbr.rel (%p536) target = $region64
      $region63: #{inception_mixed.5} parent=59 // pred_region
        %vm539 = vcmask 57344
        %540 = vst.msk [vmem:[%s534] sm:$0x1] %vm539, 0.0
      $region64: #{inception_mixed.5} parent=59 // pred_fallthru
        _
      %v541 = vld [vmem:[%s500] sm:$0xff]
      %v542 = vld [vmem:[%s500 + $0x8] sm:$0xff]
      %v543 = vld [vmem:[%s500 + $0x10] sm:$0xff]
      %v544 = vld [vmem:[%s500 + $0x18] sm:$0xff]
      %v545 = vld [vmem:[%s500 + $0x20] sm:$0xff]
      %v546 = vld [vmem:[%s500 + $0x28] sm:$0xff]
      %v547 = vld [vmem:[%s500 + $0x30] sm:$0xff]
      %v548 = vld [vmem:[%s500 + $0x38] sm:$0xff]
      %v549 = vld [vmem:[%s500 + $0x40] sm:$0xff]
      %v550 = vld [vmem:[%s500 + $0x48] sm:$0xff]
      %v551 = vld [vmem:[%s500 + $0x50] sm:$0xff]
      %v552 = vld [vmem:[%s500 + $0x58] sm:$0xff]
      %v553 = vld [vmem:[%s500 + $0x60] sm:$0xff]
      %v554 = vld [vmem:[%s500 + $0x68] sm:$0xff]
      %v555 = vld [vmem:[%s500 + $0x70] sm:$0xff]
      %v556 = vld [vmem:[%s500 + $0x78] sm:$0xff]
      %v557 = vld [vmem:[%s500 + $0x80] sm:$0xff]
      %v558 = vld [vmem:[%s500 + $0x88] sm:$0xff]
      %v559 = vld [vmem:[%s500 + $0x90] sm:$0xff]
      %v560 = vld [vmem:[%s500 + $0x98] sm:$0xff]
      %v561 = vld [vmem:[%s500 + $0xa0] sm:$0xff]
      %v562 = vld [vmem:[%s500 + $0xa8] sm:$0xff]
      %v563 = vld [vmem:[%s500 + $0xb0] sm:$0xff]
      %v564 = vld [vmem:[%s500 + $0xb8] sm:$0xff]
      %v565 = vld [vmem:[%s500 + $0xc0] sm:$0xff]
      %v566 = vld [vmem:[%s500 + $0xc8] sm:$0xff]
      %v567 = vld [vmem:[%s500 + $0xd0] sm:$0xff]
      %v568 = vld [vmem:[%s500 + $0xd8] sm:$0xff]
      %v569 = vld [vmem:[%s500 + $0xe0] sm:$0xff]
      %v570 = vld [vmem:[%s500 + $0xe8] sm:$0xff]
      %v571 = vld [vmem:[%s500 + $0xf0] sm:$0xff]
      %v572 = vld [vmem:[%s500 + $0xf8] sm:$0xff]
      %v573 = vld [vmem:[%s1] sm:$0xf]
      %vm574 = vcmask 31744
      %v576 = vsel %vm574, %v541, 0
      %v579 = vsel %vm574, %v542, 0
      %v582 = vsel %vm574, %v543, 0
      %v585 = vsel %vm574, %v544, 0
      %v588 = vsel %vm574, %v545, 0
      %v591 = vsel %vm574, %v546, 0
      %v594 = vsel %vm574, %v547, 0
      %v597 = vsel %vm574, %v548, 0
      %v600 = vsel %vm574, %v549, 0
      %v603 = vsel %vm574, %v550, 0
      %v606 = vsel %vm574, %v551, 0
      %v609 = vsel %vm574, %v552, 0
      %v612 = vsel %vm574, %v553, 0
      %v615 = vsel %vm574, %v554, 0
      %v618 = vsel %vm574, %v555, 0
      %v621 = vsel %vm574, %v556, 0
      %v624 = vsel %vm574, %v557, 0
      %v627 = vsel %vm574, %v558, 0
      %v630 = vsel %vm574, %v559, 0
      %v633 = vsel %vm574, %v560, 0
      %v636 = vsel %vm574, %v561, 0
      %v639 = vsel %vm574, %v562, 0
      %v642 = vsel %vm574, %v563, 0
      %v645 = vsel %vm574, %v564, 0
      %v648 = vsel %vm574, %v565, 0
      %v651 = vsel %vm574, %v566, 0
      %v654 = vsel %vm574, %v567, 0
      %v657 = vsel %vm574, %v568, 0
      %v660 = vsel %vm574, %v569, 0
      %v663 = vsel %vm574, %v570, 0
      %v666 = vsel %vm574, %v571, 0
      %v669 = vsel %vm574, %v572, 0
      %vm671 = vcmask 1043456
      %v673 = vsel %vm671, %v573, 0
      %675 = vmatprep.subr.mxu0 0.0
      %676 = vmatpush1.msra.mxu0 0.0
      %677 = vmatprep.subr.mxu0 0.0
      %678 = vmatpush1.msra.mxu0 0.0
      %679 = vmatprep.subr.mxu0 0.0
      %680 = vmatpush1.msra.mxu0 0.0
      %681 = vmatprep.subr.mxu0 0.0
      %682 = vmatpush1.msra.mxu0 0.0
      %683 = vmatprep.subr.mxu0 0.0
      %684 = vmatpush1.msra.mxu0 0.0
      %685 = vmatprep.subr.mxu0 0.0
      %686 = vmatpush1.msra.mxu0 0.0
      %687 = vmatprep.subr.mxu0 0.0
      %688 = vmatpush1.msra.mxu0 0.0
      %689 = vmatprep.subr.mxu0 0.0
      %690 = vmatpush1.msra.mxu0 0.0
      %691 = vmatprep.subr.mxu0 0.0
      %692 = vmatpush1.msra.mxu0 0.0
      %693 = vmatprep.subr.mxu0 0.0
      %694 = vmatpush1.msra.mxu0 0.0
      %695 = vmatprep.subr.mxu0 0.0
      %696 = vmatpush1.msra.mxu0 0.0
      %697 = vmatprep.subr.mxu0 0.0
      %698 = vmatpush1.msra.mxu0 0.0
      %699 = vmatprep.subr.mxu0 0.0
      %700 = vmatpush1.msra.mxu0 0.0
      %701 = vmatprep.subr.mxu0 0.0
      %702 = vmatpush1.msra.mxu0 0.0
      %703 = vmatprep.subr.mxu0 0.0
      %704 = vmatpush1.msra.mxu0 0.0
      %705 = vmatprep.subr.mxu0 0.0
      %706 = vmatpush1.msra.mxu0 %v673
      %707 = vmatprep.subr.mxu0 0.0
      %708 = vmatpush2.msra.mxu0 0.0
      %709 = vmatprep.subr.mxu0 0.0
      %710 = vmatpush2.msra.mxu0 0.0
      %711 = vmatprep.subr.mxu0 0.0
      %712 = vmatpush2.msra.mxu0 0.0
      %713 = vmatprep.subr.mxu0 0.0
      %714 = vmatpush2.msra.mxu0 0.0
      %715 = vmatprep.subr.mxu0 0.0
      %716 = vmatpush2.msra.mxu0 0.0
      %717 = vmatprep.subr.mxu0 0.0
      %718 = vmatpush2.msra.mxu0 0.0
      %719 = vmatprep.subr.mxu0 0.0
      %720 = vmatpush2.msra.mxu0 0.0
      %721 = vmatprep.subr.mxu0 0.0
      %722 = vmatpush2.msra.mxu0 0.0
      %723 = vmatprep.subr.mxu0 0.0
      %724 = vmatpush2.msra.mxu0 0.0
      %725 = vmatprep.subr.mxu0 0.0
      %726 = vmatpush2.msra.mxu0 0.0
      %727 = vmatprep.subr.mxu0 0.0
      %728 = vmatpush2.msra.mxu0 0.0
      %729 = vmatprep.subr.mxu0 0.0
      %730 = vmatpush2.msra.mxu0 0.0
      %731 = vmatprep.subr.mxu0 0.0
      %732 = vmatpush2.msra.mxu0 0.0
      %733 = vmatprep.subr.mxu0 0.0
      %734 = vmatpush2.msra.mxu0 0.0
      %735 = vmatprep.subr.mxu0 0.0
      %736 = vmatpush2.msra.mxu0 0.0
      %737 = vmatprep.subr.mxu0 0.0
      %738 = vmatpush2.msra.mxu0 0.0
      %739 = vmatprep.mubr.f32.mxu0 0.0
      %740 = vmatmul.mubr.f32.gmra.mxu0 %v576
      %v741 = vpop.f32.mrf.mxu0
      %v742 = vadd.f32 0.0, %v741
      %v743 = vpop.f32.mrf.mxu0
      %744 = vmatprep.mubr.f32.mxu0 0.0
      %745 = vmatmul.mubr.f32.gmra.mxu0 %v579
      %v746 = vpop.f32.mrf.mxu0
      %v747 = vadd.f32 0.0, %v746
      %v748 = vpop.f32.mrf.mxu0
      %749 = vmatprep.mubr.f32.mxu0 0.0
      %750 = vmatmul.mubr.f32.gmra.mxu0 %v582
      %v751 = vpop.f32.mrf.mxu0
      %v752 = vadd.f32 0.0, %v751
      %v753 = vpop.f32.mrf.mxu0
      %754 = vmatprep.mubr.f32.mxu0 0.0
      %755 = vmatmul.mubr.f32.gmra.mxu0 %v585
      %v756 = vpop.f32.mrf.mxu0
      %v757 = vadd.f32 0.0, %v756
      %v758 = vpop.f32.mrf.mxu0
      %759 = vmatprep.mubr.f32.mxu0 0.0
      %760 = vmatmul.mubr.f32.gmra.mxu0 %v588
      %v761 = vpop.f32.mrf.mxu0
      %v762 = vadd.f32 0.0, %v761
      %v763 = vpop.f32.mrf.mxu0
      %764 = vmatprep.mubr.f32.mxu0 0.0
      %765 = vmatmul.mubr.f32.gmra.mxu0 %v591
      %v766 = vpop.f32.mrf.mxu0
      %v767 = vadd.f32 0.0, %v766
      %v768 = vpop.f32.mrf.mxu0
      %769 = vmatprep.mubr.f32.mxu0 0.0
      %770 = vmatmul.mubr.f32.gmra.mxu0 %v594
      %v771 = vpop.f32.mrf.mxu0
      %v772 = vadd.f32 0.0, %v771
      %v773 = vpop.f32.mrf.mxu0
      %774 = vmatprep.mubr.f32.mxu0 0.0
      %775 = vmatmul.mubr.f32.gmra.mxu0 %v597
      %v776 = vpop.f32.mrf.mxu0
      %v777 = vadd.f32 0.0, %v776
      %v778 = vpop.f32.mrf.mxu0
      %779 = vmatprep.mubr.f32.mxu0 0.0
      %780 = vmatmul.mubr.f32.gmra.mxu0 %v600
      %v781 = vpop.f32.mrf.mxu0
      %v782 = vadd.f32 0.0, %v781
      %v783 = vpop.f32.mrf.mxu0
      %784 = vmatprep.mubr.f32.mxu0 0.0
      %785 = vmatmul.mubr.f32.gmra.mxu0 %v603
      %v786 = vpop.f32.mrf.mxu0
      %v787 = vadd.f32 0.0, %v786
      %v788 = vpop.f32.mrf.mxu0
      %789 = vmatprep.mubr.f32.mxu0 0.0
      %790 = vmatmul.mubr.f32.gmra.mxu0 %v606
      %v791 = vpop.f32.mrf.mxu0
      %v792 = vadd.f32 0.0, %v791
      %v793 = vpop.f32.mrf.mxu0
      %794 = vmatprep.mubr.f32.mxu0 0.0
      %795 = vmatmul.mubr.f32.gmra.mxu0 %v609
      %v796 = vpop.f32.mrf.mxu0
      %v797 = vadd.f32 0.0, %v796
      %v798 = vpop.f32.mrf.mxu0
      %799 = vmatprep.mubr.f32.mxu0 0.0
      %800 = vmatmul.mubr.f32.gmra.mxu0 %v612
      %v801 = vpop.f32.mrf.mxu0
      %v802 = vadd.f32 0.0, %v801
      %v803 = vpop.f32.mrf.mxu0
      %804 = vmatprep.mubr.f32.mxu0 0.0
      %805 = vmatmul.mubr.f32.gmra.mxu0 %v615
      %v806 = vpop.f32.mrf.mxu0
      %v807 = vadd.f32 0.0, %v806
      %v808 = vpop.f32.mrf.mxu0
      %809 = vmatprep.mubr.f32.mxu0 0.0
      %810 = vmatmul.mubr.f32.gmra.mxu0 %v618
      %v811 = vpop.f32.mrf.mxu0
      %v812 = vadd.f32 0.0, %v811
      %v813 = vpop.f32.mrf.mxu0
      %814 = vmatprep.mubr.f32.mxu0 0.0
      %815 = vmatmul.mubr.f32.gmra.mxu0 %v621
      %v816 = vpop.f32.mrf.mxu0
      %v817 = vadd.f32 0.0, %v816
      %v818 = vpop.f32.mrf.mxu0
      %819 = vmatprep.mubr.f32.mxu0 0.0
      %820 = vmatmul.mubr.f32.gmra.mxu0 %v624
      %v821 = vpop.f32.mrf.mxu0
      %v822 = vadd.f32 0.0, %v821
      %v823 = vpop.f32.mrf.mxu0
      %824 = vmatprep.mubr.f32.mxu0 0.0
      %825 = vmatmul.mubr.f32.gmra.mxu0 %v627
      %v826 = vpop.f32.mrf.mxu0
      %v827 = vadd.f32 0.0, %v826
      %v828 = vpop.f32.mrf.mxu0
      %829 = vmatprep.mubr.f32.mxu0 0.0
      %830 = vmatmul.mubr.f32.gmra.mxu0 %v630
      %v831 = vpop.f32.mrf.mxu0
      %v832 = vadd.f32 0.0, %v831
      %v833 = vpop.f32.mrf.mxu0
      %834 = vmatprep.mubr.f32.mxu0 0.0
      %835 = vmatmul.mubr.f32.gmra.mxu0 %v633
      %v836 = vpop.f32.mrf.mxu0
      %v837 = vadd.f32 0.0, %v836
      %v838 = vpop.f32.mrf.mxu0
      %839 = vmatprep.mubr.f32.mxu0 0.0
      %840 = vmatmul.mubr.f32.gmra.mxu0 %v636
      %v841 = vpop.f32.mrf.mxu0
      %v842 = vadd.f32 0.0, %v841
      %v843 = vpop.f32.mrf.mxu0
      %844 = vmatprep.mubr.f32.mxu0 0.0
      %845 = vmatmul.mubr.f32.gmra.mxu0 %v639
      %v846 = vpop.f32.mrf.mxu0
      %v847 = vadd.f32 0.0, %v846
      %v848 = vpop.f32.mrf.mxu0
      %849 = vmatprep.mubr.f32.mxu0 0.0
      %850 = vmatmul.mubr.f32.gmra.mxu0 %v642
      %v851 = vpop.f32.mrf.mxu0
      %v852 = vadd.f32 0.0, %v851
      %v853 = vpop.f32.mrf.mxu0
      %854 = vmatprep.mubr.f32.mxu0 0.0
      %855 = vmatmul.mubr.f32.gmra.mxu0 %v645
      %v856 = vpop.f32.mrf.mxu0
      %v857 = vadd.f32 0.0, %v856
      %v858 = vpop.f32.mrf.mxu0
      %859 = vmatprep.mubr.f32.mxu0 0.0
      %860 = vmatmul.mubr.f32.gmra.mxu0 %v648
      %v861 = vpop.f32.mrf.mxu0
      %v862 = vadd.f32 0.0, %v861
      %v863 = vpop.f32.mrf.mxu0
      %864 = vmatprep.mubr.f32.mxu0 0.0
      %865 = vmatmul.mubr.f32.gmra.mxu0 %v651
      %v866 = vpop.f32.mrf.mxu0
      %v867 = vadd.f32 0.0, %v866
      %v868 = vpop.f32.mrf.mxu0
      %869 = vmatprep.mubr.f32.mxu0 0.0
      %870 = vmatmul.mubr.f32.gmra.mxu0 %v654
      %v871 = vpop.f32.mrf.mxu0
      %v872 = vadd.f32 0.0, %v871
      %v873 = vpop.f32.mrf.mxu0
      %874 = vmatprep.mubr.f32.mxu0 0.0
      %875 = vmatmul.mubr.f32.gmra.mxu0 %v657
      %v876 = vpop.f32.mrf.mxu0
      %v877 = vadd.f32 0.0, %v876
      %v878 = vpop.f32.mrf.mxu0
      %879 = vmatprep.mubr.f32.mxu0 0.0
      %880 = vmatmul.mubr.f32.gmra.mxu0 %v660
      %v881 = vpop.f32.mrf.mxu0
      %v882 = vadd.f32 0.0, %v881
      %v883 = vpop.f32.mrf.mxu0
      %884 = vmatprep.mubr.f32.mxu0 0.0
      %885 = vmatmul.mubr.f32.gmra.mxu0 %v663
      %v886 = vpop.f32.mrf.mxu0
      %v887 = vadd.f32 0.0, %v886
      %v888 = vpop.f32.mrf.mxu0
      %889 = vmatprep.mubr.f32.mxu0 0.0
      %890 = vmatmul.mubr.f32.gmra.mxu0 %v666
      %v891 = vpop.f32.mrf.mxu0
      %v892 = vadd.f32 0.0, %v891
      %v893 = vpop.f32.mrf.mxu0
      %894 = vmatprep.mubr.f32.mxu0 0.0
      %895 = vmatmul.mubr.f32.gmra.mxu0 %v669
      %v896 = vpop.f32.mrf.mxu0
      %v897 = vadd.f32 0.0, %v896
      %v898 = vpop.f32.mrf.mxu0
      %899 = vdwg.mxu0
      %v900 = vld [vmem:[%s4] sm:$0x1]
      %v902 = vlaneseq
      %v903 = vshrl.u32 %v902, 7
      %v904 = vsub.s32 0, %v903
      %v905 = vrot.slane %v900, %v904
      %v907 = vmul.f32 %v742, %v905
      %v908 = vmul.f32 %v747, %v905
      %v909 = vmul.f32 %v752, %v905
      %v910 = vmul.f32 %v757, %v905
      %v911 = vmul.f32 %v762, %v905
      %v912 = vmul.f32 %v767, %v905
      %v913 = vmul.f32 %v772, %v905
      %v914 = vmul.f32 %v777, %v905
      %v915 = vmul.f32 %v782, %v905
      %v916 = vmul.f32 %v787, %v905
      %v917 = vmul.f32 %v792, %v905
      %v918 = vmul.f32 %v797, %v905
      %v919 = vmul.f32 %v802, %v905
      %v920 = vmul.f32 %v807, %v905
      %v921 = vmul.f32 %v812, %v905
      %v922 = vmul.f32 %v817, %v905
      %v923 = vmul.f32 %v822, %v905
      %v924 = vmul.f32 %v827, %v905
      %v925 = vmul.f32 %v832, %v905
      %v926 = vmul.f32 %v837, %v905
      %v927 = vmul.f32 %v842, %v905
      %v928 = vmul.f32 %v847, %v905
      %v929 = vmul.f32 %v852, %v905
      %v930 = vmul.f32 %v857, %v905
      %v931 = vmul.f32 %v862, %v905
      %v932 = vmul.f32 %v867, %v905
      %v933 = vmul.f32 %v872, %v905
      %v934 = vmul.f32 %v877, %v905
      %v935 = vmul.f32 %v882, %v905
      %v936 = vmul.f32 %v887, %v905
      %v937 = vmul.f32 %v892, %v905
      %v938 = vmul.f32 %v897, %v905
      %v939 = vld [vmem:[%s7] sm:$0x1]
      %v941 = vlaneseq
      %v942 = vshrl.u32 %v941, 7
      %v943 = vsub.s32 0, %v942
      %v944 = vrot.slane %v939, %v943
      %v946 = vadd.f32 %v907, %v944
      %v947 = vadd.f32 %v908, %v944
      %v948 = vadd.f32 %v909, %v944
      %v949 = vadd.f32 %v910, %v944
      %v950 = vadd.f32 %v911, %v944
      %v951 = vadd.f32 %v912, %v944
      %v952 = vadd.f32 %v913, %v944
      %v953 = vadd.f32 %v914, %v944
      %v954 = vadd.f32 %v915, %v944
      %v955 = vadd.f32 %v916, %v944
      %v956 = vadd.f32 %v917, %v944
      %v957 = vadd.f32 %v918, %v944
      %v958 = vadd.f32 %v919, %v944
      %v959 = vadd.f32 %v920, %v944
      %v960 = vadd.f32 %v921, %v944
      %v961 = vadd.f32 %v922, %v944
      %v962 = vadd.f32 %v923, %v944
      %v963 = vadd.f32 %v924, %v944
      %v964 = vadd.f32 %v925, %v944
      %v965 = vadd.f32 %v926, %v944
      %v966 = vadd.f32 %v927, %v944
      %v967 = vadd.f32 %v928, %v944
      %v968 = vadd.f32 %v929, %v944
      %v969 = vadd.f32 %v930, %v944
      %v970 = vadd.f32 %v931, %v944
      %v971 = vadd.f32 %v932, %v944
      %v972 = vadd.f32 %v933, %v944
      %v973 = vadd.f32 %v934, %v944
      %v974 = vadd.f32 %v935, %v944
      %v975 = vadd.f32 %v936, %v944
      %v976 = vadd.f32 %v937, %v944
      %v977 = vadd.f32 %v938, %v944
      %v978 = vmax.f32 %v946, 0.0
      %v979 = vmax.f32 %v947, 0.0
      %v980 = vmax.f32 %v948, 0.0
      %v981 = vmax.f32 %v949, 0.0
      %v982 = vmax.f32 %v950, 0.0
      %v983 = vmax.f32 %v951, 0.0
      %v984 = vmax.f32 %v952, 0.0
      %v985 = vmax.f32 %v953, 0.0
      %v986 = vmax.f32 %v954, 0.0
      %v987 = vmax.f32 %v955, 0.0
      %v988 = vmax.f32 %v956, 0.0
      %v989 = vmax.f32 %v957, 0.0
      %v990 = vmax.f32 %v958, 0.0
      %v991 = vmax.f32 %v959, 0.0
      %v992 = vmax.f32 %v960, 0.0
      %v993 = vmax.f32 %v961, 0.0
      %v994 = vmax.f32 %v962, 0.0
      %v995 = vmax.f32 %v963, 0.0
      %v996 = vmax.f32 %v964, 0.0
      %v997 = vmax.f32 %v965, 0.0
      %v998 = vmax.f32 %v966, 0.0
      %v999 = vmax.f32 %v967, 0.0
      %v1000 = vmax.f32 %v968, 0.0
      %v1001 = vmax.f32 %v969, 0.0
      %v1002 = vmax.f32 %v970, 0.0
      %v1003 = vmax.f32 %v971, 0.0
      %v1004 = vmax.f32 %v972, 0.0
      %v1005 = vmax.f32 %v973, 0.0
      %v1006 = vmax.f32 %v974, 0.0
      %v1007 = vmax.f32 %v975, 0.0
      %v1008 = vmax.f32 %v976, 0.0
      %v1009 = vmax.f32 %v977, 0.0
      %v1010 = vld [vmem:[%s534] sm:$0x1]
      %vm1011 = vcmask 64512
      %v1012 = vsel %vm1011, %v978, 0.0
      %v1013 = vsel %vm1011, %v979, 0.0
      %v1014 = vadd.f32 %v1012, %v1013
      %v1015 = vsel %vm1011, %v980, 0.0
      %v1016 = vadd.f32 %v1014, %v1015
      %v1017 = vsel %vm1011, %v981, 0.0
      %v1018 = vadd.f32 %v1016, %v1017
      %v1019 = vsel %vm1011, %v982, 0.0
      %v1020 = vadd.f32 %v1018, %v1019
      %v1021 = vsel %vm1011, %v983, 0.0
      %v1022 = vadd.f32 %v1020, %v1021
      %v1023 = vsel %vm1011, %v984, 0.0
      %v1024 = vadd.f32 %v1022, %v1023
      %v1025 = vsel %vm1011, %v985, 0.0
      %v1026 = vadd.f32 %v1024, %v1025
      %v1027 = vsel %vm1011, %v986, 0.0
      %v1028 = vadd.f32 %v1026, %v1027
      %v1029 = vsel %vm1011, %v987, 0.0
      %v1030 = vadd.f32 %v1028, %v1029
      %v1031 = vsel %vm1011, %v988, 0.0
      %v1032 = vadd.f32 %v1030, %v1031
      %v1033 = vsel %vm1011, %v989, 0.0
      %v1034 = vadd.f32 %v1032, %v1033
      %v1035 = vsel %vm1011, %v990, 0.0
      %v1036 = vadd.f32 %v1034, %v1035
      %v1037 = vsel %vm1011, %v991, 0.0
      %v1038 = vadd.f32 %v1036, %v1037
      %v1039 = vsel %vm1011, %v992, 0.0
      %v1040 = vadd.f32 %v1038, %v1039
      %v1041 = vsel %vm1011, %v993, 0.0
      %v1042 = vadd.f32 %v1040, %v1041
      %v1043 = vsel %vm1011, %v994, 0.0
      %v1044 = vadd.f32 %v1042, %v1043
      %v1045 = vsel %vm1011, %v995, 0.0
      %v1046 = vadd.f32 %v1044, %v1045
      %v1047 = vsel %vm1011, %v996, 0.0
      %v1048 = vadd.f32 %v1046, %v1047
      %v1049 = vsel %vm1011, %v997, 0.0
      %v1050 = vadd.f32 %v1048, %v1049
      %v1051 = vsel %vm1011, %v998, 0.0
      %v1052 = vadd.f32 %v1050, %v1051
      %v1053 = vsel %vm1011, %v999, 0.0
      %v1054 = vadd.f32 %v1052, %v1053
      %v1055 = vsel %vm1011, %v1000, 0.0
      %v1056 = vadd.f32 %v1054, %v1055
      %v1057 = vsel %vm1011, %v1001, 0.0
      %v1058 = vadd.f32 %v1056, %v1057
      %v1059 = vsel %vm1011, %v1002, 0.0
      %v1060 = vadd.f32 %v1058, %v1059
      %v1061 = vsel %vm1011, %v1003, 0.0
      %v1062 = vadd.f32 %v1060, %v1061
      %v1063 = vsel %vm1011, %v1004, 0.0
      %v1064 = vadd.f32 %v1062, %v1063
      %v1065 = vsel %vm1011, %v1005, 0.0
      %v1066 = vadd.f32 %v1064, %v1065
      %v1067 = vsel %vm1011, %v1006, 0.0
      %v1068 = vadd.f32 %v1066, %v1067
      %v1069 = vsel %vm1011, %v1007, 0.0
      %v1070 = vadd.f32 %v1068, %v1069
      %v1071 = vsel %vm1011, %v1008, 0.0
      %v1072 = vadd.f32 %v1070, %v1071
      %v1073 = vsel %vm1011, %v1009, 0.0
      %v1074 = vadd.f32 %v1072, %v1073
      %v1075 = vrot.slane %v1074, 4
      %v1076 = vadd.f32 %v1074, %v1075
      %v1077 = vrot.slane %v1076, 2
      %v1078 = vadd.f32 %v1076, %v1077
      %v1079 = vrot.slane %v1078, 1
      %v1080 = vadd.f32 %v1078, %v1079
      %v1081 = vadd.f32 %v1010, %v1080
      %vm1082 = vcmask 57344
      %1083 = vst.msk [vmem:[%s534] sm:$0x1] %vm1082, %v1081
      %v1084 = vpack.c.bf16 %v979, %v978
      %v1085 = vpack.c.bf16 %v981, %v980
      %v1086 = vpack.c.bf16 %v983, %v982
      %v1087 = vpack.c.bf16 %v985, %v984
      %v1088 = vpack.c.bf16 %v987, %v986
      %v1089 = vpack.c.bf16 %v989, %v988
      %v1090 = vpack.c.bf16 %v991, %v990
      %v1091 = vpack.c.bf16 %v993, %v992
      %v1092 = vpack.c.bf16 %v995, %v994
      %v1093 = vpack.c.bf16 %v997, %v996
      %v1094 = vpack.c.bf16 %v999, %v998
      %v1095 = vpack.c.bf16 %v1001, %v1000
      %v1096 = vpack.c.bf16 %v1003, %v1002
      %v1097 = vpack.c.bf16 %v1005, %v1004
      %v1098 = vpack.c.bf16 %v1007, %v1006
      %v1099 = vpack.c.bf16 %v1009, %v1008
      %v1116 = vunpack.c.l.b16 %v1084
      %v1117 = vunpack.c.h.b16 %v1084
      %v1118 = vunpack.c.l.b16 %v1085
      %v1119 = vunpack.c.h.b16 %v1085
      %v1120 = vunpack.c.l.b16 %v1086
      %v1121 = vunpack.c.h.b16 %v1086
      %v1122 = vunpack.c.l.b16 %v1087
      %v1123 = vunpack.c.h.b16 %v1087
      %v1124 = vunpack.c.l.b16 %v1088
      %v1125 = vunpack.c.h.b16 %v1088
      %v1126 = vunpack.c.l.b16 %v1089
      %v1127 = vunpack.c.h.b16 %v1089
      %v1128 = vunpack.c.l.b16 %v1090
      %v1129 = vunpack.c.h.b16 %v1090
      %v1130 = vunpack.c.l.b16 %v1091
      %v1131 = vunpack.c.h.b16 %v1091
      %v1132 = vunpack.c.l.b16 %v1092
      %v1133 = vunpack.c.h.b16 %v1092
      %v1134 = vunpack.c.l.b16 %v1093
      %v1135 = vunpack.c.h.b16 %v1093
      %v1136 = vunpack.c.l.b16 %v1094
      %v1137 = vunpack.c.h.b16 %v1094
      %v1138 = vunpack.c.l.b16 %v1095
      %v1139 = vunpack.c.h.b16 %v1095
      %v1140 = vunpack.c.l.b16 %v1096
      %v1141 = vunpack.c.h.b16 %v1096
      %v1142 = vunpack.c.l.b16 %v1097
      %v1143 = vunpack.c.h.b16 %v1097
      %v1144 = vunpack.c.l.b16 %v1098
      %v1145 = vunpack.c.h.b16 %v1098
      %v1146 = vunpack.c.l.b16 %v1099
      %v1147 = vunpack.c.h.b16 %v1099
      %v1148 = vpack.c.b16 %v1116, %v1116
      %v1149 = vpack.c.b16 %v1117, %v1117
      %v1150 = vpack.c.b16 %v1118, %v1118
      %v1151 = vpack.c.b16 %v1119, %v1119
      %v1152 = vpack.c.b16 %v1120, %v1120
      %v1153 = vpack.c.b16 %v1121, %v1121
      %v1154 = vpack.c.b16 %v1122, %v1122
      %v1155 = vpack.c.b16 %v1123, %v1123
      %v1156 = vpack.c.b16 %v1124, %v1124
      %v1157 = vpack.c.b16 %v1125, %v1125
      %v1158 = vpack.c.b16 %v1126, %v1126
      %v1159 = vpack.c.b16 %v1127, %v1127
      %v1160 = vpack.c.b16 %v1128, %v1128
      %v1161 = vpack.c.b16 %v1129, %v1129
      %v1162 = vpack.c.b16 %v1130, %v1130
      %v1163 = vpack.c.b16 %v1131, %v1131
      %v1164 = vpack.c.b16 %v1132, %v1132
      %v1165 = vpack.c.b16 %v1133, %v1133
      %v1166 = vpack.c.b16 %v1134, %v1134
      %v1167 = vpack.c.b16 %v1135, %v1135
      %v1168 = vpack.c.b16 %v1136, %v1136
      %v1169 = vpack.c.b16 %v1137, %v1137
      %v1170 = vpack.c.b16 %v1138, %v1138
      %v1171 = vpack.c.b16 %v1139, %v1139
      %v1172 = vpack.c.b16 %v1140, %v1140
      %v1173 = vpack.c.b16 %v1141, %v1141
      %v1174 = vpack.c.b16 %v1142, %v1142
      %v1175 = vpack.c.b16 %v1143, %v1143
      %v1176 = vpack.c.b16 %v1144, %v1144
      %v1177 = vpack.c.b16 %v1145, %v1145
      %v1178 = vpack.c.b16 %v1146, %v1146
      %v1179 = vpack.c.b16 %v1147, %v1147
      %vm1212 = vcmask 60416
      %1213 = vst.msk [vmem:[%s510] sm:$0xf] %vm1212, %v1148
      %1214 = vst.msk [vmem:[%s510 + $0x4] sm:$0xf] %vm1212, %v1149
      %1215 = vst.msk [vmem:[%s510 + $0x8] sm:$0xf] %vm1212, %v1150
      %1216 = vst.msk [vmem:[%s510 + $0xc] sm:$0xf] %vm1212, %v1151
      %1217 = vst.msk [vmem:[%s510 + $0x10] sm:$0xf] %vm1212, %v1152
      %1218 = vst.msk [vmem:[%s510 + $0x14] sm:$0xf] %vm1212, %v1153
      %1219 = vst.msk [vmem:[%s510 + $0x18] sm:$0xf] %vm1212, %v1154
      %1220 = vst.msk [vmem:[%s510 + $0x1c] sm:$0xf] %vm1212, %v1155
      %1221 = vst.msk [vmem:[%s510 + $0x20] sm:$0xf] %vm1212, %v1156
      %1222 = vst.msk [vmem:[%s510 + $0x24] sm:$0xf] %vm1212, %v1157
      %1223 = vst.msk [vmem:[%s510 + $0x28] sm:$0xf] %vm1212, %v1158
      %1224 = vst.msk [vmem:[%s510 + $0x2c] sm:$0xf] %vm1212, %v1159
      %1225 = vst.msk [vmem:[%s510 + $0x30] sm:$0xf] %vm1212, %v1160
      %1226 = vst.msk [vmem:[%s510 + $0x34] sm:$0xf] %vm1212, %v1161
      %1227 = vst.msk [vmem:[%s510 + $0x38] sm:$0xf] %vm1212, %v1162
      %1228 = vst.msk [vmem:[%s510 + $0x3c] sm:$0xf] %vm1212, %v1163
      %1229 = vst.msk [vmem:[%s510 + $0x40] sm:$0xf] %vm1212, %v1164
      %1230 = vst.msk [vmem:[%s510 + $0x44] sm:$0xf] %vm1212, %v1165
      %1231 = vst.msk [vmem:[%s510 + $0x48] sm:$0xf] %vm1212, %v1166
      %1232 = vst.msk [vmem:[%s510 + $0x4c] sm:$0xf] %vm1212, %v1167
      %1233 = vst.msk [vmem:[%s510 + $0x50] sm:$0xf] %vm1212, %v1168
      %1234 = vst.msk [vmem:[%s510 + $0x54] sm:$0xf] %vm1212, %v1169
      %1235 = vst.msk [vmem:[%s510 + $0x58] sm:$0xf] %vm1212, %v1170
      %1236 = vst.msk [vmem:[%s510 + $0x5c] sm:$0xf] %vm1212, %v1171
      %1237 = vst.msk [vmem:[%s510 + $0x60] sm:$0xf] %vm1212, %v1172
      %1238 = vst.msk [vmem:[%s510 + $0x64] sm:$0xf] %vm1212, %v1173
      %1239 = vst.msk [vmem:[%s510 + $0x68] sm:$0xf] %vm1212, %v1174
      %1240 = vst.msk [vmem:[%s510 + $0x6c] sm:$0xf] %vm1212, %v1175
      %1241 = vst.msk [vmem:[%s510 + $0x70] sm:$0xf] %vm1212, %v1176
      %1242 = vst.msk [vmem:[%s510 + $0x74] sm:$0xf] %vm1212, %v1177
      %1243 = vst.msk [vmem:[%s510 + $0x78] sm:$0xf] %vm1212, %v1178
      %1244 = vst.msk [vmem:[%s510 + $0x7c] sm:$0xf] %vm1212, %v1179
      %v1245 = vld [vmem:[%s2] sm:$0xf]
      %v1247 = vsel %vm671, %v1245, 0
      %1249 = vmatprep.subr.mxu0 0.0
      %1250 = vmatpush1.msra.mxu0 0.0
      %1251 = vmatprep.subr.mxu0 0.0
      %1252 = vmatpush1.msra.mxu0 0.0
      %1253 = vmatprep.subr.mxu0 0.0
      %1254 = vmatpush1.msra.mxu0 0.0
      %1255 = vmatprep.subr.mxu0 0.0
      %1256 = vmatpush1.msra.mxu0 0.0
      %1257 = vmatprep.subr.mxu0 0.0
      %1258 = vmatpush1.msra.mxu0 0.0
      %1259 = vmatprep.subr.mxu0 0.0
      %1260 = vmatpush1.msra.mxu0 0.0
      %1261 = vmatprep.subr.mxu0 0.0
      %1262 = vmatpush1.msra.mxu0 0.0
      %1263 = vmatprep.subr.mxu0 0.0
      %1264 = vmatpush1.msra.mxu0 0.0
      %1265 = vmatprep.subr.mxu0 0.0
      %1266 = vmatpush1.msra.mxu0 0.0
      %1267 = vmatprep.subr.mxu0 0.0
      %1268 = vmatpush1.msra.mxu0 0.0
      %1269 = vmatprep.subr.mxu0 0.0
      %1270 = vmatpush1.msra.mxu0 0.0
      %1271 = vmatprep.subr.mxu0 0.0
      %1272 = vmatpush1.msra.mxu0 0.0
      %1273 = vmatprep.subr.mxu0 0.0
      %1274 = vmatpush1.msra.mxu0 0.0
      %1275 = vmatprep.subr.mxu0 0.0
      %1276 = vmatpush1.msra.mxu0 0.0
      %1277 = vmatprep.subr.mxu0 0.0
      %1278 = vmatpush1.msra.mxu0 0.0
      %1279 = vmatprep.subr.mxu0 0.0
      %1280 = vmatpush1.msra.mxu0 %v1247
      %1281 = vmatprep.subr.mxu0 0.0
      %1282 = vmatpush2.msra.mxu0 0.0
      %1283 = vmatprep.subr.mxu0 0.0
      %1284 = vmatpush2.msra.mxu0 0.0
      %1285 = vmatprep.subr.mxu0 0.0
      %1286 = vmatpush2.msra.mxu0 0.0
      %1287 = vmatprep.subr.mxu0 0.0
      %1288 = vmatpush2.msra.mxu0 0.0
      %1289 = vmatprep.subr.mxu0 0.0
      %1290 = vmatpush2.msra.mxu0 0.0
      %1291 = vmatprep.subr.mxu0 0.0
      %1292 = vmatpush2.msra.mxu0 0.0
      %1293 = vmatprep.subr.mxu0 0.0
      %1294 = vmatpush2.msra.mxu0 0.0
      %1295 = vmatprep.subr.mxu0 0.0
      %1296 = vmatpush2.msra.mxu0 0.0
      %1297 = vmatprep.subr.mxu0 0.0
      %1298 = vmatpush2.msra.mxu0 0.0
      %1299 = vmatprep.subr.mxu0 0.0
      %1300 = vmatpush2.msra.mxu0 0.0
      %1301 = vmatprep.subr.mxu0 0.0
      %1302 = vmatpush2.msra.mxu0 0.0
      %1303 = vmatprep.subr.mxu0 0.0
      %1304 = vmatpush2.msra.mxu0 0.0
      %1305 = vmatprep.subr.mxu0 0.0
      %1306 = vmatpush2.msra.mxu0 0.0
      %1307 = vmatprep.subr.mxu0 0.0
      %1308 = vmatpush2.msra.mxu0 0.0
      %1309 = vmatprep.subr.mxu0 0.0
      %1310 = vmatpush2.msra.mxu0 0.0
      %1311 = vmatprep.subr.mxu0 0.0
      %1312 = vmatpush2.msra.mxu0 0.0
      %1313 = vmatprep.mubr.f32.mxu0 0.0
      %1314 = vmatmul.mubr.f32.gmra.mxu0 %v576
      %v1315 = vpop.f32.mrf.mxu0
      %v1316 = vadd.f32 0.0, %v1315
      %v1317 = vpop.f32.mrf.mxu0
      %1318 = vmatprep.mubr.f32.mxu0 0.0
      %1319 = vmatmul.mubr.f32.gmra.mxu0 %v579
      %v1320 = vpop.f32.mrf.mxu0
      %v1321 = vadd.f32 0.0, %v1320
      %v1322 = vpop.f32.mrf.mxu0
      %1323 = vmatprep.mubr.f32.mxu0 0.0
      %1324 = vmatmul.mubr.f32.gmra.mxu0 %v582
      %v1325 = vpop.f32.mrf.mxu0
      %v1326 = vadd.f32 0.0, %v1325
      %v1327 = vpop.f32.mrf.mxu0
      %1328 = vmatprep.mubr.f32.mxu0 0.0
      %1329 = vmatmul.mubr.f32.gmra.mxu0 %v585
      %v1330 = vpop.f32.mrf.mxu0
      %v1331 = vadd.f32 0.0, %v1330
      %v1332 = vpop.f32.mrf.mxu0
      %1333 = vmatprep.mubr.f32.mxu0 0.0
      %1334 = vmatmul.mubr.f32.gmra.mxu0 %v588
      %v1335 = vpop.f32.mrf.mxu0
      %v1336 = vadd.f32 0.0, %v1335
      %v1337 = vpop.f32.mrf.mxu0
      %1338 = vmatprep.mubr.f32.mxu0 0.0
      %1339 = vmatmul.mubr.f32.gmra.mxu0 %v591
      %v1340 = vpop.f32.mrf.mxu0
      %v1341 = vadd.f32 0.0, %v1340
      %v1342 = vpop.f32.mrf.mxu0
      %1343 = vmatprep.mubr.f32.mxu0 0.0
      %1344 = vmatmul.mubr.f32.gmra.mxu0 %v594
      %v1345 = vpop.f32.mrf.mxu0
      %v1346 = vadd.f32 0.0, %v1345
      %v1347 = vpop.f32.mrf.mxu0
      %1348 = vmatprep.mubr.f32.mxu0 0.0
      %1349 = vmatmul.mubr.f32.gmra.mxu0 %v597
      %v1350 = vpop.f32.mrf.mxu0
      %v1351 = vadd.f32 0.0, %v1350
      %v1352 = vpop.f32.mrf.mxu0
      %1353 = vmatprep.mubr.f32.mxu0 0.0
      %1354 = vmatmul.mubr.f32.gmra.mxu0 %v600
      %v1355 = vpop.f32.mrf.mxu0
      %v1356 = vadd.f32 0.0, %v1355
      %v1357 = vpop.f32.mrf.mxu0
      %1358 = vmatprep.mubr.f32.mxu0 0.0
      %1359 = vmatmul.mubr.f32.gmra.mxu0 %v603
      %v1360 = vpop.f32.mrf.mxu0
      %v1361 = vadd.f32 0.0, %v1360
      %v1362 = vpop.f32.mrf.mxu0
      %1363 = vmatprep.mubr.f32.mxu0 0.0
      %1364 = vmatmul.mubr.f32.gmra.mxu0 %v606
      %v1365 = vpop.f32.mrf.mxu0
      %v1366 = vadd.f32 0.0, %v1365
      %v1367 = vpop.f32.mrf.mxu0
      %1368 = vmatprep.mubr.f32.mxu0 0.0
      %1369 = vmatmul.mubr.f32.gmra.mxu0 %v609
      %v1370 = vpop.f32.mrf.mxu0
      %v1371 = vadd.f32 0.0, %v1370
      %v1372 = vpop.f32.mrf.mxu0
      %1373 = vmatprep.mubr.f32.mxu0 0.0
      %1374 = vmatmul.mubr.f32.gmra.mxu0 %v612
      %v1375 = vpop.f32.mrf.mxu0
      %v1376 = vadd.f32 0.0, %v1375
      %v1377 = vpop.f32.mrf.mxu0
      %1378 = vmatprep.mubr.f32.mxu0 0.0
      %1379 = vmatmul.mubr.f32.gmra.mxu0 %v615
      %v1380 = vpop.f32.mrf.mxu0
      %v1381 = vadd.f32 0.0, %v1380
      %v1382 = vpop.f32.mrf.mxu0
      %1383 = vmatprep.mubr.f32.mxu0 0.0
      %1384 = vmatmul.mubr.f32.gmra.mxu0 %v618
      %v1385 = vpop.f32.mrf.mxu0
      %v1386 = vadd.f32 0.0, %v1385
      %v1387 = vpop.f32.mrf.mxu0
      %1388 = vmatprep.mubr.f32.mxu0 0.0
      %1389 = vmatmul.mubr.f32.gmra.mxu0 %v621
      %v1390 = vpop.f32.mrf.mxu0
      %v1391 = vadd.f32 0.0, %v1390
      %v1392 = vpop.f32.mrf.mxu0
      %1393 = vmatprep.mubr.f32.mxu0 0.0
      %1394 = vmatmul.mubr.f32.gmra.mxu0 %v624
      %v1395 = vpop.f32.mrf.mxu0
      %v1396 = vadd.f32 0.0, %v1395
      %v1397 = vpop.f32.mrf.mxu0
      %1398 = vmatprep.mubr.f32.mxu0 0.0
      %1399 = vmatmul.mubr.f32.gmra.mxu0 %v627
      %v1400 = vpop.f32.mrf.mxu0
      %v1401 = vadd.f32 0.0, %v1400
      %v1402 = vpop.f32.mrf.mxu0
      %1403 = vmatprep.mubr.f32.mxu0 0.0
      %1404 = vmatmul.mubr.f32.gmra.mxu0 %v630
      %v1405 = vpop.f32.mrf.mxu0
      %v1406 = vadd.f32 0.0, %v1405
      %v1407 = vpop.f32.mrf.mxu0
      %1408 = vmatprep.mubr.f32.mxu0 0.0
      %1409 = vmatmul.mubr.f32.gmra.mxu0 %v633
      %v1410 = vpop.f32.mrf.mxu0
      %v1411 = vadd.f32 0.0, %v1410
      %v1412 = vpop.f32.mrf.mxu0
      %1413 = vmatprep.mubr.f32.mxu0 0.0
      %1414 = vmatmul.mubr.f32.gmra.mxu0 %v636
      %v1415 = vpop.f32.mrf.mxu0
      %v1416 = vadd.f32 0.0, %v1415
      %v1417 = vpop.f32.mrf.mxu0
      %1418 = vmatprep.mubr.f32.mxu0 0.0
      %1419 = vmatmul.mubr.f32.gmra.mxu0 %v639
      %v1420 = vpop.f32.mrf.mxu0
      %v1421 = vadd.f32 0.0, %v1420
      %v1422 = vpop.f32.mrf.mxu0
      %1423 = vmatprep.mubr.f32.mxu0 0.0
      %1424 = vmatmul.mubr.f32.gmra.mxu0 %v642
      %v1425 = vpop.f32.mrf.mxu0
      %v1426 = vadd.f32 0.0, %v1425
      %v1427 = vpop.f32.mrf.mxu0
      %1428 = vmatprep.mubr.f32.mxu0 0.0
      %1429 = vmatmul.mubr.f32.gmra.mxu0 %v645
      %v1430 = vpop.f32.mrf.mxu0
      %v1431 = vadd.f32 0.0, %v1430
      %v1432 = vpop.f32.mrf.mxu0
      %1433 = vmatprep.mubr.f32.mxu0 0.0
      %1434 = vmatmul.mubr.f32.gmra.mxu0 %v648
      %v1435 = vpop.f32.mrf.mxu0
      %v1436 = vadd.f32 0.0, %v1435
      %v1437 = vpop.f32.mrf.mxu0
      %1438 = vmatprep.mubr.f32.mxu0 0.0
      %1439 = vmatmul.mubr.f32.gmra.mxu0 %v651
      %v1440 = vpop.f32.mrf.mxu0
      %v1441 = vadd.f32 0.0, %v1440
      %v1442 = vpop.f32.mrf.mxu0
      %1443 = vmatprep.mubr.f32.mxu0 0.0
      %1444 = vmatmul.mubr.f32.gmra.mxu0 %v654
      %v1445 = vpop.f32.mrf.mxu0
      %v1446 = vadd.f32 0.0, %v1445
      %v1447 = vpop.f32.mrf.mxu0
      %1448 = vmatprep.mubr.f32.mxu0 0.0
      %1449 = vmatmul.mubr.f32.gmra.mxu0 %v657
      %v1450 = vpop.f32.mrf.mxu0
      %v1451 = vadd.f32 0.0, %v1450
      %v1452 = vpop.f32.mrf.mxu0
      %1453 = vmatprep.mubr.f32.mxu0 0.0
      %1454 = vmatmul.mubr.f32.gmra.mxu0 %v660
      %v1455 = vpop.f32.mrf.mxu0
      %v1456 = vadd.f32 0.0, %v1455
      %v1457 = vpop.f32.mrf.mxu0
      %1458 = vmatprep.mubr.f32.mxu0 0.0
      %1459 = vmatmul.mubr.f32.gmra.mxu0 %v663
      %v1460 = vpop.f32.mrf.mxu0
      %v1461 = vadd.f32 0.0, %v1460
      %v1462 = vpop.f32.mrf.mxu0
      %1463 = vmatprep.mubr.f32.mxu0 0.0
      %1464 = vmatmul.mubr.f32.gmra.mxu0 %v666
      %v1465 = vpop.f32.mrf.mxu0
      %v1466 = vadd.f32 0.0, %v1465
      %v1467 = vpop.f32.mrf.mxu0
      %1468 = vmatprep.mubr.f32.mxu0 0.0
      %1469 = vmatmul.mubr.f32.gmra.mxu0 %v669
      %v1470 = vpop.f32.mrf.mxu0
      %v1471 = vadd.f32 0.0, %v1470
      %v1472 = vpop.f32.mrf.mxu0
      %1473 = vdwg.mxu0
      %v1474 = vld [vmem:[%s5] sm:$0x1]
      %v1476 = vlaneseq
      %v1477 = vshrl.u32 %v1476, 7
      %v1478 = vsub.s32 0, %v1477
      %v1479 = vrot.slane %v1474, %v1478
      %v1481 = vmul.f32 %v1316, %v1479
      %v1482 = vmul.f32 %v1321, %v1479
      %v1483 = vmul.f32 %v1326, %v1479
      %v1484 = vmul.f32 %v1331, %v1479
      %v1485 = vmul.f32 %v1336, %v1479
      %v1486 = vmul.f32 %v1341, %v1479
      %v1487 = vmul.f32 %v1346, %v1479
      %v1488 = vmul.f32 %v1351, %v1479
      %v1489 = vmul.f32 %v1356, %v1479
      %v1490 = vmul.f32 %v1361, %v1479
      %v1491 = vmul.f32 %v1366, %v1479
      %v1492 = vmul.f32 %v1371, %v1479
      %v1493 = vmul.f32 %v1376, %v1479
      %v1494 = vmul.f32 %v1381, %v1479
      %v1495 = vmul.f32 %v1386, %v1479
      %v1496 = vmul.f32 %v1391, %v1479
      %v1497 = vmul.f32 %v1396, %v1479
      %v1498 = vmul.f32 %v1401, %v1479
      %v1499 = vmul.f32 %v1406, %v1479
      %v1500 = vmul.f32 %v1411, %v1479
      %v1501 = vmul.f32 %v1416, %v1479
      %v1502 = vmul.f32 %v1421, %v1479
      %v1503 = vmul.f32 %v1426, %v1479
      %v1504 = vmul.f32 %v1431, %v1479
      %v1505 = vmul.f32 %v1436, %v1479
      %v1506 = vmul.f32 %v1441, %v1479
      %v1507 = vmul.f32 %v1446, %v1479
      %v1508 = vmul.f32 %v1451, %v1479
      %v1509 = vmul.f32 %v1456, %v1479
      %v1510 = vmul.f32 %v1461, %v1479
      %v1511 = vmul.f32 %v1466, %v1479
      %v1512 = vmul.f32 %v1471, %v1479
      %v1513 = vld [vmem:[%s8] sm:$0x1]
      %v1515 = vlaneseq
      %v1516 = vshrl.u32 %v1515, 7
      %v1517 = vsub.s32 0, %v1516
      %v1518 = vrot.slane %v1513, %v1517
      %v1520 = vadd.f32 %v1481, %v1518
      %v1521 = vadd.f32 %v1482, %v1518
      %v1522 = vadd.f32 %v1483, %v1518
      %v1523 = vadd.f32 %v1484, %v1518
      %v1524 = vadd.f32 %v1485, %v1518
      %v1525 = vadd.f32 %v1486, %v1518
      %v1526 = vadd.f32 %v1487, %v1518
      %v1527 = vadd.f32 %v1488, %v1518
      %v1528 = vadd.f32 %v1489, %v1518
      %v1529 = vadd.f32 %v1490, %v1518
      %v1530 = vadd.f32 %v1491, %v1518
      %v1531 = vadd.f32 %v1492, %v1518
      %v1532 = vadd.f32 %v1493, %v1518
      %v1533 = vadd.f32 %v1494, %v1518
      %v1534 = vadd.f32 %v1495, %v1518
      %v1535 = vadd.f32 %v1496, %v1518
      %v1536 = vadd.f32 %v1497, %v1518
      %v1537 = vadd.f32 %v1498, %v1518
      %v1538 = vadd.f32 %v1499, %v1518
      %v1539 = vadd.f32 %v1500, %v1518
      %v1540 = vadd.f32 %v1501, %v1518
      %v1541 = vadd.f32 %v1502, %v1518
      %v1542 = vadd.f32 %v1503, %v1518
      %v1543 = vadd.f32 %v1504, %v1518
      %v1544 = vadd.f32 %v1505, %v1518
      %v1545 = vadd.f32 %v1506, %v1518
      %v1546 = vadd.f32 %v1507, %v1518
      %v1547 = vadd.f32 %v1508, %v1518
      %v1548 = vadd.f32 %v1509, %v1518
      %v1549 = vadd.f32 %v1510, %v1518
      %v1550 = vadd.f32 %v1511, %v1518
      %v1551 = vadd.f32 %v1512, %v1518
      %v1552 = vmax.f32 %v1520, 0.0
      %v1553 = vmax.f32 %v1521, 0.0
      %v1554 = vmax.f32 %v1522, 0.0
      %v1555 = vmax.f32 %v1523, 0.0
      %v1556 = vmax.f32 %v1524, 0.0
      %v1557 = vmax.f32 %v1525, 0.0
      %v1558 = vmax.f32 %v1526, 0.0
      %v1559 = vmax.f32 %v1527, 0.0
      %v1560 = vmax.f32 %v1528, 0.0
      %v1561 = vmax.f32 %v1529, 0.0
      %v1562 = vmax.f32 %v1530, 0.0
      %v1563 = vmax.f32 %v1531, 0.0
      %v1564 = vmax.f32 %v1532, 0.0
      %v1565 = vmax.f32 %v1533, 0.0
      %v1566 = vmax.f32 %v1534, 0.0
      %v1567 = vmax.f32 %v1535, 0.0
      %v1568 = vmax.f32 %v1536, 0.0
      %v1569 = vmax.f32 %v1537, 0.0
      %v1570 = vmax.f32 %v1538, 0.0
      %v1571 = vmax.f32 %v1539, 0.0
      %v1572 = vmax.f32 %v1540, 0.0
      %v1573 = vmax.f32 %v1541, 0.0
      %v1574 = vmax.f32 %v1542, 0.0
      %v1575 = vmax.f32 %v1543, 0.0
      %v1576 = vmax.f32 %v1544, 0.0
      %v1577 = vmax.f32 %v1545, 0.0
      %v1578 = vmax.f32 %v1546, 0.0
      %v1579 = vmax.f32 %v1547, 0.0
      %v1580 = vmax.f32 %v1548, 0.0
      %v1581 = vmax.f32 %v1549, 0.0
      %v1582 = vmax.f32 %v1550, 0.0
      %v1583 = vmax.f32 %v1551, 0.0
      %v1584 = vpack.c.bf16 %v1553, %v1552
      %v1585 = vpack.c.bf16 %v1555, %v1554
      %v1586 = vpack.c.bf16 %v1557, %v1556
      %v1587 = vpack.c.bf16 %v1559, %v1558
      %v1588 = vpack.c.bf16 %v1561, %v1560
      %v1589 = vpack.c.bf16 %v1563, %v1562
      %v1590 = vpack.c.bf16 %v1565, %v1564
      %v1591 = vpack.c.bf16 %v1567, %v1566
      %v1592 = vpack.c.bf16 %v1569, %v1568
      %v1593 = vpack.c.bf16 %v1571, %v1570
      %v1594 = vpack.c.bf16 %v1573, %v1572
      %v1595 = vpack.c.bf16 %v1575, %v1574
      %v1596 = vpack.c.bf16 %v1577, %v1576
      %v1597 = vpack.c.bf16 %v1579, %v1578
      %v1598 = vpack.c.bf16 %v1581, %v1580
      %v1599 = vpack.c.bf16 %v1583, %v1582
      %v1616 = vunpack.c.l.b16 %v1584
      %v1617 = vunpack.c.h.b16 %v1584
      %v1618 = vunpack.c.l.b16 %v1585
      %v1619 = vunpack.c.h.b16 %v1585
      %v1620 = vunpack.c.l.b16 %v1586
      %v1621 = vunpack.c.h.b16 %v1586
      %v1622 = vunpack.c.l.b16 %v1587
      %v1623 = vunpack.c.h.b16 %v1587
      %v1624 = vunpack.c.l.b16 %v1588
      %v1625 = vunpack.c.h.b16 %v1588
      %v1626 = vunpack.c.l.b16 %v1589
      %v1627 = vunpack.c.h.b16 %v1589
      %v1628 = vunpack.c.l.b16 %v1590
      %v1629 = vunpack.c.h.b16 %v1590
      %v1630 = vunpack.c.l.b16 %v1591
      %v1631 = vunpack.c.h.b16 %v1591
      %v1632 = vunpack.c.l.b16 %v1592
      %v1633 = vunpack.c.h.b16 %v1592
      %v1634 = vunpack.c.l.b16 %v1593
      %v1635 = vunpack.c.h.b16 %v1593
      %v1636 = vunpack.c.l.b16 %v1594
      %v1637 = vunpack.c.h.b16 %v1594
      %v1638 = vunpack.c.l.b16 %v1595
      %v1639 = vunpack.c.h.b16 %v1595
      %v1640 = vunpack.c.l.b16 %v1596
      %v1641 = vunpack.c.h.b16 %v1596
      %v1642 = vunpack.c.l.b16 %v1597
      %v1643 = vunpack.c.h.b16 %v1597
      %v1644 = vunpack.c.l.b16 %v1598
      %v1645 = vunpack.c.h.b16 %v1598
      %v1646 = vunpack.c.l.b16 %v1599
      %v1647 = vunpack.c.h.b16 %v1599
      %v1648 = vpack.c.b16 %v1616, %v1616
      %v1649 = vpack.c.b16 %v1617, %v1617
      %v1650 = vpack.c.b16 %v1618, %v1618
      %v1651 = vpack.c.b16 %v1619, %v1619
      %v1652 = vpack.c.b16 %v1620, %v1620
      %v1653 = vpack.c.b16 %v1621, %v1621
      %v1654 = vpack.c.b16 %v1622, %v1622
      %v1655 = vpack.c.b16 %v1623, %v1623
      %v1656 = vpack.c.b16 %v1624, %v1624
      %v1657 = vpack.c.b16 %v1625, %v1625
      %v1658 = vpack.c.b16 %v1626, %v1626
      %v1659 = vpack.c.b16 %v1627, %v1627
      %v1660 = vpack.c.b16 %v1628, %v1628
      %v1661 = vpack.c.b16 %v1629, %v1629
      %v1662 = vpack.c.b16 %v1630, %v1630
      %v1663 = vpack.c.b16 %v1631, %v1631
      %v1664 = vpack.c.b16 %v1632, %v1632
      %v1665 = vpack.c.b16 %v1633, %v1633
      %v1666 = vpack.c.b16 %v1634, %v1634
      %v1667 = vpack.c.b16 %v1635, %v1635
      %v1668 = vpack.c.b16 %v1636, %v1636
      %v1669 = vpack.c.b16 %v1637, %v1637
      %v1670 = vpack.c.b16 %v1638, %v1638
      %v1671 = vpack.c.b16 %v1639, %v1639
      %v1672 = vpack.c.b16 %v1640, %v1640
      %v1673 = vpack.c.b16 %v1641, %v1641
      %v1674 = vpack.c.b16 %v1642, %v1642
      %v1675 = vpack.c.b16 %v1643, %v1643
      %v1676 = vpack.c.b16 %v1644, %v1644
      %v1677 = vpack.c.b16 %v1645, %v1645
      %v1678 = vpack.c.b16 %v1646, %v1646
      %v1679 = vpack.c.b16 %v1647, %v1647
      %1712 = vst.msk [vmem:[%s520] sm:$0xf] %vm1212, %v1648
      %1713 = vst.msk [vmem:[%s520 + $0x4] sm:$0xf] %vm1212, %v1649
      %1714 = vst.msk [vmem:[%s520 + $0x8] sm:$0xf] %vm1212, %v1650
      %1715 = vst.msk [vmem:[%s520 + $0xc] sm:$0xf] %vm1212, %v1651
      %1716 = vst.msk [vmem:[%s520 + $0x10] sm:$0xf] %vm1212, %v1652
      %1717 = vst.msk [vmem:[%s520 + $0x14] sm:$0xf] %vm1212, %v1653
      %1718 = vst.msk [vmem:[%s520 + $0x18] sm:$0xf] %vm1212, %v1654
      %1719 = vst.msk [vmem:[%s520 + $0x1c] sm:$0xf] %vm1212, %v1655
      %1720 = vst.msk [vmem:[%s520 + $0x20] sm:$0xf] %vm1212, %v1656
      %1721 = vst.msk [vmem:[%s520 + $0x24] sm:$0xf] %vm1212, %v1657
      %1722 = vst.msk [vmem:[%s520 + $0x28] sm:$0xf] %vm1212, %v1658
      %1723 = vst.msk [vmem:[%s520 + $0x2c] sm:$0xf] %vm1212, %v1659
      %1724 = vst.msk [vmem:[%s520 + $0x30] sm:$0xf] %vm1212, %v1660
      %1725 = vst.msk [vmem:[%s520 + $0x34] sm:$0xf] %vm1212, %v1661
      %1726 = vst.msk [vmem:[%s520 + $0x38] sm:$0xf] %vm1212, %v1662
      %1727 = vst.msk [vmem:[%s520 + $0x3c] sm:$0xf] %vm1212, %v1663
      %1728 = vst.msk [vmem:[%s520 + $0x40] sm:$0xf] %vm1212, %v1664
      %1729 = vst.msk [vmem:[%s520 + $0x44] sm:$0xf] %vm1212, %v1665
      %1730 = vst.msk [vmem:[%s520 + $0x48] sm:$0xf] %vm1212, %v1666
      %1731 = vst.msk [vmem:[%s520 + $0x4c] sm:$0xf] %vm1212, %v1667
      %1732 = vst.msk [vmem:[%s520 + $0x50] sm:$0xf] %vm1212, %v1668
      %1733 = vst.msk [vmem:[%s520 + $0x54] sm:$0xf] %vm1212, %v1669
      %1734 = vst.msk [vmem:[%s520 + $0x58] sm:$0xf] %vm1212, %v1670
      %1735 = vst.msk [vmem:[%s520 + $0x5c] sm:$0xf] %vm1212, %v1671
      %1736 = vst.msk [vmem:[%s520 + $0x60] sm:$0xf] %vm1212, %v1672
      %1737 = vst.msk [vmem:[%s520 + $0x64] sm:$0xf] %vm1212, %v1673
      %1738 = vst.msk [vmem:[%s520 + $0x68] sm:$0xf] %vm1212, %v1674
      %1739 = vst.msk [vmem:[%s520 + $0x6c] sm:$0xf] %vm1212, %v1675
      %1740 = vst.msk [vmem:[%s520 + $0x70] sm:$0xf] %vm1212, %v1676
      %1741 = vst.msk [vmem:[%s520 + $0x74] sm:$0xf] %vm1212, %v1677
      %1742 = vst.msk [vmem:[%s520 + $0x78] sm:$0xf] %vm1212, %v1678
      %1743 = vst.msk [vmem:[%s520 + $0x7c] sm:$0xf] %vm1212, %v1679
      %v1744 = vld [vmem:[%s3] sm:$0xf]
      %v1746 = vsel %vm671, %v1744, 0
      %1748 = vmatprep.subr.mxu0 0.0
      %1749 = vmatpush1.msra.mxu0 0.0
      %1750 = vmatprep.subr.mxu0 0.0
      %1751 = vmatpush1.msra.mxu0 0.0
      %1752 = vmatprep.subr.mxu0 0.0
      %1753 = vmatpush1.msra.mxu0 0.0
      %1754 = vmatprep.subr.mxu0 0.0
      %1755 = vmatpush1.msra.mxu0 0.0
      %1756 = vmatprep.subr.mxu0 0.0
      %1757 = vmatpush1.msra.mxu0 0.0
      %1758 = vmatprep.subr.mxu0 0.0
      %1759 = vmatpush1.msra.mxu0 0.0
      %1760 = vmatprep.subr.mxu0 0.0
      %1761 = vmatpush1.msra.mxu0 0.0
      %1762 = vmatprep.subr.mxu0 0.0
      %1763 = vmatpush1.msra.mxu0 0.0
      %1764 = vmatprep.subr.mxu0 0.0
      %1765 = vmatpush1.msra.mxu0 0.0
      %1766 = vmatprep.subr.mxu0 0.0
      %1767 = vmatpush1.msra.mxu0 0.0
      %1768 = vmatprep.subr.mxu0 0.0
      %1769 = vmatpush1.msra.mxu0 0.0
      %1770 = vmatprep.subr.mxu0 0.0
      %1771 = vmatpush1.msra.mxu0 0.0
      %1772 = vmatprep.subr.mxu0 0.0
      %1773 = vmatpush1.msra.mxu0 0.0
      %1774 = vmatprep.subr.mxu0 0.0
      %1775 = vmatpush1.msra.mxu0 0.0
      %1776 = vmatprep.subr.mxu0 0.0
      %1777 = vmatpush1.msra.mxu0 0.0
      %1778 = vmatprep.subr.mxu0 0.0
      %1779 = vmatpush1.msra.mxu0 %v1746
      %1780 = vmatprep.subr.mxu0 0.0
      %1781 = vmatpush2.msra.mxu0 0.0
      %1782 = vmatprep.subr.mxu0 0.0
      %1783 = vmatpush2.msra.mxu0 0.0
      %1784 = vmatprep.subr.mxu0 0.0
      %1785 = vmatpush2.msra.mxu0 0.0
      %1786 = vmatprep.subr.mxu0 0.0
      %1787 = vmatpush2.msra.mxu0 0.0
      %1788 = vmatprep.subr.mxu0 0.0
      %1789 = vmatpush2.msra.mxu0 0.0
      %1790 = vmatprep.subr.mxu0 0.0
      %1791 = vmatpush2.msra.mxu0 0.0
      %1792 = vmatprep.subr.mxu0 0.0
      %1793 = vmatpush2.msra.mxu0 0.0
      %1794 = vmatprep.subr.mxu0 0.0
      %1795 = vmatpush2.msra.mxu0 0.0
      %1796 = vmatprep.subr.mxu0 0.0
      %1797 = vmatpush2.msra.mxu0 0.0
      %1798 = vmatprep.subr.mxu0 0.0
      %1799 = vmatpush2.msra.mxu0 0.0
      %1800 = vmatprep.subr.mxu0 0.0
      %1801 = vmatpush2.msra.mxu0 0.0
      %1802 = vmatprep.subr.mxu0 0.0
      %1803 = vmatpush2.msra.mxu0 0.0
      %1804 = vmatprep.subr.mxu0 0.0
      %1805 = vmatpush2.msra.mxu0 0.0
      %1806 = vmatprep.subr.mxu0 0.0
      %1807 = vmatpush2.msra.mxu0 0.0
      %1808 = vmatprep.subr.mxu0 0.0
      %1809 = vmatpush2.msra.mxu0 0.0
      %1810 = vmatprep.subr.mxu0 0.0
      %1811 = vmatpush2.msra.mxu0 0.0
      %1812 = vmatprep.mubr.f32.mxu0 0.0
      %1813 = vmatmul.mubr.f32.gmra.mxu0 %v576
      %v1814 = vpop.f32.mrf.mxu0
      %v1815 = vadd.f32 0.0, %v1814
      %v1816 = vpop.f32.mrf.mxu0
      %1817 = vmatprep.mubr.f32.mxu0 0.0
      %1818 = vmatmul.mubr.f32.gmra.mxu0 %v579
      %v1819 = vpop.f32.mrf.mxu0
      %v1820 = vadd.f32 0.0, %v1819
      %v1821 = vpop.f32.mrf.mxu0
      %1822 = vmatprep.mubr.f32.mxu0 0.0
      %1823 = vmatmul.mubr.f32.gmra.mxu0 %v582
      %v1824 = vpop.f32.mrf.mxu0
      %v1825 = vadd.f32 0.0, %v1824
      %v1826 = vpop.f32.mrf.mxu0
      %1827 = vmatprep.mubr.f32.mxu0 0.0
      %1828 = vmatmul.mubr.f32.gmra.mxu0 %v585
      %v1829 = vpop.f32.mrf.mxu0
      %v1830 = vadd.f32 0.0, %v1829
      %v1831 = vpop.f32.mrf.mxu0
      %1832 = vmatprep.mubr.f32.mxu0 0.0
      %1833 = vmatmul.mubr.f32.gmra.mxu0 %v588
      %v1834 = vpop.f32.mrf.mxu0
      %v1835 = vadd.f32 0.0, %v1834
      %v1836 = vpop.f32.mrf.mxu0
      %1837 = vmatprep.mubr.f32.mxu0 0.0
      %1838 = vmatmul.mubr.f32.gmra.mxu0 %v591
      %v1839 = vpop.f32.mrf.mxu0
      %v1840 = vadd.f32 0.0, %v1839
      %v1841 = vpop.f32.mrf.mxu0
      %1842 = vmatprep.mubr.f32.mxu0 0.0
      %1843 = vmatmul.mubr.f32.gmra.mxu0 %v594
      %v1844 = vpop.f32.mrf.mxu0
      %v1845 = vadd.f32 0.0, %v1844
      %v1846 = vpop.f32.mrf.mxu0
      %1847 = vmatprep.mubr.f32.mxu0 0.0
      %1848 = vmatmul.mubr.f32.gmra.mxu0 %v597
      %v1849 = vpop.f32.mrf.mxu0
      %v1850 = vadd.f32 0.0, %v1849
      %v1851 = vpop.f32.mrf.mxu0
      %1852 = vmatprep.mubr.f32.mxu0 0.0
      %1853 = vmatmul.mubr.f32.gmra.mxu0 %v600
      %v1854 = vpop.f32.mrf.mxu0
      %v1855 = vadd.f32 0.0, %v1854
      %v1856 = vpop.f32.mrf.mxu0
      %1857 = vmatprep.mubr.f32.mxu0 0.0
      %1858 = vmatmul.mubr.f32.gmra.mxu0 %v603
      %v1859 = vpop.f32.mrf.mxu0
      %v1860 = vadd.f32 0.0, %v1859
      %v1861 = vpop.f32.mrf.mxu0
      %1862 = vmatprep.mubr.f32.mxu0 0.0
      %1863 = vmatmul.mubr.f32.gmra.mxu0 %v606
      %v1864 = vpop.f32.mrf.mxu0
      %v1865 = vadd.f32 0.0, %v1864
      %v1866 = vpop.f32.mrf.mxu0
      %1867 = vmatprep.mubr.f32.mxu0 0.0
      %1868 = vmatmul.mubr.f32.gmra.mxu0 %v609
      %v1869 = vpop.f32.mrf.mxu0
      %v1870 = vadd.f32 0.0, %v1869
      %v1871 = vpop.f32.mrf.mxu0
      %1872 = vmatprep.mubr.f32.mxu0 0.0
      %1873 = vmatmul.mubr.f32.gmra.mxu0 %v612
      %v1874 = vpop.f32.mrf.mxu0
      %v1875 = vadd.f32 0.0, %v1874
      %v1876 = vpop.f32.mrf.mxu0
      %1877 = vmatprep.mubr.f32.mxu0 0.0
      %1878 = vmatmul.mubr.f32.gmra.mxu0 %v615
      %v1879 = vpop.f32.mrf.mxu0
      %v1880 = vadd.f32 0.0, %v1879
      %v1881 = vpop.f32.mrf.mxu0
      %1882 = vmatprep.mubr.f32.mxu0 0.0
      %1883 = vmatmul.mubr.f32.gmra.mxu0 %v618
      %v1884 = vpop.f32.mrf.mxu0
      %v1885 = vadd.f32 0.0, %v1884
      %v1886 = vpop.f32.mrf.mxu0
      %1887 = vmatprep.mubr.f32.mxu0 0.0
      %1888 = vmatmul.mubr.f32.gmra.mxu0 %v621
      %v1889 = vpop.f32.mrf.mxu0
      %v1890 = vadd.f32 0.0, %v1889
      %v1891 = vpop.f32.mrf.mxu0
      %1892 = vmatprep.mubr.f32.mxu0 0.0
      %1893 = vmatmul.mubr.f32.gmra.mxu0 %v624
      %v1894 = vpop.f32.mrf.mxu0
      %v1895 = vadd.f32 0.0, %v1894
      %v1896 = vpop.f32.mrf.mxu0
      %1897 = vmatprep.mubr.f32.mxu0 0.0
      %1898 = vmatmul.mubr.f32.gmra.mxu0 %v627
      %v1899 = vpop.f32.mrf.mxu0
      %v1900 = vadd.f32 0.0, %v1899
      %v1901 = vpop.f32.mrf.mxu0
      %1902 = vmatprep.mubr.f32.mxu0 0.0
      %1903 = vmatmul.mubr.f32.gmra.mxu0 %v630
      %v1904 = vpop.f32.mrf.mxu0
      %v1905 = vadd.f32 0.0, %v1904
      %v1906 = vpop.f32.mrf.mxu0
      %1907 = vmatprep.mubr.f32.mxu0 0.0
      %1908 = vmatmul.mubr.f32.gmra.mxu0 %v633
      %v1909 = vpop.f32.mrf.mxu0
      %v1910 = vadd.f32 0.0, %v1909
      %v1911 = vpop.f32.mrf.mxu0
      %1912 = vmatprep.mubr.f32.mxu0 0.0
      %1913 = vmatmul.mubr.f32.gmra.mxu0 %v636
      %v1914 = vpop.f32.mrf.mxu0
      %v1915 = vadd.f32 0.0, %v1914
      %v1916 = vpop.f32.mrf.mxu0
      %1917 = vmatprep.mubr.f32.mxu0 0.0
      %1918 = vmatmul.mubr.f32.gmra.mxu0 %v639
      %v1919 = vpop.f32.mrf.mxu0
      %v1920 = vadd.f32 0.0, %v1919
      %v1921 = vpop.f32.mrf.mxu0
      %1922 = vmatprep.mubr.f32.mxu0 0.0
      %1923 = vmatmul.mubr.f32.gmra.mxu0 %v642
      %v1924 = vpop.f32.mrf.mxu0
      %v1925 = vadd.f32 0.0, %v1924
      %v1926 = vpop.f32.mrf.mxu0
      %1927 = vmatprep.mubr.f32.mxu0 0.0
      %1928 = vmatmul.mubr.f32.gmra.mxu0 %v645
      %v1929 = vpop.f32.mrf.mxu0
      %v1930 = vadd.f32 0.0, %v1929
      %v1931 = vpop.f32.mrf.mxu0
      %1932 = vmatprep.mubr.f32.mxu0 0.0
      %1933 = vmatmul.mubr.f32.gmra.mxu0 %v648
      %v1934 = vpop.f32.mrf.mxu0
      %v1935 = vadd.f32 0.0, %v1934
      %v1936 = vpop.f32.mrf.mxu0
      %1937 = vmatprep.mubr.f32.mxu0 0.0
      %1938 = vmatmul.mubr.f32.gmra.mxu0 %v651
      %v1939 = vpop.f32.mrf.mxu0
      %v1940 = vadd.f32 0.0, %v1939
      %v1941 = vpop.f32.mrf.mxu0
      %1942 = vmatprep.mubr.f32.mxu0 0.0
      %1943 = vmatmul.mubr.f32.gmra.mxu0 %v654
      %v1944 = vpop.f32.mrf.mxu0
      %v1945 = vadd.f32 0.0, %v1944
      %v1946 = vpop.f32.mrf.mxu0
      %1947 = vmatprep.mubr.f32.mxu0 0.0
      %1948 = vmatmul.mubr.f32.gmra.mxu0 %v657
      %v1949 = vpop.f32.mrf.mxu0
      %v1950 = vadd.f32 0.0, %v1949
      %v1951 = vpop.f32.mrf.mxu0
      %1952 = vmatprep.mubr.f32.mxu0 0.0
      %1953 = vmatmul.mubr.f32.gmra.mxu0 %v660
      %v1954 = vpop.f32.mrf.mxu0
      %v1955 = vadd.f32 0.0, %v1954
      %v1956 = vpop.f32.mrf.mxu0
      %1957 = vmatprep.mubr.f32.mxu0 0.0
      %1958 = vmatmul.mubr.f32.gmra.mxu0 %v663
      %v1959 = vpop.f32.mrf.mxu0
      %v1960 = vadd.f32 0.0, %v1959
      %v1961 = vpop.f32.mrf.mxu0
      %1962 = vmatprep.mubr.f32.mxu0 0.0
      %1963 = vmatmul.mubr.f32.gmra.mxu0 %v666
      %v1964 = vpop.f32.mrf.mxu0
      %v1965 = vadd.f32 0.0, %v1964
      %v1966 = vpop.f32.mrf.mxu0
      %1967 = vmatprep.mubr.f32.mxu0 0.0
      %1968 = vmatmul.mubr.f32.gmra.mxu0 %v669
      %v1969 = vpop.f32.mrf.mxu0
      %v1970 = vadd.f32 0.0, %v1969
      %v1971 = vpop.f32.mrf.mxu0
      %1972 = vdwg.mxu0
      %v1973 = vld [vmem:[%s6] sm:$0x1]
      %v1975 = vlaneseq
      %v1976 = vshrl.u32 %v1975, 7
      %v1977 = vsub.s32 0, %v1976
      %v1978 = vrot.slane %v1973, %v1977
      %v1980 = vmul.f32 %v1815, %v1978
      %v1981 = vmul.f32 %v1820, %v1978
      %v1982 = vmul.f32 %v1825, %v1978
      %v1983 = vmul.f32 %v1830, %v1978
      %v1984 = vmul.f32 %v1835, %v1978
      %v1985 = vmul.f32 %v1840, %v1978
      %v1986 = vmul.f32 %v1845, %v1978
      %v1987 = vmul.f32 %v1850, %v1978
      %v1988 = vmul.f32 %v1855, %v1978
      %v1989 = vmul.f32 %v1860, %v1978
      %v1990 = vmul.f32 %v1865, %v1978
      %v1991 = vmul.f32 %v1870, %v1978
      %v1992 = vmul.f32 %v1875, %v1978
      %v1993 = vmul.f32 %v1880, %v1978
      %v1994 = vmul.f32 %v1885, %v1978
      %v1995 = vmul.f32 %v1890, %v1978
      %v1996 = vmul.f32 %v1895, %v1978
      %v1997 = vmul.f32 %v1900, %v1978
      %v1998 = vmul.f32 %v1905, %v1978
      %v1999 = vmul.f32 %v1910, %v1978
      %v2000 = vmul.f32 %v1915, %v1978
      %v2001 = vmul.f32 %v1920, %v1978
      %v2002 = vmul.f32 %v1925, %v1978
      %v2003 = vmul.f32 %v1930, %v1978
      %v2004 = vmul.f32 %v1935, %v1978
      %v2005 = vmul.f32 %v1940, %v1978
      %v2006 = vmul.f32 %v1945, %v1978
      %v2007 = vmul.f32 %v1950, %v1978
      %v2008 = vmul.f32 %v1955, %v1978
      %v2009 = vmul.f32 %v1960, %v1978
      %v2010 = vmul.f32 %v1965, %v1978
      %v2011 = vmul.f32 %v1970, %v1978
      %v2012 = vld [vmem:[%s9] sm:$0x1]
      %v2014 = vlaneseq
      %v2015 = vshrl.u32 %v2014, 7
      %v2016 = vsub.s32 0, %v2015
      %v2017 = vrot.slane %v2012, %v2016
      %v2019 = vadd.f32 %v1980, %v2017
      %v2020 = vadd.f32 %v1981, %v2017
      %v2021 = vadd.f32 %v1982, %v2017
      %v2022 = vadd.f32 %v1983, %v2017
      %v2023 = vadd.f32 %v1984, %v2017
      %v2024 = vadd.f32 %v1985, %v2017
      %v2025 = vadd.f32 %v1986, %v2017
      %v2026 = vadd.f32 %v1987, %v2017
      %v2027 = vadd.f32 %v1988, %v2017
      %v2028 = vadd.f32 %v1989, %v2017
      %v2029 = vadd.f32 %v1990, %v2017
      %v2030 = vadd.f32 %v1991, %v2017
      %v2031 = vadd.f32 %v1992, %v2017
      %v2032 = vadd.f32 %v1993, %v2017
      %v2033 = vadd.f32 %v1994, %v2017
      %v2034 = vadd.f32 %v1995, %v2017
      %v2035 = vadd.f32 %v1996, %v2017
      %v2036 = vadd.f32 %v1997, %v2017
      %v2037 = vadd.f32 %v1998, %v2017
      %v2038 = vadd.f32 %v1999, %v2017
      %v2039 = vadd.f32 %v2000, %v2017
      %v2040 = vadd.f32 %v2001, %v2017
      %v2041 = vadd.f32 %v2002, %v2017
      %v2042 = vadd.f32 %v2003, %v2017
      %v2043 = vadd.f32 %v2004, %v2017
      %v2044 = vadd.f32 %v2005, %v2017
      %v2045 = vadd.f32 %v2006, %v2017
      %v2046 = vadd.f32 %v2007, %v2017
      %v2047 = vadd.f32 %v2008, %v2017
      %v2048 = vadd.f32 %v2009, %v2017
      %v2049 = vadd.f32 %v2010, %v2017
      %v2050 = vadd.f32 %v2011, %v2017
      %v2051 = vmax.f32 %v2019, 0.0
      %v2052 = vmax.f32 %v2020, 0.0
      %v2053 = vmax.f32 %v2021, 0.0
      %v2054 = vmax.f32 %v2022, 0.0
      %v2055 = vmax.f32 %v2023, 0.0
      %v2056 = vmax.f32 %v2024, 0.0
      %v2057 = vmax.f32 %v2025, 0.0
      %v2058 = vmax.f32 %v2026, 0.0
      %v2059 = vmax.f32 %v2027, 0.0
      %v2060 = vmax.f32 %v2028, 0.0
      %v2061 = vmax.f32 %v2029, 0.0
      %v2062 = vmax.f32 %v2030, 0.0
      %v2063 = vmax.f32 %v2031, 0.0
      %v2064 = vmax.f32 %v2032, 0.0
      %v2065 = vmax.f32 %v2033, 0.0
      %v2066 = vmax.f32 %v2034, 0.0
      %v2067 = vmax.f32 %v2035, 0.0
      %v2068 = vmax.f32 %v2036, 0.0
      %v2069 = vmax.f32 %v2037, 0.0
      %v2070 = vmax.f32 %v2038, 0.0
      %v2071 = vmax.f32 %v2039, 0.0
      %v2072 = vmax.f32 %v2040, 0.0
      %v2073 = vmax.f32 %v2041, 0.0
      %v2074 = vmax.f32 %v2042, 0.0
      %v2075 = vmax.f32 %v2043, 0.0
      %v2076 = vmax.f32 %v2044, 0.0
      %v2077 = vmax.f32 %v2045, 0.0
      %v2078 = vmax.f32 %v2046, 0.0
      %v2079 = vmax.f32 %v2047, 0.0
      %v2080 = vmax.f32 %v2048, 0.0
      %v2081 = vmax.f32 %v2049, 0.0
      %v2082 = vmax.f32 %v2050, 0.0
      %v2083 = vpack.c.bf16 %v2052, %v2051
      %v2084 = vpack.c.bf16 %v2054, %v2053
      %v2085 = vpack.c.bf16 %v2056, %v2055
      %v2086 = vpack.c.bf16 %v2058, %v2057
      %v2087 = vpack.c.bf16 %v2060, %v2059
      %v2088 = vpack.c.bf16 %v2062, %v2061
      %v2089 = vpack.c.bf16 %v2064, %v2063
      %v2090 = vpack.c.bf16 %v2066, %v2065
      %v2091 = vpack.c.bf16 %v2068, %v2067
      %v2092 = vpack.c.bf16 %v2070, %v2069
      %v2093 = vpack.c.bf16 %v2072, %v2071
      %v2094 = vpack.c.bf16 %v2074, %v2073
      %v2095 = vpack.c.bf16 %v2076, %v2075
      %v2096 = vpack.c.bf16 %v2078, %v2077
      %v2097 = vpack.c.bf16 %v2080, %v2079
      %v2098 = vpack.c.bf16 %v2082, %v2081
      %v2115 = vunpack.c.l.b16 %v2083
      %v2116 = vunpack.c.h.b16 %v2083
      %v2117 = vunpack.c.l.b16 %v2084
      %v2118 = vunpack.c.h.b16 %v2084
      %v2119 = vunpack.c.l.b16 %v2085
      %v2120 = vunpack.c.h.b16 %v2085
      %v2121 = vunpack.c.l.b16 %v2086
      %v2122 = vunpack.c.h.b16 %v2086
      %v2123 = vunpack.c.l.b16 %v2087
      %v2124 = vunpack.c.h.b16 %v2087
      %v2125 = vunpack.c.l.b16 %v2088
      %v2126 = vunpack.c.h.b16 %v2088
      %v2127 = vunpack.c.l.b16 %v2089
      %v2128 = vunpack.c.h.b16 %v2089
      %v2129 = vunpack.c.l.b16 %v2090
      %v2130 = vunpack.c.h.b16 %v2090
      %v2131 = vunpack.c.l.b16 %v2091
      %v2132 = vunpack.c.h.b16 %v2091
      %v2133 = vunpack.c.l.b16 %v2092
      %v2134 = vunpack.c.h.b16 %v2092
      %v2135 = vunpack.c.l.b16 %v2093
      %v2136 = vunpack.c.h.b16 %v2093
      %v2137 = vunpack.c.l.b16 %v2094
      %v2138 = vunpack.c.h.b16 %v2094
      %v2139 = vunpack.c.l.b16 %v2095
      %v2140 = vunpack.c.h.b16 %v2095
      %v2141 = vunpack.c.l.b16 %v2096
      %v2142 = vunpack.c.h.b16 %v2096
      %v2143 = vunpack.c.l.b16 %v2097
      %v2144 = vunpack.c.h.b16 %v2097
      %v2145 = vunpack.c.l.b16 %v2098
      %v2146 = vunpack.c.h.b16 %v2098
      %v2147 = vpack.c.b16 %v2115, %v2115
      %v2148 = vpack.c.b16 %v2116, %v2116
      %v2149 = vpack.c.b16 %v2117, %v2117
      %v2150 = vpack.c.b16 %v2118, %v2118
      %v2151 = vpack.c.b16 %v2119, %v2119
      %v2152 = vpack.c.b16 %v2120, %v2120
      %v2153 = vpack.c.b16 %v2121, %v2121
      %v2154 = vpack.c.b16 %v2122, %v2122
      %v2155 = vpack.c.b16 %v2123, %v2123
      %v2156 = vpack.c.b16 %v2124, %v2124
      %v2157 = vpack.c.b16 %v2125, %v2125
      %v2158 = vpack.c.b16 %v2126, %v2126
      %v2159 = vpack.c.b16 %v2127, %v2127
      %v2160 = vpack.c.b16 %v2128, %v2128
      %v2161 = vpack.c.b16 %v2129, %v2129
      %v2162 = vpack.c.b16 %v2130, %v2130
      %v2163 = vpack.c.b16 %v2131, %v2131
      %v2164 = vpack.c.b16 %v2132, %v2132
      %v2165 = vpack.c.b16 %v2133, %v2133
      %v2166 = vpack.c.b16 %v2134, %v2134
      %v2167 = vpack.c.b16 %v2135, %v2135
      %v2168 = vpack.c.b16 %v2136, %v2136
      %v2169 = vpack.c.b16 %v2137, %v2137
      %v2170 = vpack.c.b16 %v2138, %v2138
      %v2171 = vpack.c.b16 %v2139, %v2139
      %v2172 = vpack.c.b16 %v2140, %v2140
      %v2173 = vpack.c.b16 %v2141, %v2141
      %v2174 = vpack.c.b16 %v2142, %v2142
      %v2175 = vpack.c.b16 %v2143, %v2143
      %v2176 = vpack.c.b16 %v2144, %v2144
      %v2177 = vpack.c.b16 %v2145, %v2145
      %v2178 = vpack.c.b16 %v2146, %v2146
      %2211 = vst.msk [vmem:[%s530] sm:$0xf] %vm1212, %v2147
      %2212 = vst.msk [vmem:[%s530 + $0x4] sm:$0xf] %vm1212, %v2148
      %2213 = vst.msk [vmem:[%s530 + $0x8] sm:$0xf] %vm1212, %v2149
      %2214 = vst.msk [vmem:[%s530 + $0xc] sm:$0xf] %vm1212, %v2150
      %2215 = vst.msk [vmem:[%s530 + $0x10] sm:$0xf] %vm1212, %v2151
      %2216 = vst.msk [vmem:[%s530 + $0x14] sm:$0xf] %vm1212, %v2152
      %2217 = vst.msk [vmem:[%s530 + $0x18] sm:$0xf] %vm1212, %v2153
      %2218 = vst.msk [vmem:[%s530 + $0x1c] sm:$0xf] %vm1212, %v2154
      %2219 = vst.msk [vmem:[%s530 + $0x20] sm:$0xf] %vm1212, %v2155
      %2220 = vst.msk [vmem:[%s530 + $0x24] sm:$0xf] %vm1212, %v2156
      %2221 = vst.msk [vmem:[%s530 + $0x28] sm:$0xf] %vm1212, %v2157
      %2222 = vst.msk [vmem:[%s530 + $0x2c] sm:$0xf] %vm1212, %v2158
      %2223 = vst.msk [vmem:[%s530 + $0x30] sm:$0xf] %vm1212, %v2159
      %2224 = vst.msk [vmem:[%s530 + $0x34] sm:$0xf] %vm1212, %v2160
      %2225 = vst.msk [vmem:[%s530 + $0x38] sm:$0xf] %vm1212, %v2161
      %2226 = vst.msk [vmem:[%s530 + $0x3c] sm:$0xf] %vm1212, %v2162
      %2227 = vst.msk [vmem:[%s530 + $0x40] sm:$0xf] %vm1212, %v2163
      %2228 = vst.msk [vmem:[%s530 + $0x44] sm:$0xf] %vm1212, %v2164
      %2229 = vst.msk [vmem:[%s530 + $0x48] sm:$0xf] %vm1212, %v2165
      %2230 = vst.msk [vmem:[%s530 + $0x4c] sm:$0xf] %vm1212, %v2166
      %2231 = vst.msk [vmem:[%s530 + $0x50] sm:$0xf] %vm1212, %v2167
      %2232 = vst.msk [vmem:[%s530 + $0x54] sm:$0xf] %vm1212, %v2168
      %2233 = vst.msk [vmem:[%s530 + $0x58] sm:$0xf] %vm1212, %v2169
      %2234 = vst.msk [vmem:[%s530 + $0x5c] sm:$0xf] %vm1212, %v2170
      %2235 = vst.msk [vmem:[%s530 + $0x60] sm:$0xf] %vm1212, %v2171
      %2236 = vst.msk [vmem:[%s530 + $0x64] sm:$0xf] %vm1212, %v2172
      %2237 = vst.msk [vmem:[%s530 + $0x68] sm:$0xf] %vm1212, %v2173
      %2238 = vst.msk [vmem:[%s530 + $0x6c] sm:$0xf] %vm1212, %v2174
      %2239 = vst.msk [vmem:[%s530 + $0x70] sm:$0xf] %vm1212, %v2175
      %2240 = vst.msk [vmem:[%s530 + $0x74] sm:$0xf] %vm1212, %v2176
      %2241 = vst.msk [vmem:[%s530 + $0x78] sm:$0xf] %vm1212, %v2177
      %2242 = vst.msk [vmem:[%s530 + $0x7c] sm:$0xf] %vm1212, %v2178
      %s2243 = smul.u32 32, %s30
      %p2244 = scmp.lt.s32.totalorder %s29, 1
      %s2245 = scalar_select %p2244, %s29, 1
      %p2246 = scmp.lt.s32.totalorder %s2243, 31
      %s2247 = scalar_select %p2246, %s2243, 31
      %s2248 = smul.addr %s2245, 32
      %s2249 = sadd.s32 %s2247, %s2248
      %s2250 = smul.addr %s2249, 4
      %s2251 = scalar_lea.vmem %s10, %s2250
      %s2252 = smul.u32 32, %s30
      %p2253 = scmp.lt.s32.totalorder %s29, 1
      %s2254 = scalar_select %p2253, %s29, 1
      %p2255 = scmp.lt.s32.totalorder %s2252, 31
      %s2256 = scalar_select %p2255, %s2252, 31
      %s2257 = smul.addr %s2254, 32
      %s2258 = sadd.s32 %s2256, %s2257
      %s2259 = smul.addr %s2258, 4
      %s2260 = scalar_lea.vmem %s11, %s2259
      %s2261 = smul.u32 32, %s30
      %p2262 = scmp.lt.s32.totalorder %s29, 1
      %s2263 = scalar_select %p2262, %s29, 1
      %p2264 = scmp.lt.s32.totalorder %s2261, 31
      %s2265 = scalar_select %p2264, %s2261, 31
      %s2266 = smul.addr %s2263, 32
      %s2267 = sadd.s32 %s2265, %s2266
      %s2268 = smul.addr %s2267, 4
      %s2269 = scalar_lea.vmem %s12, %s2268
      %p2270 = scmp.lt.s32.totalorder %s29, 1
      %s2271 = scalar_select %p2270, %s29, 1
      %s2272 = scalar_lea.vmem %s13, %s2271
      // Predicated region
      $region65: #{inception_mixed.5} parent=59 // pred_check
        %p2273 = pneg %p274
      $region66: #{inception_mixed.5} parent=59 // pred_check_branch
        %2275 = sbr.rel (%p2273) target = $region68
      $region67: #{inception_mixed.5} parent=59 // pred_region
        %s2276 = smul.u32 32, %s30
      $region68: #{inception_mixed.5} parent=59 // pred_fallthru
        _
      // Predicated region
      $region69: #{inception_mixed.5} parent=59 // pred_check
        %p2277 = pneg %p302
      $region70: #{inception_mixed.5} parent=59 // pred_check_branch
        %2279 = sbr.rel (%p2277) target = $region72
      $region71: #{inception_mixed.5} parent=59 // pred_region
        %s2280 = smul.u32 32, %s30
      $region72: #{inception_mixed.5} parent=59 // pred_fallthru
        _
      // Predicated region
      $region73: #{inception_mixed.5} parent=59 // pred_check
        %p2281 = pneg %p330
      $region74: #{inception_mixed.5} parent=59 // pred_check_branch
        %2283 = sbr.rel (%p2281) target = $region76
      $region75: #{inception_mixed.5} parent=59 // pred_region
        %s2284 = smul.u32 32, %s30
      $region76: #{inception_mixed.5} parent=59 // pred_fallthru
        _
      // Predicated region
      $region77: #{inception_mixed.5} parent=59 // pred_check
        %p2285 = pneg %p356
      $region78: #{inception_mixed.5} parent=59 // pred_check_branch
        %2287 = sbr.rel (%p2285) target = $region80
      $region79: #{inception_mixed.5} parent=59 // pred_region
        _
      $region80: #{inception_mixed.5} parent=59 // pred_fallthru
        _
    $region60: #{inception_mixed.5} parent=5 // pred_fallthru
      _
    %p2288 = scmp.le.s32.totalorder 2, %s20
    // Predicated region
    $region81: #{inception_mixed.5} parent=5 // pred_check
      %p2289 = pneg %p2288
    $region82: #{inception_mixed.5} parent=5 // pred_check_branch
      %2291 = sbr.rel (%p2289) target = $region84
    $region83: #{inception_mixed.5} parent=5 // pred_region
      %s2292 = ssub.s32 %s20, 2
      // Predicated region
      $region85: #{inception_mixed.5} parent=83 // pred_check
        %p2293 = pneg %p280
      $region86: #{inception_mixed.5} parent=83 // pred_check_branch
        %2295 = sbr.rel (%p2293) target = $region88
      $region87: #{inception_mixed.5} parent=83 // pred_region
        %s2296 = smul.u32 32, %s32
        %p2297 = scmp.lt.s32.totalorder %s31, 1
        %s2298 = scalar_select %p2297, %s31, 1
        %p2299 = scmp.lt.s32.totalorder %s2296, 31
        %s2300 = scalar_select %p2299, %s2296, 31
        %s2301 = smul.addr %s2298, 32
        %s2302 = sadd.s32 %s2300, %s2301
        %s2303 = smul.addr %s2302, 4
        %s2304 = scalar_lea.vmem %s10, %s2303
      $region88: #{inception_mixed.5} parent=83 // pred_fallthru
        _
      // Predicated region
      $region89: #{inception_mixed.5} parent=83 // pred_check
        %p2305 = pneg %p308
      $region90: #{inception_mixed.5} parent=83 // pred_check_branch
        %2307 = sbr.rel (%p2305) target = $region92
      $region91: #{inception_mixed.5} parent=83 // pred_region
        %s2308 = smul.u32 32, %s32
        %p2309 = scmp.lt.s32.totalorder %s31, 1
        %s2310 = scalar_select %p2309, %s31, 1
        %p2311 = scmp.lt.s32.totalorder %s2308, 31
        %s2312 = scalar_select %p2311, %s2308, 31
        %s2313 = smul.addr %s2310, 32
        %s2314 = sadd.s32 %s2312, %s2313
        %s2315 = smul.addr %s2314, 4
        %s2316 = scalar_lea.vmem %s11, %s2315
      $region92: #{inception_mixed.5} parent=83 // pred_fallthru
        _
      // Predicated region
      $region93: #{inception_mixed.5} parent=83 // pred_check
        %p2317 = pneg %p336
      $region94: #{inception_mixed.5} parent=83 // pred_check_branch
        %2319 = sbr.rel (%p2317) target = $region96
      $region95: #{inception_mixed.5} parent=83 // pred_region
        %s2320 = smul.u32 32, %s32
        %p2321 = scmp.lt.s32.totalorder %s31, 1
        %s2322 = scalar_select %p2321, %s31, 1
        %p2323 = scmp.lt.s32.totalorder %s2320, 31
        %s2324 = scalar_select %p2323, %s2320, 31
        %s2325 = smul.addr %s2322, 32
        %s2326 = sadd.s32 %s2324, %s2325
        %s2327 = smul.addr %s2326, 4
        %s2328 = scalar_lea.vmem %s12, %s2327
      $region96: #{inception_mixed.5} parent=83 // pred_fallthru
        _
      // Predicated region
      $region97: #{inception_mixed.5} parent=83 // pred_check
        %p2329 = pneg %p362
      $region98: #{inception_mixed.5} parent=83 // pred_check_branch
        %2331 = sbr.rel (%p2329) target = $region100
      $region99: #{inception_mixed.5} parent=83 // pred_region
        %p2332 = scmp.lt.s32.totalorder %s31, 1
        %s2333 = scalar_select %p2332, %s31, 1
        %s2334 = scalar_lea.vmem %s13, %s2333
      $region100: #{inception_mixed.5} parent=83 // pred_fallthru
        _
    $region84: #{inception_mixed.5} parent=5 // pred_fallthru
      _
  $region6: #{inception_mixed.5} parent=0 // loop_footer
    %s24 = sadd.s32 1, %s20
  $region7: #{inception_mixed.5} parent=0 // loop_footer_branch
    %19 = sbr.rel target = $region3
  $region8: #{inception_mixed.5} parent=0 // loop_exit
    _

// kernel: inception_mixed.8
$region0: #{inception_mixed.8}
  #allocation0 [shape = 'u32[]', space=smem, size = 0x4, offset = 0x4, fixed_abs, tag = 'smem constant byte address 0x4 - core index']
  #allocation1 [shape = 'u32[144,128]{1,0:T(1,128)}', space=vmem, size = 0x12000, scoped, tag = 'internal scratch']
  #allocation2 [shape = 'f32[6,10,10,4]{3,2,1,0:T(8,128)}', space=vmem, size = 0x78000, scoped, tag = 'scratch operand']
  %s0 = inlined_call_operand.vmem [shape: f32[2,4,8,8,4], index: 0, kind: input, shape index: {}]
  %s1 = inlined_call_operand.vmem [shape: f32[4,8], index: 1, kind: input, shape index: {}]
  %s2 = inlined_call_operand.vmem [shape: f32[1,8], index: 2, kind: input, shape index: {}]
  %s3 = inlined_call_operand.vmem [shape: f32[1,8], index: 3, kind: input, shape index: {}]
  %s4 = inlined_call_operand.vmem [shape: f32[8,8], index: 4, kind: input, shape index: {}]
  %s5 = inlined_call_operand.vmem [shape: bf16[2,4,8,8,8], index: 5, kind: output, shape index: {}]
  %s6 = sld [smem:[#allocation0]]
  $region53: #{inception_mixed.8} parent=0
    _
  %s8 = ssub.s32 1, %s6
  %s9 = scalar_select 0, %s8, %s6
  loop: start=0, step=1, limit=4
  $region2: #{inception_mixed.8} parent=0 // loop_pre_header
    _
  $region3: #{inception_mixed.8} parent=0 // loop_header
    %s11 = sphi 0, %s15
    %p12 = scmp.ge.s32.totalorder %s11, 4
    %s21 = sphi 0, %s23
    %s24 = sphi 0, %s21
    %s25 = sphi 0, %s24
    %s41 = sphi 0, %s25
    %s45 = sphi 0, %s45
    %s47 = sphi 0, %s45
    %s48 = sphi 0, %s47
    %s62 = sphi 0, %s48
    %s66 = sphi 0, %s66
    %s68 = sphi 0, %s66
    %s69 = sphi 0, %s68
    %s83 = sphi 0, %s69
    %s87 = sphi 0, %s87
    %s89 = sphi 0, %s87
    %s90 = sphi 0, %s89
    %s104 = sphi 0, %s90
    %s108 = sphi 0, %s108
    %s110 = sphi 0, %s108
    %s111 = sphi 0, %s110
    %s125 = sphi 0, %s111
    %s131 = sphi 0, %s133
    %s134 = sphi 0, %s131
    %s135 = sphi 0, %s134
    %s151 = sphi 0, %s135
  $region4: #{inception_mixed.8} parent=0 // loop_header_branch
    %14 = sbr.rel (%p12) target = $region8
  $region5: #{inception_mixed.8} parent=0 // loop_body
    %s16 = ssub.s32 %s11, 1
    %s17 = ssub.s32 %s11, 2
    %s18 = sadd.s32 %s11, 1
    %s19 = ssub.s32 %s11, %s18
    %p20 = scmp.eq.s32.totalorder %s19, 0
    %s22 = sadd.s32 %s21, 1
    %s23 = scalar_select %p20, %s21, %s22
    %p26 = pneg %p20
    %p27 = scmp.eq.s32.totalorder %s11, 1
    %p28 = por %p26, %p27
    %p29 = scmp.ne.s32.totalorder %s21, %s24
    %p30 = scmp.eq.s32.totalorder %s11, 0
    %p31 = por %p29, %p30
    %p32 = scmp.ne.s32.totalorder %s21, %s24
    %p33 = scmp.eq.s32.totalorder %s16, 1
    %p34 = por %p32, %p33
    %p35 = scmp.ne.s32.totalorder %s24, %s25
    %p36 = scmp.eq.s32.totalorder %s16, 0
    %p37 = por %p35, %p36
    %p38 = scmp.ne.s32.totalorder %s24, %s25
    %p39 = scmp.eq.s32.totalorder %s17, 1
    %p40 = por %p38, %p39
    %p42 = scmp.ne.s32.totalorder %s25, %s41
    %p43 = scmp.eq.s32.totalorder %s17, 0
    %p44 = por %p42, %p43
    %s46 = sadd.s32 %s45, 1
    %p49 = scmp.eq.s32.totalorder %s11, 1
    %p50 = scmp.ne.s32.totalorder %s45, %s47
    %p51 = scmp.eq.s32.totalorder %s11, 0
    %p52 = por %p50, %p51
    %p53 = scmp.ne.s32.totalorder %s45, %s47
    %p54 = scmp.eq.s32.totalorder %s16, 1
    %p55 = por %p53, %p54
    %p56 = scmp.ne.s32.totalorder %s47, %s48
    %p57 = scmp.eq.s32.totalorder %s16, 0
    %p58 = por %p56, %p57
    %p59 = scmp.ne.s32.totalorder %s47, %s48
    %p60 = scmp.eq.s32.totalorder %s17, 1
    %p61 = por %p59, %p60
    %p63 = scmp.ne.s32.totalorder %s48, %s62
    %p64 = scmp.eq.s32.totalorder %s17, 0
    %p65 = por %p63, %p64
    %s67 = sadd.s32 %s66, 1
    %p70 = scmp.eq.s32.totalorder %s11, 1
    %p71 = scmp.ne.s32.totalorder %s66, %s68
    %p72 = scmp.eq.s32.totalorder %s11, 0
    %p73 = por %p71, %p72
    %p74 = scmp.ne.s32.totalorder %s66, %s68
    %p75 = scmp.eq.s32.totalorder %s16, 1
    %p76 = por %p74, %p75
    %p77 = scmp.ne.s32.totalorder %s68, %s69
    %p78 = scmp.eq.s32.totalorder %s16, 0
    %p79 = por %p77, %p78
    %p80 = scmp.ne.s32.totalorder %s68, %s69
    %p81 = scmp.eq.s32.totalorder %s17, 1
    %p82 = por %p80, %p81
    %p84 = scmp.ne.s32.totalorder %s69, %s83
    %p85 = scmp.eq.s32.totalorder %s17, 0
    %p86 = por %p84, %p85
    %s88 = sadd.s32 %s87, 1
    %p91 = scmp.eq.s32.totalorder %s11, 1
    %p92 = scmp.ne.s32.totalorder %s87, %s89
    %p93 = scmp.eq.s32.totalorder %s11, 0
    %p94 = por %p92, %p93
    %p95 = scmp.ne.s32.totalorder %s87, %s89
    %p96 = scmp.eq.s32.totalorder %s16, 1
    %p97 = por %p95, %p96
    %p98 = scmp.ne.s32.totalorder %s89, %s90
    %p99 = scmp.eq.s32.totalorder %s16, 0
    %p100 = por %p98, %p99
    %p101 = scmp.ne.s32.totalorder %s89, %s90
    %p102 = scmp.eq.s32.totalorder %s17, 1
    %p103 = por %p101, %p102
    %p105 = scmp.ne.s32.totalorder %s90, %s104
    %p106 = scmp.eq.s32.totalorder %s17, 0
    %p107 = por %p105, %p106
    %s109 = sadd.s32 %s108, 1
    %p112 = scmp.eq.s32.totalorder %s11, 1
    %p113 = scmp.ne.s32.totalorder %s108, %s110
    %p114 = scmp.eq.s32.totalorder %s11, 0
    %p115 = por %p113, %p114
    %p116 = scmp.ne.s32.totalorder %s108, %s110
    %p117 = scmp.eq.s32.totalorder %s16, 1
    %p118 = por %p116, %p117
    %p119 = scmp.ne.s32.totalorder %s110, %s111
    %p120 = scmp.eq.s32.totalorder %s16, 0
    %p121 = por %p119, %p120
    %p122 = scmp.ne.s32.totalorder %s110, %s111
    %p123 = scmp.eq.s32.totalorder %s17, 1
    %p124 = por %p122, %p123
    %p126 = scmp.ne.s32.totalorder %s111, %s125
    %p127 = scmp.eq.s32.totalorder %s17, 0
    %p128 = por %p126, %p127
    %s129 = ssub.s32 %s11, %s18
    %p130 = scmp.eq.s32.totalorder %s129, 0
    %s132 = sadd.s32 %s131, 1
    %s133 = scalar_select %p130, %s131, %s132
    %p136 = pneg %p130
    %p137 = scmp.eq.s32.totalorder %s11, 1
    %p138 = por %p136, %p137
    %p139 = scmp.ne.s32.totalorder %s131, %s134
    %p140 = scmp.eq.s32.totalorder %s11, 0
    %p141 = por %p139, %p140
    %p142 = scmp.ne.s32.totalorder %s131, %s134
    %p143 = scmp.eq.s32.totalorder %s16, 1
    %p144 = por %p142, %p143
    %p145 = scmp.ne.s32.totalorder %s134, %s135
    %p146 = scmp.eq.s32.totalorder %s16, 0
    %p147 = por %p145, %p146
    %p148 = scmp.ne.s32.totalorder %s134, %s135
    %p149 = scmp.eq.s32.totalorder %s17, 1
    %p150 = por %p148, %p149
    %p152 = scmp.ne.s32.totalorder %s135, %s151
    %p153 = scmp.eq.s32.totalorder %s17, 0
    %p154 = por %p152, %p153
    %p155 = scmp.le.s32.totalorder 1, %s11
    %p156 = scmp.lt.s32.totalorder %s11, 3
    %p157 = pnand %p155, %p156
    %p158 = pneg %p157
    // Predicated region
    $region9: #{inception_mixed.8} parent=5 // pred_check
      _
    $region10: #{inception_mixed.8} parent=5 // pred_check_branch
      %160 = sbr.rel (%p157) target = $region12
    $region11: #{inception_mixed.8} parent=5 // pred_region
      %s161 = ssub.s32 %s11, 1
      // Predicated region
      $region13: #{inception_mixed.8} parent=11 // pred_check
        %p162 = pneg %p58
      $region14: #{inception_mixed.8} parent=11 // pred_check_branch
        %164 = sbr.rel (%p162) target = $region16
      $region15: #{inception_mixed.8} parent=11 // pred_region
        _
      $region16: #{inception_mixed.8} parent=11 // pred_fallthru
        _
      // Predicated region
      $region17: #{inception_mixed.8} parent=11 // pred_check
        %p165 = pneg %p79
      $region18: #{inception_mixed.8} parent=11 // pred_check_branch
        %167 = sbr.rel (%p165) target = $region20
      $region19: #{inception_mixed.8} parent=11 // pred_region
        _
      $region20: #{inception_mixed.8} parent=11 // pred_fallthru
        _
      // Predicated region
      $region21: #{inception_mixed.8} parent=11 // pred_check
        %p168 = pneg %p100
      $region22: #{inception_mixed.8} parent=11 // pred_check_branch
        %170 = sbr.rel (%p168) target = $region24
      $region23: #{inception_mixed.8} parent=11 // pred_region
        _
      $region24: #{inception_mixed.8} parent=11 // pred_fallthru
        _
      // Predicated region
      $region25: #{inception_mixed.8} parent=11 // pred_check
        %p171 = pneg %p121
      $region26: #{inception_mixed.8} parent=11 // pred_check_branch
        %173 = sbr.rel (%p171) target = $region28
      $region27: #{inception_mixed.8} parent=11 // pred_region
        _
      $region28: #{inception_mixed.8} parent=11 // pred_fallthru
        _
    $region12: #{inception_mixed.8} parent=5 // pred_fallthru
      _
    %p174 = scmp.lt.s32.totalorder %s11, 2
    // Predicated region
    $region29: #{inception_mixed.8} parent=5 // pred_check
      %p175 = pneg %p174
    $region30: #{inception_mixed.8} parent=5 // pred_check_branch
      %177 = sbr.rel (%p175) target = $region32
    $region31: #{inception_mixed.8} parent=5 // pred_region
      // Predicated region
      $region33: #{inception_mixed.8} parent=31 // pred_check
        %p178 = pneg %p31
      $region34: #{inception_mixed.8} parent=31 // pred_check_branch
        %180 = sbr.rel (%p178) target = $region36
      $region35: #{inception_mixed.8} parent=31 // pred_region
        %p181 = scmp.lt.s32.totalorder %s11, 1
        %s182 = scalar_select %p181, %s11, 1
        %s183 = smul.addr %s182, 32
        %s184 = smul.addr %s183, 8
        %s185 = scalar_lea.vmem %s0, %s184
      $region36: #{inception_mixed.8} parent=31 // pred_fallthru
        _
    $region32: #{inception_mixed.8} parent=5 // pred_fallthru
      _
    %p186 = scmp.le.s32.totalorder 1, %s11
    %p187 = scmp.lt.s32.totalorder %s11, 3
    %p188 = pnand %p186, %p187
    %p189 = pneg %p188
    // Predicated region
    $region37: #{inception_mixed.8} parent=5 // pred_check
      _
    $region38: #{inception_mixed.8} parent=5 // pred_check_branch
      %191 = sbr.rel (%p188) target = $region40
    $region39: #{inception_mixed.8} parent=5 // pred_region
      %s192 = ssub.s32 %s11, 1
      %p193 = scmp.lt.s32.totalorder %s16, 1
      %s194 = scalar_select %p193, %s16, 1
      %s195 = smul.addr %s194, 32
      %s196 = smul.addr %s195, 8
      %s197 = scalar_lea.vmem %s0, %s196
      %p198 = pneg %p37
      %p199 = pneg %p34
      %p200 = pneg %p58
      %p201 = pneg %p55
      %p202 = pneg %p79
      %p203 = pneg %p76
      %p204 = pneg %p100
      %p205 = pneg %p97
      %p206 = pneg %p121
      %p207 = pneg %p118
      %p208 = pneg %p147
      %p209 = pneg %p144
      %p210 = scmp.lt.s32.totalorder %s16, 1
      %s211 = scalar_select %p210, %s16, 1
      %s212 = smul.addr %s211, 32
      %s213 = smul.addr %s212, 4
      %s214 = scalar_lea.vmem %s5, %s213
      %p215 = scmp.lt.s32.totalorder %s16, 1
      %s216 = scalar_select %p215, %s16, 1
      %s217 = smul.addr %s216, 32
      %s218 = smul.addr %s217, 8
      %s219 = scalar_lea.vmem %s0, %s218
      %p220 = scmp.lt.s32.totalorder %s16, 1
      %s221 = scalar_select %p220, %s16, 1
      %s222 = smul.addr %s221, 32
      %s223 = smul.addr %s222, 4
      %s224 = scalar_lea.vmem %s5, %s223
      %vm225 = vcmask 31744
      %226 = vst.msk [vmem:[#allocation2] sm:$0xff] %vm225, 0.0
      %vm227 = vcmask 25600
      %228 = vst.msk [vmem:[#allocation2 + $0x8] sm:$0x3] %vm227, 0.0
      %229 = vst.msk [vmem:[#allocation2 + $0x10] sm:$0xff] %vm225, 0.0
      %230 = vst.msk [vmem:[#allocation2 + $0x18] sm:$0x3] %vm227, 0.0
      %231 = vst.msk [vmem:[#allocation2 + $0x20] sm:$0xff] %vm225, 0.0
      %232 = vst.msk [vmem:[#allocation2 + $0x28] sm:$0x3] %vm227, 0.0
      %233 = vst.msk [vmem:[#allocation2 + $0x30] sm:$0xff] %vm225, 0.0
      %234 = vst.msk [vmem:[#allocation2 + $0x38] sm:$0x3] %vm227, 0.0
      %235 = vst.msk [vmem:[#allocation2 + $0x40] sm:$0xff] %vm225, 0.0
      %236 = vst.msk [vmem:[#allocation2 + $0x48] sm:$0x3] %vm227, 0.0
      %237 = vst.msk [vmem:[#allocation2 + $0x50] sm:$0xff] %vm225, 0.0
      %238 = vst.msk [vmem:[#allocation2 + $0x58] sm:$0x3] %vm227, 0.0
      %239 = vst.msk [vmem:[#allocation2 + $0x60] sm:$0xff] %vm225, 0.0
      %240 = vst.msk [vmem:[#allocation2 + $0x68] sm:$0x3] %vm227, 0.0
      %241 = vst.msk [vmem:[#allocation2 + $0x70] sm:$0xff] %vm225, 0.0
      %242 = vst.msk [vmem:[#allocation2 + $0x78] sm:$0x3] %vm227, 0.0
      %243 = vst.msk [vmem:[#allocation2 + $0x80] sm:$0xff] %vm225, 0.0
      %244 = vst.msk [vmem:[#allocation2 + $0x88] sm:$0x3] %vm227, 0.0
      %245 = vst.msk [vmem:[#allocation2 + $0x90] sm:$0xff] %vm225, 0.0
      %246 = vst.msk [vmem:[#allocation2 + $0x98] sm:$0x3] %vm227, 0.0
      %s247 = scalar_lea.vmem [#allocation2], 800
      %248 = vst.msk [vmem:[%s247] sm:$0xff] %vm225, 0.0
      %249 = vst.msk [vmem:[%s247 + $0x8] sm:$0x3] %vm227, 0.0
      %250 = vst.msk [vmem:[%s247 + $0x10] sm:$0xff] %vm225, 0.0
      %251 = vst.msk [vmem:[%s247 + $0x18] sm:$0x3] %vm227, 0.0
      %252 = vst.msk [vmem:[%s247 + $0x20] sm:$0xff] %vm225, 0.0
      %253 = vst.msk [vmem:[%s247 + $0x28] sm:$0x3] %vm227, 0.0
      %254 = vst.msk [vmem:[%s247 + $0x30] sm:$0xff] %vm225, 0.0
      %255 = vst.msk [vmem:[%s247 + $0x38] sm:$0x3] %vm227, 0.0
      %256 = vst.msk [vmem:[%s247 + $0x40] sm:$0xff] %vm225, 0.0
      %257 = vst.msk [vmem:[%s247 + $0x48] sm:$0x3] %vm227, 0.0
      %258 = vst.msk [vmem:[%s247 + $0x50] sm:$0xff] %vm225, 0.0
      %259 = vst.msk [vmem:[%s247 + $0x58] sm:$0x3] %vm227, 0.0
      %260 = vst.msk [vmem:[%s247 + $0x60] sm:$0xff] %vm225, 0.0
      %261 = vst.msk [vmem:[%s247 + $0x68] sm:$0x3] %vm227, 0.0
      %262 = vst.msk [vmem:[%s247 + $0x70] sm:$0xff] %vm225, 0.0
      %263 = vst.msk [vmem:[%s247 + $0x78] sm:$0x3] %vm227, 0.0
      %264 = vst.msk [vmem:[%s247 + $0x80] sm:$0xff] %vm225, 0.0
      %265 = vst.msk [vmem:[%s247 + $0x88] sm:$0x3] %vm227, 0.0
      %266 = vst.msk [vmem:[%s247 + $0x90] sm:$0xff] %vm225, 0.0
      %267 = vst.msk [vmem:[%s247 + $0x98] sm:$0x3] %vm227, 0.0
      %s268 = scalar_lea.vmem [#allocation2], 160
      %269 = vst.msk [vmem:[%s268] sm:$0xff] %vm225, 0.0
      %270 = vst.msk [vmem:[%s268 + $0x8] sm:$0x3] %vm227, 0.0
      %271 = vst.msk [vmem:[%s268 + $0xa0] sm:$0xff] %vm225, 0.0
      %272 = vst.msk [vmem:[%s268 + $0xa8] sm:$0x3] %vm227, 0.0
      %273 = vst.msk [vmem:[%s268 + $0x140] sm:$0xff] %vm225, 0.0
      %274 = vst.msk [vmem:[%s268 + $0x148] sm:$0x3] %vm227, 0.0
      %275 = vst.msk [vmem:[%s268 + $0x1e0] sm:$0xff] %vm225, 0.0
      %276 = vst.msk [vmem:[%s268 + $0x1e8] sm:$0x3] %vm227, 0.0
      %s277 = scalar_lea.vmem [#allocation2], 304
      %278 = vst.msk [vmem:[%s277] sm:$0xff] %vm225, 0.0
      %279 = vst.msk [vmem:[%s277 + $0x8] sm:$0x3] %vm227, 0.0
      %280 = vst.msk [vmem:[%s277 + $0xa0] sm:$0xff] %vm225, 0.0
      %281 = vst.msk [vmem:[%s277 + $0xa8] sm:$0x3] %vm227, 0.0
      %282 = vst.msk [vmem:[%s277 + $0x140] sm:$0xff] %vm225, 0.0
      %283 = vst.msk [vmem:[%s277 + $0x148] sm:$0x3] %vm227, 0.0
      %284 = vst.msk [vmem:[%s277 + $0x1e0] sm:$0xff] %vm225, 0.0
      %285 = vst.msk [vmem:[%s277 + $0x1e8] sm:$0x3] %vm227, 0.0
      %s286 = scalar_lea.vmem [#allocation2], 176
      %vm287 = vcmask 24576
      %288 = vst.msk [vmem:[%s286] sm:$0x1] %vm287, 0.0
      %289 = vst.msk [vmem:[%s286 + $0x10] sm:$0x1] %vm287, 0.0
      %290 = vst.msk [vmem:[%s286 + $0x20] sm:$0x1] %vm287, 0.0
      %291 = vst.msk [vmem:[%s286 + $0x30] sm:$0x1] %vm287, 0.0
      %292 = vst.msk [vmem:[%s286 + $0x40] sm:$0x1] %vm287, 0.0
      %293 = vst.msk [vmem:[%s286 + $0x50] sm:$0x1] %vm287, 0.0
      %294 = vst.msk [vmem:[%s286 + $0x60] sm:$0x1] %vm287, 0.0
      %295 = vst.msk [vmem:[%s286 + $0x70] sm:$0x1] %vm287, 0.0
      %296 = vst.msk [vmem:[%s286 + $0xa0] sm:$0x1] %vm287, 0.0
      %297 = vst.msk [vmem:[%s286 + $0xb0] sm:$0x1] %vm287, 0.0
      %298 = vst.msk [vmem:[%s286 + $0xc0] sm:$0x1] %vm287, 0.0
      %299 = vst.msk [vmem:[%s286 + $0xd0] sm:$0x1] %vm287, 0.0
      %300 = vst.msk [vmem:[%s286 + $0xe0] sm:$0x1] %vm287, 0.0
      %301 = vst.msk [vmem:[%s286 + $0xf0] sm:$0x1] %vm287, 0.0
      %302 = vst.msk [vmem:[%s286 + $0x100] sm:$0x1] %vm287, 0.0
      %303 = vst.msk [vmem:[%s286 + $0x110] sm:$0x1] %vm287, 0.0
      %304 = vst.msk [vmem:[%s286 + $0x140] sm:$0x1] %vm287, 0.0
      %305 = vst.msk [vmem:[%s286 + $0x150] sm:$0x1] %vm287, 0.0
      %306 = vst.msk [vmem:[%s286 + $0x160] sm:$0x1] %vm287, 0.0
      %307 = vst.msk [vmem:[%s286 + $0x170] sm:$0x1] %vm287, 0.0
      %308 = vst.msk [vmem:[%s286 + $0x180] sm:$0x1] %vm287, 0.0
      %309 = vst.msk [vmem:[%s286 + $0x190] sm:$0x1] %vm287, 0.0
      %310 = vst.msk [vmem:[%s286 + $0x1a0] sm:$0x1] %vm287, 0.0
      %311 = vst.msk [vmem:[%s286 + $0x1b0] sm:$0x1] %vm287, 0.0
      %312 = vst.msk [vmem:[%s286 + $0x1e0] sm:$0x1] %vm287, 0.0
      %313 = vst.msk [vmem:[%s286 + $0x1f0] sm:$0x1] %vm287, 0.0
      %314 = vst.msk [vmem:[%s286 + $0x200] sm:$0x1] %vm287, 0.0
      %315 = vst.msk [vmem:[%s286 + $0x210] sm:$0x1] %vm287, 0.0
      %316 = vst.msk [vmem:[%s286 + $0x220] sm:$0x1] %vm287, 0.0
      %317 = vst.msk [vmem:[%s286 + $0x230] sm:$0x1] %vm287, 0.0
      %318 = vst.msk [vmem:[%s286 + $0x240] sm:$0x1] %vm287, 0.0
      %319 = vst.msk [vmem:[%s286 + $0x250] sm:$0x1] %vm287, 0.0
      %320 = vst.msk [vmem:[%s286 + $0x9] sm:$0x1] %vm287, 0.0
      %321 = vst.msk [vmem:[%s286 + $0x19] sm:$0x1] %vm287, 0.0
      %322 = vst.msk [vmem:[%s286 + $0x29] sm:$0x1] %vm287, 0.0
      %323 = vst.msk [vmem:[%s286 + $0x39] sm:$0x1] %vm287, 0.0
      %324 = vst.msk [vmem:[%s286 + $0x49] sm:$0x1] %vm287, 0.0
      %325 = vst.msk [vmem:[%s286 + $0x59] sm:$0x1] %vm287, 0.0
      %326 = vst.msk [vmem:[%s286 + $0x69] sm:$0x1] %vm287, 0.0
      %327 = vst.msk [vmem:[%s286 + $0x79] sm:$0x1] %vm287, 0.0
      %328 = vst.msk [vmem:[%s286 + $0xa9] sm:$0x1] %vm287, 0.0
      %329 = vst.msk [vmem:[%s286 + $0xb9] sm:$0x1] %vm287, 0.0
      %330 = vst.msk [vmem:[%s286 + $0xc9] sm:$0x1] %vm287, 0.0
      %331 = vst.msk [vmem:[%s286 + $0xd9] sm:$0x1] %vm287, 0.0
      %332 = vst.msk [vmem:[%s286 + $0xe9] sm:$0x1] %vm287, 0.0
      %333 = vst.msk [vmem:[%s286 + $0xf9] sm:$0x1] %vm287, 0.0
      %334 = vst.msk [vmem:[%s286 + $0x109] sm:$0x1] %vm287, 0.0
      %335 = vst.msk [vmem:[%s286 + $0x119] sm:$0x1] %vm287, 0.0
      %336 = vst.msk [vmem:[%s286 + $0x149] sm:$0x1] %vm287, 0.0
      %337 = vst.msk [vmem:[%s286 + $0x159] sm:$0x1] %vm287, 0.0
      %338 = vst.msk [vmem:[%s286 + $0x169] sm:$0x1] %vm287, 0.0
      %339 = vst.msk [vmem:[%s286 + $0x179] sm:$0x1] %vm287, 0.0
      %340 = vst.msk [vmem:[%s286 + $0x189] sm:$0x1] %vm287, 0.0
      %341 = vst.msk [vmem:[%s286 + $0x199] sm:$0x1] %vm287, 0.0
      %342 = vst.msk [vmem:[%s286 + $0x1a9] sm:$0x1] %vm287, 0.0
      %343 = vst.msk [vmem:[%s286 + $0x1b9] sm:$0x1] %vm287, 0.0
      %344 = vst.msk [vmem:[%s286 + $0x1e9] sm:$0x1] %vm287, 0.0
      %345 = vst.msk [vmem:[%s286 + $0x1f9] sm:$0x1] %vm287, 0.0
      %346 = vst.msk [vmem:[%s286 + $0x209] sm:$0x1] %vm287, 0.0
      %347 = vst.msk [vmem:[%s286 + $0x219] sm:$0x1] %vm287, 0.0
      %348 = vst.msk [vmem:[%s286 + $0x229] sm:$0x1] %vm287, 0.0
      %349 = vst.msk [vmem:[%s286 + $0x239] sm:$0x1] %vm287, 0.0
      %350 = vst.msk [vmem:[%s286 + $0x249] sm:$0x1] %vm287, 0.0
      %351 = vst.msk [vmem:[%s286 + $0x259] sm:$0x1] %vm287, 0.0
      %v352 = vld [vmem:[%s219] sm:$0xff]
      %v353 = vld [vmem:[%s219 + $0x8] sm:$0xff]
      %v354 = vld [vmem:[%s219 + $0x10] sm:$0xff]
      %v355 = vld [vmem:[%s219 + $0x18] sm:$0xff]
      %v356 = vld [vmem:[%s219 + $0x20] sm:$0xff]
      %v357 = vld [vmem:[%s219 + $0x28] sm:$0xff]
      %v358 = vld [vmem:[%s219 + $0x30] sm:$0xff]
      %v359 = vld [vmem:[%s219 + $0x38] sm:$0xff]
      %v360 = vld [vmem:[%s219 + $0x40] sm:$0xff]
      %v361 = vld [vmem:[%s219 + $0x48] sm:$0xff]
      %v362 = vld [vmem:[%s219 + $0x50] sm:$0xff]
      %v363 = vld [vmem:[%s219 + $0x58] sm:$0xff]
      %v364 = vld [vmem:[%s219 + $0x60] sm:$0xff]
      %v365 = vld [vmem:[%s219 + $0x68] sm:$0xff]
      %v366 = vld [vmem:[%s219 + $0x70] sm:$0xff]
      %v367 = vld [vmem:[%s219 + $0x78] sm:$0xff]
      %v368 = vld [vmem:[%s219 + $0x80] sm:$0xff]
      %v369 = vld [vmem:[%s219 + $0x88] sm:$0xff]
      %v370 = vld [vmem:[%s219 + $0x90] sm:$0xff]
      %v371 = vld [vmem:[%s219 + $0x98] sm:$0xff]
      %v372 = vld [vmem:[%s219 + $0xa0] sm:$0xff]
      %v373 = vld [vmem:[%s219 + $0xa8] sm:$0xff]
      %v374 = vld [vmem:[%s219 + $0xb0] sm:$0xff]
      %v375 = vld [vmem:[%s219 + $0xb8] sm:$0xff]
      %v376 = vld [vmem:[%s219 + $0xc0] sm:$0xff]
      %v377 = vld [vmem:[%s219 + $0xc8] sm:$0xff]
      %v378 = vld [vmem:[%s219 + $0xd0] sm:$0xff]
      %v379 = vld [vmem:[%s219 + $0xd8] sm:$0xff]
      %v380 = vld [vmem:[%s219 + $0xe0] sm:$0xff]
      %v381 = vld [vmem:[%s219 + $0xe8] sm:$0xff]
      %v382 = vld [vmem:[%s219 + $0xf0] sm:$0xff]
      %v383 = vld [vmem:[%s219 + $0xf8] sm:$0xff]
      %384 = vst.msk [vmem:[%s286 + $0x1] sm:$0xff] %vm225, %v352
      %385 = vst.msk [vmem:[%s286 + $0x11] sm:$0xff] %vm225, %v353
      %386 = vst.msk [vmem:[%s286 + $0x21] sm:$0xff] %vm225, %v354
      %387 = vst.msk [vmem:[%s286 + $0x31] sm:$0xff] %vm225, %v355
      %388 = vst.msk [vmem:[%s286 + $0x41] sm:$0xff] %vm225, %v356
      %389 = vst.msk [vmem:[%s286 + $0x51] sm:$0xff] %vm225, %v357
      %390 = vst.msk [vmem:[%s286 + $0x61] sm:$0xff] %vm225, %v358
      %391 = vst.msk [vmem:[%s286 + $0x71] sm:$0xff] %vm225, %v359
      %392 = vst.msk [vmem:[%s286 + $0xa1] sm:$0xff] %vm225, %v360
      %393 = vst.msk [vmem:[%s286 + $0xb1] sm:$0xff] %vm225, %v361
      %394 = vst.msk [vmem:[%s286 + $0xc1] sm:$0xff] %vm225, %v362
      %395 = vst.msk [vmem:[%s286 + $0xd1] sm:$0xff] %vm225, %v363
      %396 = vst.msk [vmem:[%s286 + $0xe1] sm:$0xff] %vm225, %v364
      %397 = vst.msk [vmem:[%s286 + $0xf1] sm:$0xff] %vm225, %v365
      %398 = vst.msk [vmem:[%s286 + $0x101] sm:$0xff] %vm225, %v366
      %399 = vst.msk [vmem:[%s286 + $0x111] sm:$0xff] %vm225, %v367
      %400 = vst.msk [vmem:[%s286 + $0x141] sm:$0xff] %vm225, %v368
      %401 = vst.msk [vmem:[%s286 + $0x151] sm:$0xff] %vm225, %v369
      %402 = vst.msk [vmem:[%s286 + $0x161] sm:$0xff] %vm225, %v370
      %403 = vst.msk [vmem:[%s286 + $0x171] sm:$0xff] %vm225, %v371
      %404 = vst.msk [vmem:[%s286 + $0x181] sm:$0xff] %vm225, %v372
      %405 = vst.msk [vmem:[%s286 + $0x191] sm:$0xff] %vm225, %v373
      %406 = vst.msk [vmem:[%s286 + $0x1a1] sm:$0xff] %vm225, %v374
      %407 = vst.msk [vmem:[%s286 + $0x1b1] sm:$0xff] %vm225, %v375
      %408 = vst.msk [vmem:[%s286 + $0x1e1] sm:$0xff] %vm225, %v376
      %409 = vst.msk [vmem:[%s286 + $0x1f1] sm:$0xff] %vm225, %v377
      %410 = vst.msk [vmem:[%s286 + $0x201] sm:$0xff] %vm225, %v378
      %411 = vst.msk [vmem:[%s286 + $0x211] sm:$0xff] %vm225, %v379
      %412 = vst.msk [vmem:[%s286 + $0x221] sm:$0xff] %vm225, %v380
      %413 = vst.msk [vmem:[%s286 + $0x231] sm:$0xff] %vm225, %v381
      %414 = vst.msk [vmem:[%s286 + $0x241] sm:$0xff] %vm225, %v382
      %415 = vst.msk [vmem:[%s286 + $0x251] sm:$0xff] %vm225, %v383
      %v416 = vld [vmem:[#allocation2] sm:$0xff]
      %v417 = vld [vmem:[#allocation2 + $0x8] sm:$0x3]
      %v418 = vld [vmem:[#allocation2 + $0x10] sm:$0xff]
      %v419 = vld [vmem:[#allocation2 + $0x18] sm:$0x3]
      %v420 = vld [vmem:[#allocation2 + $0x20] sm:$0xff]
      %v421 = vld [vmem:[#allocation2 + $0x28] sm:$0x3]
      %v422 = vld [vmem:[#allocation2 + $0x30] sm:$0xff]
      %v423 = vld [vmem:[#allocation2 + $0x38] sm:$0x3]
      %v424 = vld [vmem:[#allocation2 + $0x40] sm:$0xff]
      %v425 = vld [vmem:[#allocation2 + $0x48] sm:$0x3]
      %v426 = vld [vmem:[#allocation2 + $0x50] sm:$0xff]
      %v427 = vld [vmem:[#allocation2 + $0x58] sm:$0x3]
      %v428 = vld [vmem:[#allocation2 + $0x60] sm:$0xff]
      %v429 = vld [vmem:[#allocation2 + $0x68] sm:$0x3]
      %v430 = vld [vmem:[#allocation2 + $0x70] sm:$0xff]
      %v431 = vld [vmem:[#allocation2 + $0x78] sm:$0x3]
      %v432 = vld [vmem:[#allocation2 + $0x80] sm:$0xff]
      %v433 = vld [vmem:[#allocation2 + $0x88] sm:$0x3]
      %v434 = vld [vmem:[#allocation2 + $0x90] sm:$0xff]
      %v435 = vld [vmem:[#allocation2 + $0x98] sm:$0x3]
      %v436 = vld [vmem:[#allocation2 + $0xa0] sm:$0xff]
      %v437 = vld [vmem:[#allocation2 + $0xa8] sm:$0x3]
      %v438 = vld [vmem:[#allocation2 + $0xb0] sm:$0xff]
      %v439 = vld [vmem:[#allocation2 + $0xb8] sm:$0x3]
      %v440 = vld [vmem:[#allocation2 + $0xc0] sm:$0xff]
      %v441 = vld [vmem:[#allocation2 + $0xc8] sm:$0x3]
      %v442 = vld [vmem:[#allocation2 + $0xd0] sm:$0xff]
      %v443 = vld [vmem:[#allocation2 + $0xd8] sm:$0x3]
      %v444 = vld [vmem:[#allocation2 + $0xe0] sm:$0xff]
      %v445 = vld [vmem:[#allocation2 + $0xe8] sm:$0x3]
      %v446 = vld [vmem:[#allocation2 + $0xf0] sm:$0xff]
      %v447 = vld [vmem:[#allocation2 + $0xf8] sm:$0x3]
      %v448 = vld [vmem:[#allocation2 + $0x100] sm:$0xff]
      %v449 = vld [vmem:[#allocation2 + $0x108] sm:$0x3]
      %v450 = vld [vmem:[#allocation2 + $0x110] sm:$0xff]
      %v451 = vld [vmem:[#allocation2 + $0x118] sm:$0x3]
      %v452 = vld [vmem:[#allocation2 + $0x120] sm:$0xff]
      %v453 = vld [vmem:[#allocation2 + $0x128] sm:$0x3]
      %v454 = vld [vmem:[#allocation2 + $0x130] sm:$0xff]
      %v455 = vld [vmem:[#allocation2 + $0x138] sm:$0x3]
      %v456 = vld [vmem:[#allocation2 + $0x140] sm:$0xff]
      %v457 = vld [vmem:[#allocation2 + $0x148] sm:$0x3]
      %v458 = vld [vmem:[#allocation2 + $0x150] sm:$0xff]
      %v459 = vld [vmem:[#allocation2 + $0x158] sm:$0x3]
      %v460 = vld [vmem:[#allocation2 + $0x160] sm:$0xff]
      %v461 = vld [vmem:[#allocation2 + $0x168] sm:$0x3]
      %v462 = vld [vmem:[#allocation2 + $0x170] sm:$0xff]
      %v463 = vld [vmem:[#allocation2 + $0x178] sm:$0x3]
      %v464 = vld [vmem:[#allocation2 + $0x180] sm:$0xff]
      %v465 = vld [vmem:[#allocation2 + $0x188] sm:$0x3]
      %v466 = vld [vmem:[#allocation2 + $0x190] sm:$0xff]
      %v467 = vld [vmem:[#allocation2 + $0x198] sm:$0x3]
      %v468 = vld [vmem:[#allocation2 + $0x1a0] sm:$0xff]
      %v469 = vld [vmem:[#allocation2 + $0x1a8] sm:$0x3]
      %v470 = vld [vmem:[#allocation2 + $0x1b0] sm:$0xff]
      %v471 = vld [vmem:[#allocation2 + $0x1b8] sm:$0x3]
      %v472 = vld [vmem:[#allocation2 + $0x1c0] sm:$0xff]
      %v473 = vld [vmem:[#allocation2 + $0x1c8] sm:$0x3]
      %v474 = vld [vmem:[#allocation2 + $0x1d0] sm:$0xff]
      %v475 = vld [vmem:[#allocation2 + $0x1d8] sm:$0x3]
      %v476 = vld [vmem:[#allocation2 + $0x1e0] sm:$0xff]
      %v477 = vld [vmem:[#allocation2 + $0x1e8] sm:$0x3]
      %v478 = vld [vmem:[#allocation2 + $0x1f0] sm:$0xff]
      %v479 = vld [vmem:[#allocation2 + $0x1f8] sm:$0x3]
      %v480 = vld [vmem:[#allocation2 + $0x200] sm:$0xff]
      %v481 = vld [vmem:[#allocation2 + $0x208] sm:$0x3]
      %v482 = vld [vmem:[#allocation2 + $0x210] sm:$0xff]
      %v483 = vld [vmem:[#allocation2 + $0x218] sm:$0x3]
      %v484 = vld [vmem:[#allocation2 + $0x220] sm:$0xff]
      %v485 = vld [vmem:[#allocation2 + $0x228] sm:$0x3]
      %v486 = vld [vmem:[#allocation2 + $0x230] sm:$0xff]
      %v487 = vld [vmem:[#allocation2 + $0x238] sm:$0x3]
      %v488 = vld [vmem:[#allocation2 + $0x240] sm:$0xff]
      %v489 = vld [vmem:[#allocation2 + $0x248] sm:$0x3]
      %v490 = vld [vmem:[#allocation2 + $0x250] sm:$0xff]
      %v491 = vld [vmem:[#allocation2 + $0x258] sm:$0x3]
      %v492 = vld [vmem:[#allocation2 + $0x260] sm:$0xff]
      %v493 = vld [vmem:[#allocation2 + $0x268] sm:$0x3]
      %v494 = vld [vmem:[#allocation2 + $0x270] sm:$0xff]
      %v495 = vld [vmem:[#allocation2 + $0x278] sm:$0x3]
      %v496 = vld [vmem:[#allocation2 + $0x280] sm:$0xff]
      %v497 = vld [vmem:[#allocation2 + $0x288] sm:$0x3]
      %v498 = vld [vmem:[#allocation2 + $0x290] sm:$0xff]
      %v499 = vld [vmem:[#allocation2 + $0x298] sm:$0x3]
      %v500 = vld [vmem:[#allocation2 + $0x2a0] sm:$0xff]
      %v501 = vld [vmem:[#allocation2 + $0x2a8] sm:$0x3]
      %v502 = vld [vmem:[#allocation2 + $0x2b0] sm:$0xff]
      %v503 = vld [vmem:[#allocation2 + $0x2b8] sm:$0x3]
      %v504 = vld [vmem:[#allocation2 + $0x2c0] sm:$0xff]
      %v505 = vld [vmem:[#allocation2 + $0x2c8] sm:$0x3]
      %v506 = vld [vmem:[#allocation2 + $0x2d0] sm:$0xff]
      %v507 = vld [vmem:[#allocation2 + $0x2d8] sm:$0x3]
      %v508 = vld [vmem:[#allocation2 + $0x2e0] sm:$0xff]
      %v509 = vld [vmem:[#allocation2 + $0x2e8] sm:$0x3]
      %v510 = vld [vmem:[#allocation2 + $0x2f0] sm:$0xff]
      %v511 = vld [vmem:[#allocation2 + $0x2f8] sm:$0x3]
      %v512 = vld [vmem:[#allocation2 + $0x300] sm:$0xff]
      %v513 = vld [vmem:[#allocation2 + $0x308] sm:$0x3]
      %v514 = vld [vmem:[#allocation2 + $0x310] sm:$0xff]
      %v515 = vld [vmem:[#allocation2 + $0x318] sm:$0x3]
      %v516 = vld [vmem:[#allocation2 + $0x320] sm:$0xff]
      %v517 = vld [vmem:[#allocation2 + $0x328] sm:$0x3]
      %v518 = vld [vmem:[#allocation2 + $0x330] sm:$0xff]
      %v519 = vld [vmem:[#allocation2 + $0x338] sm:$0x3]
      %v520 = vld [vmem:[#allocation2 + $0x340] sm:$0xff]
      %v521 = vld [vmem:[#allocation2 + $0x348] sm:$0x3]
      %v522 = vld [vmem:[#allocation2 + $0x350] sm:$0xff]
      %v523 = vld [vmem:[#allocation2 + $0x358] sm:$0x3]
      %v524 = vld [vmem:[#allocation2 + $0x360] sm:$0xff]
      %v525 = vld [vmem:[#allocation2 + $0x368] sm:$0x3]
      %v526 = vld [vmem:[#allocation2 + $0x370] sm:$0xff]
      %v527 = vld [vmem:[#allocation2 + $0x378] sm:$0x3]
      %v528 = vld [vmem:[#allocation2 + $0x380] sm:$0xff]
      %v529 = vld [vmem:[#allocation2 + $0x388] sm:$0x3]
      %v530 = vld [vmem:[#allocation2 + $0x390] sm:$0xff]
      %v531 = vld [vmem:[#allocation2 + $0x398] sm:$0x3]
      %v532 = vld [vmem:[#allocation2 + $0x3a0] sm:$0xff]
      %v533 = vld [vmem:[#allocation2 + $0x3a8] sm:$0x3]
      %v534 = vld [vmem:[#allocation2 + $0x3b0] sm:$0xff]
      %v535 = vld [vmem:[#allocation2 + $0x3b8] sm:$0x3]
      %vm656 = vcmask 1046528
      %v657 = vrot.slane %v416, 1
      %v658 = vrot.slane %v417, 1
      %v659 = vsel %vm656, %v657, %v658
      %v660 = vrot.slane %v418, 1
      %v661 = vrot.slane %v419, 1
      %v662 = vsel %vm656, %v660, %v661
      %v663 = vrot.slane %v420, 1
      %v664 = vrot.slane %v421, 1
      %v665 = vsel %vm656, %v663, %v664
      %v666 = vrot.slane %v422, 1
      %v667 = vrot.slane %v423, 1
      %v668 = vsel %vm656, %v666, %v667
      %v669 = vrot.slane %v424, 1
      %v670 = vrot.slane %v425, 1
      %v671 = vsel %vm656, %v669, %v670
      %v672 = vrot.slane %v426, 1
      %v673 = vrot.slane %v427, 1
      %v674 = vsel %vm656, %v672, %v673
      %v675 = vrot.slane %v428, 1
      %v676 = vrot.slane %v429, 1
      %v677 = vsel %vm656, %v675, %v676
      %v678 = vrot.slane %v430, 1
      %v679 = vrot.slane %v431, 1
      %v680 = vsel %vm656, %v678, %v679
      %v681 = vrot.slane %v432, 1
      %v682 = vrot.slane %v433, 1
      %v683 = vsel %vm656, %v681, %v682
      %v684 = vrot.slane %v434, 1
      %v685 = vrot.slane %v435, 1
      %v686 = vsel %vm656, %v684, %v685
      %v687 = vrot.slane %v436, 1
      %v688 = vrot.slane %v437, 1
      %v689 = vsel %vm656, %v687, %v688
      %v690 = vrot.slane %v438, 1
      %v691 = vrot.slane %v439, 1
      %v692 = vsel %vm656, %v690, %v691
      %v693 = vrot.slane %v440, 1
      %v694 = vrot.slane %v441, 1
      %v695 = vsel %vm656, %v693, %v694
      %v696 = vrot.slane %v442, 1
      %v697 = vrot.slane %v443, 1
      %v698 = vsel %vm656, %v696, %v697
      %v699 = vrot.slane %v444, 1
      %v700 = vrot.slane %v445, 1
      %v701 = vsel %vm656, %v699, %v700
      %v702 = vrot.slane %v446, 1
      %v703 = vrot.slane %v447, 1
      %v704 = vsel %vm656, %v702, %v703
      %v705 = vrot.slane %v448, 1
      %v706 = vrot.slane %v449, 1
      %v707 = vsel %vm656, %v705, %v706
      %v708 = vrot.slane %v450, 1
      %v709 = vrot.slane %v451, 1
      %v710 = vsel %vm656, %v708, %v709
      %v711 = vrot.slane %v452, 1
      %v712 = vrot.slane %v453, 1
      %v713 = vsel %vm656, %v711, %v712
      %v714 = vrot.slane %v454, 1
      %v715 = vrot.slane %v455, 1
      %v716 = vsel %vm656, %v714, %v715
      %v717 = vrot.slane %v456, 1
      %v718 = vrot.slane %v457, 1
      %v719 = vsel %vm656, %v717, %v718
      %v720 = vrot.slane %v458, 1
      %v721 = vrot.slane %v459, 1
      %v722 = vsel %vm656, %v720, %v721
      %v723 = vrot.slane %v460, 1
      %v724 = vrot.slane %v461, 1
      %v725 = vsel %vm656, %v723, %v724
      %v726 = vrot.slane %v462, 1
      %v727 = vrot.slane %v463, 1
      %v728 = vsel %vm656, %v726, %v727
      %v729 = vrot.slane %v464, 1
      %v730 = vrot.slane %v465, 1
      %v731 = vsel %vm656, %v729, %v730
      %v732 = vrot.slane %v466, 1
      %v733 = vrot.slane %v467, 1
      %v734 = vsel %vm656, %v732, %v733
      %v735 = vrot.slane %v468, 1
      %v736 = vrot.slane %v469, 1
      %v737 = vsel %vm656, %v735, %v736
      %v738 = vrot.slane %v470, 1
      %v739 = vrot.slane %v471, 1
      %v740 = vsel %vm656, %v738, %v739
      %v741 = vrot.slane %v472, 1
      %v742 = vrot.slane %v473, 1
      %v743 = vsel %vm656, %v741, %v742
      %v744 = vrot.slane %v474, 1
      %v745 = vrot.slane %v475, 1
      %v746 = vsel %vm656, %v744, %v745
      %v747 = vrot.slane %v476, 1
      %v748 = vrot.slane %v477, 1
      %v749 = vsel %vm656, %v747, %v748
      %v750 = vrot.slane %v478, 1
      %v751 = vrot.slane %v479, 1
      %v752 = vsel %vm656, %v750, %v751
      %v753 = vrot.slane %v480, 1
      %v754 = vrot.slane %v481, 1
      %v755 = vsel %vm656, %v753, %v754
      %v756 = vrot.slane %v482, 1
      %v757 = vrot.slane %v483, 1
      %v758 = vsel %vm656, %v756, %v757
      %v759 = vrot.slane %v484, 1
      %v760 = vrot.slane %v485, 1
      %v761 = vsel %vm656, %v759, %v760
      %v762 = vrot.slane %v486, 1
      %v763 = vrot.slane %v487, 1
      %v764 = vsel %vm656, %v762, %v763
      %v765 = vrot.slane %v488, 1
      %v766 = vrot.slane %v489, 1
      %v767 = vsel %vm656, %v765, %v766
      %v768 = vrot.slane %v490, 1
      %v769 = vrot.slane %v491, 1
      %v770 = vsel %vm656, %v768, %v769
      %v771 = vrot.slane %v492, 1
      %v772 = vrot.slane %v493, 1
      %v773 = vsel %vm656, %v771, %v772
      %v774 = vrot.slane %v494, 1
      %v775 = vrot.slane %v495, 1
      %v776 = vsel %vm656, %v774, %v775
      %v777 = vrot.slane %v496, 1
      %v778 = vrot.slane %v497, 1
      %v779 = vsel %vm656, %v777, %v778
      %v780 = vrot.slane %v498, 1
      %v781 = vrot.slane %v499, 1
      %v782 = vsel %vm656, %v780, %v781
      %v783 = vrot.slane %v500, 1
      %v784 = vrot.slane %v501, 1
      %v785 = vsel %vm656, %v783, %v784
      %v786 = vrot.slane %v502, 1
      %v787 = vrot.slane %v503, 1
      %v788 = vsel %vm656, %v786, %v787
      %v789 = vrot.slane %v504, 1
      %v790 = vrot.slane %v505, 1
      %v791 = vsel %vm656, %v789, %v790
      %v792 = vrot.slane %v506, 1
      %v793 = vrot.slane %v507, 1
      %v794 = vsel %vm656, %v792, %v793
      %v795 = vrot.slane %v508, 1
      %v796 = vrot.slane %v509, 1
      %v797 = vsel %vm656, %v795, %v796
      %v798 = vrot.slane %v510, 1
      %v799 = vrot.slane %v511, 1
      %v800 = vsel %vm656, %v798, %v799
      %v801 = vrot.slane %v512, 1
      %v802 = vrot.slane %v513, 1
      %v803 = vsel %vm656, %v801, %v802
      %v804 = vrot.slane %v514, 1
      %v805 = vrot.slane %v515, 1
      %v806 = vsel %vm656, %v804, %v805
      %v807 = vrot.slane %v516, 1
      %v808 = vrot.slane %v517, 1
      %v809 = vsel %vm656, %v807, %v808
      %v810 = vrot.slane %v518, 1
      %v811 = vrot.slane %v519, 1
      %v812 = vsel %vm656, %v810, %v811
      %v813 = vrot.slane %v520, 1
      %v814 = vrot.slane %v521, 1
      %v815 = vsel %vm656, %v813, %v814
      %v816 = vrot.slane %v522, 1
      %v817 = vrot.slane %v523, 1
      %v818 = vsel %vm656, %v816, %v817
      %v819 = vrot.slane %v524, 1
      %v820 = vrot.slane %v525, 1
      %v821 = vsel %vm656, %v819, %v820
      %v822 = vrot.slane %v526, 1
      %v823 = vrot.slane %v527, 1
      %v824 = vsel %vm656, %v822, %v823
      %v825 = vrot.slane %v528, 1
      %v826 = vrot.slane %v529, 1
      %v827 = vsel %vm656, %v825, %v826
      %v828 = vrot.slane %v530, 1
      %v829 = vrot.slane %v531, 1
      %v830 = vsel %vm656, %v828, %v829
      %v831 = vrot.slane %v532, 1
      %v832 = vrot.slane %v533, 1
      %v833 = vsel %vm656, %v831, %v832
      %v834 = vrot.slane %v534, 1
      %v835 = vrot.slane %v535, 1
      %v836 = vsel %vm656, %v834, %v835
      %v897 = vmax.f32 %v416, %v659
      %v898 = vmax.f32 %v418, %v662
      %v899 = vmax.f32 %v420, %v665
      %v900 = vmax.f32 %v422, %v668
      %v901 = vmax.f32 %v424, %v671
      %v902 = vmax.f32 %v426, %v674
      %v903 = vmax.f32 %v428, %v677
      %v904 = vmax.f32 %v430, %v680
      %v905 = vmax.f32 %v432, %v683
      %v906 = vmax.f32 %v434, %v686
      %v907 = vmax.f32 %v436, %v689
      %v908 = vmax.f32 %v438, %v692
      %v909 = vmax.f32 %v440, %v695
      %v910 = vmax.f32 %v442, %v698
      %v911 = vmax.f32 %v444, %v701
      %v912 = vmax.f32 %v446, %v704
      %v913 = vmax.f32 %v448, %v707
      %v914 = vmax.f32 %v450, %v710
      %v915 = vmax.f32 %v452, %v713
      %v916 = vmax.f32 %v454, %v716
      %v917 = vmax.f32 %v456, %v719
      %v918 = vmax.f32 %v458, %v722
      %v919 = vmax.f32 %v460, %v725
      %v920 = vmax.f32 %v462, %v728
      %v921 = vmax.f32 %v464, %v731
      %v922 = vmax.f32 %v466, %v734
      %v923 = vmax.f32 %v468, %v737
      %v924 = vmax.f32 %v470, %v740
      %v925 = vmax.f32 %v472, %v743
      %v926 = vmax.f32 %v474, %v746
      %v927 = vmax.f32 %v476, %v749
      %v928 = vmax.f32 %v478, %v752
      %v929 = vmax.f32 %v480, %v755
      %v930 = vmax.f32 %v482, %v758
      %v931 = vmax.f32 %v484, %v761
      %v932 = vmax.f32 %v486, %v764
      %v933 = vmax.f32 %v488, %v767
      %v934 = vmax.f32 %v490, %v770
      %v935 = vmax.f32 %v492, %v773
      %v936 = vmax.f32 %v494, %v776
      %v937 = vmax.f32 %v496, %v779
      %v938 = vmax.f32 %v498, %v782
      %v939 = vmax.f32 %v500, %v785
      %v940 = vmax.f32 %v502, %v788
      %v941 = vmax.f32 %v504, %v791
      %v942 = vmax.f32 %v506, %v794
      %v943 = vmax.f32 %v508, %v797
      %v944 = vmax.f32 %v510, %v800
      %v945 = vmax.f32 %v512, %v803
      %v946 = vmax.f32 %v514, %v806
      %v947 = vmax.f32 %v516, %v809
      %v948 = vmax.f32 %v518, %v812
      %v949 = vmax.f32 %v520, %v815
      %v950 = vmax.f32 %v522, %v818
      %v951 = vmax.f32 %v524, %v821
      %v952 = vmax.f32 %v526, %v824
      %v953 = vmax.f32 %v528, %v827
      %v954 = vmax.f32 %v530, %v830
      %v955 = vmax.f32 %v532, %v833
      %v956 = vmax.f32 %v534, %v836
      %vm957 = vcmask 1045504
      %v958 = vrot.slane %v416, 2
      %v959 = vrot.slane %v417, 2
      %v960 = vsel %vm957, %v958, %v959
      %v961 = vrot.slane %v418, 2
      %v962 = vrot.slane %v419, 2
      %v963 = vsel %vm957, %v961, %v962
      %v964 = vrot.slane %v420, 2
      %v965 = vrot.slane %v421, 2
      %v966 = vsel %vm957, %v964, %v965
      %v967 = vrot.slane %v422, 2
      %v968 = vrot.slane %v423, 2
      %v969 = vsel %vm957, %v967, %v968
      %v970 = vrot.slane %v424, 2
      %v971 = vrot.slane %v425, 2
      %v972 = vsel %vm957, %v970, %v971
      %v973 = vrot.slane %v426, 2
      %v974 = vrot.slane %v427, 2
      %v975 = vsel %vm957, %v973, %v974
      %v976 = vrot.slane %v428, 2
      %v977 = vrot.slane %v429, 2
      %v978 = vsel %vm957, %v976, %v977
      %v979 = vrot.slane %v430, 2
      %v980 = vrot.slane %v431, 2
      %v981 = vsel %vm957, %v979, %v980
      %v982 = vrot.slane %v432, 2
      %v983 = vrot.slane %v433, 2
      %v984 = vsel %vm957, %v982, %v983
      %v985 = vrot.slane %v434, 2
      %v986 = vrot.slane %v435, 2
      %v987 = vsel %vm957, %v985, %v986
      %v988 = vrot.slane %v436, 2
      %v989 = vrot.slane %v437, 2
      %v990 = vsel %vm957, %v988, %v989
      %v991 = vrot.slane %v438, 2
      %v992 = vrot.slane %v439, 2
      %v993 = vsel %vm957, %v991, %v992
      %v994 = vrot.slane %v440, 2
      %v995 = vrot.slane %v441, 2
      %v996 = vsel %vm957, %v994, %v995
      %v997 = vrot.slane %v442, 2
      %v998 = vrot.slane %v443, 2
      %v999 = vsel %vm957, %v997, %v998
      %v1000 = vrot.slane %v444, 2
      %v1001 = vrot.slane %v445, 2
      %v1002 = vsel %vm957, %v1000, %v1001
      %v1003 = vrot.slane %v446, 2
      %v1004 = vrot.slane %v447, 2
      %v1005 = vsel %vm957, %v1003, %v1004
      %v1006 = vrot.slane %v448, 2
      %v1007 = vrot.slane %v449, 2
      %v1008 = vsel %vm957, %v1006, %v1007
      %v1009 = vrot.slane %v450, 2
      %v1010 = vrot.slane %v451, 2
      %v1011 = vsel %vm957, %v1009, %v1010
      %v1012 = vrot.slane %v452, 2
      %v1013 = vrot.slane %v453, 2
      %v1014 = vsel %vm957, %v1012, %v1013
      %v1015 = vrot.slane %v454, 2
      %v1016 = vrot.slane %v455, 2
      %v1017 = vsel %vm957, %v1015, %v1016
      %v1018 = vrot.slane %v456, 2
      %v1019 = vrot.slane %v457, 2
      %v1020 = vsel %vm957, %v1018, %v1019
      %v1021 = vrot.slane %v458, 2
      %v1022 = vrot.slane %v459, 2
      %v1023 = vsel %vm957, %v1021, %v1022
      %v1024 = vrot.slane %v460, 2
      %v1025 = vrot.slane %v461, 2
      %v1026 = vsel %vm957, %v1024, %v1025
      %v1027 = vrot.slane %v462, 2
      %v1028 = vrot.slane %v463, 2
      %v1029 = vsel %vm957, %v1027, %v1028
      %v1030 = vrot.slane %v464, 2
      %v1031 = vrot.slane %v465, 2
      %v1032 = vsel %vm957, %v1030, %v1031
      %v1033 = vrot.slane %v466, 2
      %v1034 = vrot.slane %v467, 2
      %v1035 = vsel %vm957, %v1033, %v1034
      %v1036 = vrot.slane %v468, 2
      %v1037 = vrot.slane %v469, 2
      %v1038 = vsel %vm957, %v1036, %v1037
      %v1039 = vrot.slane %v470, 2
      %v1040 = vrot.slane %v471, 2
      %v1041 = vsel %vm957, %v1039, %v1040
      %v1042 = vrot.slane %v472, 2
      %v1043 = vrot.slane %v473, 2
      %v1044 = vsel %vm957, %v1042, %v1043
      %v1045 = vrot.slane %v474, 2
      %v1046 = vrot.slane %v475, 2
      %v1047 = vsel %vm957, %v1045, %v1046
      %v1048 = vrot.slane %v476, 2
      %v1049 = vrot.slane %v477, 2
      %v1050 = vsel %vm957, %v1048, %v1049
      %v1051 = vrot.slane %v478, 2
      %v1052 = vrot.slane %v479, 2
      %v1053 = vsel %vm957, %v1051, %v1052
      %v1054 = vrot.slane %v480, 2
      %v1055 = vrot.slane %v481, 2
      %v1056 = vsel %vm957, %v1054, %v1055
      %v1057 = vrot.slane %v482, 2
      %v1058 = vrot.slane %v483, 2
      %v1059 = vsel %vm957, %v1057, %v1058
      %v1060 = vrot.slane %v484, 2
      %v1061 = vrot.slane %v485, 2
      %v1062 = vsel %vm957, %v1060, %v1061
      %v1063 = vrot.slane %v486, 2
      %v1064 = vrot.slane %v487, 2
      %v1065 = vsel %vm957, %v1063, %v1064
      %v1066 = vrot.slane %v488, 2
      %v1067 = vrot.slane %v489, 2
      %v1068 = vsel %vm957, %v1066, %v1067
      %v1069 = vrot.slane %v490, 2
      %v1070 = vrot.slane %v491, 2
      %v1071 = vsel %vm957, %v1069, %v1070
      %v1072 = vrot.slane %v492, 2
      %v1073 = vrot.slane %v493, 2
      %v1074 = vsel %vm957, %v1072, %v1073
      %v1075 = vrot.slane %v494, 2
      %v1076 = vrot.slane %v495, 2
      %v1077 = vsel %vm957, %v1075, %v1076
      %v1078 = vrot.slane %v496, 2
      %v1079 = vrot.slane %v497, 2
      %v1080 = vsel %vm957, %v1078, %v1079
      %v1081 = vrot.slane %v498, 2
      %v1082 = vrot.slane %v499, 2
      %v1083 = vsel %vm957, %v1081, %v1082
      %v1084 = vrot.slane %v500, 2
      %v1085 = vrot.slane %v501, 2
      %v1086 = vsel %vm957, %v1084, %v1085
      %v1087 = vrot.slane %v502, 2
      %v1088 = vrot.slane %v503, 2
      %v1089 = vsel %vm957, %v1087, %v1088
      %v1090 = vrot.slane %v504, 2
      %v1091 = vrot.slane %v505, 2
      %v1092 = vsel %vm957, %v1090, %v1091
      %v1093 = vrot.slane %v506, 2
      %v1094 = vrot.slane %v507, 2
      %v1095 = vsel %vm957, %v1093, %v1094
      %v1096 = vrot.slane %v508, 2
      %v1097 = vrot.slane %v509, 2
      %v1098 = vsel %vm957, %v1096, %v1097
      %v1099 = vrot.slane %v510, 2
      %v1100 = vrot.slane %v511, 2
      %v1101 = vsel %vm957, %v1099, %v1100
      %v1102 = vrot.slane %v512, 2
      %v1103 = vrot.slane %v513, 2
      %v1104 = vsel %vm957, %v1102, %v1103
      %v1105 = vrot.slane %v514, 2
      %v1106 = vrot.slane %v515, 2
      %v1107 = vsel %vm957, %v1105, %v1106
      %v1108 = vrot.slane %v516, 2
      %v1109 = vrot.slane %v517, 2
      %v1110 = vsel %vm957, %v1108, %v1109
      %v1111 = vrot.slane %v518, 2
      %v1112 = vrot.slane %v519, 2
      %v1113 = vsel %vm957, %v1111, %v1112
      %v1114 = vrot.slane %v520, 2
      %v1115 = vrot.slane %v521, 2
      %v1116 = vsel %vm957, %v1114, %v1115
      %v1117 = vrot.slane %v522, 2
      %v1118 = vrot.slane %v523, 2
      %v1119 = vsel %vm957, %v1117, %v1118
      %v1120 = vrot.slane %v524, 2
      %v1121 = vrot.slane %v525, 2
      %v1122 = vsel %vm957, %v1120, %v1121
      %v1123 = vrot.slane %v526, 2
      %v1124 = vrot.slane %v527, 2
      %v1125 = vsel %vm957, %v1123, %v1124
      %v1126 = vrot.slane %v528, 2
      %v1127 = vrot.slane %v529, 2
      %v1128 = vsel %vm957, %v1126, %v1127
      %v1129 = vrot.slane %v530, 2
      %v1130 = vrot.slane %v531, 2
      %v1131 = vsel %vm957, %v1129, %v1130
      %v1132 = vrot.slane %v532, 2
      %v1133 = vrot.slane %v533, 2
      %v1134 = vsel %vm957, %v1132, %v1133
      %v1135 = vrot.slane %v534, 2
      %v1136 = vrot.slane %v535, 2
      %v1137 = vsel %vm957, %v1135, %v1136
      %v1198 = vmax.f32 %v897, %v960
      %v1199 = vmax.f32 %v898, %v963
      %v1200 = vmax.f32 %v899, %v966
      %v1201 = vmax.f32 %v900, %v969
      %v1202 = vmax.f32 %v901, %v972
      %v1203 = vmax.f32 %v902, %v975
      %v1204 = vmax.f32 %v903, %v978
      %v1205 = vmax.f32 %v904, %v981
      %v1206 = vmax.f32 %v905, %v984
      %v1207 = vmax.f32 %v906, %v987
      %v1208 = vmax.f32 %v907, %v990
      %v1209 = vmax.f32 %v908, %v993
      %v1210 = vmax.f32 %v909, %v996
      %v1211 = vmax.f32 %v910, %v999
      %v1212 = vmax.f32 %v911, %v1002
      %v1213 = vmax.f32 %v912, %v1005
      %v1214 = vmax.f32 %v913, %v1008
      %v1215 = vmax.f32 %v914, %v1011
      %v1216 = vmax.f32 %v915, %v1014
      %v1217 = vmax.f32 %v916, %v1017
      %v1218 = vmax.f32 %v917, %v1020
      %v1219 = vmax.f32 %v918, %v1023
      %v1220 = vmax.f32 %v919, %v1026
      %v1221 = vmax.f32 %v920, %v1029
      %v1222 = vmax.f32 %v921, %v1032
      %v1223 = vmax.f32 %v922, %v1035
      %v1224 = vmax.f32 %v923, %v1038
      %v1225 = vmax.f32 %v924, %v1041
      %v1226 = vmax.f32 %v925, %v1044
      %v1227 = vmax.f32 %v926, %v1047
      %v1228 = vmax.f32 %v927, %v1050
      %v1229 = vmax.f32 %v928, %v1053
      %v1230 = vmax.f32 %v929, %v1056
      %v1231 = vmax.f32 %v930, %v1059
      %v1232 = vmax.f32 %v931, %v1062
      %v1233 = vmax.f32 %v932, %v1065
      %v1234 = vmax.f32 %v933, %v1068
      %v1235 = vmax.f32 %v934, %v1071
      %v1236 = vmax.f32 %v935, %v1074
      %v1237 = vmax.f32 %v936, %v1077
      %v1238 = vmax.f32 %v937, %v1080
      %v1239 = vmax.f32 %v938, %v1083
      %v1240 = vmax.f32 %v939, %v1086
      %v1241 = vmax.f32 %v940, %v1089
      %v1242 = vmax.f32 %v941, %v1092
      %v1243 = vmax.f32 %v942, %v1095
      %v1244 = vmax.f32 %v943, %v1098
      %v1245 = vmax.f32 %v944, %v1101
      %v1246 = vmax.f32 %v945, %v1104
      %v1247 = vmax.f32 %v946, %v1107
      %v1248 = vmax.f32 %v947, %v1110
      %v1249 = vmax.f32 %v948, %v1113
      %v1250 = vmax.f32 %v949, %v1116
      %v1251 = vmax.f32 %v950, %v1119
      %v1252 = vmax.f32 %v951, %v1122
      %v1253 = vmax.f32 %v952, %v1125
      %v1254 = vmax.f32 %v953, %v1128
      %v1255 = vmax.f32 %v954, %v1131
      %v1256 = vmax.f32 %v955, %v1134
      %v1257 = vmax.f32 %v956, %v1137
      %v1258 = vmax.f32 %v1198, %v1199
      %v1259 = vmax.f32 %v1199, %v1200
      %v1260 = vmax.f32 %v1200, %v1201
      %v1261 = vmax.f32 %v1201, %v1202
      %v1262 = vmax.f32 %v1202, %v1203
      %v1263 = vmax.f32 %v1203, %v1204
      %v1264 = vmax.f32 %v1204, %v1205
      %v1265 = vmax.f32 %v1205, %v1206
      %v1266 = vmax.f32 %v1208, %v1209
      %v1267 = vmax.f32 %v1209, %v1210
      %v1268 = vmax.f32 %v1210, %v1211
      %v1269 = vmax.f32 %v1211, %v1212
      %v1270 = vmax.f32 %v1212, %v1213
      %v1271 = vmax.f32 %v1213, %v1214
      %v1272 = vmax.f32 %v1214, %v1215
      %v1273 = vmax.f32 %v1215, %v1216
      %v1274 = vmax.f32 %v1218, %v1219
      %v1275 = vmax.f32 %v1219, %v1220
      %v1276 = vmax.f32 %v1220, %v1221
      %v1277 = vmax.f32 %v1221, %v1222
      %v1278 = vmax.f32 %v1222, %v1223
      %v1279 = vmax.f32 %v1223, %v1224
      %v1280 = vmax.f32 %v1224, %v1225
      %v1281 = vmax.f32 %v1225, %v1226
      %v1282 = vmax.f32 %v1228, %v1229
      %v1283 = vmax.f32 %v1229, %v1230
      %v1284 = vmax.f32 %v1230, %v1231
      %v1285 = vmax.f32 %v1231, %v1232
      %v1286 = vmax.f32 %v1232, %v1233
      %v1287 = vmax.f32 %v1233, %v1234
      %v1288 = vmax.f32 %v1234, %v1235
      %v1289 = vmax.f32 %v1235, %v1236
      %v1290 = vmax.f32 %v1238, %v1239
      %v1291 = vmax.f32 %v1239, %v1240
      %v1292 = vmax.f32 %v1240, %v1241
      %v1293 = vmax.f32 %v1241, %v1242
      %v1294 = vmax.f32 %v1242, %v1243
      %v1295 = vmax.f32 %v1243, %v1244
      %v1296 = vmax.f32 %v1244, %v1245
      %v1297 = vmax.f32 %v1245, %v1246
      %v1298 = vmax.f32 %v1248, %v1249
      %v1299 = vmax.f32 %v1249, %v1250
      %v1300 = vmax.f32 %v1250, %v1251
      %v1301 = vmax.f32 %v1251, %v1252
      %v1302 = vmax.f32 %v1252, %v1253
      %v1303 = vmax.f32 %v1253, %v1254
      %v1304 = vmax.f32 %v1254, %v1255
      %v1305 = vmax.f32 %v1255, %v1256
      %v1306 = vmax.f32 %v1258, %v1200
      %v1307 = vmax.f32 %v1259, %v1201
      %v1308 = vmax.f32 %v1260, %v1202
      %v1309 = vmax.f32 %v1261, %v1203
      %v1310 = vmax.f32 %v1262, %v1204
      %v1311 = vmax.f32 %v1263, %v1205
      %v1312 = vmax.f32 %v1264, %v1206
      %v1313 = vmax.f32 %v1265, %v1207
      %v1314 = vmax.f32 %v1266, %v1210
      %v1315 = vmax.f32 %v1267, %v1211
      %v1316 = vmax.f32 %v1268, %v1212
      %v1317 = vmax.f32 %v1269, %v1213
      %v1318 = vmax.f32 %v1270, %v1214
      %v1319 = vmax.f32 %v1271, %v1215
      %v1320 = vmax.f32 %v1272, %v1216
      %v1321 = vmax.f32 %v1273, %v1217
      %v1322 = vmax.f32 %v1274, %v1220
      %v1323 = vmax.f32 %v1275, %v1221
      %v1324 = vmax.f32 %v1276, %v1222
      %v1325 = vmax.f32 %v1277, %v1223
      %v1326 = vmax.f32 %v1278, %v1224
      %v1327 = vmax.f32 %v1279, %v1225
      %v1328 = vmax.f32 %v1280, %v1226
      %v1329 = vmax.f32 %v1281, %v1227
      %v1330 = vmax.f32 %v1282, %v1230
      %v1331 = vmax.f32 %v1283, %v1231
      %v1332 = vmax.f32 %v1284, %v1232
      %v1333 = vmax.f32 %v1285, %v1233
      %v1334 = vmax.f32 %v1286, %v1234
      %v1335 = vmax.f32 %v1287, %v1235
      %v1336 = vmax.f32 %v1288, %v1236
      %v1337 = vmax.f32 %v1289, %v1237
      %v1338 = vmax.f32 %v1290, %v1240
      %v1339 = vmax.f32 %v1291, %v1241
      %v1340 = vmax.f32 %v1292, %v1242
      %v1341 = vmax.f32 %v1293, %v1243
      %v1342 = vmax.f32 %v1294, %v1244
      %v1343 = vmax.f32 %v1295, %v1245
      %v1344 = vmax.f32 %v1296, %v1246
      %v1345 = vmax.f32 %v1297, %v1247
      %v1346 = vmax.f32 %v1298, %v1250
      %v1347 = vmax.f32 %v1299, %v1251
      %v1348 = vmax.f32 %v1300, %v1252
      %v1349 = vmax.f32 %v1301, %v1253
      %v1350 = vmax.f32 %v1302, %v1254
      %v1351 = vmax.f32 %v1303, %v1255
      %v1352 = vmax.f32 %v1304, %v1256
      %v1353 = vmax.f32 %v1305, %v1257
      %v1354 = vmax.f32 %v1306, %v1314
      %v1355 = vmax.f32 %v1307, %v1315
      %v1356 = vmax.f32 %v1308, %v1316
      %v1357 = vmax.f32 %v1309, %v1317
      %v1358 = vmax.f32 %v1310, %v1318
      %v1359 = vmax.f32 %v1311, %v1319
      %v1360 = vmax.f32 %v1312, %v1320
      %v1361 = vmax.f32 %v1313, %v1321
      %v1362 = vmax.f32 %v1314, %v1322
      %v1363 = vmax.f32 %v1315, %v1323
      %v1364 = vmax.f32 %v1316, %v1324
      %v1365 = vmax.f32 %v1317, %v1325
      %v1366 = vmax.f32 %v1318, %v1326
      %v1367 = vmax.f32 %v1319, %v1327
      %v1368 = vmax.f32 %v1320, %v1328
      %v1369 = vmax.f32 %v1321, %v1329
      %v1370 = vmax.f32 %v1322, %v1330
      %v1371 = vmax.f32 %v1323, %v1331
      %v1372 = vmax.f32 %v1324, %v1332
      %v1373 = vmax.f32 %v1325, %v1333
      %v1374 = vmax.f32 %v1326, %v1334
      %v1375 = vmax.f32 %v1327, %v1335
      %v1376 = vmax.f32 %v1328, %v1336
      %v1377 = vmax.f32 %v1329, %v1337
      %v1378 = vmax.f32 %v1330, %v1338
      %v1379 = vmax.f32 %v1331, %v1339
      %v1380 = vmax.f32 %v1332, %v1340
      %v1381 = vmax.f32 %v1333, %v1341
      %v1382 = vmax.f32 %v1334, %v1342
      %v1383 = vmax.f32 %v1335, %v1343
      %v1384 = vmax.f32 %v1336, %v1344
      %v1385 = vmax.f32 %v1337, %v1345
      %v1386 = vmax.f32 %v1354, %v1322
      %v1387 = vmax.f32 %v1355, %v1323
      %v1388 = vmax.f32 %v1356, %v1324
      %v1389 = vmax.f32 %v1357, %v1325
      %v1390 = vmax.f32 %v1358, %v1326
      %v1391 = vmax.f32 %v1359, %v1327
      %v1392 = vmax.f32 %v1360, %v1328
      %v1393 = vmax.f32 %v1361, %v1329
      %v1394 = vmax.f32 %v1362, %v1330
      %v1395 = vmax.f32 %v1363, %v1331
      %v1396 = vmax.f32 %v1364, %v1332
      %v1397 = vmax.f32 %v1365, %v1333
      %v1398 = vmax.f32 %v1366, %v1334
      %v1399 = vmax.f32 %v1367, %v1335
      %v1400 = vmax.f32 %v1368, %v1336
      %v1401 = vmax.f32 %v1369, %v1337
      %v1402 = vmax.f32 %v1370, %v1338
      %v1403 = vmax.f32 %v1371, %v1339
      %v1404 = vmax.f32 %v1372, %v1340
      %v1405 = vmax.f32 %v1373, %v1341
      %v1406 = vmax.f32 %v1374, %v1342
      %v1407 = vmax.f32 %v1375, %v1343
      %v1408 = vmax.f32 %v1376, %v1344
      %v1409 = vmax.f32 %v1377, %v1345
      %v1410 = vmax.f32 %v1378, %v1346
      %v1411 = vmax.f32 %v1379, %v1347
      %v1412 = vmax.f32 %v1380, %v1348
      %v1413 = vmax.f32 %v1381, %v1349
      %v1414 = vmax.f32 %v1382, %v1350
      %v1415 = vmax.f32 %v1383, %v1351
      %v1416 = vmax.f32 %v1384, %v1352
      %v1417 = vmax.f32 %v1385, %v1353
      %v1418 = vld [vmem:[%s1] sm:$0xf]
      %v1420 = vsel %vm225, %v1386, 0
      %v1423 = vsel %vm225, %v1387, 0
      %v1426 = vsel %vm225, %v1388, 0
      %v1429 = vsel %vm225, %v1389, 0
      %v1432 = vsel %vm225, %v1390, 0
      %v1435 = vsel %vm225, %v1391, 0
      %v1438 = vsel %vm225, %v1392, 0
      %v1441 = vsel %vm225, %v1393, 0
      %v1444 = vsel %vm225, %v1394, 0
      %v1447 = vsel %vm225, %v1395, 0
      %v1450 = vsel %vm225, %v1396, 0
      %v1453 = vsel %vm225, %v1397, 0
      %v1456 = vsel %vm225, %v1398, 0
      %v1459 = vsel %vm225, %v1399, 0
      %v1462 = vsel %vm225, %v1400, 0
      %v1465 = vsel %vm225, %v1401, 0
      %v1468 = vsel %vm225, %v1402, 0
      %v1471 = vsel %vm225, %v1403, 0
      %v1474 = vsel %vm225, %v1404, 0
      %v1477 = vsel %vm225, %v1405, 0
      %v1480 = vsel %vm225, %v1406, 0
      %v1483 = vsel %vm225, %v1407, 0
      %v1486 = vsel %vm225, %v1408, 0
      %v1489 = vsel %vm225, %v1409, 0
      %v1492 = vsel %vm225, %v1410, 0
      %v1495 = vsel %vm225, %v1411, 0
      %v1498 = vsel %vm225, %v1412, 0
      %v1501 = vsel %vm225, %v1413, 0
      %v1504 = vsel %vm225, %v1414, 0
      %v1507 = vsel %vm225, %v1415, 0
      %v1510 = vsel %vm225, %v1416, 0
      %v1513 = vsel %vm225, %v1417, 0
      %vm1515 = vcmask 1043456
      %v1517 = vsel %vm1515, %v1418, 0
      %1519 = vmatprep.subr.mxu0 0.0
      %1520 = vmatpush1.msra.mxu0 0.0
      %1521 = vmatprep.subr.mxu0 0.0
      %1522 = vmatpush1.msra.mxu0 0.0
      %1523 = vmatprep.subr.mxu0 0.0
      %1524 = vmatpush1.msra.mxu0 0.0
      %1525 = vmatprep.subr.mxu0 0.0
      %1526 = vmatpush1.msra.mxu0 0.0
      %1527 = vmatprep.subr.mxu0 0.0
      %1528 = vmatpush1.msra.mxu0 0.0
      %1529 = vmatprep.subr.mxu0 0.0
      %1530 = vmatpush1.msra.mxu0 0.0
      %1531 = vmatprep.subr.mxu0 0.0
      %1532 = vmatpush1.msra.mxu0 0.0
      %1533 = vmatprep.subr.mxu0 0.0
      %1534 = vmatpush1.msra.mxu0 0.0
      %1535 = vmatprep.subr.mxu0 0.0
      %1536 = vmatpush1.msra.mxu0 0.0
      %1537 = vmatprep.subr.mxu0 0.0
      %1538 = vmatpush1.msra.mxu0 0.0
      %1539 = vmatprep.subr.mxu0 0.0
      %1540 = vmatpush1.msra.mxu0 0.0
      %1541 = vmatprep.subr.mxu0 0.0
      %1542 = vmatpush1.msra.mxu0 0.0
      %1543 = vmatprep.subr.mxu0 0.0
      %1544 = vmatpush1.msra.mxu0 0.0
      %1545 = vmatprep.subr.mxu0 0.0
      %1546 = vmatpush1.msra.mxu0 0.0
      %1547 = vmatprep.subr.mxu0 0.0
      %1548 = vmatpush1.msra.mxu0 0.0
      %1549 = vmatprep.subr.mxu0 0.0
      %1550 = vmatpush1.msra.mxu0 %v1517
      %1551 = vmatprep.subr.mxu0 0.0
      %1552 = vmatpush2.msra.mxu0 0.0
      %1553 = vmatprep.subr.mxu0 0.0
      %1554 = vmatpush2.msra.mxu0 0.0
      %1555 = vmatprep.subr.mxu0 0.0
      %1556 = vmatpush2.msra.mxu0 0.0
      %1557 = vmatprep.subr.mxu0 0.0
      %1558 = vmatpush2.msra.mxu0 0.0
      %1559 = vmatprep.subr.mxu0 0.0
      %1560 = vmatpush2.msra.mxu0 0.0
      %1561 = vmatprep.subr.mxu0 0.0
      %1562 = vmatpush2.msra.mxu0 0.0
      %1563 = vmatprep.subr.mxu0 0.0
      %1564 = vmatpush2.msra.mxu0 0.0
      %1565 = vmatprep.subr.mxu0 0.0
      %1566 = vmatpush2.msra.mxu0 0.0
      %1567 = vmatprep.subr.mxu0 0.0
      %1568 = vmatpush2.msra.mxu0 0.0
      %1569 = vmatprep.subr.mxu0 0.0
      %1570 = vmatpush2.msra.mxu0 0.0
      %1571 = vmatprep.subr.mxu0 0.0
      %1572 = vmatpush2.msra.mxu0 0.0
      %1573 = vmatprep.subr.mxu0 0.0
      %1574 = vmatpush2.msra.mxu0 0.0
      %1575 = vmatprep.subr.mxu0 0.0
      %1576 = vmatpush2.msra.mxu0 0.0
      %1577 = vmatprep.subr.mxu0 0.0
      %1578 = vmatpush2.msra.mxu0 0.0
      %1579 = vmatprep.subr.mxu0 0.0
      %1580 = vmatpush2.msra.mxu0 0.0
      %1581 = vmatprep.subr.mxu0 0.0
      %1582 = vmatpush2.msra.mxu0 0.0
      %1583 = vmatprep.mubr.f32.mxu0 0.0
      %1584 = vmatmul.mubr.f32.gmra.mxu0 %v1420
      %v1585 = vpop.f32.mrf.mxu0
      %v1586 = vadd.f32 0.0, %v1585
      %v1587 = vpop.f32.mrf.mxu0
      %1588 = vmatprep.mubr.f32.mxu0 0.0
      %1589 = vmatmul.mubr.f32.gmra.mxu0 %v1423
      %v1590 = vpop.f32.mrf.mxu0
      %v1591 = vadd.f32 0.0, %v1590
      %v1592 = vpop.f32.mrf.mxu0
      %1593 = vmatprep.mubr.f32.mxu0 0.0
      %1594 = vmatmul.mubr.f32.gmra.mxu0 %v1426
      %v1595 = vpop.f32.mrf.mxu0
      %v1596 = vadd.f32 0.0, %v1595
      %v1597 = vpop.f32.mrf.mxu0
      %1598 = vmatprep.mubr.f32.mxu0 0.0
      %1599 = vmatmul.mubr.f32.gmra.mxu0 %v1429
      %v1600 = vpop.f32.mrf.mxu0
      %v1601 = vadd.f32 0.0, %v1600
      %v1602 = vpop.f32.mrf.mxu0
      %1603 = vmatprep.mubr.f32.mxu0 0.0
      %1604 = vmatmul.mubr.f32.gmra.mxu0 %v1432
      %v1605 = vpop.f32.mrf.mxu0
      %v1606 = vadd.f32 0.0, %v1605
      %v1607 = vpop.f32.mrf.mxu0
      %1608 = vmatprep.mubr.f32.mxu0 0.0
      %1609 = vmatmul.mubr.f32.gmra.mxu0 %v1435
      %v1610 = vpop.f32.mrf.mxu0
      %v1611 = vadd.f32 0.0, %v1610
      %v1612 = vpop.f32.mrf.mxu0
      %1613 = vmatprep.mubr.f32.mxu0 0.0
      %1614 = vmatmul.mubr.f32.gmra.mxu0 %v1438
      %v1615 = vpop.f32.mrf.mxu0
      %v1616 = vadd.f32 0.0, %v1615
      %v1617 = vpop.f32.mrf.mxu0
      %1618 = vmatprep.mubr.f32.mxu0 0.0
      %1619 = vmatmul.mubr.f32.gmra.mxu0 %v1441
      %v1620 = vpop.f32.mrf.mxu0
      %v1621 = vadd.f32 0.0, %v1620
      %v1622 = vpop.f32.mrf.mxu0
      %1623 = vmatprep.mubr.f32.mxu0 0.0
      %1624 = vmatmul.mubr.f32.gmra.mxu0 %v1444
      %v1625 = vpop.f32.mrf.mxu0
      %v1626 = vadd.f32 0.0, %v1625
      %v1627 = vpop.f32.mrf.mxu0
      %1628 = vmatprep.mubr.f32.mxu0 0.0
      %1629 = vmatmul.mubr.f32.gmra.mxu0 %v1447
      %v1630 = vpop.f32.mrf.mxu0
      %v1631 = vadd.f32 0.0, %v1630
      %v1632 = vpop.f32.mrf.mxu0
      %1633 = vmatprep.mubr.f32.mxu0 0.0
      %1634 = vmatmul.mubr.f32.gmra.mxu0 %v1450
      %v1635 = vpop.f32.mrf.mxu0
      %v1636 = vadd.f32 0.0, %v1635
      %v1637 = vpop.f32.mrf.mxu0
      %1638 = vmatprep.mubr.f32.mxu0 0.0
      %1639 = vmatmul.mubr.f32.gmra.mxu0 %v1453
      %v1640 = vpop.f32.mrf.mxu0
      %v1641 = vadd.f32 0.0, %v1640
      %v1642 = vpop.f32.mrf.mxu0
      %1643 = vmatprep.mubr.f32.mxu0 0.0
      %1644 = vmatmul.mubr.f32.gmra.mxu0 %v1456
      %v1645 = vpop.f32.mrf.mxu0
      %v1646 = vadd.f32 0.0, %v1645
      %v1647 = vpop.f32.mrf.mxu0
      %1648 = vmatprep.mubr.f32.mxu0 0.0
      %1649 = vmatmul.mubr.f32.gmra.mxu0 %v1459
      %v1650 = vpop.f32.mrf.mxu0
      %v1651 = vadd.f32 0.0, %v1650
      %v1652 = vpop.f32.mrf.mxu0
      %1653 = vmatprep.mubr.f32.mxu0 0.0
      %1654 = vmatmul.mubr.f32.gmra.mxu0 %v1462
      %v1655 = vpop.f32.mrf.mxu0
      %v1656 = vadd.f32 0.0, %v1655
      %v1657 = vpop.f32.mrf.mxu0
      %1658 = vmatprep.mubr.f32.mxu0 0.0
      %1659 = vmatmul.mubr.f32.gmra.mxu0 %v1465
      %v1660 = vpop.f32.mrf.mxu0
      %v1661 = vadd.f32 0.0, %v1660
      %v1662 = vpop.f32.mrf.mxu0
      %1663 = vmatprep.mubr.f32.mxu0 0.0
      %1664 = vmatmul.mubr.f32.gmra.mxu0 %v1468
      %v1665 = vpop.f32.mrf.mxu0
      %v1666 = vadd.f32 0.0, %v1665
      %v1667 = vpop.f32.mrf.mxu0
      %1668 = vmatprep.mubr.f32.mxu0 0.0
      %1669 = vmatmul.mubr.f32.gmra.mxu0 %v1471
      %v1670 = vpop.f32.mrf.mxu0
      %v1671 = vadd.f32 0.0, %v1670
      %v1672 = vpop.f32.mrf.mxu0
      %1673 = vmatprep.mubr.f32.mxu0 0.0
      %1674 = vmatmul.mubr.f32.gmra.mxu0 %v1474
      %v1675 = vpop.f32.mrf.mxu0
      %v1676 = vadd.f32 0.0, %v1675
      %v1677 = vpop.f32.mrf.mxu0
      %1678 = vmatprep.mubr.f32.mxu0 0.0
      %1679 = vmatmul.mubr.f32.gmra.mxu0 %v1477
      %v1680 = vpop.f32.mrf.mxu0
      %v1681 = vadd.f32 0.0, %v1680
      %v1682 = vpop.f32.mrf.mxu0
      %1683 = vmatprep.mubr.f32.mxu0 0.0
      %1684 = vmatmul.mubr.f32.gmra.mxu0 %v1480
      %v1685 = vpop.f32.mrf.mxu0
      %v1686 = vadd.f32 0.0, %v1685
      %v1687 = vpop.f32.mrf.mxu0
      %1688 = vmatprep.mubr.f32.mxu0 0.0
      %1689 = vmatmul.mubr.f32.gmra.mxu0 %v1483
      %v1690 = vpop.f32.mrf.mxu0
      %v1691 = vadd.f32 0.0, %v1690
      %v1692 = vpop.f32.mrf.mxu0
      %1693 = vmatprep.mubr.f32.mxu0 0.0
      %1694 = vmatmul.mubr.f32.gmra.mxu0 %v1486
      %v1695 = vpop.f32.mrf.mxu0
      %v1696 = vadd.f32 0.0, %v1695
      %v1697 = vpop.f32.mrf.mxu0
      %1698 = vmatprep.mubr.f32.mxu0 0.0
      %1699 = vmatmul.mubr.f32.gmra.mxu0 %v1489
      %v1700 = vpop.f32.mrf.mxu0
      %v1701 = vadd.f32 0.0, %v1700
      %v1702 = vpop.f32.mrf.mxu0
      %1703 = vmatprep.mubr.f32.mxu0 0.0
      %1704 = vmatmul.mubr.f32.gmra.mxu0 %v1492
      %v1705 = vpop.f32.mrf.mxu0
      %v1706 = vadd.f32 0.0, %v1705
      %v1707 = vpop.f32.mrf.mxu0
      %1708 = vmatprep.mubr.f32.mxu0 0.0
      %1709 = vmatmul.mubr.f32.gmra.mxu0 %v1495
      %v1710 = vpop.f32.mrf.mxu0
      %v1711 = vadd.f32 0.0, %v1710
      %v1712 = vpop.f32.mrf.mxu0
      %1713 = vmatprep.mubr.f32.mxu0 0.0
      %1714 = vmatmul.mubr.f32.gmra.mxu0 %v1498
      %v1715 = vpop.f32.mrf.mxu0
      %v1716 = vadd.f32 0.0, %v1715
      %v1717 = vpop.f32.mrf.mxu0
      %1718 = vmatprep.mubr.f32.mxu0 0.0
      %1719 = vmatmul.mubr.f32.gmra.mxu0 %v1501
      %v1720 = vpop.f32.mrf.mxu0
      %v1721 = vadd.f32 0.0, %v1720
      %v1722 = vpop.f32.mrf.mxu0
      %1723 = vmatprep.mubr.f32.mxu0 0.0
      %1724 = vmatmul.mubr.f32.gmra.mxu0 %v1504
      %v1725 = vpop.f32.mrf.mxu0
      %v1726 = vadd.f32 0.0, %v1725
      %v1727 = vpop.f32.mrf.mxu0
      %1728 = vmatprep.mubr.f32.mxu0 0.0
      %1729 = vmatmul.mubr.f32.gmra.mxu0 %v1507
      %v1730 = vpop.f32.mrf.mxu0
      %v1731 = vadd.f32 0.0, %v1730
      %v1732 = vpop.f32.mrf.mxu0
      %1733 = vmatprep.mubr.f32.mxu0 0.0
      %1734 = vmatmul.mubr.f32.gmra.mxu0 %v1510
      %v1735 = vpop.f32.mrf.mxu0
      %v1736 = vadd.f32 0.0, %v1735
      %v1737 = vpop.f32.mrf.mxu0
      %1738 = vmatprep.mubr.f32.mxu0 0.0
      %1739 = vmatmul.mubr.f32.gmra.mxu0 %v1513
      %v1740 = vpop.f32.mrf.mxu0
      %v1741 = vadd.f32 0.0, %v1740
      %v1742 = vpop.f32.mrf.mxu0
      %1743 = vdwg.mxu0
      %v1744 = vld [vmem:[%s2] sm:$0x1]
      %v1746 = vlaneseq
      %v1747 = vshrl.u32 %v1746, 7
      %v1748 = vsub.s32 0, %v1747
      %v1749 = vrot.slane %v1744, %v1748
      %v1751 = vmul.f32 %v1586, %v1749
      %v1752 = vmul.f32 %v1591, %v1749
      %v1753 = vmul.f32 %v1596, %v1749
      %v1754 = vmul.f32 %v1601, %v1749
      %v1755 = vmul.f32 %v1606, %v1749
      %v1756 = vmul.f32 %v1611, %v1749
      %v1757 = vmul.f32 %v1616, %v1749
      %v1758 = vmul.f32 %v1621, %v1749
      %v1759 = vmul.f32 %v1626, %v1749
      %v1760 = vmul.f32 %v1631, %v1749
      %v1761 = vmul.f32 %v1636, %v1749
      %v1762 = vmul.f32 %v1641, %v1749
      %v1763 = vmul.f32 %v1646, %v1749
      %v1764 = vmul.f32 %v1651, %v1749
      %v1765 = vmul.f32 %v1656, %v1749
      %v1766 = vmul.f32 %v1661, %v1749
      %v1767 = vmul.f32 %v1666, %v1749
      %v1768 = vmul.f32 %v1671, %v1749
      %v1769 = vmul.f32 %v1676, %v1749
      %v1770 = vmul.f32 %v1681, %v1749
      %v1771 = vmul.f32 %v1686, %v1749
      %v1772 = vmul.f32 %v1691, %v1749
      %v1773 = vmul.f32 %v1696, %v1749
      %v1774 = vmul.f32 %v1701, %v1749
      %v1775 = vmul.f32 %v1706, %v1749
      %v1776 = vmul.f32 %v1711, %v1749
      %v1777 = vmul.f32 %v1716, %v1749
      %v1778 = vmul.f32 %v1721, %v1749
      %v1779 = vmul.f32 %v1726, %v1749
      %v1780 = vmul.f32 %v1731, %v1749
      %v1781 = vmul.f32 %v1736, %v1749
      %v1782 = vmul.f32 %v1741, %v1749
      %v1783 = vld [vmem:[%s3] sm:$0x1]
      %v1785 = vlaneseq
      %v1786 = vshrl.u32 %v1785, 7
      %v1787 = vsub.s32 0, %v1786
      %v1788 = vrot.slane %v1783, %v1787
      %v1790 = vadd.f32 %v1751, %v1788
      %v1791 = vadd.f32 %v1752, %v1788
      %v1792 = vadd.f32 %v1753, %v1788
      %v1793 = vadd.f32 %v1754, %v1788
      %v1794 = vadd.f32 %v1755, %v1788
      %v1795 = vadd.f32 %v1756, %v1788
      %v1796 = vadd.f32 %v1757, %v1788
      %v1797 = vadd.f32 %v1758, %v1788
      %v1798 = vadd.f32 %v1759, %v1788
      %v1799 = vadd.f32 %v1760, %v1788
      %v1800 = vadd.f32 %v1761, %v1788
      %v1801 = vadd.f32 %v1762, %v1788
      %v1802 = vadd.f32 %v1763, %v1788
      %v1803 = vadd.f32 %v1764, %v1788
      %v1804 = vadd.f32 %v1765, %v1788
      %v1805 = vadd.f32 %v1766, %v1788
      %v1806 = vadd.f32 %v1767, %v1788
      %v1807 = vadd.f32 %v1768, %v1788
      %v1808 = vadd.f32 %v1769, %v1788
      %v1809 = vadd.f32 %v1770, %v1788
      %v1810 = vadd.f32 %v1771, %v1788
      %v1811 = vadd.f32 %v1772, %v1788
      %v1812 = vadd.f32 %v1773, %v1788
      %v1813 = vadd.f32 %v1774, %v1788
      %v1814 = vadd.f32 %v1775, %v1788
      %v1815 = vadd.f32 %v1776, %v1788
      %v1816 = vadd.f32 %v1777, %v1788
      %v1817 = vadd.f32 %v1778, %v1788
      %v1818 = vadd.f32 %v1779, %v1788
      %v1819 = vadd.f32 %v1780, %v1788
      %v1820 = vadd.f32 %v1781, %v1788
      %v1821 = vadd.f32 %v1782, %v1788
      %v1822 = vmax.f32 %v1790, 0.0
      %v1823 = vmax.f32 %v1791, 0.0
      %v1824 = vmax.f32 %v1792, 0.0
      %v1825 = vmax.f32 %v1793, 0.0
      %v1826 = vmax.f32 %v1794, 0.0
      %v1827 = vmax.f32 %v1795, 0.0
      %v1828 = vmax.f32 %v1796, 0.0
      %v1829 = vmax.f32 %v1797, 0.0
      %v1830 = vmax.f32 %v1798, 0.0
      %v1831 = vmax.f32 %v1799, 0.0
      %v1832 = vmax.f32 %v1800, 0.0
      %v1833 = vmax.f32 %v1801, 0.0
      %v1834 = vmax.f32 %v1802, 0.0
      %v1835 = vmax.f32 %v1803, 0.0
      %v1836 = vmax.f32 %v1804, 0.0
      %v1837 = vmax.f32 %v1805, 0.0
      %v1838 = vmax.f32 %v1806, 0.0
      %v1839 = vmax.f32 %v1807, 0.0
      %v1840 = vmax.f32 %v1808, 0.0
      %v1841 = vmax.f32 %v1809, 0.0
      %v1842 = vmax.f32 %v1810, 0.0
      %v1843 = vmax.f32 %v1811, 0.0
      %v1844 = vmax.f32 %v1812, 0.0
      %v1845 = vmax.f32 %v1813, 0.0
      %v1846 = vmax.f32 %v1814, 0.0
      %v1847 = vmax.f32 %v1815, 0.0
      %v1848 = vmax.f32 %v1816, 0.0
      %v1849 = vmax.f32 %v1817, 0.0
      %v1850 = vmax.f32 %v1818, 0.0
      %v1851 = vmax.f32 %v1819, 0.0
      %v1852 = vmax.f32 %v1820, 0.0
      %v1853 = vmax.f32 %v1821, 0.0
      %vm1854 = vcmask 64512
      %v1855 = vsel %vm1854, %v1822, 0.0
      %v1856 = vsel %vm1854, %v1823, 0.0
      %v1857 = vadd.f32 %v1855, %v1856
      %v1858 = vsel %vm1854, %v1824, 0.0
      %v1859 = vadd.f32 %v1857, %v1858
      %v1860 = vsel %vm1854, %v1825, 0.0
      %v1861 = vadd.f32 %v1859, %v1860
      %v1862 = vsel %vm1854, %v1826, 0.0
      %v1863 = vadd.f32 %v1861, %v1862
      %v1864 = vsel %vm1854, %v1827, 0.0
      %v1865 = vadd.f32 %v1863, %v1864
      %v1866 = vsel %vm1854, %v1828, 0.0
      %v1867 = vadd.f32 %v1865, %v1866
      %v1868 = vsel %vm1854, %v1829, 0.0
      %v1869 = vadd.f32 %v1867, %v1868
      %v1870 = vsel %vm1854, %v1830, 0.0
      %v1871 = vadd.f32 %v1869, %v1870
      %v1872 = vsel %vm1854, %v1831, 0.0
      %v1873 = vadd.f32 %v1871, %v1872
      %v1874 = vsel %vm1854, %v1832, 0.0
      %v1875 = vadd.f32 %v1873, %v1874
      %v1876 = vsel %vm1854, %v1833, 0.0
      %v1877 = vadd.f32 %v1875, %v1876
      %v1878 = vsel %vm1854, %v1834, 0.0
      %v1879 = vadd.f32 %v1877, %v1878
      %v1880 = vsel %vm1854, %v1835, 0.0
      %v1881 = vadd.f32 %v1879, %v1880
      %v1882 = vsel %vm1854, %v1836, 0.0
      %v1883 = vadd.f32 %v1881, %v1882
      %v1884 = vsel %vm1854, %v1837, 0.0
      %v1885 = vadd.f32 %v1883, %v1884
      %v1886 = vsel %vm1854, %v1838, 0.0
      %v1887 = vadd.f32 %v1885, %v1886
      %v1888 = vsel %vm1854, %v1839, 0.0
      %v1889 = vadd.f32 %v1887, %v1888
      %v1890 = vsel %vm1854, %v1840, 0.0
      %v1891 = vadd.f32 %v1889, %v1890
      %v1892 = vsel %vm1854, %v1841, 0.0
      %v1893 = vadd.f32 %v1891, %v1892
      %v1894 = vsel %vm1854, %v1842, 0.0
      %v1895 = vadd.f32 %v1893, %v1894
      %v1896 = vsel %vm1854, %v1843, 0.0
      %v1897 = vadd.f32 %v1895, %v1896
      %v1898 = vsel %vm1854, %v1844, 0.0
      %v1899 = vadd.f32 %v1897, %v1898
      %v1900 = vsel %vm1854, %v1845, 0.0
      %v1901 = vadd.f32 %v1899, %v1900
      %v1902 = vsel %vm1854, %v1846, 0.0
      %v1903 = vadd.f32 %v1901, %v1902
      %v1904 = vsel %vm1854, %v1847, 0.0
      %v1905 = vadd.f32 %v1903, %v1904
      %v1906 = vsel %vm1854, %v1848, 0.0
      %v1907 = vadd.f32 %v1905, %v1906
      %v1908 = vsel %vm1854, %v1849, 0.0
      %v1909 = vadd.f32 %v1907, %v1908
      %v1910 = vsel %vm1854, %v1850, 0.0
      %v1911 = vadd.f32 %v1909, %v1910
      %v1912 = vsel %vm1854, %v1851, 0.0
      %v1913 = vadd.f32 %v1911, %v1912
      %v1914 = vsel %vm1854, %v1852, 0.0
      %v1915 = vadd.f32 %v1913, %v1914
      %v1916 = vsel %vm1854, %v1853, 0.0
      %v1917 = vadd.f32 %v1915, %v1916
      %v1918 = vrot.slane %v1917, 4
      %v1919 = vadd.f32 %v1917, %v1918
      %v1920 = vrot.slane %v1919, 2
      %v1921 = vadd.f32 %v1919, %v1920
      %v1922 = vrot.slane %v1921, 1
      %v1923 = vadd.f32 %v1921, %v1922
      %v1924 = vmul.f32 %v1923, 0.00390625
      %v1925 = vld [vmem:[%s4] sm:$0xff]
      %v1927 = vsel %vm1854, %v1924, 0
      %1929 = vmatprep.subr.mxu0 0.0
      %1930 = vmatpush1.msra.mxu0 0.0
      %1931 = vmatprep.subr.mxu0 0.0
      %1932 = vmatpush1.msra.mxu0 0.0
      %1933 = vmatprep.subr.mxu0 0.0
      %1934 = vmatpush1.msra.mxu0 0.0
      %1935 = vmatprep.subr.mxu0 0.0
      %1936 = vmatpush1.msra.mxu0 0.0
      %1937 = vmatprep.subr.mxu0 0.0
      %1938 = vmatpush1.msra.mxu0 0.0
      %1939 = vmatprep.subr.mxu0 0.0
      %1940 = vmatpush1.msra.mxu0 0.0
      %1941 = vmatprep.subr.mxu0 0.0
      %1942 = vmatpush1.msra.mxu0 0.0
      %1943 = vmatprep.subr.mxu0 0.0
      %1944 = vmatpush1.msra.mxu0 0.0
      %1945 = vmatprep.subr.mxu0 0.0
      %1946 = vmatpush1.msra.mxu0 0.0
      %1947 = vmatprep.subr.mxu0 0.0
      %1948 = vmatpush1.msra.mxu0 0.0
      %1949 = vmatprep.subr.mxu0 0.0
      %1950 = vmatpush1.msra.mxu0 0.0
      %1951 = vmatprep.subr.mxu0 0.0
      %1952 = vmatpush1.msra.mxu0 0.0
      %1953 = vmatprep.subr.mxu0 0.0
      %1954 = vmatpush1.msra.mxu0 0.0
      %1955 = vmatprep.subr.mxu0 0.0
      %1956 = vmatpush1.msra.mxu0 0.0
      %1957 = vmatprep.subr.mxu0 0.0
      %1958 = vmatpush1.msra.mxu0 0.0
      %1959 = vmatprep.subr.mxu0 0.0
      %1960 = vmatpush1.msra.mxu0 %v1925
      %1961 = vmatprep.subr.mxu0 0.0
      %1962 = vmatpush2.msra.mxu0 0.0
      %1963 = vmatprep.subr.mxu0 0.0
      %1964 = vmatpush2.msra.mxu0 0.0
      %1965 = vmatprep.subr.mxu0 0.0
      %1966 = vmatpush2.msra.mxu0 0.0
      %1967 = vmatprep.subr.mxu0 0.0
      %1968 = vmatpush2.msra.mxu0 0.0
      %1969 = vmatprep.subr.mxu0 0.0
      %1970 = vmatpush2.msra.mxu0 0.0
      %1971 = vmatprep.subr.mxu0 0.0
      %1972 = vmatpush2.msra.mxu0 0.0
      %1973 = vmatprep.subr.mxu0 0.0
      %1974 = vmatpush2.msra.mxu0 0.0
      %1975 = vmatprep.subr.mxu0 0.0
      %1976 = vmatpush2.msra.mxu0 0.0
      %1977 = vmatprep.subr.mxu0 0.0
      %1978 = vmatpush2.msra.mxu0 0.0
      %1979 = vmatprep.subr.mxu0 0.0
      %1980 = vmatpush2.msra.mxu0 0.0
      %1981 = vmatprep.subr.mxu0 0.0
      %1982 = vmatpush2.msra.mxu0 0.0
      %1983 = vmatprep.subr.mxu0 0.0
      %1984 = vmatpush2.msra.mxu0 0.0
      %1985 = vmatprep.subr.mxu0 0.0
      %1986 = vmatpush2.msra.mxu0 0.0
      %1987 = vmatprep.subr.mxu0 0.0
      %1988 = vmatpush2.msra.mxu0 0.0
      %1989 = vmatprep.subr.mxu0 0.0
      %1990 = vmatpush2.msra.mxu0 0.0
      %1991 = vmatprep.subr.mxu0 0.0
      %1992 = vmatpush2.msra.mxu0 0.0
      %1993 = vmatprep.mubr.f32.mxu0 0.0
      %1994 = vmatmul.mubr.f32.gmra.mxu0 %v1927
      %v1995 = vpop.f32.mrf.mxu0
      %v1996 = vadd.f32 0.0, %v1995
      %v1997 = vpop.f32.mrf.mxu0
      %1998 = vdwg.mxu0
      %v1999 = vsub.f32 0.0, %v1996
      %v2000 = vmul.f32 %v1999, 1.442695
      %v2001 = vpow.pop %v2000
      %v2002 = vadd.f32 %v2001, 1.0
      %v2003 = vrcp.pop %v2002
      %v2004 = vmul.f32 1.0, %v2003
      %v2005 = vlaneseq
      %v2006 = vshrl.u32 %v2005, 7
      %v2007 = vsub.s32 0, %v2006
      %v2008 = vrot.slane %v2004, %v2007
      %v2009 = vmul.f32 %v1822, %v2008
      %v2010 = vmul.f32 %v1823, %v2008
      %v2011 = vmul.f32 %v1824, %v2008
      %v2012 = vmul.f32 %v1825, %v2008
      %v2013 = vmul.f32 %v1826, %v2008
      %v2014 = vmul.f32 %v1827, %v2008
      %v2015 = vmul.f32 %v1828, %v2008
      %v2016 = vmul.f32 %v1829, %v2008
      %v2017 = vmul.f32 %v1830, %v2008
      %v2018 = vmul.f32 %v1831, %v2008
      %v2019 = vmul.f32 %v1832, %v2008
      %v2020 = vmul.f32 %v1833, %v2008
      %v2021 = vmul.f32 %v1834, %v2008
      %v2022 = vmul.f32 %v1835, %v2008
      %v2023 = vmul.f32 %v1836, %v2008
      %v2024 = vmul.f32 %v1837, %v2008
      %v2025 = vmul.f32 %v1838, %v2008
      %v2026 = vmul.f32 %v1839, %v2008
      %v2027 = vmul.f32 %v1840, %v2008
      %v2028 = vmul.f32 %v1841, %v2008
      %v2029 = vmul.f32 %v1842, %v2008
      %v2030 = vmul.f32 %v1843, %v2008
      %v2031 = vmul.f32 %v1844, %v2008
      %v2032 = vmul.f32 %v1845, %v2008
      %v2033 = vmul.f32 %v1846, %v2008
      %v2034 = vmul.f32 %v1847, %v2008
      %v2035 = vmul.f32 %v1848, %v2008
      %v2036 = vmul.f32 %v1849, %v2008
      %v2037 = vmul.f32 %v1850, %v2008
      %v2038 = vmul.f32 %v1851, %v2008
      %v2039 = vmul.f32 %v1852, %v2008
      %v2040 = vmul.f32 %v1853, %v2008
      %v2041 = vpack.c.bf16 %v2009, %v2009
      %v2042 = vpack.c.bf16 %v2010, %v2010
      %v2043 = vpack.c.bf16 %v2011, %v2011
      %v2044 = vpack.c.bf16 %v2012, %v2012
      %v2045 = vpack.c.bf16 %v2013, %v2013
      %v2046 = vpack.c.bf16 %v2014, %v2014
      %v2047 = vpack.c.bf16 %v2015, %v2015
      %v2048 = vpack.c.bf16 %v2016, %v2016
      %v2049 = vpack.c.bf16 %v2017, %v2017
      %v2050 = vpack.c.bf16 %v2018, %v2018
      %v2051 = vpack.c.bf16 %v2019, %v2019
      %v2052 = vpack.c.bf16 %v2020, %v2020
      %v2053 = vpack.c.bf16 %v2021, %v2021
      %v2054 = vpack.c.bf16 %v2022, %v2022
      %v2055 = vpack.c.bf16 %v2023, %v2023
      %v2056 = vpack.c.bf16 %v2024, %v2024
      %v2057 = vpack.c.bf16 %v2025, %v2025
      %v2058 = vpack.c.bf16 %v2026, %v2026
      %v2059 = vpack.c.bf16 %v2027, %v2027
      %v2060 = vpack.c.bf16 %v2028, %v2028
      %v2061 = vpack.c.bf16 %v2029, %v2029
      %v2062 = vpack.c.bf16 %v2030, %v2030
      %v2063 = vpack.c.bf16 %v2031, %v2031
      %v2064 = vpack.c.bf16 %v2032, %v2032
      %v2065 = vpack.c.bf16 %v2033, %v2033
      %v2066 = vpack.c.bf16 %v2034, %v2034
      %v2067 = vpack.c.bf16 %v2035, %v2035
      %v2068 = vpack.c.bf16 %v2036, %v2036
      %v2069 = vpack.c.bf16 %v2037, %v2037
      %v2070 = vpack.c.bf16 %v2038, %v2038
      %v2071 = vpack.c.bf16 %v2039, %v2039
      %v2072 = vpack.c.bf16 %v2040, %v2040
      %vm2073 = vcmask 60416
      %2074 = vst.msk [vmem:[%s224] sm:$0xf] %vm2073, %v2041
      %2075 = vst.msk [vmem:[%s224 + $0x4] sm:$0xf] %vm2073, %v2042
      %2076 = vst.msk [vmem:[%s224 + $0x8] sm:$0xf] %vm2073, %v2043
      %2077 = vst.msk [vmem:[%s224 + $0xc] sm:$0xf] %vm2073, %v2044
      %2078 = vst.msk [vmem:[%s224 + $0x10] sm:$0xf] %vm2073, %v2045
      %2079 = vst.msk [vmem:[%s224 + $0x14] sm:$0xf] %vm2073, %v2046
      %2080 = vst.msk [vmem:[%s224 + $0x18] sm:$0xf] %vm2073, %v2047
      %2081 = vst.msk [vmem:[%s224 + $0x1c] sm:$0xf] %vm2073, %v2048
      %2082 = vst.msk [vmem:[%s224 + $0x20] sm:$0xf] %vm2073, %v2049
      %2083 = vst.msk [vmem:[%s224 + $0x24] sm:$0xf] %vm2073, %v2050
      %2084 = vst.msk [vmem:[%s224 + $0x28] sm:$0xf] %vm2073, %v2051
      %2085 = vst.msk [vmem:[%s224 + $0x2c] sm:$0xf] %vm2073, %v2052
      %2086 = vst.msk [vmem:[%s224 + $0x30] sm:$0xf] %vm2073, %v2053
      %2087 = vst.msk [vmem:[%s224 + $0x34] sm:$0xf] %vm2073, %v2054
      %2088 = vst.msk [vmem:[%s224 + $0x38] sm:$0xf] %vm2073, %v2055
      %2089 = vst.msk [vmem:[%s224 + $0x3c] sm:$0xf] %vm2073, %v2056
      %2090 = vst.msk [vmem:[%s224 + $0x40] sm:$0xf] %vm2073, %v2057
      %2091 = vst.msk [vmem:[%s224 + $0x44] sm:$0xf] %vm2073, %v2058
      %2092 = vst.msk [vmem:[%s224 + $0x48] sm:$0xf] %vm2073, %v2059
      %2093 = vst.msk [vmem:[%s224 + $0x4c] sm:$0xf] %vm2073, %v2060
      %2094 = vst.msk [vmem:[%s224 + $0x50] sm:$0xf] %vm2073, %v2061
      %2095 = vst.msk [vmem:[%s224 + $0x54] sm:$0xf] %vm2073, %v2062
      %2096 = vst.msk [vmem:[%s224 + $0x58] sm:$0xf] %vm2073, %v2063
      %2097 = vst.msk [vmem:[%s224 + $0x5c] sm:$0xf] %vm2073, %v2064
      %2098 = vst.msk [vmem:[%s224 + $0x60] sm:$0xf] %vm2073, %v2065
      %2099 = vst.msk [vmem:[%s224 + $0x64] sm:$0xf] %vm2073, %v2066
      %2100 = vst.msk [vmem:[%s224 + $0x68] sm:$0xf] %vm2073, %v2067
      %2101 = vst.msk [vmem:[%s224 + $0x6c] sm:$0xf] %vm2073, %v2068
      %2102 = vst.msk [vmem:[%s224 + $0x70] sm:$0xf] %vm2073, %v2069
      %2103 = vst.msk [vmem:[%s224 + $0x74] sm:$0xf] %vm2073, %v2070
      %2104 = vst.msk [vmem:[%s224 + $0x78] sm:$0xf] %vm2073, %v2071
      %2105 = vst.msk [vmem:[%s224 + $0x7c] sm:$0xf] %vm2073, %v2072
      %p2106 = scmp.lt.s32.totalorder %s16, 1
      %s2107 = scalar_select %p2106, %s16, 1
      %s2108 = smul.addr %s2107, 32
      %s2109 = smul.addr %s2108, 4
      %s2110 = scalar_lea.vmem %s5, %s2109
      // Predicated region
      $region41: #{inception_mixed.8} parent=39 // pred_check
        %p2111 = pneg %p144
      $region42: #{inception_mixed.8} parent=39 // pred_check_branch
        %2113 = sbr.rel (%p2111) target = $region44
      $region43: #{inception_mixed.8} parent=39 // pred_region
        _
      $region44: #{inception_mixed.8} parent=39 // pred_fallthru
        _
    $region40: #{inception_mixed.8} parent=5 // pred_fallthru
      _
    %p2114 = scmp.le.s32.totalorder 2, %s11
    // Predicated region
    $region45: #{inception_mixed.8} parent=5 // pred_check
      %p2115 = pneg %p2114
    $region46: #{inception_mixed.8} parent=5 // pred_check_branch
      %2117 = sbr.rel (%p2115) target = $region48
    $region47: #{inception_mixed.8} parent=5 // pred_region
      %s2118 = ssub.s32 %s11, 2
      // Predicated region
      $region49: #{inception_mixed.8} parent=47 // pred_check
        %p2119 = pneg %p150
      $region50: #{inception_mixed.8} parent=47 // pred_check_branch
        %2121 = sbr.rel (%p2119) target = $region52
      $region51: #{inception_mixed.8} parent=47 // pred_region
        %p2122 = scmp.lt.s32.totalorder %s17, 1
        %s2123 = scalar_select %p2122, %s17, 1
        %s2124 = smul.addr %s2123, 32
        %s2125 = smul.addr %s2124, 4
        %s2126 = scalar_lea.vmem %s5, %s2125
      $region52: #{inception_mixed.8} parent=47 // pred_fallthru
        _
    $region48: #{inception_mixed.8} parent=5 // pred_fallthru
      _
  $region6: #{inception_mixed.8} parent=0 // loop_footer
    %s15 = sadd.s32 1, %s11
  $region7: #{inception_mixed.8} parent=0 // loop_footer_branch
    %10 = sbr.rel target = $region3
  $region8: #{inception_mixed.8} parent=0 // loop_exit
    _

// kernel: inception_mixed.6
$region0: #{inception_mixed.6}
  #allocation0 [shape = 'u32[]', space=smem, size = 0x4, offset = 0x4, fixed_abs, tag = 'smem constant byte address 0x4 - core index']
  #allocation1 [shape = 'u32[144,128]{1,0:T(1,128)}', space=vmem, size = 0x12000, scoped, tag = 'internal scratch']
  #allocation2 [shape = 'f32[4,10,10,8]{3,2,1,0:T(8,128)}', space=vmem, size = 0x50000, scoped, tag = 'scratch operand']
  #allocation3 [shape = 'f32[6,8,8,8]{3,2,1,0:T(8,128)}', space=vmem, size = 0x30000, scoped, tag = 'scratch operand']
  %s0 = inlined_call_operand.vmem [shape: bf16[2,4,8,8,8], index: 0, kind: input, shape index: {}]
  %s1 = inlined_call_operand.vmem [shape: f32[72,8], index: 1, kind: input, shape index: {}]
  %s2 = inlined_call_operand.vmem [shape: f32[1,8], index: 2, kind: input, shape index: {}]
  %s3 = inlined_call_operand.vmem [shape: f32[1,8], index: 3, kind: input, shape index: {}]
  %s4 = inlined_call_operand.vmem [shape: f32[24,8], index: 4, kind: input, shape index: {}]
  %s5 = inlined_call_operand.vmem [shape: f32[1,8], index: 5, kind: input, shape index: {}]
  %s6 = inlined_call_operand.vmem [shape: f32[8,8], index: 6, kind: input, shape index: {}]
  %s7 = inlined_call_operand.vmem [shape: bf16[2,4,8,8,8], index: 7, kind: output, shape index: {}]
  %s8 = sld [smem:[#allocation0]]
  $region61: #{inception_mixed.6} parent=0
    _
  %s10 = ssub.s32 1, %s8
  %s11 = scalar_select 0, %s10, %s8
  loop: start=0, step=1, limit=4
  $region2: #{inception_mixed.6} parent=0 // loop_pre_header
    _
  $region3: #{inception_mixed.6} parent=0 // loop_header
    %s13 = sphi 0, %s17
    %p14 = scmp.ge.s32.totalorder %s13, 4
    %s23 = sphi 0, %s25
    %s26 = sphi 0, %s23
    %s27 = sphi 0, %s26
    %s43 = sphi 0, %s27
    %s47 = sphi 0, %s47
    %s49 = sphi 0, %s47
    %s50 = sphi 0, %s49
    %s64 = sphi 0, %s50
    %s68 = sphi 0, %s68
    %s70 = sphi 0, %s68
    %s71 = sphi 0, %s70
    %s85 = sphi 0, %s71
    %s89 = sphi 0, %s89
    %s91 = sphi 0, %s89
    %s92 = sphi 0, %s91
    %s106 = sphi 0, %s92
    %s110 = sphi 0, %s110
    %s112 = sphi 0, %s110
    %s113 = sphi 0, %s112
    %s127 = sphi 0, %s113
    %s131 = sphi 0, %s131
    %s133 = sphi 0, %s131
    %s134 = sphi 0, %s133
    %s148 = sphi 0, %s134
    %s152 = sphi 0, %s152
    %s154 = sphi 0, %s152
    %s155 = sphi 0, %s154
    %s169 = sphi 0, %s155
    %s175 = sphi 0, %s177
    %s178 = sphi 0, %s175
    %s179 = sphi 0, %s178
    %s195 = sphi 0, %s179
  $region4: #{inception_mixed.6} parent=0 // loop_header_branch
    %16 = sbr.rel (%p14) target = $region8
  $region5: #{inception_mixed.6} parent=0 // loop_body
    %s18 = ssub.s32 %s13, 1
    %s19 = ssub.s32 %s13, 2
    %s20 = sadd.s32 %s13, 1
    %s21 = ssub.s32 %s13, %s20
    %p22 = scmp.eq.s32.totalorder %s21, 0
    %s24 = sadd.s32 %s23, 1
    %s25 = scalar_select %p22, %s23, %s24
    %p28 = pneg %p22
    %p29 = scmp.eq.s32.totalorder %s13, 1
    %p30 = por %p28, %p29
    %p31 = scmp.ne.s32.totalorder %s23, %s26
    %p32 = scmp.eq.s32.totalorder %s13, 0
    %p33 = por %p31, %p32
    %p34 = scmp.ne.s32.totalorder %s23, %s26
    %p35 = scmp.eq.s32.totalorder %s18, 1
    %p36 = por %p34, %p35
    %p37 = scmp.ne.s32.totalorder %s26, %s27
    %p38 = scmp.eq.s32.totalorder %s18, 0
    %p39 = por %p37, %p38
    %p40 = scmp.ne.s32.totalorder %s26, %s27
    %p41 = scmp.eq.s32.totalorder %s19, 1
    %p42 = por %p40, %p41
    %p44 = scmp.ne.s32.totalorder %s27, %s43
    %p45 = scmp.eq.s32.totalorder %s19, 0
    %p46 = por %p44, %p45
    %s48 = sadd.s32 %s47, 1
    %p51 = scmp.eq.s32.totalorder %s13, 1
    %p52 = scmp.ne.s32.totalorder %s47, %s49
    %p53 = scmp.eq.s32.totalorder %s13, 0
    %p54 = por %p52, %p53
    %p55 = scmp.ne.s32.totalorder %s47, %s49
    %p56 = scmp.eq.s32.totalorder %s18, 1
    %p57 = por %p55, %p56
    %p58 = scmp.ne.s32.totalorder %s49, %s50
    %p59 = scmp.eq.s32.totalorder %s18, 0
    %p60 = por %p58, %p59
    %p61 = scmp.ne.s32.totalorder %s49, %s50
    %p62 = scmp.eq.s32.totalorder %s19, 1
    %p63 = por %p61, %p62
    %p65 = scmp.ne.s32.totalorder %s50, %s64
    %p66 = scmp.eq.s32.totalorder %s19, 0
    %p67 = por %p65, %p66
    %s69 = sadd.s32 %s68, 1
    %p72 = scmp.eq.s32.totalorder %s13, 1
    %p73 = scmp.ne.s32.totalorder %s68, %s70
    %p74 = scmp.eq.s32.totalorder %s13, 0
    %p75 = por %p73, %p74
    %p76 = scmp.ne.s32.totalorder %s68, %s70
    %p77 = scmp.eq.s32.totalorder %s18, 1
    %p78 = por %p76, %p77
    %p79 = scmp.ne.s32.totalorder %s70, %s71
    %p80 = scmp.eq.s32.totalorder %s18, 0
    %p81 = por %p79, %p80
    %p82 = scmp.ne.s32.totalorder %s70, %s71
    %p83 = scmp.eq.s32.totalorder %s19, 1
    %p84 = por %p82, %p83
    %p86 = scmp.ne.s32.totalorder %s71, %s85
    %p87 = scmp.eq.s32.totalorder %s19, 0
    %p88 = por %p86, %p87
    %s90 = sadd.s32 %s89, 1
    %p93 = scmp.eq.s32.totalorder %s13, 1
    %p94 = scmp.ne.s32.totalorder %s89, %s91
    %p95 = scmp.eq.s32.totalorder %s13, 0
    %p96 = por %p94, %p95
    %p97 = scmp.ne.s32.totalorder %s89, %s91
    %p98 = scmp.eq.s32.totalorder %s18, 1
    %p99 = por %p97, %p98
    %p100 = scmp.ne.s32.totalorder %s91, %s92
    %p101 = scmp.eq.s32.totalorder %s18, 0
    %p102 = por %p100, %p101
    %p103 = scmp.ne.s32.totalorder %s91, %s92
    %p104 = scmp.eq.s32.totalorder %s19, 1
    %p105 = por %p103, %p104
    %p107 = scmp.ne.s32.totalorder %s92, %s106
    %p108 = scmp.eq.s32.totalorder %s19, 0
    %p109 = por %p107, %p108
    %s111 = sadd.s32 %s110, 1
    %p114 = scmp.eq.s32.totalorder %s13, 1
    %p115 = scmp.ne.s32.totalorder %s110, %s112
    %p116 = scmp.eq.s32.totalorder %s13, 0
    %p117 = por %p115, %p116
    %p118 = scmp.ne.s32.totalorder %s110, %s112
    %p119 = scmp.eq.s32.totalorder %s18, 1
    %p120 = por %p118, %p119
    %p121 = scmp.ne.s32.totalorder %s112, %s113
    %p122 = scmp.eq.s32.totalorder %s18, 0
    %p123 = por %p121, %p122
    %p124 = scmp.ne.s32.totalorder %s112, %s113
    %p125 = scmp.eq.s32.totalorder %s19, 1
    %p126 = por %p124, %p125
    %p128 = scmp.ne.s32.totalorder %s113, %s127
    %p129 = scmp.eq.s32.totalorder %s19, 0
    %p130 = por %p128, %p129
    %s132 = sadd.s32 %s131, 1
    %p135 = scmp.eq.s32.totalorder %s13, 1
    %p136 = scmp.ne.s32.totalorder %s131, %s133
    %p137 = scmp.eq.s32.totalorder %s13, 0
    %p138 = por %p136, %p137
    %p139 = scmp.ne.s32.totalorder %s131, %s133
    %p140 = scmp.eq.s32.totalorder %s18, 1
    %p141 = por %p139, %p140
    %p142 = scmp.ne.s32.totalorder %s133, %s134
    %p143 = scmp.eq.s32.totalorder %s18, 0
    %p144 = por %p142, %p143
    %p145 = scmp.ne.s32.totalorder %s133, %s134
    %p146 = scmp.eq.s32.totalorder %s19, 1
    %p147 = por %p145, %p146
    %p149 = scmp.ne.s32.totalorder %s134, %s148
    %p150 = scmp.eq.s32.totalorder %s19, 0
    %p151 = por %p149, %p150
    %s153 = sadd.s32 %s152, 1
    %p156 = scmp.eq.s32.totalorder %s13, 1
    %p157 = scmp.ne.s32.totalorder %s152, %s154
    %p158 = scmp.eq.s32.totalorder %s13, 0
    %p159 = por %p157, %p158
    %p160 = scmp.ne.s32.totalorder %s152, %s154
    %p161 = scmp.eq.s32.totalorder %s18, 1
    %p162 = por %p160, %p161
    %p163 = scmp.ne.s32.totalorder %s154, %s155
    %p164 = scmp.eq.s32.totalorder %s18, 0
    %p165 = por %p163, %p164
    %p166 = scmp.ne.s32.totalorder %s154, %s155
    %p167 = scmp.eq.s32.totalorder %s19, 1
    %p168 = por %p166, %p167
    %p170 = scmp.ne.s32.totalorder %s155, %s169
    %p171 = scmp.eq.s32.totalorder %s19, 0
    %p172 = por %p170, %p171
    %s173 = ssub.s32 %s13, %s20
    %p174 = scmp.eq.s32.totalorder %s173, 0
    %s176 = sadd.s32 %s175, 1
    %s177 = scalar_select %p174, %s175, %s176
    %p180 = pneg %p174
    %p181 = scmp.eq.s32.totalorder %s13, 1
    %p182 = por %p180, %p181
    %p183 = scmp.ne.s32.totalorder %s175, %s178
    %p184 = scmp.eq.s32.totalorder %s13, 0
    %p185 = por %p183, %p184
    %p186 = scmp.ne.s32.totalorder %s175, %s178
    %p187 = scmp.eq.s32.totalorder %s18, 1
    %p188 = por %p186, %p187
    %p189 = scmp.ne.s32.totalorder %s178, %s179
    %p190 = scmp.eq.s32.totalorder %s18, 0
    %p191 = por %p189, %p190
    %p192 = scmp.ne.s32.totalorder %s178, %s179
    %p193 = scmp.eq.s32.totalorder %s19, 1
    %p194 = por %p192, %p193
    %p196 = scmp.ne.s32.totalorder %s179, %s195
    %p197 = scmp.eq.s32.totalorder %s19, 0
    %p198 = por %p196, %p197
    %p199 = scmp.le.s32.totalorder 1, %s13
    %p200 = scmp.lt.s32.totalorder %s13, 3
    %p201 = pnand %p199, %p200
    %p202 = pneg %p201
    // Predicated region
    $region9: #{inception_mixed.6} parent=5 // pred_check
      _
    $region10: #{inception_mixed.6} parent=5 // pred_check_branch
      %204 = sbr.rel (%p201) target = $region12
    $region11: #{inception_mixed.6} parent=5 // pred_region
      %s205 = ssub.s32 %s13, 1
      // Predicated region
      $region13: #{inception_mixed.6} parent=11 // pred_check
        %p206 = pneg %p60
      $region14: #{inception_mixed.6} parent=11 // pred_check_branch
        %208 = sbr.rel (%p206) target = $region16
      $region15: #{inception_mixed.6} parent=11 // pred_region
        _
      $region16: #{inception_mixed.6} parent=11 // pred_fallthru
        _
      // Predicated region
      $region17: #{inception_mixed.6} parent=11 // pred_check
        %p209 = pneg %p81
      $region18: #{inception_mixed.6} parent=11 // pred_check_branch
        %211 = sbr.rel (%p209) target = $region20
      $region19: #{inception_mixed.6} parent=11 // pred_region
        _
      $region20: #{inception_mixed.6} parent=11 // pred_fallthru
        _
      // Predicated region
      $region21: #{inception_mixed.6} parent=11 // pred_check
        %p212 = pneg %p102
      $region22: #{inception_mixed.6} parent=11 // pred_check_branch
        %214 = sbr.rel (%p212) target = $region24
      $region23: #{inception_mixed.6} parent=11 // pred_region
        _
      $region24: #{inception_mixed.6} parent=11 // pred_fallthru
        _
      // Predicated region
      $region25: #{inception_mixed.6} parent=11 // pred_check
        %p215 = pneg %p123
      $region26: #{inception_mixed.6} parent=11 // pred_check_branch
        %217 = sbr.rel (%p215) target = $region28
      $region27: #{inception_mixed.6} parent=11 // pred_region
        _
      $region28: #{inception_mixed.6} parent=11 // pred_fallthru
        _
      // Predicated region
      $region29: #{inception_mixed.6} parent=11 // pred_check
        %p218 = pneg %p144
      $region30: #{inception_mixed.6} parent=11 // pred_check_branch
        %220 = sbr.rel (%p218) target = $region32
      $region31: #{inception_mixed.6} parent=11 // pred_region
        _
      $region32: #{inception_mixed.6} parent=11 // pred_fallthru
        _
      // Predicated region
      $region33: #{inception_mixed.6} parent=11 // pred_check
        %p221 = pneg %p165
      $region34: #{inception_mixed.6} parent=11 // pred_check_branch
        %223 = sbr.rel (%p221) target = $region36
      $region35: #{inception_mixed.6} parent=11 // pred_region
        _
      $region36: #{inception_mixed.6} parent=11 // pred_fallthru
        _
    $region12: #{inception_mixed.6} parent=5 // pred_fallthru
      _
    %p224 = scmp.lt.s32.totalorder %s13, 2
    // Predicated region
    $region37: #{inception_mixed.6} parent=5 // pred_check
      %p225 = pneg %p224
    $region38: #{inception_mixed.6} parent=5 // pred_check_branch
      %227 = sbr.rel (%p225) target = $region40
    $region39: #{inception_mixed.6} parent=5 // pred_region
      // Predicated region
      $region41: #{inception_mixed.6} parent=39 // pred_check
        %p228 = pneg %p33
      $region42: #{inception_mixed.6} parent=39 // pred_check_branch
        %230 = sbr.rel (%p228) target = $region44
      $region43: #{inception_mixed.6} parent=39 // pred_region
        %p231 = scmp.lt.s32.totalorder %s13, 1
        %s232 = scalar_select %p231, %s13, 1
        %s233 = smul.addr %s232, 32
        %s234 = smul.addr %s233, 4
        %s235 = scalar_lea.vmem %s0, %s234
      $region44: #{inception_mixed.6} parent=39 // pred_fallthru
        _
    $region40: #{inception_mixed.6} parent=5 // pred_fallthru
      _
    %p236 = scmp.le.s32.totalorder 1, %s13
    %p237 = scmp.lt.s32.totalorder %s13, 3
    %p238 = pnand %p236, %p237
    %p239 = pneg %p238
    // Predicated region
    $region45: #{inception_mixed.6} parent=5 // pred_check
      _
    $region46: #{inception_mixed.6} parent=5 // pred_check_branch
      %241 = sbr.rel (%p238) target = $region48
    $region47: #{inception_mixed.6} parent=5 // pred_region
      %s242 = ssub.s32 %s13, 1
      %p243 = scmp.lt.s32.totalorder %s18, 1
      %s244 = scalar_select %p243, %s18, 1
      %s245 = smul.addr %s244, 32
      %s246 = smul.addr %s245, 4
      %s247 = scalar_lea.vmem %s0, %s246
      %p248 = pneg %p39
      %p249 = pneg %p36
      %p250 = pneg %p60
      %p251 = pneg %p57
      %p252 = pneg %p81
      %p253 = pneg %p78
      %p254 = pneg %p102
      %p255 = pneg %p99
      %p256 = pneg %p123
      %p257 = pneg %p120
      %p258 = pneg %p144
      %p259 = pneg %p141
      %p260 = pneg %p165
      %p261 = pneg %p162
      %p262 = pneg %p191
      %p263 = pneg %p188
      %p264 = scmp.lt.s32.totalorder %s18, 1
      %s265 = scalar_select %p264, %s18, 1
      %s266 = smul.addr %s265, 32
      %s267 = smul.addr %s266, 4
      %s268 = scalar_lea.vmem %s7, %s267
      %p269 = scmp.lt.s32.totalorder %s18, 1
      %s270 = scalar_select %p269, %s18, 1
      %s271 = smul.addr %s270, 32
      %s272 = smul.addr %s271, 4
      %s273 = scalar_lea.vmem %s0, %s272
      %p274 = scmp.lt.s32.totalorder %s18, 1
      %s275 = scalar_select %p274, %s18, 1
      %s276 = smul.addr %s275, 32
      %s277 = smul.addr %s276, 4
      %s278 = scalar_lea.vmem %s7, %s277
      %vm279 = vcmask 64512
      %280 = vst.msk [vmem:[#allocation2] sm:$0xff] %vm279, 0.0
      %vm281 = vcmask 58368
      %282 = vst.msk [vmem:[#allocation2 + $0x8] sm:$0x3] %vm281, 0.0
      %283 = vst.msk [vmem:[#allocation2 + $0xa0] sm:$0xff] %vm279, 0.0
      %284 = vst.msk [vmem:[#allocation2 + $0xa8] sm:$0x3] %vm281, 0.0
      %285 = vst.msk [vmem:[#allocation2 + $0x140] sm:$0xff] %vm279, 0.0
      %286 = vst.msk [vmem:[#allocation2 + $0x148] sm:$0x3] %vm281, 0.0
      %287 = vst.msk [vmem:[#allocation2 + $0x1e0] sm:$0xff] %vm279, 0.0
      %288 = vst.msk [vmem:[#allocation2 + $0x1e8] sm:$0x3] %vm281, 0.0
      %s289 = scalar_lea.vmem [#allocation2], 144
      %290 = vst.msk [vmem:[%s289] sm:$0xff] %vm279, 0.0
      %291 = vst.msk [vmem:[%s289 + $0x8] sm:$0x3] %vm281, 0.0
      %292 = vst.msk [vmem:[%s289 + $0xa0] sm:$0xff] %vm279, 0.0
      %293 = vst.msk [vmem:[%s289 + $0xa8] sm:$0x3] %vm281, 0.0
      %294 = vst.msk [vmem:[%s289 + $0x140] sm:$0xff] %vm279, 0.0
      %295 = vst.msk [vmem:[%s289 + $0x148] sm:$0x3] %vm281, 0.0
      %296 = vst.msk [vmem:[%s289 + $0x1e0] sm:$0xff] %vm279, 0.0
      %297 = vst.msk [vmem:[%s289 + $0x1e8] sm:$0x3] %vm281, 0.0
      %s298 = scalar_lea.vmem [#allocation2], 16
      %vm299 = vcmask 57344
      %300 = vst.msk [vmem:[%s298] sm:$0x1] %vm299, 0.0
      %301 = vst.msk [vmem:[%s298 + $0x10] sm:$0x1] %vm299, 0.0
      %302 = vst.msk [vmem:[%s298 + $0x20] sm:$0x1] %vm299, 0.0
      %303 = vst.msk [vmem:[%s298 + $0x30] sm:$0x1] %vm299, 0.0
      %304 = vst.msk [vmem:[%s298 + $0x40] sm:$0x1] %vm299, 0.0
      %305 = vst.msk [vmem:[%s298 + $0x50] sm:$0x1] %vm299, 0.0
      %306 = vst.msk [vmem:[%s298 + $0x60] sm:$0x1] %vm299, 0.0
      %307 = vst.msk [vmem:[%s298 + $0x70] sm:$0x1] %vm299, 0.0
      %308 = vst.msk [vmem:[%s298 + $0xa0] sm:$0x1] %vm299, 0.0
      %309 = vst.msk [vmem:[%s298 + $0xb0] sm:$0x1] %vm299, 0.0
      %310 = vst.msk [vmem:[%s298 + $0xc0] sm:$0x1] %vm299, 0.0
      %311 = vst.msk [vmem:[%s298 + $0xd0] sm:$0x1] %vm299, 0.0
      %312 = vst.msk [vmem:[%s298 + $0xe0] sm:$0x1] %vm299, 0.0
      %313 = vst.msk [vmem:[%s298 + $0xf0] sm:$0x1] %vm299, 0.0
      %314 = vst.msk [vmem:[%s298 + $0x100] sm:$0x1] %vm299, 0.0
      %315 = vst.msk [vmem:[%s298 + $0x110] sm:$0x1] %vm299, 0.0
      %316 = vst.msk [vmem:[%s298 + $0x140] sm:$0x1] %vm299, 0.0
      %317 = vst.msk [vmem:[%s298 + $0x150] sm:$0x1] %vm299, 0.0
      %318 = vst.msk [vmem:[%s298 + $0x160] sm:$0x1] %vm299, 0.0
      %319 = vst.msk [vmem:[%s298 + $0x170] sm:$0x1] %vm299, 0.0
      %320 = vst.msk [vmem:[%s298 + $0x180] sm:$0x1] %vm299, 0.0
      %321 = vst.msk [vmem:[%s298 + $0x190] sm:$0x1] %vm299, 0.0
      %322 = vst.msk [vmem:[%s298 + $0x1a0] sm:$0x1] %vm299, 0.0
      %323 = vst.msk [vmem:[%s298 + $0x1b0] sm:$0x1] %vm299, 0.0
      %324 = vst.msk [vmem:[%s298 + $0x1e0] sm:$0x1] %vm299, 0.0
      %325 = vst.msk [vmem:[%s298 + $0x1f0] sm:$0x1] %vm299, 0.0
      %326 = vst.msk [vmem:[%s298 + $0x200] sm:$0x1] %vm299, 0.0
      %327 = vst.msk [vmem:[%s298 + $0x210] sm:$0x1] %vm299, 0.0
      %328 = vst.msk [vmem:[%s298 + $0x220] sm:$0x1] %vm299, 0.0
      %329 = vst.msk [vmem:[%s298 + $0x230] sm:$0x1] %vm299, 0.0
      %330 = vst.msk [vmem:[%s298 + $0x240] sm:$0x1] %vm299, 0.0
      %331 = vst.msk [vmem:[%s298 + $0x250] sm:$0x1] %vm299, 0.0
      %332 = vst.msk [vmem:[%s298 + $0x9] sm:$0x1] %vm299, 0.0
      %333 = vst.msk [vmem:[%s298 + $0x19] sm:$0x1] %vm299, 0.0
      %334 = vst.msk [vmem:[%s298 + $0x29] sm:$0x1] %vm299, 0.0
      %335 = vst.msk [vmem:[%s298 + $0x39] sm:$0x1] %vm299, 0.0
      %336 = vst.msk [vmem:[%s298 + $0x49] sm:$0x1] %vm299, 0.0
      %337 = vst.msk [vmem:[%s298 + $0x59] sm:$0x1] %vm299, 0.0
      %338 = vst.msk [vmem:[%s298 + $0x69] sm:$0x1] %vm299, 0.0
      %339 = vst.msk [vmem:[%s298 + $0x79] sm:$0x1] %vm299, 0.0
      %340 = vst.msk [vmem:[%s298 + $0xa9] sm:$0x1] %vm299, 0.0
      %341 = vst.msk [vmem:[%s298 + $0xb9] sm:$0x1] %vm299, 0.0
      %342 = vst.msk [vmem:[%s298 + $0xc9] sm:$0x1] %vm299, 0.0
      %343 = vst.msk [vmem:[%s298 + $0xd9] sm:$0x1] %vm299, 0.0
      %344 = vst.msk [vmem:[%s298 + $0xe9] sm:$0x1] %vm299, 0.0
      %345 = vst.msk [vmem:[%s298 + $0xf9] sm:$0x1] %vm299, 0.0
      %346 = vst.msk [vmem:[%s298 + $0x109] sm:$0x1] %vm299, 0.0
      %347 = vst.msk [vmem:[%s298 + $0x119] sm:$0x1] %vm299, 0.0
      %348 = vst.msk [vmem:[%s298 + $0x149] sm:$0x1] %vm299, 0.0
      %349 = vst.msk [vmem:[%s298 + $0x159] sm:$0x1] %vm299, 0.0
      %350 = vst.msk [vmem:[%s298 + $0x169] sm:$0x1] %vm299, 0.0
      %351 = vst.msk [vmem:[%s298 + $0x179] sm:$0x1] %vm299, 0.0
      %352 = vst.msk [vmem:[%s298 + $0x189] sm:$0x1] %vm299, 0.0
      %353 = vst.msk [vmem:[%s298 + $0x199] sm:$0x1] %vm299, 0.0
      %354 = vst.msk [vmem:[%s298 + $0x1a9] sm:$0x1] %vm299, 0.0
      %355 = vst.msk [vmem:[%s298 + $0x1b9] sm:$0x1] %vm299, 0.0
      %356 = vst.msk [vmem:[%s298 + $0x1e9] sm:$0x1] %vm299, 0.0
      %357 = vst.msk [vmem:[%s298 + $0x1f9] sm:$0x1] %vm299, 0.0
      %358 = vst.msk [vmem:[%s298 + $0x209] sm:$0x1] %vm299, 0.0
      %359 = vst.msk [vmem:[%s298 + $0x219] sm:$0x1] %vm299, 0.0
      %360 = vst.msk [vmem:[%s298 + $0x229] sm:$0x1] %vm299, 0.0
      %361 = vst.msk [vmem:[%s298 + $0x239] sm:$0x1] %vm299, 0.0
      %362 = vst.msk [vmem:[%s298 + $0x249] sm:$0x1] %vm299, 0.0
      %363 = vst.msk [vmem:[%s298 + $0x259] sm:$0x1] %vm299, 0.0
      %364 = vst.msk [vmem:[#allocation3] sm:$0xff] %vm279, 0.0
      %365 = vst.msk [vmem:[#allocation3 + $0x8] sm:$0xff] %vm279, 0.0
      %366 = vst.msk [vmem:[#allocation3 + $0x10] sm:$0xff] %vm279, 0.0
      %367 = vst.msk [vmem:[#allocation3 + $0x18] sm:$0xff] %vm279, 0.0
      %368 = vst.msk [vmem:[#allocation3 + $0x20] sm:$0xff] %vm279, 0.0
      %369 = vst.msk [vmem:[#allocation3 + $0x28] sm:$0xff] %vm279, 0.0
      %370 = vst.msk [vmem:[#allocation3 + $0x30] sm:$0xff] %vm279, 0.0
      %371 = vst.msk [vmem:[#allocation3 + $0x38] sm:$0xff] %vm279, 0.0
      %s372 = scalar_lea.vmem [#allocation3], 320
      %373 = vst.msk [vmem:[%s372] sm:$0xff] %vm279, 0.0
      %374 = vst.msk [vmem:[%s372 + $0x8] sm:$0xff] %vm279, 0.0
      %375 = vst.msk [vmem:[%s372 + $0x10] sm:$0xff] %vm279, 0.0
      %376 = vst.msk [vmem:[%s372 + $0x18] sm:$0xff] %vm279, 0.0
      %377 = vst.msk [vmem:[%s372 + $0x20] sm:$0xff] %vm279, 0.0
      %378 = vst.msk [vmem:[%s372 + $0x28] sm:$0xff] %vm279, 0.0
      %379 = vst.msk [vmem:[%s372 + $0x30] sm:$0xff] %vm279, 0.0
      %380 = vst.msk [vmem:[%s372 + $0x38] sm:$0xff] %vm279, 0.0
      %v381 = vld [vmem:[%s273] sm:$0xf]
      %v382 = vld [vmem:[%s273 + $0x4] sm:$0xf]
      %v383 = vld [vmem:[%s273 + $0x8] sm:$0xf]
      %v384 = vld [vmem:[%s273 + $0xc] sm:$0xf]
      %v385 = vld [vmem:[%s273 + $0x10] sm:$0xf]
      %v386 = vld [vmem:[%s273 + $0x14] sm:$0xf]
      %v387 = vld [vmem:[%s273 + $0x18] sm:$0xf]
      %v388 = vld [vmem:[%s273 + $0x1c] sm:$0xf]
      %v389 = vld [vmem:[%s273 + $0x20] sm:$0xf]
      %v390 = vld [vmem:[%s273 + $0x24] sm:$0xf]
      %v391 = vld [vmem:[%s273 + $0x28] sm:$0xf]
      %v392 = vld [vmem:[%s273 + $0x2c] sm:$0xf]
      %v393 = vld [vmem:[%s273 + $0x30] sm:$0xf]
      %v394 = vld [vmem:[%s273 + $0x34] sm:$0xf]
      %v395 = vld [vmem:[%s273 + $0x38] sm:$0xf]
      %v396 = vld [vmem:[%s273 + $0x3c] sm:$0xf]
      %v397 = vld [vmem:[%s273 + $0x40] sm:$0xf]
      %v398 = vld [vmem:[%s273 + $0x44] sm:$0xf]
      %v399 = vld [vmem:[%s273 + $0x48] sm:$0xf]
      %v400 = vld [vmem:[%s273 + $0x4c] sm:$0xf]
      %v401 = vld [vmem:[%s273 + $0x50] sm:$0xf]
      %v402 = vld [vmem:[%s273 + $0x54] sm:$0xf]
      %v403 = vld [vmem:[%s273 + $0x58] sm:$0xf]
      %v404 = vld [vmem:[%s273 + $0x5c] sm:$0xf]
      %v405 = vld [vmem:[%s273 + $0x60] sm:$0xf]
      %v406 = vld [vmem:[%s273 + $0x64] sm:$0xf]
      %v407 = vld [vmem:[%s273 + $0x68] sm:$0xf]
      %v408 = vld [vmem:[%s273 + $0x6c] sm:$0xf]
      %v409 = vld [vmem:[%s273 + $0x70] sm:$0xf]
      %v410 = vld [vmem:[%s273 + $0x74] sm:$0xf]
      %v411 = vld [vmem:[%s273 + $0x78] sm:$0xf]
      %v412 = vld [vmem:[%s273 + $0x7c] sm:$0xf]
      %v413 = vunpack.c.l.bf16 %v381
      %v414 = vunpack.c.l.bf16 %v382
      %v415 = vunpack.c.l.bf16 %v383
      %v416 = vunpack.c.l.bf16 %v384
      %v417 = vunpack.c.l.bf16 %v385
      %v418 = vunpack.c.l.bf16 %v386
      %v419 = vunpack.c.l.bf16 %v387
      %v420 = vunpack.c.l.bf16 %v388
      %v421 = vunpack.c.l.bf16 %v389
      %v422 = vunpack.c.l.bf16 %v390
      %v423 = vunpack.c.l.bf16 %v391
      %v424 = vunpack.c.l.bf16 %v392
      %v425 = vunpack.c.l.bf16 %v393
      %v426 = vunpack.c.l.bf16 %v394
      %v427 = vunpack.c.l.bf16 %v395
      %v428 = vunpack.c.l.bf16 %v396
      %v429 = vunpack.c.l.bf16 %v397
      %v430 = vunpack.c.l.bf16 %v398
      %v431 = vunpack.c.l.bf16 %v399
      %v432 = vunpack.c.l.bf16 %v400
      %v433 = vunpack.c.l.bf16 %v401
      %v434 = vunpack.c.l.bf16 %v402
      %v435 = vunpack.c.l.bf16 %v403
      %v436 = vunpack.c.l.bf16 %v404
      %v437 = vunpack.c.l.bf16 %v405
      %v438 = vunpack.c.l.bf16 %v406
      %v439 = vunpack.c.l.bf16 %v407
      %v440 = vunpack.c.l.bf16 %v408
      %v441 = vunpack.c.l.bf16 %v409
      %v442 = vunpack.c.l.bf16 %v410
      %v443 = vunpack.c.l.bf16 %v411
      %v444 = vunpack.c.l.bf16 %v412
      %445 = vst.msk [vmem:[%s298 + $0x1] sm:$0xff] %vm279, %v413
      %446 = vst.msk [vmem:[%s298 + $0x11] sm:$0xff] %vm279, %v414
      %447 = vst.msk [vmem:[%s298 + $0x21] sm:$0xff] %vm279, %v415
      %448 = vst.msk [vmem:[%s298 + $0x31] sm:$0xff] %vm279, %v416
      %449 = vst.msk [vmem:[%s298 + $0x41] sm:$0xff] %vm279, %v417
      %450 = vst.msk [vmem:[%s298 + $0x51] sm:$0xff] %vm279, %v418
      %451 = vst.msk [vmem:[%s298 + $0x61] sm:$0xff] %vm279, %v419
      %452 = vst.msk [vmem:[%s298 + $0x71] sm:$0xff] %vm279, %v420
      %453 = vst.msk [vmem:[%s298 + $0xa1] sm:$0xff] %vm279, %v421
      %454 = vst.msk [vmem:[%s298 + $0xb1] sm:$0xff] %vm279, %v422
      %455 = vst.msk [vmem:[%s298 + $0xc1] sm:$0xff] %vm279, %v423
      %456 = vst.msk [vmem:[%s298 + $0xd1] sm:$0xff] %vm279, %v424
      %457 = vst.msk [vmem:[%s298 + $0xe1] sm:$0xff] %vm279, %v425
      %458 = vst.msk [vmem:[%s298 + $0xf1] sm:$0xff] %vm279, %v426
      %459 = vst.msk [vmem:[%s298 + $0x101] sm:$0xff] %vm279, %v427
      %460 = vst.msk [vmem:[%s298 + $0x111] sm:$0xff] %vm279, %v428
      %461 = vst.msk [vmem:[%s298 + $0x141] sm:$0xff] %vm279, %v429
      %462 = vst.msk [vmem:[%s298 + $0x151] sm:$0xff] %vm279, %v430
      %463 = vst.msk [vmem:[%s298 + $0x161] sm:$0xff] %vm279, %v431
      %464 = vst.msk [vmem:[%s298 + $0x171] sm:$0xff] %vm279, %v432
      %465 = vst.msk [vmem:[%s298 + $0x181] sm:$0xff] %vm279, %v433
      %466 = vst.msk [vmem:[%s298 + $0x191] sm:$0xff] %vm279, %v434
      %467 = vst.msk [vmem:[%s298 + $0x1a1] sm:$0xff] %vm279, %v435
      %468 = vst.msk [vmem:[%s298 + $0x1b1] sm:$0xff] %vm279, %v436
      %469 = vst.msk [vmem:[%s298 + $0x1e1] sm:$0xff] %vm279, %v437
      %470 = vst.msk [vmem:[%s298 + $0x1f1] sm:$0xff] %vm279, %v438
      %471 = vst.msk [vmem:[%s298 + $0x201] sm:$0xff] %vm279, %v439
      %472 = vst.msk [vmem:[%s298 + $0x211] sm:$0xff] %vm279, %v440
      %473 = vst.msk [vmem:[%s298 + $0x221] sm:$0xff] %vm279, %v441
      %474 = vst.msk [vmem:[%s298 + $0x231] sm:$0xff] %vm279, %v442
      %475 = vst.msk [vmem:[%s298 + $0x241] sm:$0xff] %vm279, %v443
      %476 = vst.msk [vmem:[%s298 + $0x251] sm:$0xff] %vm279, %v444
      %v477 = vld [vmem:[#allocation2] sm:$0xff]
      %v478 = vld [vmem:[#allocation2 + $0x8] sm:$0x3]
      %v479 = vld [vmem:[#allocation2 + $0x10] sm:$0xff]
      %v480 = vld [vmem:[#allocation2 + $0x18] sm:$0x3]
      %v481 = vld [vmem:[#allocation2 + $0x20] sm:$0xff]
      %v482 = vld [vmem:[#allocation2 + $0x28] sm:$0x3]
      %v483 = vld [vmem:[#allocation2 + $0x30] sm:$0xff]
      %v484 = vld [vmem:[#allocation2 + $0x38] sm:$0x3]
      %v485 = vld [vmem:[#allocation2 + $0x40] sm:$0xff]
      %v486 = vld [vmem:[#allocation2 + $0x48] sm:$0x3]
      %v487 = vld [vmem:[#allocation2 + $0x50] sm:$0xff]
      %v488 = vld [vmem:[#allocation2 + $0x58] sm:$0x3]
      %v489 = vld [vmem:[#allocation2 + $0x60] sm:$0xff]
      %v490 = vld [vmem:[#allocation2 + $0x68] sm:$0x3]
      %v491 = vld [vmem:[#allocation2 + $0x70] sm:$0xff]
      %v492 = vld [vmem:[#allocation2 + $0x78] sm:$0x3]
      %v493 = vld [vmem:[#allocation2 + $0x80] sm:$0xff]
      %v494 = vld [vmem:[#allocation2 + $0x88] sm:$0x3]
      %v495 = vld [vmem:[#allocation2 + $0x90] sm:$0xff]
      %v496 = vld [vmem:[#allocation2 + $0x98] sm:$0x3]
      %v497 = vld [vmem:[#allocation2 + $0xa0] sm:$0xff]
      %v498 = vld [vmem:[#allocation2 + $0xa8] sm:$0x3]
      %v499 = vld [vmem:[#allocation2 + $0xb0] sm:$0xff]
      %v500 = vld [vmem:[#allocation2 + $0xb8] sm:$0x3]
      %v501 = vld [vmem:[#allocation2 + $0xc0] sm:$0xff]
      %v502 = vld [vmem:[#allocation2 + $0xc8] sm:$0x3]
      %v503 = vld [vmem:[#allocation2 + $0xd0] sm:$0xff]
      %v504 = vld [vmem:[#allocation2 + $0xd8] sm:$0x3]
      %v505 = vld [vmem:[#allocation2 + $0xe0] sm:$0xff]
      %v506 = vld [vmem:[#allocation2 + $0xe8] sm:$0x3]
      %v507 = vld [vmem:[#allocation2 + $0xf0] sm:$0xff]
      %v508 = vld [vmem:[#allocation2 + $0xf8] sm:$0x3]
      %v509 = vld [vmem:[#allocation2 + $0x100] sm:$0xff]
      %v510 = vld [vmem:[#allocation2 + $0x108] sm:$0x3]
      %v511 = vld [vmem:[#allocation2 + $0x110] sm:$0xff]
      %v512 = vld [vmem:[#allocation2 + $0x118] sm:$0x3]
      %v513 = vld [vmem:[#allocation2 + $0x120] sm:$0xff]
      %v514 = vld [vmem:[#allocation2 + $0x128] sm:$0x3]
      %v515 = vld [vmem:[#allocation2 + $0x130] sm:$0xff]
      %v516 = vld [vmem:[#allocation2 + $0x138] sm:$0x3]
      %v517 = vld [vmem:[#allocation2 + $0x140] sm:$0xff]
      %v518 = vld [vmem:[#allocation2 + $0x148] sm:$0x3]
      %v519 = vld [vmem:[#allocation2 + $0x150] sm:$0xff]
      %v520 = vld [vmem:[#allocation2 + $0x158] sm:$0x3]
      %v521 = vld [vmem:[#allocation2 + $0x160] sm:$0xff]
      %v522 = vld [vmem:[#allocation2 + $0x168] sm:$0x3]
      %v523 = vld [vmem:[#allocation2 + $0x170] sm:$0xff]
      %v524 = vld [vmem:[#allocation2 + $0x178] sm:$0x3]
      %v525 = vld [vmem:[#allocation2 + $0x180] sm:$0xff]
      %v526 = vld [vmem:[#allocation2 + $0x188] sm:$0x3]
      %v527 = vld [vmem:[#allocation2 + $0x190] sm:$0xff]
      %v528 = vld [vmem:[#allocation2 + $0x198] sm:$0x3]
      %v529 = vld [vmem:[#allocation2 + $0x1a0] sm:$0xff]
      %v530 = vld [vmem:[#allocation2 + $0x1a8] sm:$0x3]
      %v531 = vld [vmem:[#allocation2 + $0x1b0] sm:$0xff]
      %v532 = vld [vmem:[#allocation2 + $0x1b8] sm:$0x3]
      %v533 = vld [vmem:[#allocation2 + $0x1c0] sm:$0xff]
      %v534 = vld [vmem:[#allocation2 + $0x1c8] sm:$0x3]
      %v535 = vld [vmem:[#allocation2 + $0x1d0] sm:$0xff]
      %v536 = vld [vmem:[#allocation2 + $0x1d8] sm:$0x3]
      %v537 = vld [vmem:[#allocation2 + $0x1e0] sm:$0xff]
      %v538 = vld [vmem:[#allocation2 + $0x1e8] sm:$0x3]
      %v539 = vld [vmem:[#allocation2 + $0x1f0] sm:$0xff]
      %v540 = vld [vmem:[#allocation2 + $0x1f8] sm:$0x3]
      %v541 = vld [vmem:[#allocation2 + $0x200] sm:$0xff]
      %v542 = vld [vmem:[#allocation2 + $0x208] sm:$0x3]
      %v543 = vld [vmem:[#allocation2 + $0x210] sm:$0xff]
      %v544 = vld [vmem:[#allocation2 + $0x218] sm:$0x3]
      %v545 = vld [vmem:[#allocation2 + $0x220] sm:$0xff]
      %v546 = vld [vmem:[#allocation2 + $0x228] sm:$0x3]
      %v547 = vld [vmem:[#allocation2 + $0x230] sm:$0xff]
      %v548 = vld [vmem:[#allocation2 + $0x238] sm:$0x3]
      %v549 = vld [vmem:[#allocation2 + $0x240] sm:$0xff]
      %v550 = vld [vmem:[#allocation2 + $0x248] sm:$0x3]
      %v551 = vld [vmem:[#allocation2 + $0x250] sm:$0xff]
      %v552 = vld [vmem:[#allocation2 + $0x258] sm:$0x3]
      %v553 = vld [vmem:[#allocation2 + $0x260] sm:$0xff]
      %v554 = vld [vmem:[#allocation2 + $0x268] sm:$0x3]
      %v555 = vld [vmem:[#allocation2 + $0x270] sm:$0xff]
      %v556 = vld [vmem:[#allocation2 + $0x278] sm:$0x3]
      %vm621 = vcmask 1046528
      %v622 = vrot.slane %v477, 1
      %v623 = vrot.slane %v478, 1
      %v624 = vsel %vm621, %v622, %v623
      %v625 = vrot.slane %v479, 1
      %v626 = vrot.slane %v480, 1
      %v627 = vsel %vm621, %v625, %v626
      %v628 = vrot.slane %v481, 1
      %v629 = vrot.slane %v482, 1
      %v630 = vsel %vm621, %v628, %v629
      %v631 = vrot.slane %v483, 1
      %v632 = vrot.slane %v484, 1
      %v633 = vsel %vm621, %v631, %v632
      %v634 = vrot.slane %v485, 1
      %v635 = vrot.slane %v486, 1
      %v636 = vsel %vm621, %v634, %v635
      %v637 = vrot.slane %v487, 1
      %v638 = vrot.slane %v488, 1
      %v639 = vsel %vm621, %v637, %v638
      %v640 = vrot.slane %v489, 1
      %v641 = vrot.slane %v490, 1
      %v642 = vsel %vm621, %v640, %v641
      %v643 = vrot.slane %v491, 1
      %v644 = vrot.slane %v492, 1
      %v645 = vsel %vm621, %v643, %v644
      %v646 = vrot.slane %v497, 1
      %v647 = vrot.slane %v498, 1
      %v648 = vsel %vm621, %v646, %v647
      %v649 = vrot.slane %v499, 1
      %v650 = vrot.slane %v500, 1
      %v651 = vsel %vm621, %v649, %v650
      %v652 = vrot.slane %v501, 1
      %v653 = vrot.slane %v502, 1
      %v654 = vsel %vm621, %v652, %v653
      %v655 = vrot.slane %v503, 1
      %v656 = vrot.slane %v504, 1
      %v657 = vsel %vm621, %v655, %v656
      %v658 = vrot.slane %v505, 1
      %v659 = vrot.slane %v506, 1
      %v660 = vsel %vm621, %v658, %v659
      %v661 = vrot.slane %v507, 1
      %v662 = vrot.slane %v508, 1
      %v663 = vsel %vm621, %v661, %v662
      %v664 = vrot.slane %v509, 1
      %v665 = vrot.slane %v510, 1
      %v666 = vsel %vm621, %v664, %v665
      %v667 = vrot.slane %v511, 1
      %v668 = vrot.slane %v512, 1
      %v669 = vsel %vm621, %v667, %v668
      %v670 = vrot.slane %v517, 1
      %v671 = vrot.slane %v518, 1
      %v672 = vsel %vm621, %v670, %v671
      %v673 = vrot.slane %v519, 1
      %v674 = vrot.slane %v520, 1
      %v675 = vsel %vm621, %v673, %v674
      %v676 = vrot.slane %v521, 1
      %v677 = vrot.slane %v522, 1
      %v678 = vsel %vm621, %v676, %v677
      %v679 = vrot.slane %v523, 1
      %v680 = vrot.slane %v524, 1
      %v681 = vsel %vm621, %v679, %v680
      %v682 = vrot.slane %v525, 1
      %v683 = vrot.slane %v526, 1
      %v684 = vsel %vm621, %v682, %v683
      %v685 = vrot.slane %v527, 1
      %v686 = vrot.slane %v528, 1
      %v687 = vsel %vm621, %v685, %v686
      %v688 = vrot.slane %v529, 1
      %v689 = vrot.slane %v530, 1
      %v690 = vsel %vm621, %v688, %v689
      %v691 = vrot.slane %v531, 1
      %v692 = vrot.slane %v532, 1
      %v693 = vsel %vm621, %v691, %v692
      %v694 = vrot.slane %v537, 1
      %v695 = vrot.slane %v538, 1
      %v696 = vsel %vm621, %v694, %v695
      %v697 = vrot.slane %v539, 1
      %v698 = vrot.slane %v540, 1
      %v699 = vsel %vm621, %v697, %v698
      %v700 = vrot.slane %v541, 1
      %v701 = vrot.slane %v542, 1
      %v702 = vsel %vm621, %v700, %v701
      %v703 = vrot.slane %v543, 1
      %v704 = vrot.slane %v544, 1
      %v705 = vsel %vm621, %v703, %v704
      %v706 = vrot.slane %v545, 1
      %v707 = vrot.slane %v546, 1
      %v708 = vsel %vm621, %v706, %v707
      %v709 = vrot.slane %v547, 1
      %v710 = vrot.slane %v548, 1
      %v711 = vsel %vm621, %v709, %v710
      %v712 = vrot.slane %v549, 1
      %v713 = vrot.slane %v550, 1
      %v714 = vsel %vm621, %v712, %v713
      %v715 = vrot.slane %v551, 1
      %v716 = vrot.slane %v552, 1
      %v717 = vsel %vm621, %v715, %v716
      %vm718 = vcmask 1045504
      %v719 = vrot.slane %v477, 2
      %v720 = vrot.slane %v478, 2
      %v721 = vsel %vm718, %v719, %v720
      %v722 = vrot.slane %v479, 2
      %v723 = vrot.slane %v480, 2
      %v724 = vsel %vm718, %v722, %v723
      %v725 = vrot.slane %v481, 2
      %v726 = vrot.slane %v482, 2
      %v727 = vsel %vm718, %v725, %v726
      %v728 = vrot.slane %v483, 2
      %v729 = vrot.slane %v484, 2
      %v730 = vsel %vm718, %v728, %v729
      %v731 = vrot.slane %v485, 2
      %v732 = vrot.slane %v486, 2
      %v733 = vsel %vm718, %v731, %v732
      %v734 = vrot.slane %v487, 2
      %v735 = vrot.slane %v488, 2
      %v736 = vsel %vm718, %v734, %v735
      %v737 = vrot.slane %v489, 2
      %v738 = vrot.slane %v490, 2
      %v739 = vsel %vm718, %v737, %v738
      %v740 = vrot.slane %v491, 2
      %v741 = vrot.slane %v492, 2
      %v742 = vsel %vm718, %v740, %v741
      %v743 = vrot.slane %v497, 2
      %v744 = vrot.slane %v498, 2
      %v745 = vsel %vm718, %v743, %v744
      %v746 = vrot.slane %v499, 2
      %v747 = vrot.slane %v500, 2
      %v748 = vsel %vm718, %v746, %v747
      %v749 = vrot.slane %v501, 2
      %v750 = vrot.slane %v502, 2
      %v751 = vsel %vm718, %v749, %v750
      %v752 = vrot.slane %v503, 2
      %v753 = vrot.slane %v504, 2
      %v754 = vsel %vm718, %v752, %v753
      %v755 = vrot.slane %v505, 2
      %v756 = vrot.slane %v506, 2
      %v757 = vsel %vm718, %v755, %v756
      %v758 = vrot.slane %v507, 2
      %v759 = vrot.slane %v508, 2
      %v760 = vsel %vm718, %v758, %v759
      %v761 = vrot.slane %v509, 2
      %v762 = vrot.slane %v510, 2
      %v763 = vsel %vm718, %v761, %v762
      %v764 = vrot.slane %v511, 2
      %v765 = vrot.slane %v512, 2
      %v766 = vsel %vm718, %v764, %v765
      %v767 = vrot.slane %v517, 2
      %v768 = vrot.slane %v518, 2
      %v769 = vsel %vm718, %v767, %v768
      %v770 = vrot.slane %v519, 2
      %v771 = vrot.slane %v520, 2
      %v772 = vsel %vm718, %v770, %v771
      %v773 = vrot.slane %v521, 2
      %v774 = vrot.slane %v522, 2
      %v775 = vsel %vm718, %v773, %v774
      %v776 = vrot.slane %v523, 2
      %v777 = vrot.slane %v524, 2
      %v778 = vsel %vm718, %v776, %v777
      %v779 = vrot.slane %v525, 2
      %v780 = vrot.slane %v526, 2
      %v781 = vsel %vm718, %v779, %v780
      %v782 = vrot.slane %v527, 2
      %v783 = vrot.slane %v528, 2
      %v784 = vsel %vm718, %v782, %v783
      %v785 = vrot.slane %v529, 2
      %v786 = vrot.slane %v530, 2
      %v787 = vsel %vm718, %v785, %v786
      %v788 = vrot.slane %v531, 2
      %v789 = vrot.slane %v532, 2
      %v790 = vsel %vm718, %v788, %v789
      %v791 = vrot.slane %v537, 2
      %v792 = vrot.slane %v538, 2
      %v793 = vsel %vm718, %v791, %v792
      %v794 = vrot.slane %v539, 2
      %v795 = vrot.slane %v540, 2
      %v796 = vsel %vm718, %v794, %v795
      %v797 = vrot.slane %v541, 2
      %v798 = vrot.slane %v542, 2
      %v799 = vsel %vm718, %v797, %v798
      %v800 = vrot.slane %v543, 2
      %v801 = vrot.slane %v544, 2
      %v802 = vsel %vm718, %v800, %v801
      %v803 = vrot.slane %v545, 2
      %v804 = vrot.slane %v546, 2
      %v805 = vsel %vm718, %v803, %v804
      %v806 = vrot.slane %v547, 2
      %v807 = vrot.slane %v548, 2
      %v808 = vsel %vm718, %v806, %v807
      %v809 = vrot.slane %v549, 2
      %v810 = vrot.slane %v550, 2
      %v811 = vsel %vm718, %v809, %v810
      %v812 = vrot.slane %v551, 2
      %v813 = vrot.slane %v552, 2
      %v814 = vsel %vm718, %v812, %v813
      %v823 = vrot.slane %v493, 1
      %v824 = vrot.slane %v494, 1
      %v825 = vsel %vm621, %v823, %v824
      %v826 = vrot.slane %v513, 1
      %v827 = vrot.slane %v514, 1
      %v828 = vsel %vm621, %v826, %v827
      %v829 = vrot.slane %v533, 1
      %v830 = vrot.slane %v534, 1
      %v831 = vsel %vm621, %v829, %v830
      %v832 = vrot.slane %v553, 1
      %v833 = vrot.slane %v554, 1
      %v834 = vsel %vm621, %v832, %v833
      %v835 = vrot.slane %v493, 2
      %v836 = vrot.slane %v494, 2
      %v837 = vsel %vm718, %v835, %v836
      %v838 = vrot.slane %v513, 2
      %v839 = vrot.slane %v514, 2
      %v840 = vsel %vm718, %v838, %v839
      %v841 = vrot.slane %v533, 2
      %v842 = vrot.slane %v534, 2
      %v843 = vsel %vm718, %v841, %v842
      %v844 = vrot.slane %v553, 2
      %v845 = vrot.slane %v554, 2
      %v846 = vsel %vm718, %v844, %v845
      %v855 = vrot.slane %v495, 1
      %v856 = vrot.slane %v496, 1
      %v857 = vsel %vm621, %v855, %v856
      %v858 = vrot.slane %v515, 1
      %v859 = vrot.slane %v516, 1
      %v860 = vsel %vm621, %v858, %v859
      %v861 = vrot.slane %v535, 1
      %v862 = vrot.slane %v536, 1
      %v863 = vsel %vm621, %v861, %v862
      %v864 = vrot.slane %v555, 1
      %v865 = vrot.slane %v556, 1
      %v866 = vsel %vm621, %v864, %v865
      %v867 = vrot.slane %v495, 2
      %v868 = vrot.slane %v496, 2
      %v869 = vsel %vm718, %v867, %v868
      %v870 = vrot.slane %v515, 2
      %v871 = vrot.slane %v516, 2
      %v872 = vsel %vm718, %v870, %v871
      %v873 = vrot.slane %v535, 2
      %v874 = vrot.slane %v536, 2
      %v875 = vsel %vm718, %v873, %v874
      %v876 = vrot.slane %v555, 2
      %v877 = vrot.slane %v556, 2
      %v878 = vsel %vm718, %v876, %v877
      %879 = vrot.lane.b32.xlu0 %v624, 8
      %v880 = vpop.permute.xlu0 %879
      %881 = vrot.lane.b32.xlu0 %v627, 8
      %v882 = vpop.permute.xlu0 %881
      %883 = vrot.lane.b32.xlu0 %v630, 8
      %v884 = vpop.permute.xlu0 %883
      %885 = vrot.lane.b32.xlu0 %v633, 8
      %v886 = vpop.permute.xlu0 %885
      %887 = vrot.lane.b32.xlu0 %v636, 8
      %v888 = vpop.permute.xlu0 %887
      %889 = vrot.lane.b32.xlu0 %v639, 8
      %v890 = vpop.permute.xlu0 %889
      %891 = vrot.lane.b32.xlu0 %v642, 8
      %v892 = vpop.permute.xlu0 %891
      %893 = vrot.lane.b32.xlu0 %v645, 8
      %v894 = vpop.permute.xlu0 %893
      %895 = vrot.lane.b32.xlu0 %v648, 8
      %v896 = vpop.permute.xlu0 %895
      %897 = vrot.lane.b32.xlu0 %v651, 8
      %v898 = vpop.permute.xlu0 %897
      %899 = vrot.lane.b32.xlu0 %v654, 8
      %v900 = vpop.permute.xlu0 %899
      %901 = vrot.lane.b32.xlu0 %v657, 8
      %v902 = vpop.permute.xlu0 %901
      %903 = vrot.lane.b32.xlu0 %v660, 8
      %v904 = vpop.permute.xlu0 %903
      %905 = vrot.lane.b32.xlu0 %v663, 8
      %v906 = vpop.permute.xlu0 %905
      %907 = vrot.lane.b32.xlu0 %v666, 8
      %v908 = vpop.permute.xlu0 %907
      %909 = vrot.lane.b32.xlu0 %v669, 8
      %v910 = vpop.permute.xlu0 %909
      %911 = vrot.lane.b32.xlu0 %v672, 8
      %v912 = vpop.permute.xlu0 %911
      %913 = vrot.lane.b32.xlu0 %v675, 8
      %v914 = vpop.permute.xlu0 %913
      %915 = vrot.lane.b32.xlu0 %v678, 8
      %v916 = vpop.permute.xlu0 %915
      %917 = vrot.lane.b32.xlu0 %v681, 8
      %v918 = vpop.permute.xlu0 %917
      %919 = vrot.lane.b32.xlu0 %v684, 8
      %v920 = vpop.permute.xlu0 %919
      %921 = vrot.lane.b32.xlu0 %v687, 8
      %v922 = vpop.permute.xlu0 %921
      %923 = vrot.lane.b32.xlu0 %v690, 8
      %v924 = vpop.permute.xlu0 %923
      %925 = vrot.lane.b32.xlu0 %v693, 8
      %v926 = vpop.permute.xlu0 %925
      %927 = vrot.lane.b32.xlu0 %v696, 8
      %v928 = vpop.permute.xlu0 %927
      %929 = vrot.lane.b32.xlu0 %v699, 8
      %v930 = vpop.permute.xlu0 %929
      %931 = vrot.lane.b32.xlu0 %v702, 8
      %v932 = vpop.permute.xlu0 %931
      %933 = vrot.lane.b32.xlu0 %v705, 8
      %v934 = vpop.permute.xlu0 %933
      %935 = vrot.lane.b32.xlu0 %v708, 8
      %v936 = vpop.permute.xlu0 %935
      %937 = vrot.lane.b32.xlu0 %v711, 8
      %v938 = vpop.permute.xlu0 %937
      %939 = vrot.lane.b32.xlu0 %v714, 8
      %v940 = vpop.permute.xlu0 %939
      %941 = vrot.lane.b32.xlu0 %v717, 8
      %v942 = vpop.permute.xlu0 %941
      %975 = vrot.lane.b32.xlu0 %v721, 16
      %v976 = vpop.permute.xlu0 %975
      %977 = vrot.lane.b32.xlu0 %v724, 16
      %v978 = vpop.permute.xlu0 %977
      %979 = vrot.lane.b32.xlu0 %v727, 16
      %v980 = vpop.permute.xlu0 %979
      %981 = vrot.lane.b32.xlu0 %v730, 16
      %v982 = vpop.permute.xlu0 %981
      %983 = vrot.lane.b32.xlu0 %v733, 16
      %v984 = vpop.permute.xlu0 %983
      %985 = vrot.lane.b32.xlu0 %v736, 16
      %v986 = vpop.permute.xlu0 %985
      %987 = vrot.lane.b32.xlu0 %v739, 16
      %v988 = vpop.permute.xlu0 %987
      %989 = vrot.lane.b32.xlu0 %v742, 16
      %v990 = vpop.permute.xlu0 %989
      %991 = vrot.lane.b32.xlu0 %v745, 16
      %v992 = vpop.permute.xlu0 %991
      %993 = vrot.lane.b32.xlu0 %v748, 16
      %v994 = vpop.permute.xlu0 %993
      %995 = vrot.lane.b32.xlu0 %v751, 16
      %v996 = vpop.permute.xlu0 %995
      %997 = vrot.lane.b32.xlu0 %v754, 16
      %v998 = vpop.permute.xlu0 %997
      %999 = vrot.lane.b32.xlu0 %v757, 16
      %v1000 = vpop.permute.xlu0 %999
      %1001 = vrot.lane.b32.xlu0 %v760, 16
      %v1002 = vpop.permute.xlu0 %1001
      %1003 = vrot.lane.b32.xlu0 %v763, 16
      %v1004 = vpop.permute.xlu0 %1003
      %1005 = vrot.lane.b32.xlu0 %v766, 16
      %v1006 = vpop.permute.xlu0 %1005
      %1007 = vrot.lane.b32.xlu0 %v769, 16
      %v1008 = vpop.permute.xlu0 %1007
      %1009 = vrot.lane.b32.xlu0 %v772, 16
      %v1010 = vpop.permute.xlu0 %1009
      %1011 = vrot.lane.b32.xlu0 %v775, 16
      %v1012 = vpop.permute.xlu0 %1011
      %1013 = vrot.lane.b32.xlu0 %v778, 16
      %v1014 = vpop.permute.xlu0 %1013
      %1015 = vrot.lane.b32.xlu0 %v781, 16
      %v1016 = vpop.permute.xlu0 %1015
      %1017 = vrot.lane.b32.xlu0 %v784, 16
      %v1018 = vpop.permute.xlu0 %1017
      %1019 = vrot.lane.b32.xlu0 %v787, 16
      %v1020 = vpop.permute.xlu0 %1019
      %1021 = vrot.lane.b32.xlu0 %v790, 16
      %v1022 = vpop.permute.xlu0 %1021
      %1023 = vrot.lane.b32.xlu0 %v793, 16
      %v1024 = vpop.permute.xlu0 %1023
      %1025 = vrot.lane.b32.xlu0 %v796, 16
      %v1026 = vpop.permute.xlu0 %1025
      %1027 = vrot.lane.b32.xlu0 %v799, 16
      %v1028 = vpop.permute.xlu0 %1027
      %1029 = vrot.lane.b32.xlu0 %v802, 16
      %v1030 = vpop.permute.xlu0 %1029
      %1031 = vrot.lane.b32.xlu0 %v805, 16
      %v1032 = vpop.permute.xlu0 %1031
      %1033 = vrot.lane.b32.xlu0 %v808, 16
      %v1034 = vpop.permute.xlu0 %1033
      %1035 = vrot.lane.b32.xlu0 %v811, 16
      %v1036 = vpop.permute.xlu0 %1035
      %1037 = vrot.lane.b32.xlu0 %v814, 16
      %v1038 = vpop.permute.xlu0 %1037
      %1071 = vrot.lane.b32.xlu0 %v479, 24
      %v1072 = vpop.permute.xlu0 %1071
      %1073 = vrot.lane.b32.xlu0 %v481, 24
      %v1074 = vpop.permute.xlu0 %1073
      %1075 = vrot.lane.b32.xlu0 %v483, 24
      %v1076 = vpop.permute.xlu0 %1075
      %1077 = vrot.lane.b32.xlu0 %v485, 24
      %v1078 = vpop.permute.xlu0 %1077
      %1079 = vrot.lane.b32.xlu0 %v487, 24
      %v1080 = vpop.permute.xlu0 %1079
      %1081 = vrot.lane.b32.xlu0 %v489, 24
      %v1082 = vpop.permute.xlu0 %1081
      %1083 = vrot.lane.b32.xlu0 %v491, 24
      %v1084 = vpop.permute.xlu0 %1083
      %1085 = vrot.lane.b32.xlu0 %v493, 24
      %v1086 = vpop.permute.xlu0 %1085
      %1087 = vrot.lane.b32.xlu0 %v499, 24
      %v1088 = vpop.permute.xlu0 %1087
      %1089 = vrot.lane.b32.xlu0 %v501, 24
      %v1090 = vpop.permute.xlu0 %1089
      %1091 = vrot.lane.b32.xlu0 %v503, 24
      %v1092 = vpop.permute.xlu0 %1091
      %1093 = vrot.lane.b32.xlu0 %v505, 24
      %v1094 = vpop.permute.xlu0 %1093
      %1095 = vrot.lane.b32.xlu0 %v507, 24
      %v1096 = vpop.permute.xlu0 %1095
      %1097 = vrot.lane.b32.xlu0 %v509, 24
      %v1098 = vpop.permute.xlu0 %1097
      %1099 = vrot.lane.b32.xlu0 %v511, 24
      %v1100 = vpop.permute.xlu0 %1099
      %1101 = vrot.lane.b32.xlu0 %v513, 24
      %v1102 = vpop.permute.xlu0 %1101
      %1103 = vrot.lane.b32.xlu0 %v519, 24
      %v1104 = vpop.permute.xlu0 %1103
      %1105 = vrot.lane.b32.xlu0 %v521, 24
      %v1106 = vpop.permute.xlu0 %1105
      %1107 = vrot.lane.b32.xlu0 %v523, 24
      %v1108 = vpop.permute.xlu0 %1107
      %1109 = vrot.lane.b32.xlu0 %v525, 24
      %v1110 = vpop.permute.xlu0 %1109
      %1111 = vrot.lane.b32.xlu0 %v527, 24
      %v1112 = vpop.permute.xlu0 %1111
      %1113 = vrot.lane.b32.xlu0 %v529, 24
      %v1114 = vpop.permute.xlu0 %1113
      %1115 = vrot.lane.b32.xlu0 %v531, 24
      %v1116 = vpop.permute.xlu0 %1115
      %1117 = vrot.lane.b32.xlu0 %v533, 24
      %v1118 = vpop.permute.xlu0 %1117
      %1119 = vrot.lane.b32.xlu0 %v539, 24
      %v1120 = vpop.permute.xlu0 %1119
      %1121 = vrot.lane.b32.xlu0 %v541, 24
      %v1122 = vpop.permute.xlu0 %1121
      %1123 = vrot.lane.b32.xlu0 %v543, 24
      %v1124 = vpop.permute.xlu0 %1123
      %1125 = vrot.lane.b32.xlu0 %v545, 24
      %v1126 = vpop.permute.xlu0 %1125
      %1127 = vrot.lane.b32.xlu0 %v547, 24
      %v1128 = vpop.permute.xlu0 %1127
      %1129 = vrot.lane.b32.xlu0 %v549, 24
      %v1130 = vpop.permute.xlu0 %1129
      %1131 = vrot.lane.b32.xlu0 %v551, 24
      %v1132 = vpop.permute.xlu0 %1131
      %1133 = vrot.lane.b32.xlu0 %v553, 24
      %v1134 = vpop.permute.xlu0 %1133
      %1167 = vrot.lane.b32.xlu0 %v627, 32
      %v1168 = vpop.permute.xlu0 %1167
      %1169 = vrot.lane.b32.xlu0 %v630, 32
      %v1170 = vpop.permute.xlu0 %1169
      %1171 = vrot.lane.b32.xlu0 %v633, 32
      %v1172 = vpop.permute.xlu0 %1171
      %1173 = vrot.lane.b32.xlu0 %v636, 32
      %v1174 = vpop.permute.xlu0 %1173
      %1175 = vrot.lane.b32.xlu0 %v639, 32
      %v1176 = vpop.permute.xlu0 %1175
      %1177 = vrot.lane.b32.xlu0 %v642, 32
      %v1178 = vpop.permute.xlu0 %1177
      %1179 = vrot.lane.b32.xlu0 %v645, 32
      %v1180 = vpop.permute.xlu0 %1179
      %1181 = vrot.lane.b32.xlu0 %v825, 32
      %v1182 = vpop.permute.xlu0 %1181
      %1183 = vrot.lane.b32.xlu0 %v651, 32
      %v1184 = vpop.permute.xlu0 %1183
      %1185 = vrot.lane.b32.xlu0 %v654, 32
      %v1186 = vpop.permute.xlu0 %1185
      %1187 = vrot.lane.b32.xlu0 %v657, 32
      %v1188 = vpop.permute.xlu0 %1187
      %1189 = vrot.lane.b32.xlu0 %v660, 32
      %v1190 = vpop.permute.xlu0 %1189
      %1191 = vrot.lane.b32.xlu0 %v663, 32
      %v1192 = vpop.permute.xlu0 %1191
      %1193 = vrot.lane.b32.xlu0 %v666, 32
      %v1194 = vpop.permute.xlu0 %1193
      %1195 = vrot.lane.b32.xlu0 %v669, 32
      %v1196 = vpop.permute.xlu0 %1195
      %1197 = vrot.lane.b32.xlu0 %v828, 32
      %v1198 = vpop.permute.xlu0 %1197
      %1199 = vrot.lane.b32.xlu0 %v675, 32
      %v1200 = vpop.permute.xlu0 %1199
      %1201 = vrot.lane.b32.xlu0 %v678, 32
      %v1202 = vpop.permute.xlu0 %1201
      %1203 = vrot.lane.b32.xlu0 %v681, 32
      %v1204 = vpop.permute.xlu0 %1203
      %1205 = vrot.lane.b32.xlu0 %v684, 32
      %v1206 = vpop.permute.xlu0 %1205
      %1207 = vrot.lane.b32.xlu0 %v687, 32
      %v1208 = vpop.permute.xlu0 %1207
      %1209 = vrot.lane.b32.xlu0 %v690, 32
      %v1210 = vpop.permute.xlu0 %1209
      %1211 = vrot.lane.b32.xlu0 %v693, 32
      %v1212 = vpop.permute.xlu0 %1211
      %1213 = vrot.lane.b32.xlu0 %v831, 32
      %v1214 = vpop.permute.xlu0 %1213
      %1215 = vrot.lane.b32.xlu0 %v699, 32
      %v1216 = vpop.permute.xlu0 %1215
      %1217 = vrot.lane.b32.xlu0 %v702, 32
      %v1218 = vpop.permute.xlu0 %1217
      %1219 = vrot.lane.b32.xlu0 %v705, 32
      %v1220 = vpop.permute.xlu0 %1219
      %1221 = vrot.lane.b32.xlu0 %v708, 32
      %v1222 = vpop.permute.xlu0 %1221
      %1223 = vrot.lane.b32.xlu0 %v711, 32
      %v1224 = vpop.permute.xlu0 %1223
      %1225 = vrot.lane.b32.xlu0 %v714, 32
      %v1226 = vpop.permute.xlu0 %1225
      %1227 = vrot.lane.b32.xlu0 %v717, 32
      %v1228 = vpop.permute.xlu0 %1227
      %1229 = vrot.lane.b32.xlu0 %v834, 32
      %v1230 = vpop.permute.xlu0 %1229
      %1263 = vrot.lane.b32.xlu0 %v724, 40
      %v1264 = vpop.permute.xlu0 %1263
      %1265 = vrot.lane.b32.xlu0 %v727, 40
      %v1266 = vpop.permute.xlu0 %1265
      %1267 = vrot.lane.b32.xlu0 %v730, 40
      %v1268 = vpop.permute.xlu0 %1267
      %1269 = vrot.lane.b32.xlu0 %v733, 40
      %v1270 = vpop.permute.xlu0 %1269
      %1271 = vrot.lane.b32.xlu0 %v736, 40
      %v1272 = vpop.permute.xlu0 %1271
      %1273 = vrot.lane.b32.xlu0 %v739, 40
      %v1274 = vpop.permute.xlu0 %1273
      %1275 = vrot.lane.b32.xlu0 %v742, 40
      %v1276 = vpop.permute.xlu0 %1275
      %1277 = vrot.lane.b32.xlu0 %v837, 40
      %v1278 = vpop.permute.xlu0 %1277
      %1279 = vrot.lane.b32.xlu0 %v748, 40
      %v1280 = vpop.permute.xlu0 %1279
      %1281 = vrot.lane.b32.xlu0 %v751, 40
      %v1282 = vpop.permute.xlu0 %1281
      %1283 = vrot.lane.b32.xlu0 %v754, 40
      %v1284 = vpop.permute.xlu0 %1283
      %1285 = vrot.lane.b32.xlu0 %v757, 40
      %v1286 = vpop.permute.xlu0 %1285
      %1287 = vrot.lane.b32.xlu0 %v760, 40
      %v1288 = vpop.permute.xlu0 %1287
      %1289 = vrot.lane.b32.xlu0 %v763, 40
      %v1290 = vpop.permute.xlu0 %1289
      %1291 = vrot.lane.b32.xlu0 %v766, 40
      %v1292 = vpop.permute.xlu0 %1291
      %1293 = vrot.lane.b32.xlu0 %v840, 40
      %v1294 = vpop.permute.xlu0 %1293
      %1295 = vrot.lane.b32.xlu0 %v772, 40
      %v1296 = vpop.permute.xlu0 %1295
      %1297 = vrot.lane.b32.xlu0 %v775, 40
      %v1298 = vpop.permute.xlu0 %1297
      %1299 = vrot.lane.b32.xlu0 %v778, 40
      %v1300 = vpop.permute.xlu0 %1299
      %1301 = vrot.lane.b32.xlu0 %v781, 40
      %v1302 = vpop.permute.xlu0 %1301
      %1303 = vrot.lane.b32.xlu0 %v784, 40
      %v1304 = vpop.permute.xlu0 %1303
      %1305 = vrot.lane.b32.xlu0 %v787, 40
      %v1306 = vpop.permute.xlu0 %1305
      %1307 = vrot.lane.b32.xlu0 %v790, 40
      %v1308 = vpop.permute.xlu0 %1307
      %1309 = vrot.lane.b32.xlu0 %v843, 40
      %v1310 = vpop.permute.xlu0 %1309
      %1311 = vrot.lane.b32.xlu0 %v796, 40
      %v1312 = vpop.permute.xlu0 %1311
      %1313 = vrot.lane.b32.xlu0 %v799, 40
      %v1314 = vpop.permute.xlu0 %1313
      %1315 = vrot.lane.b32.xlu0 %v802, 40
      %v1316 = vpop.permute.xlu0 %1315
      %1317 = vrot.lane.b32.xlu0 %v805, 40
      %v1318 = vpop.permute.xlu0 %1317
      %1319 = vrot.lane.b32.xlu0 %v808, 40
      %v1320 = vpop.permute.xlu0 %1319
      %1321 = vrot.lane.b32.xlu0 %v811, 40
      %v1322 = vpop.permute.xlu0 %1321
      %1323 = vrot.lane.b32.xlu0 %v814, 40
      %v1324 = vpop.permute.xlu0 %1323
      %1325 = vrot.lane.b32.xlu0 %v846, 40
      %v1326 = vpop.permute.xlu0 %1325
      %1359 = vrot.lane.b32.xlu0 %v481, 48
      %v1360 = vpop.permute.xlu0 %1359
      %1361 = vrot.lane.b32.xlu0 %v483, 48
      %v1362 = vpop.permute.xlu0 %1361
      %1363 = vrot.lane.b32.xlu0 %v485, 48
      %v1364 = vpop.permute.xlu0 %1363
      %1365 = vrot.lane.b32.xlu0 %v487, 48
      %v1366 = vpop.permute.xlu0 %1365
      %1367 = vrot.lane.b32.xlu0 %v489, 48
      %v1368 = vpop.permute.xlu0 %1367
      %1369 = vrot.lane.b32.xlu0 %v491, 48
      %v1370 = vpop.permute.xlu0 %1369
      %1371 = vrot.lane.b32.xlu0 %v493, 48
      %v1372 = vpop.permute.xlu0 %1371
      %1373 = vrot.lane.b32.xlu0 %v495, 48
      %v1374 = vpop.permute.xlu0 %1373
      %1375 = vrot.lane.b32.xlu0 %v501, 48
      %v1376 = vpop.permute.xlu0 %1375
      %1377 = vrot.lane.b32.xlu0 %v503, 48
      %v1378 = vpop.permute.xlu0 %1377
      %1379 = vrot.lane.b32.xlu0 %v505, 48
      %v1380 = vpop.permute.xlu0 %1379
      %1381 = vrot.lane.b32.xlu0 %v507, 48
      %v1382 = vpop.permute.xlu0 %1381
      %1383 = vrot.lane.b32.xlu0 %v509, 48
      %v1384 = vpop.permute.xlu0 %1383
      %1385 = vrot.lane.b32.xlu0 %v511, 48
      %v1386 = vpop.permute.xlu0 %1385
      %1387 = vrot.lane.b32.xlu0 %v513, 48
      %v1388 = vpop.permute.xlu0 %1387
      %1389 = vrot.lane.b32.xlu0 %v515, 48
      %v1390 = vpop.permute.xlu0 %1389
      %1391 = vrot.lane.b32.xlu0 %v521, 48
      %v1392 = vpop.permute.xlu0 %1391
      %1393 = vrot.lane.b32.xlu0 %v523, 48
      %v1394 = vpop.permute.xlu0 %1393
      %1395 = vrot.lane.b32.xlu0 %v525, 48
      %v1396 = vpop.permute.xlu0 %1395
      %1397 = vrot.lane.b32.xlu0 %v527, 48
      %v1398 = vpop.permute.xlu0 %1397
      %1399 = vrot.lane.b32.xlu0 %v529, 48
      %v1400 = vpop.permute.xlu0 %1399
      %1401 = vrot.lane.b32.xlu0 %v531, 48
      %v1402 = vpop.permute.xlu0 %1401
      %1403 = vrot.lane.b32.xlu0 %v533, 48
      %v1404 = vpop.permute.xlu0 %1403
      %1405 = vrot.lane.b32.xlu0 %v535, 48
      %v1406 = vpop.permute.xlu0 %1405
      %1407 = vrot.lane.b32.xlu0 %v541, 48
      %v1408 = vpop.permute.xlu0 %1407
      %1409 = vrot.lane.b32.xlu0 %v543, 48
      %v1410 = vpop.permute.xlu0 %1409
      %1411 = vrot.lane.b32.xlu0 %v545, 48
      %v1412 = vpop.permute.xlu0 %1411
      %1413 = vrot.lane.b32.xlu0 %v547, 48
      %v1414 = vpop.permute.xlu0 %1413
      %1415 = vrot.lane.b32.xlu0 %v549, 48
      %v1416 = vpop.permute.xlu0 %1415
      %1417 = vrot.lane.b32.xlu0 %v551, 48
      %v1418 = vpop.permute.xlu0 %1417
      %1419 = vrot.lane.b32.xlu0 %v553, 48
      %v1420 = vpop.permute.xlu0 %1419
      %1421 = vrot.lane.b32.xlu0 %v555, 48
      %v1422 = vpop.permute.xlu0 %1421
      %1455 = vrot.lane.b32.xlu0 %v630, 56
      %v1456 = vpop.permute.xlu0 %1455
      %1457 = vrot.lane.b32.xlu0 %v633, 56
      %v1458 = vpop.permute.xlu0 %1457
      %1459 = vrot.lane.b32.xlu0 %v636, 56
      %v1460 = vpop.permute.xlu0 %1459
      %1461 = vrot.lane.b32.xlu0 %v639, 56
      %v1462 = vpop.permute.xlu0 %1461
      %1463 = vrot.lane.b32.xlu0 %v642, 56
      %v1464 = vpop.permute.xlu0 %1463
      %1465 = vrot.lane.b32.xlu0 %v645, 56
      %v1466 = vpop.permute.xlu0 %1465
      %1467 = vrot.lane.b32.xlu0 %v825, 56
      %v1468 = vpop.permute.xlu0 %1467
      %1469 = vrot.lane.b32.xlu0 %v857, 56
      %v1470 = vpop.permute.xlu0 %1469
      %1471 = vrot.lane.b32.xlu0 %v654, 56
      %v1472 = vpop.permute.xlu0 %1471
      %1473 = vrot.lane.b32.xlu0 %v657, 56
      %v1474 = vpop.permute.xlu0 %1473
      %1475 = vrot.lane.b32.xlu0 %v660, 56
      %v1476 = vpop.permute.xlu0 %1475
      %1477 = vrot.lane.b32.xlu0 %v663, 56
      %v1478 = vpop.permute.xlu0 %1477
      %1479 = vrot.lane.b32.xlu0 %v666, 56
      %v1480 = vpop.permute.xlu0 %1479
      %1481 = vrot.lane.b32.xlu0 %v669, 56
      %v1482 = vpop.permute.xlu0 %1481
      %1483 = vrot.lane.b32.xlu0 %v828, 56
      %v1484 = vpop.permute.xlu0 %1483
      %1485 = vrot.lane.b32.xlu0 %v860, 56
      %v1486 = vpop.permute.xlu0 %1485
      %1487 = vrot.lane.b32.xlu0 %v678, 56
      %v1488 = vpop.permute.xlu0 %1487
      %1489 = vrot.lane.b32.xlu0 %v681, 56
      %v1490 = vpop.permute.xlu0 %1489
      %1491 = vrot.lane.b32.xlu0 %v684, 56
      %v1492 = vpop.permute.xlu0 %1491
      %1493 = vrot.lane.b32.xlu0 %v687, 56
      %v1494 = vpop.permute.xlu0 %1493
      %1495 = vrot.lane.b32.xlu0 %v690, 56
      %v1496 = vpop.permute.xlu0 %1495
      %1497 = vrot.lane.b32.xlu0 %v693, 56
      %v1498 = vpop.permute.xlu0 %1497
      %1499 = vrot.lane.b32.xlu0 %v831, 56
      %v1500 = vpop.permute.xlu0 %1499
      %1501 = vrot.lane.b32.xlu0 %v863, 56
      %v1502 = vpop.permute.xlu0 %1501
      %1503 = vrot.lane.b32.xlu0 %v702, 56
      %v1504 = vpop.permute.xlu0 %1503
      %1505 = vrot.lane.b32.xlu0 %v705, 56
      %v1506 = vpop.permute.xlu0 %1505
      %1507 = vrot.lane.b32.xlu0 %v708, 56
      %v1508 = vpop.permute.xlu0 %1507
      %1509 = vrot.lane.b32.xlu0 %v711, 56
      %v1510 = vpop.permute.xlu0 %1509
      %1511 = vrot.lane.b32.xlu0 %v714, 56
      %v1512 = vpop.permute.xlu0 %1511
      %1513 = vrot.lane.b32.xlu0 %v717, 56
      %v1514 = vpop.permute.xlu0 %1513
      %1515 = vrot.lane.b32.xlu0 %v834, 56
      %v1516 = vpop.permute.xlu0 %1515
      %1517 = vrot.lane.b32.xlu0 %v866, 56
      %v1518 = vpop.permute.xlu0 %1517
      %1551 = vrot.lane.b32.xlu0 %v727, 64
      %v1552 = vpop.permute.xlu0 %1551
      %1553 = vrot.lane.b32.xlu0 %v730, 64
      %v1554 = vpop.permute.xlu0 %1553
      %1555 = vrot.lane.b32.xlu0 %v733, 64
      %v1556 = vpop.permute.xlu0 %1555
      %1557 = vrot.lane.b32.xlu0 %v736, 64
      %v1558 = vpop.permute.xlu0 %1557
      %1559 = vrot.lane.b32.xlu0 %v739, 64
      %v1560 = vpop.permute.xlu0 %1559
      %1561 = vrot.lane.b32.xlu0 %v742, 64
      %v1562 = vpop.permute.xlu0 %1561
      %1563 = vrot.lane.b32.xlu0 %v837, 64
      %v1564 = vpop.permute.xlu0 %1563
      %1565 = vrot.lane.b32.xlu0 %v869, 64
      %v1566 = vpop.permute.xlu0 %1565
      %1567 = vrot.lane.b32.xlu0 %v751, 64
      %v1568 = vpop.permute.xlu0 %1567
      %1569 = vrot.lane.b32.xlu0 %v754, 64
      %v1570 = vpop.permute.xlu0 %1569
      %1571 = vrot.lane.b32.xlu0 %v757, 64
      %v1572 = vpop.permute.xlu0 %1571
      %1573 = vrot.lane.b32.xlu0 %v760, 64
      %v1574 = vpop.permute.xlu0 %1573
      %1575 = vrot.lane.b32.xlu0 %v763, 64
      %v1576 = vpop.permute.xlu0 %1575
      %1577 = vrot.lane.b32.xlu0 %v766, 64
      %v1578 = vpop.permute.xlu0 %1577
      %1579 = vrot.lane.b32.xlu0 %v840, 64
      %v1580 = vpop.permute.xlu0 %1579
      %1581 = vrot.lane.b32.xlu0 %v872, 64
      %v1582 = vpop.permute.xlu0 %1581
      %1583 = vrot.lane.b32.xlu0 %v775, 64
      %v1584 = vpop.permute.xlu0 %1583
      %1585 = vrot.lane.b32.xlu0 %v778, 64
      %v1586 = vpop.permute.xlu0 %1585
      %1587 = vrot.lane.b32.xlu0 %v781, 64
      %v1588 = vpop.permute.xlu0 %1587
      %1589 = vrot.lane.b32.xlu0 %v784, 64
      %v1590 = vpop.permute.xlu0 %1589
      %1591 = vrot.lane.b32.xlu0 %v787, 64
      %v1592 = vpop.permute.xlu0 %1591
      %1593 = vrot.lane.b32.xlu0 %v790, 64
      %v1594 = vpop.permute.xlu0 %1593
      %1595 = vrot.lane.b32.xlu0 %v843, 64
      %v1596 = vpop.permute.xlu0 %1595
      %1597 = vrot.lane.b32.xlu0 %v875, 64
      %v1598 = vpop.permute.xlu0 %1597
      %1599 = vrot.lane.b32.xlu0 %v799, 64
      %v1600 = vpop.permute.xlu0 %1599
      %1601 = vrot.lane.b32.xlu0 %v802, 64
      %v1602 = vpop.permute.xlu0 %1601
      %1603 = vrot.lane.b32.xlu0 %v805, 64
      %v1604 = vpop.permute.xlu0 %1603
      %1605 = vrot.lane.b32.xlu0 %v808, 64
      %v1606 = vpop.permute.xlu0 %1605
      %1607 = vrot.lane.b32.xlu0 %v811, 64
      %v1608 = vpop.permute.xlu0 %1607
      %1609 = vrot.lane.b32.xlu0 %v814, 64
      %v1610 = vpop.permute.xlu0 %1609
      %1611 = vrot.lane.b32.xlu0 %v846, 64
      %v1612 = vpop.permute.xlu0 %1611
      %1613 = vrot.lane.b32.xlu0 %v878, 64
      %v1614 = vpop.permute.xlu0 %1613
      %v1647 = vsel %vm279, %v477, %v880
      %v1648 = vsel %vm279, %v479, %v882
      %v1649 = vsel %vm279, %v481, %v884
      %v1650 = vsel %vm279, %v483, %v886
      %v1651 = vsel %vm279, %v485, %v888
      %v1652 = vsel %vm279, %v487, %v890
      %v1653 = vsel %vm279, %v489, %v892
      %v1654 = vsel %vm279, %v491, %v894
      %v1655 = vsel %vm279, %v497, %v896
      %v1656 = vsel %vm279, %v499, %v898
      %v1657 = vsel %vm279, %v501, %v900
      %v1658 = vsel %vm279, %v503, %v902
      %v1659 = vsel %vm279, %v505, %v904
      %v1660 = vsel %vm279, %v507, %v906
      %v1661 = vsel %vm279, %v509, %v908
      %v1662 = vsel %vm279, %v511, %v910
      %v1663 = vsel %vm279, %v517, %v912
      %v1664 = vsel %vm279, %v519, %v914
      %v1665 = vsel %vm279, %v521, %v916
      %v1666 = vsel %vm279, %v523, %v918
      %v1667 = vsel %vm279, %v525, %v920
      %v1668 = vsel %vm279, %v527, %v922
      %v1669 = vsel %vm279, %v529, %v924
      %v1670 = vsel %vm279, %v531, %v926
      %v1671 = vsel %vm279, %v537, %v928
      %v1672 = vsel %vm279, %v539, %v930
      %v1673 = vsel %vm279, %v541, %v932
      %v1674 = vsel %vm279, %v543, %v934
      %v1675 = vsel %vm279, %v545, %v936
      %v1676 = vsel %vm279, %v547, %v938
      %v1677 = vsel %vm279, %v549, %v940
      %v1678 = vsel %vm279, %v551, %v942
      %vm1679 = vcmask 130048
      %v1680 = vsel %vm1679, %v1647, %v976
      %v1681 = vsel %vm1679, %v1648, %v978
      %v1682 = vsel %vm1679, %v1649, %v980
      %v1683 = vsel %vm1679, %v1650, %v982
      %v1684 = vsel %vm1679, %v1651, %v984
      %v1685 = vsel %vm1679, %v1652, %v986
      %v1686 = vsel %vm1679, %v1653, %v988
      %v1687 = vsel %vm1679, %v1654, %v990
      %v1688 = vsel %vm1679, %v1655, %v992
      %v1689 = vsel %vm1679, %v1656, %v994
      %v1690 = vsel %vm1679, %v1657, %v996
      %v1691 = vsel %vm1679, %v1658, %v998
      %v1692 = vsel %vm1679, %v1659, %v1000
      %v1693 = vsel %vm1679, %v1660, %v1002
      %v1694 = vsel %vm1679, %v1661, %v1004
      %v1695 = vsel %vm1679, %v1662, %v1006
      %v1696 = vsel %vm1679, %v1663, %v1008
      %v1697 = vsel %vm1679, %v1664, %v1010
      %v1698 = vsel %vm1679, %v1665, %v1012
      %v1699 = vsel %vm1679, %v1666, %v1014
      %v1700 = vsel %vm1679, %v1667, %v1016
      %v1701 = vsel %vm1679, %v1668, %v1018
      %v1702 = vsel %vm1679, %v1669, %v1020
      %v1703 = vsel %vm1679, %v1670, %v1022
      %v1704 = vsel %vm1679, %v1671, %v1024
      %v1705 = vsel %vm1679, %v1672, %v1026
      %v1706 = vsel %vm1679, %v1673, %v1028
      %v1707 = vsel %vm1679, %v1674, %v1030
      %v1708 = vsel %vm1679, %v1675, %v1032
      %v1709 = vsel %vm1679, %v1676, %v1034
      %v1710 = vsel %vm1679, %v1677, %v1036
      %v1711 = vsel %vm1679, %v1678, %v1038
      %vm1712 = vcmask 195584
      %v1713 = vsel %vm1712, %v1680, %v1072
      %v1714 = vsel %vm1712, %v1681, %v1074
      %v1715 = vsel %vm1712, %v1682, %v1076
      %v1716 = vsel %vm1712, %v1683, %v1078
      %v1717 = vsel %vm1712, %v1684, %v1080
      %v1718 = vsel %vm1712, %v1685, %v1082
      %v1719 = vsel %vm1712, %v1686, %v1084
      %v1720 = vsel %vm1712, %v1687, %v1086
      %v1721 = vsel %vm1712, %v1688, %v1088
      %v1722 = vsel %vm1712, %v1689, %v1090
      %v1723 = vsel %vm1712, %v1690, %v1092
      %v1724 = vsel %vm1712, %v1691, %v1094
      %v1725 = vsel %vm1712, %v1692, %v1096
      %v1726 = vsel %vm1712, %v1693, %v1098
      %v1727 = vsel %vm1712, %v1694, %v1100
      %v1728 = vsel %vm1712, %v1695, %v1102
      %v1729 = vsel %vm1712, %v1696, %v1104
      %v1730 = vsel %vm1712, %v1697, %v1106
      %v1731 = vsel %vm1712, %v1698, %v1108
      %v1732 = vsel %vm1712, %v1699, %v1110
      %v1733 = vsel %vm1712, %v1700, %v1112
      %v1734 = vsel %vm1712, %v1701, %v1114
      %v1735 = vsel %vm1712, %v1702, %v1116
      %v1736 = vsel %vm1712, %v1703, %v1118
      %v1737 = vsel %vm1712, %v1704, %v1120
      %v1738 = vsel %vm1712, %v1705, %v1122
      %v1739 = vsel %vm1712, %v1706, %v1124
      %v1740 = vsel %vm1712, %v1707, %v1126
      %v1741 = vsel %vm1712, %v1708, %v1128
      %v1742 = vsel %vm1712, %v1709, %v1130
      %v1743 = vsel %vm1712, %v1710, %v1132
      %v1744 = vsel %vm1712, %v1711, %v1134
      %vm1745 = vcmask 261120
      %v1746 = vsel %vm1745, %v1713, %v1168
      %v1747 = vsel %vm1745, %v1714, %v1170
      %v1748 = vsel %vm1745, %v1715, %v1172
      %v1749 = vsel %vm1745, %v1716, %v1174
      %v1750 = vsel %vm1745, %v1717, %v1176
      %v1751 = vsel %vm1745, %v1718, %v1178
      %v1752 = vsel %vm1745, %v1719, %v1180
      %v1753 = vsel %vm1745, %v1720, %v1182
      %v1754 = vsel %vm1745, %v1721, %v1184
      %v1755 = vsel %vm1745, %v1722, %v1186
      %v1756 = vsel %vm1745, %v1723, %v1188
      %v1757 = vsel %vm1745, %v1724, %v1190
      %v1758 = vsel %vm1745, %v1725, %v1192
      %v1759 = vsel %vm1745, %v1726, %v1194
      %v1760 = vsel %vm1745, %v1727, %v1196
      %v1761 = vsel %vm1745, %v1728, %v1198
      %v1762 = vsel %vm1745, %v1729, %v1200
      %v1763 = vsel %vm1745, %v1730, %v1202
      %v1764 = vsel %vm1745, %v1731, %v1204
      %v1765 = vsel %vm1745, %v1732, %v1206
      %v1766 = vsel %vm1745, %v1733, %v1208
      %v1767 = vsel %vm1745, %v1734, %v1210
      %v1768 = vsel %vm1745, %v1735, %v1212
      %v1769 = vsel %vm1745, %v1736, %v1214
      %v1770 = vsel %vm1745, %v1737, %v1216
      %v1771 = vsel %vm1745, %v1738, %v1218
      %v1772 = vsel %vm1745, %v1739, %v1220
      %v1773 = vsel %vm1745, %v1740, %v1222
      %v1774 = vsel %vm1745, %v1741, %v1224
      %v1775 = vsel %vm1745, %v1742, %v1226
      %v1776 = vsel %vm1745, %v1743, %v1228
      %v1777 = vsel %vm1745, %v1744, %v1230
      %vm1778 = vcmask 326656
      %v1779 = vsel %vm1778, %v1746, %v1264
      %v1780 = vsel %vm1778, %v1747, %v1266
      %v1781 = vsel %vm1778, %v1748, %v1268
      %v1782 = vsel %vm1778, %v1749, %v1270
      %v1783 = vsel %vm1778, %v1750, %v1272
      %v1784 = vsel %vm1778, %v1751, %v1274
      %v1785 = vsel %vm1778, %v1752, %v1276
      %v1786 = vsel %vm1778, %v1753, %v1278
      %v1787 = vsel %vm1778, %v1754, %v1280
      %v1788 = vsel %vm1778, %v1755, %v1282
      %v1789 = vsel %vm1778, %v1756, %v1284
      %v1790 = vsel %vm1778, %v1757, %v1286
      %v1791 = vsel %vm1778, %v1758, %v1288
      %v1792 = vsel %vm1778, %v1759, %v1290
      %v1793 = vsel %vm1778, %v1760, %v1292
      %v1794 = vsel %vm1778, %v1761, %v1294
      %v1795 = vsel %vm1778, %v1762, %v1296
      %v1796 = vsel %vm1778, %v1763, %v1298
      %v1797 = vsel %vm1778, %v1764, %v1300
      %v1798 = vsel %vm1778, %v1765, %v1302
      %v1799 = vsel %vm1778, %v1766, %v1304
      %v1800 = vsel %vm1778, %v1767, %v1306
      %v1801 = vsel %vm1778, %v1768, %v1308
      %v1802 = vsel %vm1778, %v1769, %v1310
      %v1803 = vsel %vm1778, %v1770, %v1312
      %v1804 = vsel %vm1778, %v1771, %v1314
      %v1805 = vsel %vm1778, %v1772, %v1316
      %v1806 = vsel %vm1778, %v1773, %v1318
      %v1807 = vsel %vm1778, %v1774, %v1320
      %v1808 = vsel %vm1778, %v1775, %v1322
      %v1809 = vsel %vm1778, %v1776, %v1324
      %v1810 = vsel %vm1778, %v1777, %v1326
      %vm1811 = vcmask 392192
      %v1812 = vsel %vm1811, %v1779, %v1360
      %v1813 = vsel %vm1811, %v1780, %v1362
      %v1814 = vsel %vm1811, %v1781, %v1364
      %v1815 = vsel %vm1811, %v1782, %v1366
      %v1816 = vsel %vm1811, %v1783, %v1368
      %v1817 = vsel %vm1811, %v1784, %v1370
      %v1818 = vsel %vm1811, %v1785, %v1372
      %v1819 = vsel %vm1811, %v1786, %v1374
      %v1820 = vsel %vm1811, %v1787, %v1376
      %v1821 = vsel %vm1811, %v1788, %v1378
      %v1822 = vsel %vm1811, %v1789, %v1380
      %v1823 = vsel %vm1811, %v1790, %v1382
      %v1824 = vsel %vm1811, %v1791, %v1384
      %v1825 = vsel %vm1811, %v1792, %v1386
      %v1826 = vsel %vm1811, %v1793, %v1388
      %v1827 = vsel %vm1811, %v1794, %v1390
      %v1828 = vsel %vm1811, %v1795, %v1392
      %v1829 = vsel %vm1811, %v1796, %v1394
      %v1830 = vsel %vm1811, %v1797, %v1396
      %v1831 = vsel %vm1811, %v1798, %v1398
      %v1832 = vsel %vm1811, %v1799, %v1400
      %v1833 = vsel %vm1811, %v1800, %v1402
      %v1834 = vsel %vm1811, %v1801, %v1404
      %v1835 = vsel %vm1811, %v1802, %v1406
      %v1836 = vsel %vm1811, %v1803, %v1408
      %v1837 = vsel %vm1811, %v1804, %v1410
      %v1838 = vsel %vm1811, %v1805, %v1412
      %v1839 = vsel %vm1811, %v1806, %v1414
      %v1840 = vsel %vm1811, %v1807, %v1416
      %v1841 = vsel %vm1811, %v1808, %v1418
      %v1842 = vsel %vm1811, %v1809, %v1420
      %v1843 = vsel %vm1811, %v1810, %v1422
      %vm1844 = vcmask 457728
      %v1845 = vsel %vm1844, %v1812, %v1456
      %v1846 = vsel %vm1844, %v1813, %v1458
      %v1847 = vsel %vm1844, %v1814, %v1460
      %v1848 = vsel %vm1844, %v1815, %v1462
      %v1849 = vsel %vm1844, %v1816, %v1464
      %v1850 = vsel %vm1844, %v1817, %v1466
      %v1851 = vsel %vm1844, %v1818, %v1468
      %v1852 = vsel %vm1844, %v1819, %v1470
      %v1853 = vsel %vm1844, %v1820, %v1472
      %v1854 = vsel %vm1844, %v1821, %v1474
      %v1855 = vsel %vm1844, %v1822, %v1476
      %v1856 = vsel %vm1844, %v1823, %v1478
      %v1857 = vsel %vm1844, %v1824, %v1480
      %v1858 = vsel %vm1844, %v1825, %v1482
      %v1859 = vsel %vm1844, %v1826, %v1484
      %v1860 = vsel %vm1844, %v1827, %v1486
      %v1861 = vsel %vm1844, %v1828, %v1488
      %v1862 = vsel %vm1844, %v1829, %v1490
      %v1863 = vsel %vm1844, %v1830, %v1492
      %v1864 = vsel %vm1844, %v1831, %v1494
      %v1865 = vsel %vm1844, %v1832, %v1496
      %v1866 = vsel %vm1844, %v1833, %v1498
      %v1867 = vsel %vm1844, %v1834, %v1500
      %v1868 = vsel %vm1844, %v1835, %v1502
      %v1869 = vsel %vm1844, %v1836, %v1504
      %v1870 = vsel %vm1844, %v1837, %v1506
      %v1871 = vsel %vm1844, %v1838, %v1508
      %v1872 = vsel %vm1844, %v1839, %v1510
      %v1873 = vsel %vm1844, %v1840, %v1512
      %v1874 = vsel %vm1844, %v1841, %v1514
      %v1875 = vsel %vm1844, %v1842, %v1516
      %v1876 = vsel %vm1844, %v1843, %v1518
      %vm1877 = vcmask 523264
      %v1878 = vsel %vm1877, %v1845, %v1552
      %v1879 = vsel %vm1877, %v1846, %v1554
      %v1880 = vsel %vm1877, %v1847, %v1556
      %v1881 = vsel %vm1877, %v1848, %v1558
      %v1882 = vsel %vm1877, %v1849, %v1560
      %v1883 = vsel %vm1877, %v1850, %v1562
      %v1884 = vsel %vm1877, %v1851, %v1564
      %v1885 = vsel %vm1877, %v1852, %v1566
      %v1886 = vsel %vm1877, %v1853, %v1568
      %v1887 = vsel %vm1877, %v1854, %v1570
      %v1888 = vsel %vm1877, %v1855, %v1572
      %v1889 = vsel %vm1877, %v1856, %v1574
      %v1890 = vsel %vm1877, %v1857, %v1576
      %v1891 = vsel %vm1877, %v1858, %v1578
      %v1892 = vsel %vm1877, %v1859, %v1580
      %v1893 = vsel %vm1877, %v1860, %v1582
      %v1894 = vsel %vm1877, %v1861, %v1584
      %v1895 = vsel %vm1877, %v1862, %v1586
      %v1896 = vsel %vm1877, %v1863, %v1588
      %v1897 = vsel %vm1877, %v1864, %v1590
      %v1898 = vsel %vm1877, %v1865, %v1592
      %v1899 = vsel %vm1877, %v1866, %v1594
      %v1900 = vsel %vm1877, %v1867, %v1596
      %v1901 = vsel %vm1877, %v1868, %v1598
      %v1902 = vsel %vm1877, %v1869, %v1600
      %v1903 = vsel %vm1877, %v1870, %v1602
      %v1904 = vsel %vm1877, %v1871, %v1604
      %v1905 = vsel %vm1877, %v1872, %v1606
      %v1906 = vsel %vm1877, %v1873, %v1608
      %v1907 = vsel %vm1877, %v1874, %v1610
      %v1908 = vsel %vm1877, %v1875, %v1612
      %v1909 = vsel %vm1877, %v1876, %v1614
      %v1910 = vld [vmem:[%s1] sm:$0xff]
      %v1911 = vld [vmem:[%s1 + $0x8] sm:$0xff]
      %v1912 = vld [vmem:[%s1 + $0x10] sm:$0xff]
      %v1913 = vld [vmem:[%s1 + $0x18] sm:$0xff]
      %v1914 = vld [vmem:[%s1 + $0x20] sm:$0xff]
      %v1915 = vld [vmem:[%s1 + $0x28] sm:$0xff]
      %v1916 = vld [vmem:[%s1 + $0x30] sm:$0xff]
      %v1917 = vld [vmem:[%s1 + $0x38] sm:$0xff]
      %v1918 = vld [vmem:[%s1 + $0x40] sm:$0xff]
      %vm1919 = vcmask 588800
      %v1921 = vsel %vm1919, %v1878, 0
      %v1924 = vsel %vm1919, %v1879, 0
      %v1927 = vsel %vm1919, %v1880, 0
      %v1930 = vsel %vm1919, %v1881, 0
      %v1933 = vsel %vm1919, %v1882, 0
      %v1936 = vsel %vm1919, %v1883, 0
      %v1939 = vsel %vm1919, %v1884, 0
      %v1942 = vsel %vm1919, %v1885, 0
      %v1945 = vsel %vm1919, %v1886, 0
      %v1948 = vsel %vm1919, %v1887, 0
      %v1951 = vsel %vm1919, %v1888, 0
      %v1954 = vsel %vm1919, %v1889, 0
      %v1957 = vsel %vm1919, %v1890, 0
      %v1960 = vsel %vm1919, %v1891, 0
      %v1963 = vsel %vm1919, %v1892, 0
      %v1966 = vsel %vm1919, %v1893, 0
      %v1969 = vsel %vm1919, %v1894, 0
      %v1972 = vsel %vm1919, %v1895, 0
      %v1975 = vsel %vm1919, %v1896, 0
      %v1978 = vsel %vm1919, %v1897, 0
      %v1981 = vsel %vm1919, %v1898, 0
      %v1984 = vsel %vm1919, %v1899, 0
      %v1987 = vsel %vm1919, %v1900, 0
      %v1990 = vsel %vm1919, %v1901, 0
      %v1993 = vsel %vm1919, %v1902, 0
      %v1996 = vsel %vm1919, %v1903, 0
      %v1999 = vsel %vm1919, %v1904, 0
      %v2002 = vsel %vm1919, %v1905, 0
      %v2005 = vsel %vm1919, %v1906, 0
      %v2008 = vsel %vm1919, %v1907, 0
      %v2011 = vsel %vm1919, %v1908, 0
      %v2014 = vsel %vm1919, %v1909, 0
      %2016 = vmatprep.subr.mxu0 0.0
      %2017 = vmatpush1.msra.mxu0 0.0
      %2018 = vmatprep.subr.mxu0 0.0
      %2019 = vmatpush1.msra.mxu0 0.0
      %2020 = vmatprep.subr.mxu0 0.0
      %2021 = vmatpush1.msra.mxu0 0.0
      %2022 = vmatprep.subr.mxu0 0.0
      %2023 = vmatpush1.msra.mxu0 0.0
      %2024 = vmatprep.subr.mxu0 0.0
      %2025 = vmatpush1.msra.mxu0 0.0
      %2026 = vmatprep.subr.mxu0 0.0
      %2027 = vmatpush1.msra.mxu0 0.0
      %2028 = vmatprep.subr.mxu0 0.0
      %2029 = vmatpush1.msra.mxu0 0.0
      %2030 = vmatprep.subr.mxu0 0.0
      %2031 = vmatpush1.msra.mxu0 %v1918
      %2032 = vmatprep.subr.mxu0 0.0
      %2033 = vmatpush1.msra.mxu0 %v1917
      %2034 = vmatprep.subr.mxu0 0.0
      %2035 = vmatpush1.msra.mxu0 %v1916
      %2036 = vmatprep.subr.mxu0 0.0
      %2037 = vmatpush1.msra.mxu0 %v1915
      %2038 = vmatprep.subr.mxu0 0.0
      %2039 = vmatpush1.msra.mxu0 %v1914
      %2040 = vmatprep.subr.mxu0 0.0
      %2041 = vmatpush1.msra.mxu0 %v1913
      %2042 = vmatprep.subr.mxu0 0.0
      %2043 = vmatpush1.msra.mxu0 %v1912
      %2044 = vmatprep.subr.mxu0 0.0
      %2045 = vmatpush1.msra.mxu0 %v1911
      %2046 = vmatprep.subr.mxu0 0.0
      %2047 = vmatpush1.msra.mxu0 %v1910
      %2048 = vmatprep.subr.mxu0 0.0
      %2049 = vmatpush2.msra.mxu0 0.0
      %2050 = vmatprep.subr.mxu0 0.0
      %2051 = vmatpush2.msra.mxu0 0.0
      %2052 = vmatprep.subr.mxu0 0.0
      %2053 = vmatpush2.msra.mxu0 0.0
      %2054 = vmatprep.subr.mxu0 0.0
      %2055 = vmatpush2.msra.mxu0 0.0
      %2056 = vmatprep.subr.mxu0 0.0
      %2057 = vmatpush2.msra.mxu0 0.0
      %2058 = vmatprep.subr.mxu0 0.0
      %2059 = vmatpush2.msra.mxu0 0.0
      %2060 = vmatprep.subr.mxu0 0.0
      %2061 = vmatpush2.msra.mxu0 0.0
      %2062 = vmatprep.subr.mxu0 0.0
      %2063 = vmatpush2.msra.mxu0 0.0
      %2064 = vmatprep.subr.mxu0 0.0
      %2065 = vmatpush2.msra.mxu0 0.0
      %2066 = vmatprep.subr.mxu0 0.0
      %2067 = vmatpush2.msra.mxu0 0.0
      %2068 = vmatprep.subr.mxu0 0.0
      %2069 = vmatpush2.msra.mxu0 0.0
      %2070 = vmatprep.subr.mxu0 0.0
      %2071 = vmatpush2.msra.mxu0 0.0
      %2072 = vmatprep.subr.mxu0 0.0
      %2073 = vmatpush2.msra.mxu0 0.0
      %2074 = vmatprep.subr.mxu0 0.0
      %2075 = vmatpush2.msra.mxu0 0.0
      %2076 = vmatprep.subr.mxu0 0.0
      %2077 = vmatpush2.msra.mxu0 0.0
      %2078 = vmatprep.subr.mxu0 0.0
      %2079 = vmatpush2.msra.mxu0 0.0
      %2080 = vmatprep.mubr.f32.mxu0 0.0
      %2081 = vmatmul.mubr.f32.gmra.mxu0 %v1921
      %v2082 = vpop.f32.mrf.mxu0
      %v2083 = vadd.f32 0.0, %v2082
      %v2084 = vpop.f32.mrf.mxu0
      %2085 = vmatprep.mubr.f32.mxu0 0.0
      %2086 = vmatmul.mubr.f32.gmra.mxu0 %v1924
      %v2087 = vpop.f32.mrf.mxu0
      %v2088 = vadd.f32 0.0, %v2087
      %v2089 = vpop.f32.mrf.mxu0
      %2090 = vmatprep.mubr.f32.mxu0 0.0
      %2091 = vmatmul.mubr.f32.gmra.mxu0 %v1927
      %v2092 = vpop.f32.mrf.mxu0
      %v2093 = vadd.f32 0.0, %v2092
      %v2094 = vpop.f32.mrf.mxu0
      %2095 = vmatprep.mubr.f32.mxu0 0.0
      %2096 = vmatmul.mubr.f32.gmra.mxu0 %v1930
      %v2097 = vpop.f32.mrf.mxu0
      %v2098 = vadd.f32 0.0, %v2097
      %v2099 = vpop.f32.mrf.mxu0
      %2100 = vmatprep.mubr.f32.mxu0 0.0
      %2101 = vmatmul.mubr.f32.gmra.mxu0 %v1933
      %v2102 = vpop.f32.mrf.mxu0
      %v2103 = vadd.f32 0.0, %v2102
      %v2104 = vpop.f32.mrf.mxu0
      %2105 = vmatprep.mubr.f32.mxu0 0.0
      %2106 = vmatmul.mubr.f32.gmra.mxu0 %v1936
      %v2107 = vpop.f32.mrf.mxu0
      %v2108 = vadd.f32 0.0, %v2107
      %v2109 = vpop.f32.mrf.mxu0
      %2110 = vmatprep.mubr.f32.mxu0 0.0
      %2111 = vmatmul.mubr.f32.gmra.mxu0 %v1939
      %v2112 = vpop.f32.mrf.mxu0
      %v2113 = vadd.f32 0.0, %v2112
      %v2114 = vpop.f32.mrf.mxu0
      %2115 = vmatprep.mubr.f32.mxu0 0.0
      %2116 = vmatmul.mubr.f32.gmra.mxu0 %v1942
      %v2117 = vpop.f32.mrf.mxu0
      %v2118 = vadd.f32 0.0, %v2117
      %v2119 = vpop.f32.mrf.mxu0
      %2120 = vmatprep.mubr.f32.mxu0 0.0
      %2121 = vmatmul.mubr.f32.gmra.mxu0 %v1945
      %v2122 = vpop.f32.mrf.mxu0
      %v2123 = vadd.f32 0.0, %v2122
      %v2124 = vpop.f32.mrf.mxu0
      %2125 = vmatprep.mubr.f32.mxu0 0.0
      %2126 = vmatmul.mubr.f32.gmra.mxu0 %v1948
      %v2127 = vpop.f32.mrf.mxu0
      %v2128 = vadd.f32 0.0, %v2127
      %v2129 = vpop.f32.mrf.mxu0
      %2130 = vmatprep.mubr.f32.mxu0 0.0
      %2131 = vmatmul.mubr.f32.gmra.mxu0 %v1951
      %v2132 = vpop.f32.mrf.mxu0
      %v2133 = vadd.f32 0.0, %v2132
      %v2134 = vpop.f32.mrf.mxu0
      %2135 = vmatprep.mubr.f32.mxu0 0.0
      %2136 = vmatmul.mubr.f32.gmra.mxu0 %v1954
      %v2137 = vpop.f32.mrf.mxu0
      %v2138 = vadd.f32 0.0, %v2137
      %v2139 = vpop.f32.mrf.mxu0
      %2140 = vmatprep.mubr.f32.mxu0 0.0
      %2141 = vmatmul.mubr.f32.gmra.mxu0 %v1957
      %v2142 = vpop.f32.mrf.mxu0
      %v2143 = vadd.f32 0.0, %v2142
      %v2144 = vpop.f32.mrf.mxu0
      %2145 = vmatprep.mubr.f32.mxu0 0.0
      %2146 = vmatmul.mubr.f32.gmra.mxu0 %v1960
      %v2147 = vpop.f32.mrf.mxu0
      %v2148 = vadd.f32 0.0, %v2147
      %v2149 = vpop.f32.mrf.mxu0
      %2150 = vmatprep.mubr.f32.mxu0 0.0
      %2151 = vmatmul.mubr.f32.gmra.mxu0 %v1963
      %v2152 = vpop.f32.mrf.mxu0
      %v2153 = vadd.f32 0.0, %v2152
      %v2154 = vpop.f32.mrf.mxu0
      %2155 = vmatprep.mubr.f32.mxu0 0.0
      %2156 = vmatmul.mubr.f32.gmra.mxu0 %v1966
      %v2157 = vpop.f32.mrf.mxu0
      %v2158 = vadd.f32 0.0, %v2157
      %v2159 = vpop.f32.mrf.mxu0
      %2160 = vmatprep.mubr.f32.mxu0 0.0
      %2161 = vmatmul.mubr.f32.gmra.mxu0 %v1969
      %v2162 = vpop.f32.mrf.mxu0
      %v2163 = vadd.f32 0.0, %v2162
      %v2164 = vpop.f32.mrf.mxu0
      %2165 = vmatprep.mubr.f32.mxu0 0.0
      %2166 = vmatmul.mubr.f32.gmra.mxu0 %v1972
      %v2167 = vpop.f32.mrf.mxu0
      %v2168 = vadd.f32 0.0, %v2167
      %v2169 = vpop.f32.mrf.mxu0
      %2170 = vmatprep.mubr.f32.mxu0 0.0
      %2171 = vmatmul.mubr.f32.gmra.mxu0 %v1975
      %v2172 = vpop.f32.mrf.mxu0
      %v2173 = vadd.f32 0.0, %v2172
      %v2174 = vpop.f32.mrf.mxu0
      %2175 = vmatprep.mubr.f32.mxu0 0.0
      %2176 = vmatmul.mubr.f32.gmra.mxu0 %v1978
      %v2177 = vpop.f32.mrf.mxu0
      %v2178 = vadd.f32 0.0, %v2177
      %v2179 = vpop.f32.mrf.mxu0
      %2180 = vmatprep.mubr.f32.mxu0 0.0
      %2181 = vmatmul.mubr.f32.gmra.mxu0 %v1981
      %v2182 = vpop.f32.mrf.mxu0
      %v2183 = vadd.f32 0.0, %v2182
      %v2184 = vpop.f32.mrf.mxu0
      %2185 = vmatprep.mubr.f32.mxu0 0.0
      %2186 = vmatmul.mubr.f32.gmra.mxu0 %v1984
      %v2187 = vpop.f32.mrf.mxu0
      %v2188 = vadd.f32 0.0, %v2187
      %v2189 = vpop.f32.mrf.mxu0
      %2190 = vmatprep.mubr.f32.mxu0 0.0
      %2191 = vmatmul.mubr.f32.gmra.mxu0 %v1987
      %v2192 = vpop.f32.mrf.mxu0
      %v2193 = vadd.f32 0.0, %v2192
      %v2194 = vpop.f32.mrf.mxu0
      %2195 = vmatprep.mubr.f32.mxu0 0.0
      %2196 = vmatmul.mubr.f32.gmra.mxu0 %v1990
      %v2197 = vpop.f32.mrf.mxu0
      %v2198 = vadd.f32 0.0, %v2197
      %v2199 = vpop.f32.mrf.mxu0
      %2200 = vmatprep.mubr.f32.mxu0 0.0
      %2201 = vmatmul.mubr.f32.gmra.mxu0 %v1993
      %v2202 = vpop.f32.mrf.mxu0
      %v2203 = vadd.f32 0.0, %v2202
      %v2204 = vpop.f32.mrf.mxu0
      %2205 = vmatprep.mubr.f32.mxu0 0.0
      %2206 = vmatmul.mubr.f32.gmra.mxu0 %v1996
      %v2207 = vpop.f32.mrf.mxu0
      %v2208 = vadd.f32 0.0, %v2207
      %v2209 = vpop.f32.mrf.mxu0
      %2210 = vmatprep.mubr.f32.mxu0 0.0
      %2211 = vmatmul.mubr.f32.gmra.mxu0 %v1999
      %v2212 = vpop.f32.mrf.mxu0
      %v2213 = vadd.f32 0.0, %v2212
      %v2214 = vpop.f32.mrf.mxu0
      %2215 = vmatprep.mubr.f32.mxu0 0.0
      %2216 = vmatmul.mubr.f32.gmra.mxu0 %v2002
      %v2217 = vpop.f32.mrf.mxu0
      %v2218 = vadd.f32 0.0, %v2217
      %v2219 = vpop.f32.mrf.mxu0
      %2220 = vmatprep.mubr.f32.mxu0 0.0
      %2221 = vmatmul.mubr.f32.gmra.mxu0 %v2005
      %v2222 = vpop.f32.mrf.mxu0
      %v2223 = vadd.f32 0.0, %v2222
      %v2224 = vpop.f32.mrf.mxu0
      %2225 = vmatprep.mubr.f32.mxu0 0.0
      %2226 = vmatmul.mubr.f32.gmra.mxu0 %v2008
      %v2227 = vpop.f32.mrf.mxu0
      %v2228 = vadd.f32 0.0, %v2227
      %v2229 = vpop.f32.mrf.mxu0
      %2230 = vmatprep.mubr.f32.mxu0 0.0
      %2231 = vmatmul.mubr.f32.gmra.mxu0 %v2011
      %v2232 = vpop.f32.mrf.mxu0
      %v2233 = vadd.f32 0.0, %v2232
      %v2234 = vpop.f32.mrf.mxu0
      %2235 = vmatprep.mubr.f32.mxu0 0.0
      %2236 = vmatmul.mubr.f32.gmra.mxu0 %v2014
      %v2237 = vpop.f32.mrf.mxu0
      %v2238 = vadd.f32 0.0, %v2237
      %v2239 = vpop.f32.mrf.mxu0
      %2240 = vdwg.mxu0
      %v2241 = vld [vmem:[%s2] sm:$0x1]
      %v2243 = vlaneseq
      %v2244 = vshrl.u32 %v2243, 7
      %v2245 = vsub.s32 0, %v2244
      %v2246 = vrot.slane %v2241, %v2245
      %v2248 = vmul.f32 %v2083, %v2246
      %v2249 = vmul.f32 %v2088, %v2246
      %v2250 = vmul.f32 %v2093, %v2246
      %v2251 = vmul.f32 %v2098, %v2246
      %v2252 = vmul.f32 %v2103, %v2246
      %v2253 = vmul.f32 %v2108, %v2246
      %v2254 = vmul.f32 %v2113, %v2246
      %v2255 = vmul.f32 %v2118, %v2246
      %v2256 = vmul.f32 %v2123, %v2246
      %v2257 = vmul.f32 %v2128, %v2246
      %v2258 = vmul.f32 %v2133, %v2246
      %v2259 = vmul.f32 %v2138, %v2246
      %v2260 = vmul.f32 %v2143, %v2246
      %v2261 = vmul.f32 %v2148, %v2246
      %v2262 = vmul.f32 %v2153, %v2246
      %v2263 = vmul.f32 %v2158, %v2246
      %v2264 = vmul.f32 %v2163, %v2246
      %v2265 = vmul.f32 %v2168, %v2246
      %v2266 = vmul.f32 %v2173, %v2246
      %v2267 = vmul.f32 %v2178, %v2246
      %v2268 = vmul.f32 %v2183, %v2246
      %v2269 = vmul.f32 %v2188, %v2246
      %v2270 = vmul.f32 %v2193, %v2246
      %v2271 = vmul.f32 %v2198, %v2246
      %v2272 = vmul.f32 %v2203, %v2246
      %v2273 = vmul.f32 %v2208, %v2246
      %v2274 = vmul.f32 %v2213, %v2246
      %v2275 = vmul.f32 %v2218, %v2246
      %v2276 = vmul.f32 %v2223, %v2246
      %v2277 = vmul.f32 %v2228, %v2246
      %v2278 = vmul.f32 %v2233, %v2246
      %v2279 = vmul.f32 %v2238, %v2246
      %v2280 = vld [vmem:[%s3] sm:$0x1]
      %v2282 = vlaneseq
      %v2283 = vshrl.u32 %v2282, 7
      %v2284 = vsub.s32 0, %v2283
      %v2285 = vrot.slane %v2280, %v2284
      %v2287 = vadd.f32 %v2248, %v2285
      %v2288 = vadd.f32 %v2249, %v2285
      %v2289 = vadd.f32 %v2250, %v2285
      %v2290 = vadd.f32 %v2251, %v2285
      %v2291 = vadd.f32 %v2252, %v2285
      %v2292 = vadd.f32 %v2253, %v2285
      %v2293 = vadd.f32 %v2254, %v2285
      %v2294 = vadd.f32 %v2255, %v2285
      %v2295 = vadd.f32 %v2256, %v2285
      %v2296 = vadd.f32 %v2257, %v2285
      %v2297 = vadd.f32 %v2258, %v2285
      %v2298 = vadd.f32 %v2259, %v2285
      %v2299 = vadd.f32 %v2260, %v2285
      %v2300 = vadd.f32 %v2261, %v2285
      %v2301 = vadd.f32 %v2262, %v2285
      %v2302 = vadd.f32 %v2263, %v2285
      %v2303 = vadd.f32 %v2264, %v2285
      %v2304 = vadd.f32 %v2265, %v2285
      %v2305 = vadd.f32 %v2266, %v2285
      %v2306 = vadd.f32 %v2267, %v2285
      %v2307 = vadd.f32 %v2268, %v2285
      %v2308 = vadd.f32 %v2269, %v2285
      %v2309 = vadd.f32 %v2270, %v2285
      %v2310 = vadd.f32 %v2271, %v2285
      %v2311 = vadd.f32 %v2272, %v2285
      %v2312 = vadd.f32 %v2273, %v2285
      %v2313 = vadd.f32 %v2274, %v2285
      %v2314 = vadd.f32 %v2275, %v2285
      %v2315 = vadd.f32 %v2276, %v2285
      %v2316 = vadd.f32 %v2277, %v2285
      %v2317 = vadd.f32 %v2278, %v2285
      %v2318 = vadd.f32 %v2279, %v2285
      %v2319 = vmax.f32 %v2287, 0.0
      %v2320 = vmax.f32 %v2288, 0.0
      %v2321 = vmax.f32 %v2289, 0.0
      %v2322 = vmax.f32 %v2290, 0.0
      %v2323 = vmax.f32 %v2291, 0.0
      %v2324 = vmax.f32 %v2292, 0.0
      %v2325 = vmax.f32 %v2293, 0.0
      %v2326 = vmax.f32 %v2294, 0.0
      %v2327 = vmax.f32 %v2295, 0.0
      %v2328 = vmax.f32 %v2296, 0.0
      %v2329 = vmax.f32 %v2297, 0.0
      %v2330 = vmax.f32 %v2298, 0.0
      %v2331 = vmax.f32 %v2299, 0.0
      %v2332 = vmax.f32 %v2300, 0.0
      %v2333 = vmax.f32 %v2301, 0.0
      %v2334 = vmax.f32 %v2302, 0.0
      %v2335 = vmax.f32 %v2303, 0.0
      %v2336 = vmax.f32 %v2304, 0.0
      %v2337 = vmax.f32 %v2305, 0.0
      %v2338 = vmax.f32 %v2306, 0.0
      %v2339 = vmax.f32 %v2307, 0.0
      %v2340 = vmax.f32 %v2308, 0.0
      %v2341 = vmax.f32 %v2309, 0.0
      %v2342 = vmax.f32 %v2310, 0.0
      %v2343 = vmax.f32 %v2311, 0.0
      %v2344 = vmax.f32 %v2312, 0.0
      %v2345 = vmax.f32 %v2313, 0.0
      %v2346 = vmax.f32 %v2314, 0.0
      %v2347 = vmax.f32 %v2315, 0.0
      %v2348 = vmax.f32 %v2316, 0.0
      %v2349 = vmax.f32 %v2317, 0.0
      %v2350 = vmax.f32 %v2318, 0.0
      %s2351 = scalar_lea.vmem [#allocation3], 64
      %2352 = vst.msk [vmem:[%s2351] sm:$0xff] %vm279, %v2319
      %2353 = vst.msk [vmem:[%s2351 + $0x8] sm:$0xff] %vm279, %v2320
      %2354 = vst.msk [vmem:[%s2351 + $0x10] sm:$0xff] %vm279, %v2321
      %2355 = vst.msk [vmem:[%s2351 + $0x18] sm:$0xff] %vm279, %v2322
      %2356 = vst.msk [vmem:[%s2351 + $0x20] sm:$0xff] %vm279, %v2323
      %2357 = vst.msk [vmem:[%s2351 + $0x28] sm:$0xff] %vm279, %v2324
      %2358 = vst.msk [vmem:[%s2351 + $0x30] sm:$0xff] %vm279, %v2325
      %2359 = vst.msk [vmem:[%s2351 + $0x38] sm:$0xff] %vm279, %v2326
      %2360 = vst.msk [vmem:[%s2351 + $0x40] sm:$0xff] %vm279, %v2327
      %2361 = vst.msk [vmem:[%s2351 + $0x48] sm:$0xff] %vm279, %v2328
      %2362 = vst.msk [vmem:[%s2351 + $0x50] sm:$0xff] %vm279, %v2329
      %2363 = vst.msk [vmem:[%s2351 + $0x58] sm:$0xff] %vm279, %v2330
      %2364 = vst.msk [vmem:[%s2351 + $0x60] sm:$0xff] %vm279, %v2331
      %2365 = vst.msk [vmem:[%s2351 + $0x68] sm:$0xff] %vm279, %v2332
      %2366 = vst.msk [vmem:[%s2351 + $0x70] sm:$0xff] %vm279, %v2333
      %2367 = vst.msk [vmem:[%s2351 + $0x78] sm:$0xff] %vm279, %v2334
      %2368 = vst.msk [vmem:[%s2351 + $0x80] sm:$0xff] %vm279, %v2335
      %2369 = vst.msk [vmem:[%s2351 + $0x88] sm:$0xff] %vm279, %v2336
      %2370 = vst.msk [vmem:[%s2351 + $0x90] sm:$0xff] %vm279, %v2337
      %2371 = vst.msk [vmem:[%s2351 + $0x98] sm:$0xff] %vm279, %v2338
      %2372 = vst.msk [vmem:[%s2351 + $0xa0] sm:$0xff] %vm279, %v2339
      %2373 = vst.msk [vmem:[%s2351 + $0xa8] sm:$0xff] %vm279, %v2340
      %2374 = vst.msk [vmem:[%s2351 + $0xb0] sm:$0xff] %vm279, %v2341
      %2375 = vst.msk [vmem:[%s2351 + $0xb8] sm:$0xff] %vm279, %v2342
      %2376 = vst.msk [vmem:[%s2351 + $0xc0] sm:$0xff] %vm279, %v2343
      %2377 = vst.msk [vmem:[%s2351 + $0xc8] sm:$0xff] %vm279, %v2344
      %2378 = vst.msk [vmem:[%s2351 + $0xd0] sm:$0xff] %vm279, %v2345
      %2379 = vst.msk [vmem:[%s2351 + $0xd8] sm:$0xff] %vm279, %v2346
      %2380 = vst.msk [vmem:[%s2351 + $0xe0] sm:$0xff] %vm279, %v2347
      %2381 = vst.msk [vmem:[%s2351 + $0xe8] sm:$0xff] %vm279, %v2348
      %2382 = vst.msk [vmem:[%s2351 + $0xf0] sm:$0xff] %vm279, %v2349
      %2383 = vst.msk [vmem:[%s2351 + $0xf8] sm:$0xff] %vm279, %v2350
      %v2384 = vld [vmem:[#allocation3] sm:$0xff]
      %v2385 = vld [vmem:[#allocation3 + $0x8] sm:$0xff]
      %v2386 = vld [vmem:[#allocation3 + $0x10] sm:$0xff]
      %v2387 = vld [vmem:[#allocation3 + $0x18] sm:$0xff]
      %v2388 = vld [vmem:[#allocation3 + $0x20] sm:$0xff]
      %v2389 = vld [vmem:[#allocation3 + $0x28] sm:$0xff]
      %v2390 = vld [vmem:[#allocation3 + $0x30] sm:$0xff]
      %v2391 = vld [vmem:[#allocation3 + $0x38] sm:$0xff]
      %v2392 = vld [vmem:[#allocation3 + $0x40] sm:$0xff]
      %v2393 = vld [vmem:[#allocation3 + $0x48] sm:$0xff]
      %v2394 = vld [vmem:[#allocation3 + $0x50] sm:$0xff]
      %v2395 = vld [vmem:[#allocation3 + $0x58] sm:$0xff]
      %v2396 = vld [vmem:[#allocation3 + $0x60] sm:$0xff]
      %v2397 = vld [vmem:[#allocation3 + $0x68] sm:$0xff]
      %v2398 = vld [vmem:[#allocation3 + $0x70] sm:$0xff]
      %v2399 = vld [vmem:[#allocation3 + $0x78] sm:$0xff]
      %v2400 = vld [vmem:[#allocation3 + $0x80] sm:$0xff]
      %v2401 = vld [vmem:[#allocation3 + $0x88] sm:$0xff]
      %v2402 = vld [vmem:[#allocation3 + $0x90] sm:$0xff]
      %v2403 = vld [vmem:[#allocation3 + $0x98] sm:$0xff]
      %v2404 = vld [vmem:[#allocation3 + $0xa0] sm:$0xff]
      %v2405 = vld [vmem:[#allocation3 + $0xa8] sm:$0xff]
      %v2406 = vld [vmem:[#allocation3 + $0xb0] sm:$0xff]
      %v2407 = vld [vmem:[#allocation3 + $0xb8] sm:$0xff]
      %v2408 = vld [vmem:[#allocation3 + $0xc0] sm:$0xff]
      %v2409 = vld [vmem:[#allocation3 + $0xc8] sm:$0xff]
      %v2410 = vld [vmem:[#allocation3 + $0xd0] sm:$0xff]
      %v2411 = vld [vmem:[#allocation3 + $0xd8] sm:$0xff]
      %v2412 = vld [vmem:[#allocation3 + $0xe0] sm:$0xff]
      %v2413 = vld [vmem:[#allocation3 + $0xe8] sm:$0xff]
      %v2414 = vld [vmem:[#allocation3 + $0xf0] sm:$0xff]
      %v2415 = vld [vmem:[#allocation3 + $0xf8] sm:$0xff]
      %v2416 = vld [vmem:[#allocation3 + $0x100] sm:$0xff]
      %v2417 = vld [vmem:[#allocation3 + $0x108] sm:$0xff]
      %v2418 = vld [vmem:[#allocation3 + $0x110] sm:$0xff]
      %v2419 = vld [vmem:[#allocation3 + $0x118] sm:$0xff]
      %v2420 = vld [vmem:[#allocation3 + $0x120] sm:$0xff]
      %v2421 = vld [vmem:[#allocation3 + $0x128] sm:$0xff]
      %v2422 = vld [vmem:[#allocation3 + $0x130] sm:$0xff]
      %v2423 = vld [vmem:[#allocation3 + $0x138] sm:$0xff]
      %v2424 = vld [vmem:[#allocation3 + $0x140] sm:$0xff]
      %v2425 = vld [vmem:[#allocation3 + $0x148] sm:$0xff]
      %v2426 = vld [vmem:[#allocation3 + $0x150] sm:$0xff]
      %v2427 = vld [vmem:[#allocation3 + $0x158] sm:$0xff]
      %v2428 = vld [vmem:[#allocation3 + $0x160] sm:$0xff]
      %v2429 = vld [vmem:[#allocation3 + $0x168] sm:$0xff]
      %v2430 = vld [vmem:[#allocation3 + $0x170] sm:$0xff]
      %v2431 = vld [vmem:[#allocation3 + $0x178] sm:$0xff]
      %2464 = vrot.lane.b32.xlu0 %v2392, 8
      %v2465 = vpop.permute.xlu0 %2464
      %2466 = vrot.lane.b32.xlu0 %v2393, 8
      %v2467 = vpop.permute.xlu0 %2466
      %2468 = vrot.lane.b32.xlu0 %v2394, 8
      %v2469 = vpop.permute.xlu0 %2468
      %2470 = vrot.lane.b32.xlu0 %v2395, 8
      %v2471 = vpop.permute.xlu0 %2470
      %2472 = vrot.lane.b32.xlu0 %v2396, 8
      %v2473 = vpop.permute.xlu0 %2472
      %2474 = vrot.lane.b32.xlu0 %v2397, 8
      %v2475 = vpop.permute.xlu0 %2474
      %2476 = vrot.lane.b32.xlu0 %v2398, 8
      %v2477 = vpop.permute.xlu0 %2476
      %2478 = vrot.lane.b32.xlu0 %v2399, 8
      %v2479 = vpop.permute.xlu0 %2478
      %2480 = vrot.lane.b32.xlu0 %v2400, 8
      %v2481 = vpop.permute.xlu0 %2480
      %2482 = vrot.lane.b32.xlu0 %v2401, 8
      %v2483 = vpop.permute.xlu0 %2482
      %2484 = vrot.lane.b32.xlu0 %v2402, 8
      %v2485 = vpop.permute.xlu0 %2484
      %2486 = vrot.lane.b32.xlu0 %v2403, 8
      %v2487 = vpop.permute.xlu0 %2486
      %2488 = vrot.lane.b32.xlu0 %v2404, 8
      %v2489 = vpop.permute.xlu0 %2488
      %2490 = vrot.lane.b32.xlu0 %v2405, 8
      %v2491 = vpop.permute.xlu0 %2490
      %2492 = vrot.lane.b32.xlu0 %v2406, 8
      %v2493 = vpop.permute.xlu0 %2492
      %2494 = vrot.lane.b32.xlu0 %v2407, 8
      %v2495 = vpop.permute.xlu0 %2494
      %2496 = vrot.lane.b32.xlu0 %v2408, 8
      %v2497 = vpop.permute.xlu0 %2496
      %2498 = vrot.lane.b32.xlu0 %v2409, 8
      %v2499 = vpop.permute.xlu0 %2498
      %2500 = vrot.lane.b32.xlu0 %v2410, 8
      %v2501 = vpop.permute.xlu0 %2500
      %2502 = vrot.lane.b32.xlu0 %v2411, 8
      %v2503 = vpop.permute.xlu0 %2502
      %2504 = vrot.lane.b32.xlu0 %v2412, 8
      %v2505 = vpop.permute.xlu0 %2504
      %2506 = vrot.lane.b32.xlu0 %v2413, 8
      %v2507 = vpop.permute.xlu0 %2506
      %2508 = vrot.lane.b32.xlu0 %v2414, 8
      %v2509 = vpop.permute.xlu0 %2508
      %2510 = vrot.lane.b32.xlu0 %v2415, 8
      %v2511 = vpop.permute.xlu0 %2510
      %2512 = vrot.lane.b32.xlu0 %v2416, 8
      %v2513 = vpop.permute.xlu0 %2512
      %2514 = vrot.lane.b32.xlu0 %v2417, 8
      %v2515 = vpop.permute.xlu0 %2514
      %2516 = vrot.lane.b32.xlu0 %v2418, 8
      %v2517 = vpop.permute.xlu0 %2516
      %2518 = vrot.lane.b32.xlu0 %v2419, 8
      %v2519 = vpop.permute.xlu0 %2518
      %2520 = vrot.lane.b32.xlu0 %v2420, 8
      %v2521 = vpop.permute.xlu0 %2520
      %2522 = vrot.lane.b32.xlu0 %v2421, 8
      %v2523 = vpop.permute.xlu0 %2522
      %2524 = vrot.lane.b32.xlu0 %v2422, 8
      %v2525 = vpop.permute.xlu0 %2524
      %2526 = vrot.lane.b32.xlu0 %v2423, 8
      %v2527 = vpop.permute.xlu0 %2526
      %2568 = vrot.lane.b32.xlu0 %v2400, 16
      %v2569 = vpop.permute.xlu0 %2568
      %2570 = vrot.lane.b32.xlu0 %v2401, 16
      %v2571 = vpop.permute.xlu0 %2570
      %2572 = vrot.lane.b32.xlu0 %v2402, 16
      %v2573 = vpop.permute.xlu0 %2572
      %2574 = vrot.lane.b32.xlu0 %v2403, 16
      %v2575 = vpop.permute.xlu0 %2574
      %2576 = vrot.lane.b32.xlu0 %v2404, 16
      %v2577 = vpop.permute.xlu0 %2576
      %2578 = vrot.lane.b32.xlu0 %v2405, 16
      %v2579 = vpop.permute.xlu0 %2578
      %2580 = vrot.lane.b32.xlu0 %v2406, 16
      %v2581 = vpop.permute.xlu0 %2580
      %2582 = vrot.lane.b32.xlu0 %v2407, 16
      %v2583 = vpop.permute.xlu0 %2582
      %2584 = vrot.lane.b32.xlu0 %v2408, 16
      %v2585 = vpop.permute.xlu0 %2584
      %2586 = vrot.lane.b32.xlu0 %v2409, 16
      %v2587 = vpop.permute.xlu0 %2586
      %2588 = vrot.lane.b32.xlu0 %v2410, 16
      %v2589 = vpop.permute.xlu0 %2588
      %2590 = vrot.lane.b32.xlu0 %v2411, 16
      %v2591 = vpop.permute.xlu0 %2590
      %2592 = vrot.lane.b32.xlu0 %v2412, 16
      %v2593 = vpop.permute.xlu0 %2592
      %2594 = vrot.lane.b32.xlu0 %v2413, 16
      %v2595 = vpop.permute.xlu0 %2594
      %2596 = vrot.lane.b32.xlu0 %v2414, 16
      %v2597 = vpop.permute.xlu0 %2596
      %2598 = vrot.lane.b32.xlu0 %v2415, 16
      %v2599 = vpop.permute.xlu0 %2598
      %2600 = vrot.lane.b32.xlu0 %v2416, 16
      %v2601 = vpop.permute.xlu0 %2600
      %2602 = vrot.lane.b32.xlu0 %v2417, 16
      %v2603 = vpop.permute.xlu0 %2602
      %2604 = vrot.lane.b32.xlu0 %v2418, 16
      %v2605 = vpop.permute.xlu0 %2604
      %2606 = vrot.lane.b32.xlu0 %v2419, 16
      %v2607 = vpop.permute.xlu0 %2606
      %2608 = vrot.lane.b32.xlu0 %v2420, 16
      %v2609 = vpop.permute.xlu0 %2608
      %2610 = vrot.lane.b32.xlu0 %v2421, 16
      %v2611 = vpop.permute.xlu0 %2610
      %2612 = vrot.lane.b32.xlu0 %v2422, 16
      %v2613 = vpop.permute.xlu0 %2612
      %2614 = vrot.lane.b32.xlu0 %v2423, 16
      %v2615 = vpop.permute.xlu0 %2614
      %2616 = vrot.lane.b32.xlu0 %v2424, 16
      %v2617 = vpop.permute.xlu0 %2616
      %2618 = vrot.lane.b32.xlu0 %v2425, 16
      %v2619 = vpop.permute.xlu0 %2618
      %2620 = vrot.lane.b32.xlu0 %v2426, 16
      %v2621 = vpop.permute.xlu0 %2620
      %2622 = vrot.lane.b32.xlu0 %v2427, 16
      %v2623 = vpop.permute.xlu0 %2622
      %2624 = vrot.lane.b32.xlu0 %v2428, 16
      %v2625 = vpop.permute.xlu0 %2624
      %2626 = vrot.lane.b32.xlu0 %v2429, 16
      %v2627 = vpop.permute.xlu0 %2626
      %2628 = vrot.lane.b32.xlu0 %v2430, 16
      %v2629 = vpop.permute.xlu0 %2628
      %2630 = vrot.lane.b32.xlu0 %v2431, 16
      %v2631 = vpop.permute.xlu0 %2630
      %v2664 = vsel %vm279, %v2384, %v2465
      %v2665 = vsel %vm279, %v2385, %v2467
      %v2666 = vsel %vm279, %v2386, %v2469
      %v2667 = vsel %vm279, %v2387, %v2471
      %v2668 = vsel %vm279, %v2388, %v2473
      %v2669 = vsel %vm279, %v2389, %v2475
      %v2670 = vsel %vm279, %v2390, %v2477
      %v2671 = vsel %vm279, %v2391, %v2479
      %v2672 = vsel %vm279, %v2392, %v2481
      %v2673 = vsel %vm279, %v2393, %v2483
      %v2674 = vsel %vm279, %v2394, %v2485
      %v2675 = vsel %vm279, %v2395, %v2487
      %v2676 = vsel %vm279, %v2396, %v2489
      %v2677 = vsel %vm279, %v2397, %v2491
      %v2678 = vsel %vm279, %v2398, %v2493
      %v2679 = vsel %vm279, %v2399, %v2495
      %v2680 = vsel %vm279, %v2400, %v2497
      %v2681 = vsel %vm279, %v2401, %v2499
      %v2682 = vsel %vm279, %v2402, %v2501
      %v2683 = vsel %vm279, %v2403, %v2503
      %v2684 = vsel %vm279, %v2404, %v2505
      %v2685 = vsel %vm279, %v2405, %v2507
      %v2686 = vsel %vm279, %v2406, %v2509
      %v2687 = vsel %vm279, %v2407, %v2511
      %v2688 = vsel %vm279, %v2408, %v2513
      %v2689 = vsel %vm279, %v2409, %v2515
      %v2690 = vsel %vm279, %v2410, %v2517
      %v2691 = vsel %vm279, %v2411, %v2519
      %v2692 = vsel %vm279, %v2412, %v2521
      %v2693 = vsel %vm279, %v2413, %v2523
      %v2694 = vsel %vm279, %v2414, %v2525
      %v2695 = vsel %vm279, %v2415, %v2527
      %v2696 = vsel %vm1679, %v2664, %v2569
      %v2697 = vsel %vm1679, %v2665, %v2571
      %v2698 = vsel %vm1679, %v2666, %v2573
      %v2699 = vsel %vm1679, %v2667, %v2575
      %v2700 = vsel %vm1679, %v2668, %v2577
      %v2701 = vsel %vm1679, %v2669, %v2579
      %v2702 = vsel %vm1679, %v2670, %v2581
      %v2703 = vsel %vm1679, %v2671, %v2583
      %v2704 = vsel %vm1679, %v2672, %v2585
      %v2705 = vsel %vm1679, %v2673, %v2587
      %v2706 = vsel %vm1679, %v2674, %v2589
      %v2707 = vsel %vm1679, %v2675, %v2591
      %v2708 = vsel %vm1679, %v2676, %v2593
      %v2709 = vsel %vm1679, %v2677, %v2595
      %v2710 = vsel %vm1679, %v2678, %v2597
      %v2711 = vsel %vm1679, %v2679, %v2599
      %v2712 = vsel %vm1679, %v2680, %v2601
      %v2713 = vsel %vm1679, %v2681, %v2603
      %v2714 = vsel %vm1679, %v2682, %v2605
      %v2715 = vsel %vm1679, %v2683, %v2607
      %v2716 = vsel %vm1679, %v2684, %v2609
      %v2717 = vsel %vm1679, %v2685, %v2611
      %v2718 = vsel %vm1679, %v2686, %v2613
      %v2719 = vsel %vm1679, %v2687, %v2615
      %v2720 = vsel %vm1679, %v2688, %v2617
      %v2721 = vsel %vm1679, %v2689, %v2619
      %v2722 = vsel %vm1679, %v2690, %v2621
      %v2723 = vsel %vm1679, %v2691, %v2623
      %v2724 = vsel %vm1679, %v2692, %v2625
      %v2725 = vsel %vm1679, %v2693, %v2627
      %v2726 = vsel %vm1679, %v2694, %v2629
      %v2727 = vsel %vm1679, %v2695, %v2631
      %v2728 = vld [vmem:[%s4] sm:$0xff]
      %v2729 = vld [vmem:[%s4 + $0x8] sm:$0xff]
      %v2730 = vld [vmem:[%s4 + $0x10] sm:$0xff]
      %v2731 = vld [vmem:[%s5] sm:$0x1]
      %v2733 = vlaneseq
      %v2734 = vshrl.u32 %v2733, 7
      %v2735 = vsub.s32 0, %v2734
      %v2736 = vrot.slane %v2731, %v2735
      %v2739 = vsel %vm1712, %v2696, 0
      %v2742 = vsel %vm1712, %v2697, 0
      %v2745 = vsel %vm1712, %v2698, 0
      %v2748 = vsel %vm1712, %v2699, 0
      %v2751 = vsel %vm1712, %v2700, 0
      %v2754 = vsel %vm1712, %v2701, 0
      %v2757 = vsel %vm1712, %v2702, 0
      %v2760 = vsel %vm1712, %v2703, 0
      %v2763 = vsel %vm1712, %v2704, 0
      %v2766 = vsel %vm1712, %v2705, 0
      %v2769 = vsel %vm1712, %v2706, 0
      %v2772 = vsel %vm1712, %v2707, 0
      %v2775 = vsel %vm1712, %v2708, 0
      %v2778 = vsel %vm1712, %v2709, 0
      %v2781 = vsel %vm1712, %v2710, 0
      %v2784 = vsel %vm1712, %v2711, 0
      %v2787 = vsel %vm1712, %v2712, 0
      %v2790 = vsel %vm1712, %v2713, 0
      %v2793 = vsel %vm1712, %v2714, 0
      %v2796 = vsel %vm1712, %v2715, 0
      %v2799 = vsel %vm1712, %v2716, 0
      %v2802 = vsel %vm1712, %v2717, 0
      %v2805 = vsel %vm1712, %v2718, 0
      %v2808 = vsel %vm1712, %v2719, 0
      %v2811 = vsel %vm1712, %v2720, 0
      %v2814 = vsel %vm1712, %v2721, 0
      %v2817 = vsel %vm1712, %v2722, 0
      %v2820 = vsel %vm1712, %v2723, 0
      %v2823 = vsel %vm1712, %v2724, 0
      %v2826 = vsel %vm1712, %v2725, 0
      %v2829 = vsel %vm1712, %v2726, 0
      %v2832 = vsel %vm1712, %v2727, 0
      %2834 = vmatprep.subr.mxu0 0.0
      %2835 = vmatpush1.msra.mxu0 0.0
      %2836 = vmatprep.subr.mxu0 0.0
      %2837 = vmatpush1.msra.mxu0 0.0
      %2838 = vmatprep.subr.mxu0 0.0
      %2839 = vmatpush1.msra.mxu0 0.0
      %2840 = vmatprep.subr.mxu0 0.0
      %2841 = vmatpush1.msra.mxu0 0.0
      %2842 = vmatprep.subr.mxu0 0.0
      %2843 = vmatpush1.msra.mxu0 0.0
      %2844 = vmatprep.subr.mxu0 0.0
      %2845 = vmatpush1.msra.mxu0 0.0
      %2846 = vmatprep.subr.mxu0 0.0
      %2847 = vmatpush1.msra.mxu0 0.0
      %2848 = vmatprep.subr.mxu0 0.0
      %2849 = vmatpush1.msra.mxu0 0.0
      %2850 = vmatprep.subr.mxu0 0.0
      %2851 = vmatpush1.msra.mxu0 0.0
      %2852 = vmatprep.subr.mxu0 0.0
      %2853 = vmatpush1.msra.mxu0 0.0
      %2854 = vmatprep.subr.mxu0 0.0
      %2855 = vmatpush1.msra.mxu0 0.0
      %2856 = vmatprep.subr.mxu0 0.0
      %2857 = vmatpush1.msra.mxu0 0.0
      %2858 = vmatprep.subr.mxu0 0.0
      %2859 = vmatpush1.msra.mxu0 0.0
      %2860 = vmatprep.subr.mxu0 0.0
      %2861 = vmatpush1.msra.mxu0 %v2730
      %2862 = vmatprep.subr.mxu0 0.0
      %2863 = vmatpush1.msra.mxu0 %v2729
      %2864 = vmatprep.subr.mxu0 0.0
      %2865 = vmatpush1.msra.mxu0 %v2728
      %2866 = vmatprep.subr.mxu0 0.0
      %2867 = vmatpush2.msra.mxu0 0.0
      %2868 = vmatprep.subr.mxu0 0.0
      %2869 = vmatpush2.msra.mxu0 0.0
      %2870 = vmatprep.subr.mxu0 0.0
      %2871 = vmatpush2.msra.mxu0 0.0
      %2872 = vmatprep.subr.mxu0 0.0
      %2873 = vmatpush2.msra.mxu0 0.0
      %2874 = vmatprep.subr.mxu0 0.0
      %2875 = vmatpush2.msra.mxu0 0.0
      %2876 = vmatprep.subr.mxu0 0.0
      %2877 = vmatpush2.msra.mxu0 0.0
      %2878 = vmatprep.subr.mxu0 0.0
      %2879 = vmatpush2.msra.mxu0 0.0
      %2880 = vmatprep.subr.mxu0 0.0
      %2881 = vmatpush2.msra.mxu0 0.0
      %2882 = vmatprep.subr.mxu0 0.0
      %2883 = vmatpush2.msra.mxu0 0.0
      %2884 = vmatprep.subr.mxu0 0.0
      %2885 = vmatpush2.msra.mxu0 0.0
      %2886 = vmatprep.subr.mxu0 0.0
      %2887 = vmatpush2.msra.mxu0 0.0
      %2888 = vmatprep.subr.mxu0 0.0
      %2889 = vmatpush2.msra.mxu0 0.0
      %2890 = vmatprep.subr.mxu0 0.0
      %2891 = vmatpush2.msra.mxu0 0.0
      %2892 = vmatprep.subr.mxu0 0.0
      %2893 = vmatpush2.msra.mxu0 0.0
      %2894 = vmatprep.subr.mxu0 0.0
      %2895 = vmatpush2.msra.mxu0 0.0
      %2896 = vmatprep.subr.mxu0 0.0
      %2897 = vmatpush2.msra.mxu0 0.0
      %2898 = vmatprep.mubr.f32.mxu0 0.0
      %2899 = vmatmul.mubr.f32.gmra.mxu0 %v2739
      %v2900 = vpop.f32.mrf.mxu0
      %v2901 = vadd.f32 %v2736, %v2900
      %v2902 = vpop.f32.mrf.mxu0
      %2903 = vmatprep.mubr.f32.mxu0 0.0
      %2904 = vmatmul.mubr.f32.gmra.mxu0 %v2742
      %v2905 = vpop.f32.mrf.mxu0
      %v2906 = vadd.f32 %v2736, %v2905
      %v2907 = vpop.f32.mrf.mxu0
      %2908 = vmatprep.mubr.f32.mxu0 0.0
      %2909 = vmatmul.mubr.f32.gmra.mxu0 %v2745
      %v2910 = vpop.f32.mrf.mxu0
      %v2911 = vadd.f32 %v2736, %v2910
      %v2912 = vpop.f32.mrf.mxu0
      %2913 = vmatprep.mubr.f32.mxu0 0.0
      %2914 = vmatmul.mubr.f32.gmra.mxu0 %v2748
      %v2915 = vpop.f32.mrf.mxu0
      %v2916 = vadd.f32 %v2736, %v2915
      %v2917 = vpop.f32.mrf.mxu0
      %2918 = vmatprep.mubr.f32.mxu0 0.0
      %2919 = vmatmul.mubr.f32.gmra.mxu0 %v2751
      %v2920 = vpop.f32.mrf.mxu0
      %v2921 = vadd.f32 %v2736, %v2920
      %v2922 = vpop.f32.mrf.mxu0
      %2923 = vmatprep.mubr.f32.mxu0 0.0
      %2924 = vmatmul.mubr.f32.gmra.mxu0 %v2754
      %v2925 = vpop.f32.mrf.mxu0
      %v2926 = vadd.f32 %v2736, %v2925
      %v2927 = vpop.f32.mrf.mxu0
      %2928 = vmatprep.mubr.f32.mxu0 0.0
      %2929 = vmatmul.mubr.f32.gmra.mxu0 %v2757
      %v2930 = vpop.f32.mrf.mxu0
      %v2931 = vadd.f32 %v2736, %v2930
      %v2932 = vpop.f32.mrf.mxu0
      %2933 = vmatprep.mubr.f32.mxu0 0.0
      %2934 = vmatmul.mubr.f32.gmra.mxu0 %v2760
      %v2935 = vpop.f32.mrf.mxu0
      %v2936 = vadd.f32 %v2736, %v2935
      %v2937 = vpop.f32.mrf.mxu0
      %2938 = vmatprep.mubr.f32.mxu0 0.0
      %2939 = vmatmul.mubr.f32.gmra.mxu0 %v2763
      %v2940 = vpop.f32.mrf.mxu0
      %v2941 = vadd.f32 %v2736, %v2940
      %v2942 = vpop.f32.mrf.mxu0
      %2943 = vmatprep.mubr.f32.mxu0 0.0
      %2944 = vmatmul.mubr.f32.gmra.mxu0 %v2766
      %v2945 = vpop.f32.mrf.mxu0
      %v2946 = vadd.f32 %v2736, %v2945
      %v2947 = vpop.f32.mrf.mxu0
      %2948 = vmatprep.mubr.f32.mxu0 0.0
      %2949 = vmatmul.mubr.f32.gmra.mxu0 %v2769
      %v2950 = vpop.f32.mrf.mxu0
      %v2951 = vadd.f32 %v2736, %v2950
      %v2952 = vpop.f32.mrf.mxu0
      %2953 = vmatprep.mubr.f32.mxu0 0.0
      %2954 = vmatmul.mubr.f32.gmra.mxu0 %v2772
      %v2955 = vpop.f32.mrf.mxu0
      %v2956 = vadd.f32 %v2736, %v2955
      %v2957 = vpop.f32.mrf.mxu0
      %2958 = vmatprep.mubr.f32.mxu0 0.0
      %2959 = vmatmul.mubr.f32.gmra.mxu0 %v2775
      %v2960 = vpop.f32.mrf.mxu0
      %v2961 = vadd.f32 %v2736, %v2960
      %v2962 = vpop.f32.mrf.mxu0
      %2963 = vmatprep.mubr.f32.mxu0 0.0
      %2964 = vmatmul.mubr.f32.gmra.mxu0 %v2778
      %v2965 = vpop.f32.mrf.mxu0
      %v2966 = vadd.f32 %v2736, %v2965
      %v2967 = vpop.f32.mrf.mxu0
      %2968 = vmatprep.mubr.f32.mxu0 0.0
      %2969 = vmatmul.mubr.f32.gmra.mxu0 %v2781
      %v2970 = vpop.f32.mrf.mxu0
      %v2971 = vadd.f32 %v2736, %v2970
      %v2972 = vpop.f32.mrf.mxu0
      %2973 = vmatprep.mubr.f32.mxu0 0.0
      %2974 = vmatmul.mubr.f32.gmra.mxu0 %v2784
      %v2975 = vpop.f32.mrf.mxu0
      %v2976 = vadd.f32 %v2736, %v2975
      %v2977 = vpop.f32.mrf.mxu0
      %2978 = vmatprep.mubr.f32.mxu0 0.0
      %2979 = vmatmul.mubr.f32.gmra.mxu0 %v2787
      %v2980 = vpop.f32.mrf.mxu0
      %v2981 = vadd.f32 %v2736, %v2980
      %v2982 = vpop.f32.mrf.mxu0
      %2983 = vmatprep.mubr.f32.mxu0 0.0
      %2984 = vmatmul.mubr.f32.gmra.mxu0 %v2790
      %v2985 = vpop.f32.mrf.mxu0
      %v2986 = vadd.f32 %v2736, %v2985
      %v2987 = vpop.f32.mrf.mxu0
      %2988 = vmatprep.mubr.f32.mxu0 0.0
      %2989 = vmatmul.mubr.f32.gmra.mxu0 %v2793
      %v2990 = vpop.f32.mrf.mxu0
      %v2991 = vadd.f32 %v2736, %v2990
      %v2992 = vpop.f32.mrf.mxu0
      %2993 = vmatprep.mubr.f32.mxu0 0.0
      %2994 = vmatmul.mubr.f32.gmra.mxu0 %v2796
      %v2995 = vpop.f32.mrf.mxu0
      %v2996 = vadd.f32 %v2736, %v2995
      %v2997 = vpop.f32.mrf.mxu0
      %2998 = vmatprep.mubr.f32.mxu0 0.0
      %2999 = vmatmul.mubr.f32.gmra.mxu0 %v2799
      %v3000 = vpop.f32.mrf.mxu0
      %v3001 = vadd.f32 %v2736, %v3000
      %v3002 = vpop.f32.mrf.mxu0
      %3003 = vmatprep.mubr.f32.mxu0 0.0
      %3004 = vmatmul.mubr.f32.gmra.mxu0 %v2802
      %v3005 = vpop.f32.mrf.mxu0
      %v3006 = vadd.f32 %v2736, %v3005
      %v3007 = vpop.f32.mrf.mxu0
      %3008 = vmatprep.mubr.f32.mxu0 0.0
      %3009 = vmatmul.mubr.f32.gmra.mxu0 %v2805
      %v3010 = vpop.f32.mrf.mxu0
      %v3011 = vadd.f32 %v2736, %v3010
      %v3012 = vpop.f32.mrf.mxu0
      %3013 = vmatprep.mubr.f32.mxu0 0.0
      %3014 = vmatmul.mubr.f32.gmra.mxu0 %v2808
      %v3015 = vpop.f32.mrf.mxu0
      %v3016 = vadd.f32 %v2736, %v3015
      %v3017 = vpop.f32.mrf.mxu0
      %3018 = vmatprep.mubr.f32.mxu0 0.0
      %3019 = vmatmul.mubr.f32.gmra.mxu0 %v2811
      %v3020 = vpop.f32.mrf.mxu0
      %v3021 = vadd.f32 %v2736, %v3020
      %v3022 = vpop.f32.mrf.mxu0
      %3023 = vmatprep.mubr.f32.mxu0 0.0
      %3024 = vmatmul.mubr.f32.gmra.mxu0 %v2814
      %v3025 = vpop.f32.mrf.mxu0
      %v3026 = vadd.f32 %v2736, %v3025
      %v3027 = vpop.f32.mrf.mxu0
      %3028 = vmatprep.mubr.f32.mxu0 0.0
      %3029 = vmatmul.mubr.f32.gmra.mxu0 %v2817
      %v3030 = vpop.f32.mrf.mxu0
      %v3031 = vadd.f32 %v2736, %v3030
      %v3032 = vpop.f32.mrf.mxu0
      %3033 = vmatprep.mubr.f32.mxu0 0.0
      %3034 = vmatmul.mubr.f32.gmra.mxu0 %v2820
      %v3035 = vpop.f32.mrf.mxu0
      %v3036 = vadd.f32 %v2736, %v3035
      %v3037 = vpop.f32.mrf.mxu0
      %3038 = vmatprep.mubr.f32.mxu0 0.0
      %3039 = vmatmul.mubr.f32.gmra.mxu0 %v2823
      %v3040 = vpop.f32.mrf.mxu0
      %v3041 = vadd.f32 %v2736, %v3040
      %v3042 = vpop.f32.mrf.mxu0
      %3043 = vmatprep.mubr.f32.mxu0 0.0
      %3044 = vmatmul.mubr.f32.gmra.mxu0 %v2826
      %v3045 = vpop.f32.mrf.mxu0
      %v3046 = vadd.f32 %v2736, %v3045
      %v3047 = vpop.f32.mrf.mxu0
      %3048 = vmatprep.mubr.f32.mxu0 0.0
      %3049 = vmatmul.mubr.f32.gmra.mxu0 %v2829
      %v3050 = vpop.f32.mrf.mxu0
      %v3051 = vadd.f32 %v2736, %v3050
      %v3052 = vpop.f32.mrf.mxu0
      %3053 = vmatprep.mubr.f32.mxu0 0.0
      %3054 = vmatmul.mubr.f32.gmra.mxu0 %v2832
      %v3055 = vpop.f32.mrf.mxu0
      %v3056 = vadd.f32 %v2736, %v3055
      %v3057 = vpop.f32.mrf.mxu0
      %3058 = vdwg.mxu0
      %v3059 = vmax.f32 %v2901, 0.0
      %v3060 = vmax.f32 %v2906, 0.0
      %v3061 = vmax.f32 %v2911, 0.0
      %v3062 = vmax.f32 %v2916, 0.0
      %v3063 = vmax.f32 %v2921, 0.0
      %v3064 = vmax.f32 %v2926, 0.0
      %v3065 = vmax.f32 %v2931, 0.0
      %v3066 = vmax.f32 %v2936, 0.0
      %v3067 = vmax.f32 %v2941, 0.0
      %v3068 = vmax.f32 %v2946, 0.0
      %v3069 = vmax.f32 %v2951, 0.0
      %v3070 = vmax.f32 %v2956, 0.0
      %v3071 = vmax.f32 %v2961, 0.0
      %v3072 = vmax.f32 %v2966, 0.0
      %v3073 = vmax.f32 %v2971, 0.0
      %v3074 = vmax.f32 %v2976, 0.0
      %v3075 = vmax.f32 %v2981, 0.0
      %v3076 = vmax.f32 %v2986, 0.0
      %v3077 = vmax.f32 %v2991, 0.0
      %v3078 = vmax.f32 %v2996, 0.0
      %v3079 = vmax.f32 %v3001, 0.0
      %v3080 = vmax.f32 %v3006, 0.0
      %v3081 = vmax.f32 %v3011, 0.0
      %v3082 = vmax.f32 %v3016, 0.0
      %v3083 = vmax.f32 %v3021, 0.0
      %v3084 = vmax.f32 %v3026, 0.0
      %v3085 = vmax.f32 %v3031, 0.0
      %v3086 = vmax.f32 %v3036, 0.0
      %v3087 = vmax.f32 %v3041, 0.0
      %v3088 = vmax.f32 %v3046, 0.0
      %v3089 = vmax.f32 %v3051, 0.0
      %v3090 = vmax.f32 %v3056, 0.0
      %v3091 = vsel %vm279, %v3059, 0.0
      %v3092 = vsel %vm279, %v3060, 0.0
      %v3093 = vadd.f32 %v3091, %v3092
      %v3094 = vsel %vm279, %v3061, 0.0
      %v3095 = vadd.f32 %v3093, %v3094
      %v3096 = vsel %vm279, %v3062, 0.0
      %v3097 = vadd.f32 %v3095, %v3096
      %v3098 = vsel %vm279, %v3063, 0.0
      %v3099 = vadd.f32 %v3097, %v3098
      %v3100 = vsel %vm279, %v3064, 0.0
      %v3101 = vadd.f32 %v3099, %v3100
      %v3102 = vsel %vm279, %v3065, 0.0
      %v3103 = vadd.f32 %v3101, %v3102
      %v3104 = vsel %vm279, %v3066, 0.0
      %v3105 = vadd.f32 %v3103, %v3104
      %v3106 = vsel %vm279, %v3067, 0.0
      %v3107 = vadd.f32 %v3105, %v3106
      %v3108 = vsel %vm279, %v3068, 0.0
      %v3109 = vadd.f32 %v3107, %v3108
      %v3110 = vsel %vm279, %v3069, 0.0
      %v3111 = vadd.f32 %v3109, %v3110
      %v3112 = vsel %vm279, %v3070, 0.0
      %v3113 = vadd.f32 %v3111, %v3112
      %v3114 = vsel %vm279, %v3071, 0.0
      %v3115 = vadd.f32 %v3113, %v3114
      %v3116 = vsel %vm279, %v3072, 0.0
      %v3117 = vadd.f32 %v3115, %v3116
      %v3118 = vsel %vm279, %v3073, 0.0
      %v3119 = vadd.f32 %v3117, %v3118
      %v3120 = vsel %vm279, %v3074, 0.0
      %v3121 = vadd.f32 %v3119, %v3120
      %v3122 = vsel %vm279, %v3075, 0.0
      %v3123 = vadd.f32 %v3121, %v3122
      %v3124 = vsel %vm279, %v3076, 0.0
      %v3125 = vadd.f32 %v3123, %v3124
      %v3126 = vsel %vm279, %v3077, 0.0
      %v3127 = vadd.f32 %v3125, %v3126
      %v3128 = vsel %vm279, %v3078, 0.0
      %v3129 = vadd.f32 %v3127, %v3128
      %v3130 = vsel %vm279, %v3079, 0.0
      %v3131 = vadd.f32 %v3129, %v3130
      %v3132 = vsel %vm279, %v3080, 0.0
      %v3133 = vadd.f32 %v3131, %v3132
      %v3134 = vsel %vm279, %v3081, 0.0
      %v3135 = vadd.f32 %v3133, %v3134
      %v3136 = vsel %vm279, %v3082, 0.0
      %v3137 = vadd.f32 %v3135, %v3136
      %v3138 = vsel %vm279, %v3083, 0.0
      %v3139 = vadd.f32 %v3137, %v3138
      %v3140 = vsel %vm279, %v3084, 0.0
      %v3141 = vadd.f32 %v3139, %v3140
      %v3142 = vsel %vm279, %v3085, 0.0
      %v3143 = vadd.f32 %v3141, %v3142
      %v3144 = vsel %vm279, %v3086, 0.0
      %v3145 = vadd.f32 %v3143, %v3144
      %v3146 = vsel %vm279, %v3087, 0.0
      %v3147 = vadd.f32 %v3145, %v3146
      %v3148 = vsel %vm279, %v3088, 0.0
      %v3149 = vadd.f32 %v3147, %v3148
      %v3150 = vsel %vm279, %v3089, 0.0
      %v3151 = vadd.f32 %v3149, %v3150
      %v3152 = vsel %vm279, %v3090, 0.0
      %v3153 = vadd.f32 %v3151, %v3152
      %v3154 = vrot.slane %v3153, 4
      %v3155 = vadd.f32 %v3153, %v3154
      %v3156 = vrot.slane %v3155, 2
      %v3157 = vadd.f32 %v3155, %v3156
      %v3158 = vrot.slane %v3157, 1
      %v3159 = vadd.f32 %v3157, %v3158
      %v3160 = vmul.f32 %v3159, 0.00390625
      %v3161 = vld [vmem:[%s6] sm:$0xff]
      %v3163 = vsel %vm279, %v3160, 0
      %3165 = vmatprep.subr.mxu0 0.0
      %3166 = vmatpush1.msra.mxu0 0.0
      %3167 = vmatprep.subr.mxu0 0.0
      %3168 = vmatpush1.msra.mxu0 0.0
      %3169 = vmatprep.subr.mxu0 0.0
      %3170 = vmatpush1.msra.mxu0 0.0
      %3171 = vmatprep.subr.mxu0 0.0
      %3172 = vmatpush1.msra.mxu0 0.0
      %3173 = vmatprep.subr.mxu0 0.0
      %3174 = vmatpush1.msra.mxu0 0.0
      %3175 = vmatprep.subr.mxu0 0.0
      %3176 = vmatpush1.msra.mxu0 0.0
      %3177 = vmatprep.subr.mxu0 0.0
      %3178 = vmatpush1.msra.mxu0 0.0
      %3179 = vmatprep.subr.mxu0 0.0
      %3180 = vmatpush1.msra.mxu0 0.0
      %3181 = vmatprep.subr.mxu0 0.0
      %3182 = vmatpush1.msra.mxu0 0.0
      %3183 = vmatprep.subr.mxu0 0.0
      %3184 = vmatpush1.msra.mxu0 0.0
      %3185 = vmatprep.subr.mxu0 0.0
      %3186 = vmatpush1.msra.mxu0 0.0
      %3187 = vmatprep.subr.mxu0 0.0
      %3188 = vmatpush1.msra.mxu0 0.0
      %3189 = vmatprep.subr.mxu0 0.0
      %3190 = vmatpush1.msra.mxu0 0.0
      %3191 = vmatprep.subr.mxu0 0.0
      %3192 = vmatpush1.msra.mxu0 0.0
      %3193 = vmatprep.subr.mxu0 0.0
      %3194 = vmatpush1.msra.mxu0 0.0
      %3195 = vmatprep.subr.mxu0 0.0
      %3196 = vmatpush1.msra.mxu0 %v3161
      %3197 = vmatprep.subr.mxu0 0.0
      %3198 = vmatpush2.msra.mxu0 0.0
      %3199 = vmatprep.subr.mxu0 0.0
      %3200 = vmatpush2.msra.mxu0 0.0
      %3201 = vmatprep.subr.mxu0 0.0
      %3202 = vmatpush2.msra.mxu0 0.0
      %3203 = vmatprep.subr.mxu0 0.0
      %3204 = vmatpush2.msra.mxu0 0.0
      %3205 = vmatprep.subr.mxu0 0.0
      %3206 = vmatpush2.msra.mxu0 0.0
      %3207 = vmatprep.subr.mxu0 0.0
      %3208 = vmatpush2.msra.mxu0 0.0
      %3209 = vmatprep.subr.mxu0 0.0
      %3210 = vmatpush2.msra.mxu0 0.0
      %3211 = vmatprep.subr.mxu0 0.0
      %3212 = vmatpush2.msra.mxu0 0.0
      %3213 = vmatprep.subr.mxu0 0.0
      %3214 = vmatpush2.msra.mxu0 0.0
      %3215 = vmatprep.subr.mxu0 0.0
      %3216 = vmatpush2.msra.mxu0 0.0
      %3217 = vmatprep.subr.mxu0 0.0
      %3218 = vmatpush2.msra.mxu0 0.0
      %3219 = vmatprep.subr.mxu0 0.0
      %3220 = vmatpush2.msra.mxu0 0.0
      %3221 = vmatprep.subr.mxu0 0.0
      %3222 = vmatpush2.msra.mxu0 0.0
      %3223 = vmatprep.subr.mxu0 0.0
      %3224 = vmatpush2.msra.mxu0 0.0
      %3225 = vmatprep.subr.mxu0 0.0
      %3226 = vmatpush2.msra.mxu0 0.0
      %3227 = vmatprep.subr.mxu0 0.0
      %3228 = vmatpush2.msra.mxu0 0.0
      %3229 = vmatprep.mubr.f32.mxu0 0.0
      %3230 = vmatmul.mubr.f32.gmra.mxu0 %v3163
      %v3231 = vpop.f32.mrf.mxu0
      %v3232 = vadd.f32 0.0, %v3231
      %v3233 = vpop.f32.mrf.mxu0
      %3234 = vdwg.mxu0
      %v3235 = vsub.f32 0.0, %v3232
      %v3236 = vmul.f32 %v3235, 1.442695
      %v3237 = vpow.pop %v3236
      %v3238 = vadd.f32 %v3237, 1.0
      %v3239 = vrcp.pop %v3238
      %v3240 = vmul.f32 1.0, %v3239
      %v3241 = vlaneseq
      %v3242 = vshrl.u32 %v3241, 7
      %v3243 = vsub.s32 0, %v3242
      %v3244 = vrot.slane %v3240, %v3243
      %v3245 = vmul.f32 %v3059, %v3244
      %v3246 = vmul.f32 %v3060, %v3244
      %v3247 = vmul.f32 %v3061, %v3244
      %v3248 = vmul.f32 %v3062, %v3244
      %v3249 = vmul.f32 %v3063, %v3244
      %v3250 = vmul.f32 %v3064, %v3244
      %v3251 = vmul.f32 %v3065, %v3244
      %v3252 = vmul.f32 %v3066, %v3244
      %v3253 = vmul.f32 %v3067, %v3244
      %v3254 = vmul.f32 %v3068, %v3244
      %v3255 = vmul.f32 %v3069, %v3244
      %v3256 = vmul.f32 %v3070, %v3244
      %v3257 = vmul.f32 %v3071, %v3244
      %v3258 = vmul.f32 %v3072, %v3244
      %v3259 = vmul.f32 %v3073, %v3244
      %v3260 = vmul.f32 %v3074, %v3244
      %v3261 = vmul.f32 %v3075, %v3244
      %v3262 = vmul.f32 %v3076, %v3244
      %v3263 = vmul.f32 %v3077, %v3244
      %v3264 = vmul.f32 %v3078, %v3244
      %v3265 = vmul.f32 %v3079, %v3244
      %v3266 = vmul.f32 %v3080, %v3244
      %v3267 = vmul.f32 %v3081, %v3244
      %v3268 = vmul.f32 %v3082, %v3244
      %v3269 = vmul.f32 %v3083, %v3244
      %v3270 = vmul.f32 %v3084, %v3244
      %v3271 = vmul.f32 %v3085, %v3244
      %v3272 = vmul.f32 %v3086, %v3244
      %v3273 = vmul.f32 %v3087, %v3244
      %v3274 = vmul.f32 %v3088, %v3244
      %v3275 = vmul.f32 %v3089, %v3244
      %v3276 = vmul.f32 %v3090, %v3244
      %v3277 = vpack.c.bf16 %v3245, %v3245
      %v3278 = vpack.c.bf16 %v3246, %v3246
      %v3279 = vpack.c.bf16 %v3247, %v3247
      %v3280 = vpack.c.bf16 %v3248, %v3248
      %v3281 = vpack.c.bf16 %v3249, %v3249
      %v3282 = vpack.c.bf16 %v3250, %v3250
      %v3283 = vpack.c.bf16 %v3251, %v3251
      %v3284 = vpack.c.bf16 %v3252, %v3252
      %v3285 = vpack.c.bf16 %v3253, %v3253
      %v3286 = vpack.c.bf16 %v3254, %v3254
      %v3287 = vpack.c.bf16 %v3255, %v3255
      %v3288 = vpack.c.bf16 %v3256, %v3256
      %v3289 = vpack.c.bf16 %v3257, %v3257
      %v3290 = vpack.c.bf16 %v3258, %v3258
      %v3291 = vpack.c.bf16 %v3259, %v3259
      %v3292 = vpack.c.bf16 %v3260, %v3260
      %v3293 = vpack.c.bf16 %v3261, %v3261
      %v3294 = vpack.c.bf16 %v3262, %v3262
      %v3295 = vpack.c.bf16 %v3263, %v3263
      %v3296 = vpack.c.bf16 %v3264, %v3264
      %v3297 = vpack.c.bf16 %v3265, %v3265
      %v3298 = vpack.c.bf16 %v3266, %v3266
      %v3299 = vpack.c.bf16 %v3267, %v3267
      %v3300 = vpack.c.bf16 %v3268, %v3268
      %v3301 = vpack.c.bf16 %v3269, %v3269
      %v3302 = vpack.c.bf16 %v3270, %v3270
      %v3303 = vpack.c.bf16 %v3271, %v3271
      %v3304 = vpack.c.bf16 %v3272, %v3272
      %v3305 = vpack.c.bf16 %v3273, %v3273
      %v3306 = vpack.c.bf16 %v3274, %v3274
      %v3307 = vpack.c.bf16 %v3275, %v3275
      %v3308 = vpack.c.bf16 %v3276, %v3276
      %vm3309 = vcmask 60416
      %3310 = vst.msk [vmem:[%s278] sm:$0xf] %vm3309, %v3277
      %3311 = vst.msk [vmem:[%s278 + $0x4] sm:$0xf] %vm3309, %v3278
      %3312 = vst.msk [vmem:[%s278 + $0x8] sm:$0xf] %vm3309, %v3279
      %3313 = vst.msk [vmem:[%s278 + $0xc] sm:$0xf] %vm3309, %v3280
      %3314 = vst.msk [vmem:[%s278 + $0x10] sm:$0xf] %vm3309, %v3281
      %3315 = vst.msk [vmem:[%s278 + $0x14] sm:$0xf] %vm3309, %v3282
      %3316 = vst.msk [vmem:[%s278 + $0x18] sm:$0xf] %vm3309, %v3283
      %3317 = vst.msk [vmem:[%s278 + $0x1c] sm:$0xf] %vm3309, %v3284
      %3318 = vst.msk [vmem:[%s278 + $0x20] sm:$0xf] %vm3309, %v3285
      %3319 = vst.msk [vmem:[%s278 + $0x24] sm:$0xf] %vm3309, %v3286
      %3320 = vst.msk [vmem:[%s278 + $0x28] sm:$0xf] %vm3309, %v3287
      %3321 = vst.msk [vmem:[%s278 + $0x2c] sm:$0xf] %vm3309, %v3288
      %3322 = vst.msk [vmem:[%s278 + $0x30] sm:$0xf] %vm3309, %v3289
      %3323 = vst.msk [vmem:[%s278 + $0x34] sm:$0xf] %vm3309, %v3290
      %3324 = vst.msk [vmem:[%s278 + $0x38] sm:$0xf] %vm3309, %v3291
      %3325 = vst.msk [vmem:[%s278 + $0x3c] sm:$0xf] %vm3309, %v3292
      %3326 = vst.msk [vmem:[%s278 + $0x40] sm:$0xf] %vm3309, %v3293
      %3327 = vst.msk [vmem:[%s278 + $0x44] sm:$0xf] %vm3309, %v3294
      %3328 = vst.msk [vmem:[%s278 + $0x48] sm:$0xf] %vm3309, %v3295
      %3329 = vst.msk [vmem:[%s278 + $0x4c] sm:$0xf] %vm3309, %v3296
      %3330 = vst.msk [vmem:[%s278 + $0x50] sm:$0xf] %vm3309, %v3297
      %3331 = vst.msk [vmem:[%s278 + $0x54] sm:$0xf] %vm3309, %v3298
      %3332 = vst.msk [vmem:[%s278 + $0x58] sm:$0xf] %vm3309, %v3299
      %3333 = vst.msk [vmem:[%s278 + $0x5c] sm:$0xf] %vm3309, %v3300
      %3334 = vst.msk [vmem:[%s278 + $0x60] sm:$0xf] %vm3309, %v3301
      %3335 = vst.msk [vmem:[%s278 + $0x64] sm:$0xf] %vm3309, %v3302
      %3336 = vst.msk [vmem:[%s278 + $0x68] sm:$0xf] %vm3309, %v3303
      %3337 = vst.msk [vmem:[%s278 + $0x6c] sm:$0xf] %vm3309, %v3304
      %3338 = vst.msk [vmem:[%s278 + $0x70] sm:$0xf] %vm3309, %v3305
      %3339 = vst.msk [vmem:[%s278 + $0x74] sm:$0xf] %vm3309, %v3306
      %3340 = vst.msk [vmem:[%s278 + $0x78] sm:$0xf] %vm3309, %v3307
      %3341 = vst.msk [vmem:[%s278 + $0x7c] sm:$0xf] %vm3309, %v3308
      %p3342 = scmp.lt.s32.totalorder %s18, 1
      %s3343 = scalar_select %p3342, %s18, 1
      %s3344 = smul.addr %s3343, 32
      %s3345 = smul.addr %s3344, 4
      %s3346 = scalar_lea.vmem %s7, %s3345
      // Predicated region
      $region49: #{inception_mixed.6} parent=47 // pred_check
        %p3347 = pneg %p188
      $region50: #{inception_mixed.6} parent=47 // pred_check_branch
        %3349 = sbr.rel (%p3347) target = $region52
      $region51: #{inception_mixed.6} parent=47 // pred_region
        _
      $region52: #{inception_mixed.6} parent=47 // pred_fallthru
        _
    $region48: #{inception_mixed.6} parent=5 // pred_fallthru
      _
    %p3350 = scmp.le.s32.totalorder 2, %s13
    // Predicated region
    $region53: #{inception_mixed.6} parent=5 // pred_check
      %p3351 = pneg %p3350
    $region54: #{inception_mixed.6} parent=5 // pred_check_branch
      %3353 = sbr.rel (%p3351) target = $region56
    $region55: #{inception_mixed.6} parent=5 // pred_region
      %s3354 = ssub.s32 %s13, 2
      // Predicated region
      $region57: #{inception_mixed.6} parent=55 // pred_check
        %p3355 = pneg %p194
      $region58: #{inception_mixed.6} parent=55 // pred_check_branch
        %3357 = sbr.rel (%p3355) target = $region60
      $region59: #{inception_mixed.6} parent=55 // pred_region
        %p3358 = scmp.lt.s32.totalorder %s19, 1
        %s3359 = scalar_select %p3358, %s19, 1
        %s3360 = smul.addr %s3359, 32
        %s3361 = smul.addr %s3360, 4
        %s3362 = scalar_lea.vmem %s7, %s3361
      $region60: #{inception_mixed.6} parent=55 // pred_fallthru
        _
    $region56: #{inception_mixed.6} parent=5 // pred_fallthru
      _
  $region6: #{inception_mixed.6} parent=0 // loop_footer
    %s17 = sadd.s32 1, %s13
  $region7: #{inception_mixed.6} parent=0 // loop_footer_branch
    %12 = sbr.rel target = $region3
  $region8: #{inception_mixed.6} parent=0 // loop_exit
    _

</llo_original>
